<compile_context>
chip_gen: v5e
topology: v5e:2x2
jax: 0.10.0
libtpu: 0.0.40
codegen_flags: <defaults>
</compile_context>

<pallas_src>
import numpy as np
import jax
import jax.numpy as jnp
from jax import lax
from jax.experimental import pallas as pl
from jax.experimental.pallas import tpu as pltpu

# -----------------------------------------------------------------------------
# Config (BasicLayer hyper-parameters, small but shape-consistent)
# -----------------------------------------------------------------------------
B = 2                       # batch
H = W = 8                   # input_resolution
C = 32                      # dim
DEPTH = 2                   # number of SwinTransformerBlocks
NUM_HEADS = 4
WINDOW = 4                  # window_size (< min(H, W) so it is kept)
SHIFTS = tuple(0 if i % 2 == 0 else WINDOW // 2 for i in range(DEPTH))
MLP_RATIO = 4
HIDDEN = C * MLP_RATIO
HEAD_DIM = C // NUM_HEADS
SCALE = HEAD_DIM ** (-0.5)
L = H * W
NWIN = (H // WINDOW) * (W // WINDOW)       # windows per image
NTOK = WINDOW * WINDOW                     # tokens per window
EPS = 1e-5                                 # LayerNorm eps (PyTorch default)


# -----------------------------------------------------------------------------
# In-kernel helpers (all operate on VMEM values, fully static shapes)
# -----------------------------------------------------------------------------
def _layer_norm(x, g, b):
    mu = jnp.mean(x, axis=-1, keepdims=True)
    var = jnp.mean(jnp.square(x - mu), axis=-1, keepdims=True)
    return (x - mu) * lax.rsqrt(var + EPS) * g + b


def _gelu(x):
    # TODO(synk): PyTorch nn.GELU defaults to the exact erf form; the tanh
    # approximation used here differs by <~1e-3 and lowers cleanly to the EUP.
    c = float(np.sqrt(2.0 / np.pi))
    return 0.5 * x * (1.0 + jnp.tanh(c * (x + 0.044715 * x * x * x)))


def _roll2d(xs, sh, sw):
    """torch.roll(xs, (sh, sw), dims=(0, 1)) with static shifts via concat."""
    if sh % xs.shape[0] != 0:
        s = sh % xs.shape[0]
        xs = jnp.concatenate([xs[xs.shape[0] - s:], xs[:xs.shape[0] - s]], axis=0)
    if sw % xs.shape[1] != 0:
        s = sw % xs.shape[1]
        xs = jnp.concatenate([xs[:, xs.shape[1] - s:], xs[:, :xs.shape[1] - s]],
                             axis=1)
    return xs


def _window_partition(xs):
    """(H, W, C) -> (nW*N, C); window order row-major over (hi, wj)."""
    rows = []
    for hi in range(H // WINDOW):
        for wj in range(W // WINDOW):
            blk = xs[hi * WINDOW:(hi + 1) * WINDOW,
                     wj * WINDOW:(wj + 1) * WINDOW, :]
            rows.append(blk.reshape(NTOK, C))
    return jnp.concatenate(rows, axis=0)


def _window_reverse(xw2d):
    """(nW*N, C) -> (H, W, C)."""
    rows = []
    for hi in range(H // WINDOW):
        row = []
        for wj in range(W // WINDOW):
            w_idx = hi * (W // WINDOW) + wj
            row.append(xw2d[w_idx * NTOK:(w_idx + 1) * NTOK, :]
                       .reshape(WINDOW, WINDOW, C))
        rows.append(jnp.concatenate(row, axis=1))
    return jnp.concatenate(rows, axis=0)


def _window_attention(xw2d, qkv_w, qkv_b, proj_w, proj_b, bias_ref, blk):
    """Window MHSA.  bias_ref holds rel-pos bias (+ shift mask) pre-combined
    per (block, head): shape (DEPTH*NUM_HEADS, nW, N, N)."""
    qkv = jnp.dot(xw2d, qkv_w, preferred_element_type=jnp.float32) + qkv_b
    q = qkv[:, :C] * SCALE
    k = qkv[:, C:2 * C]
    v = qkv[:, 2 * C:]

    head_outs = []
    for h in range(NUM_HEADS):
        sl = slice(h * HEAD_DIM, (h + 1) * HEAD_DIM)
        qh = q[:, sl].reshape(NWIN, NTOK, HEAD_DIM)
        kh = k[:, sl].reshape(NWIN, NTOK, HEAD_DIM)
        vh = v[:, sl].reshape(NWIN, NTOK, HEAD_DIM)
        attn = jnp.einsum('wnd,wmd->wnm', qh, kh,
                          preferred_element_type=jnp.float32)      # (nW,N,N)
        attn = attn + bias_ref[blk * NUM_HEADS + h]                # bias+mask
        attn = attn - jnp.max(attn, axis=-1, keepdims=True)
        p = jnp.exp(attn)
        p = p * pl.reciprocal(jnp.sum(p, axis=-1, keepdims=True), approx=True)
        oh = jnp.einsum('wnm,wmd->wnd', p, vh,
                        preferred_element_type=jnp.float32)        # (nW,N,hd)
        head_outs.append(oh.reshape(NWIN * NTOK, HEAD_DIM))

    out = jnp.concatenate(head_outs, axis=-1)                      # (nW*N, C)
    return jnp.dot(out, proj_w, preferred_element_type=jnp.float32) + proj_b


# -----------------------------------------------------------------------------
# The single fused kernel: one batch element per grid step, both blocks inline
# -----------------------------------------------------------------------------
def _basic_layer_kernel(x_ref, n1g_ref, n1b_ref, qkvw_ref, qkvb_ref,
                        projw_ref, projb_ref, n2g_ref, n2b_ref,
                        fc1w_ref, fc1b_ref, fc2w_ref, fc2b_ref,
                        bias_ref, o_ref):
    x = x_ref[0]                                                   # (L, C)

    for blk in range(DEPTH):                                       # unrolled
        shift = SHIFTS[blk]

        # --- W-MSA / SW-MSA branch ---------------------------------------
        shortcut = x
        xn = _layer_norm(x, n1g_ref[blk], n1b_ref[blk])
        xs = xn.reshape(H, W, C)
        if shift > 0:
            xs = _roll2d(xs, -shift, -shift)
        xw = _window_partition(xs)                                 # (nW*N, C)
        xw = _window_attention(xw, qkvw_ref[blk], qkvb_ref[blk],
                               projw_ref[blk], projb_ref[blk],
                               bias_ref, blk)
        xs = _window_reverse(xw)                                   # (H, W, C)
        if shift > 0:
            xs = _roll2d(xs, shift, shift)
        x = shortcut + xs.reshape(L, C)

        # --- MLP branch ----------------------------------------------------
        xn = _layer_norm(x, n2g_ref[blk], n2b_ref[blk])
        hid = _gelu(jnp.dot(xn, fc1w_ref[blk],
                            preferred_element_type=jnp.float32) + fc1b_ref[blk])
        x = x + jnp.dot(hid, fc2w_ref[blk],
                        preferred_element_type=jnp.float32) + fc2b_ref[blk]

    o_ref[0] = x


def _full_spec(shape):
    zeros = (0,) * len(shape)
    return pl.BlockSpec(tuple(shape), lambda n: zeros)


def basic_layer_forward(params, x):
    b, l, c = x.shape
    args = (x,
            params["norm1_g"], params["norm1_b"],
            params["qkv_w"], params["qkv_b"],
            params["proj_w"], params["proj_b"],
            params["norm2_g"], params["norm2_b"],
            params["fc1_w"], params["fc1_b"],
            params["fc2_w"], params["fc2_b"],
            params["attn_bias"])
    in_specs = ([pl.BlockSpec((1, l, c), lambda n: (n, 0, 0))]
                + [_full_spec(a.shape) for a in args[1:]])
    return pl.pallas_call(
        _basic_layer_kernel,
        out_shape=jax.ShapeDtypeStruct((b, l, c), jnp.float32),
        grid=(b,),
        in_specs=in_specs,
        out_specs=pl.BlockSpec((1, l, c), lambda n: (n, 0, 0)),
        compiler_params=pltpu.CompilerParams(
            dimension_semantics=("parallel",)),
    )(*args)


# -----------------------------------------------------------------------------
# Host-side constants: relative-position index / bias gather, shift mask
# -----------------------------------------------------------------------------
def _relative_position_index():
    coords = np.stack(np.meshgrid(np.arange(WINDOW), np.arange(WINDOW),
                                  indexing="ij"))                  # (2,ws,ws)
    coords = coords.reshape(2, -1)                                 # (2, N)
    rel = coords[:, :, None] - coords[:, None, :]                  # (2, N, N)
    rel = rel.transpose(1, 2, 0).astype(np.int64)                  # (N, N, 2)
    rel[:, :, 0] += WINDOW - 1
    rel[:, :, 1] += WINDOW - 1
    rel[:, :, 0] *= 2 * WINDOW - 1
    return rel.sum(-1)                                             # (N, N)


def _shift_attn_mask():
    shift = WINDOW // 2
    img = np.zeros((H, W), np.float32)
    cnt = 0
    slices = (slice(0, -WINDOW), slice(-WINDOW, -shift), slice(-shift, None))
    for hs in slices:
        for ws_ in slices:
            img[hs, ws_] = cnt
            cnt += 1
    mw = img.reshape(H // WINDOW, WINDOW, W // WINDOW, WINDOW)
    mw = mw.transpose(0, 2, 1, 3).reshape(-1, NTOK)                # (nW, N)
    diff = mw[:, None, :] - mw[:, :, None]                         # (nW, N, N)
    return np.where(diff != 0, -100.0, 0.0).astype(np.float32)


# -----------------------------------------------------------------------------
# Parameters (deterministic synthetic init; weights stored as (in, out))
# -----------------------------------------------------------------------------
def init_params(key):
    ks = jax.random.split(key, 16)

    def p(k, shape, s=0.05):
        return s * jax.random.normal(k, shape, jnp.float32)

    params = {
        "norm1_g": 1.0 + p(ks[0], (DEPTH, 1, C), 0.1),
        "norm1_b": p(ks[1], (DEPTH, 1, C)),
        "norm2_g": 1.0 + p(ks[2], (DEPTH, 1, C), 0.1),
        "norm2_b": p(ks[3], (DEPTH, 1, C)),
        "qkv_w": p(ks[4], (DEPTH, C, 3 * C)),
        "qkv_b": p(ks[5], (DEPTH, 1, 3 * C)),
        "proj_w": p(ks[6], (DEPTH, C, C)),
        "proj_b": p(ks[7], (DEPTH, 1, C)),
        "fc1_w": p(ks[8], (DEPTH, C, HIDDEN)),
        "fc1_b": p(ks[9], (DEPTH, 1, HIDDEN)),
        "fc2_w": p(ks[10], (DEPTH, HIDDEN, C)),
        "fc2_b": p(ks[11], (DEPTH, 1, C)),
    }
    table = 0.02 * jax.random.normal(
        ks[12], (DEPTH, (2 * WINDOW - 1) ** 2, NUM_HEADS), jnp.float32)
    idx = _relative_position_index().reshape(-1)                   # (N*N,)
    bias = table[:, idx, :].reshape(DEPTH, NTOK, NTOK, NUM_HEADS)
    rel_bias = jnp.transpose(bias, (0, 3, 1, 2))                   # (D,nH,N,N)
    attn_mask = jnp.asarray(_shift_attn_mask())                    # (nW,N,N)
    params["rel_bias"] = rel_bias            # raw pieces, used by the reference
    params["attn_mask"] = attn_mask

    # Fold shift mask into the relative-position bias once, host-side:
    # comb[d, h, w] = rel_bias[d, h] + (mask[w] if block d is shifted else 0).
    mask_per_blk = jnp.stack(
        [attn_mask if SHIFTS[d] > 0 else jnp.zeros_like(attn_mask)
         for d in range(DEPTH)])                                   # (D,nW,N,N)
    comb = (jnp.broadcast_to(rel_bias[:, :, None],
                             (DEPTH, NUM_HEADS, NWIN, NTOK, NTOK))
            + mask_per_blk[:, None])
    params["attn_bias"] = comb.reshape(DEPTH * NUM_HEADS, NWIN, NTOK, NTOK)
    return params


# -----------------------------------------------------------------------------
# Pure-JAX reference (full precision) for correctness check
# -----------------------------------------------------------------------------
def basic_layer_ref(params, x):
    hp = lax.Precision.HIGHEST

    def layer_norm(v, g, b):
        mu = v.mean(-1, keepdims=True)
        var = ((v - mu) ** 2).mean(-1, keepdims=True)
        return (v - mu) / jnp.sqrt(var + EPS) * g + b

    def gelu(v):
        c = float(np.sqrt(2.0 / np.pi))
        return 0.5 * v * (1.0 + jnp.tanh(c * (v + 0.044715 * v ** 3)))

    for blk in range(DEPTH):
        shift = SHIFTS[blk]
        shortcut = x
        xn = layer_norm(x, params["norm1_g"][blk], params["norm1_b"][blk])
        xs = xn.reshape(B, H, W, C)
        if shift:
            xs = jnp.roll(xs, (-shift, -shift), axis=(1, 2))
        xw = xs.reshape(B, H // WINDOW, WINDOW, W // WINDOW, WINDOW, C)
        xw = xw.transpose(0, 1, 3, 2, 4, 5).reshape(B * NWIN, NTOK, C)

        qkv = jnp.einsum('bnc,cd->bnd', xw, params["qkv_w"][blk],
                         precision=hp) + params["qkv_b"][blk]
        qkv = qkv.reshape(B * NWIN, NTOK, 3, NUM_HEADS, HEAD_DIM)
        qkv = qkv.transpose(2, 0, 3, 1, 4)
        q, k, v = qkv[0] * SCALE, qkv[1], qkv[2]
        attn = jnp.einsum('bhnd,bhmd->bhnm', q, k, precision=hp)
        attn = attn + params["rel_bias"][blk][None]
        if shift:
            mask = params["attn_mask"]
            attn = (attn.reshape(B, NWIN, NUM_HEADS, NTOK, NTOK)
                    + mask[None, :, None]).reshape(B * NWIN, NUM_HEADS,
                                                   NTOK, NTOK)
        attn = jax.nn.softmax(attn, axis=-1)
        out = jnp.einsum('bhnm,bhmd->bhnd', attn, v, precision=hp)
        out = out.transpose(0, 2, 1, 3).reshape(B * NWIN, NTOK, C)
        out = jnp.einsum('bnc,cd->bnd', out, params["proj_w"][blk],
                         precision=hp) + params["proj_b"][blk]

        xs = out.reshape(B, H // WINDOW, W // WINDOW, WINDOW, WINDOW, C)
        xs = xs.transpose(0, 1, 3, 2, 4, 5).reshape(B, H, W, C)
        if shift:
            xs = jnp.roll(xs, (shift, shift), axis=(1, 2))
        x = shortcut + xs.reshape(B, L, C)

        xn = layer_norm(x, params["norm2_g"][blk], params["norm2_b"][blk])
        hid = gelu(jnp.einsum('blc,cd->bld', xn, params["fc1_w"][blk],
                              precision=hp) + params["fc1_b"][blk])
        x = x + jnp.einsum('bld,dc->blc', hid, params["fc2_w"][blk],
                           precision=hp) + params["fc2_b"][blk]
    return x


# -----------------------------------------------------------------------------
if __name__ == "__main__":
    key = jax.random.PRNGKey(0)
    kx, kp = jax.random.split(key)
    x = jax.random.normal(kx, (B, L, C), jnp.float32)
    params = init_params(kp)

    out = basic_layer_forward(params, x)
    out = jax.block_until_ready(out)
    assert out.shape == (B, L, C)

    ref = basic_layer_ref(params, x)
    np.testing.assert_allclose(np.asarray(out), np.asarray(ref),
                               rtol=2e-2, atol=2e-2)
    print("KERNEL_OK")
</pallas_src>

<mosaic_0001>
module attributes {stable_mosaic.version = 11 : i64} {
  func.func @_basic_layer_kernel(%arg0: i32, %arg1: memref<1x64x32xf32, #tpu.memory_space<vmem>>, %arg2: memref<2x1x32xf32, #tpu.memory_space<vmem>>, %arg3: memref<2x1x32xf32, #tpu.memory_space<vmem>>, %arg4: memref<2x32x96xf32, #tpu.memory_space<vmem>>, %arg5: memref<2x1x96xf32, #tpu.memory_space<vmem>>, %arg6: memref<2x32x32xf32, #tpu.memory_space<vmem>>, %arg7: memref<2x1x32xf32, #tpu.memory_space<vmem>>, %arg8: memref<2x1x32xf32, #tpu.memory_space<vmem>>, %arg9: memref<2x1x32xf32, #tpu.memory_space<vmem>>, %arg10: memref<2x32x128xf32, #tpu.memory_space<vmem>>, %arg11: memref<2x1x128xf32, #tpu.memory_space<vmem>>, %arg12: memref<2x128x32xf32, #tpu.memory_space<vmem>>, %arg13: memref<2x1x32xf32, #tpu.memory_space<vmem>>, %arg14: memref<8x4x16x16xf32, #tpu.memory_space<vmem>>, %arg15: memref<1x64x32xf32, #tpu.memory_space<vmem>>) attributes {dimension_semantics = [#tpu.dimension_semantics<parallel>], iteration_bounds = array<i64: 2>, scalar_prefetch = 0 : i64, scratch_operands = 0 : i64, tpu.core_type = #tpu.core_type<tc>, window_params = [{transform_indices = @transform_0, window_bounds = array<i64: 1, 64, 32>}, {pipeline_mode = #tpu.pipeline_mode<synchronous>, transform_indices = @transform_1, window_bounds = array<i64: 2, 1, 32>}, {pipeline_mode = #tpu.pipeline_mode<synchronous>, transform_indices = @transform_2, window_bounds = array<i64: 2, 1, 32>}, {pipeline_mode = #tpu.pipeline_mode<synchronous>, transform_indices = @transform_3, window_bounds = array<i64: 2, 32, 96>}, {pipeline_mode = #tpu.pipeline_mode<synchronous>, transform_indices = @transform_4, window_bounds = array<i64: 2, 1, 96>}, {pipeline_mode = #tpu.pipeline_mode<synchronous>, transform_indices = @transform_5, window_bounds = array<i64: 2, 32, 32>}, {pipeline_mode = #tpu.pipeline_mode<synchronous>, transform_indices = @transform_6, window_bounds = array<i64: 2, 1, 32>}, {pipeline_mode = #tpu.pipeline_mode<synchronous>, transform_indices = @transform_7, window_bounds = array<i64: 2, 1, 32>}, {pipeline_mode = #tpu.pipeline_mode<synchronous>, transform_indices = @transform_8, window_bounds = array<i64: 2, 1, 32>}, {pipeline_mode = #tpu.pipeline_mode<synchronous>, transform_indices = @transform_9, window_bounds = array<i64: 2, 32, 128>}, {pipeline_mode = #tpu.pipeline_mode<synchronous>, transform_indices = @transform_10, window_bounds = array<i64: 2, 1, 128>}, {pipeline_mode = #tpu.pipeline_mode<synchronous>, transform_indices = @transform_11, window_bounds = array<i64: 2, 128, 32>}, {pipeline_mode = #tpu.pipeline_mode<synchronous>, transform_indices = @transform_12, window_bounds = array<i64: 2, 1, 32>}, {pipeline_mode = #tpu.pipeline_mode<synchronous>, transform_indices = @transform_13, window_bounds = array<i64: 8, 4, 16, 16>}, {transform_indices = @transform_14, window_bounds = array<i64: 1, 64, 32>}]} {
    %c0 = arith.constant 0 : index
    %c0_0 = arith.constant 0 : index
    %c0_1 = arith.constant 0 : index
    %0 = vector.load %arg1[%c0, %c0_0, %c0_1] : memref<1x64x32xf32, #tpu.memory_space<vmem>>, vector<1x64x32xf32>
    %1 = vector.shape_cast %0 : vector<1x64x32xf32> to vector<64x32xf32>
    %c0_2 = arith.constant 0 : index
    %c0_3 = arith.constant 0 : index
    %c0_4 = arith.constant 0 : index
    %2 = vector.load %arg2[%c0_2, %c0_3, %c0_4] : memref<2x1x32xf32, #tpu.memory_space<vmem>>, vector<1x1x32xf32>
    %3 = vector.shape_cast %2 : vector<1x1x32xf32> to vector<1x32xf32>
    %c0_5 = arith.constant 0 : index
    %c0_6 = arith.constant 0 : index
    %c0_7 = arith.constant 0 : index
    %4 = vector.load %arg3[%c0_5, %c0_6, %c0_7] : memref<2x1x32xf32, #tpu.memory_space<vmem>>, vector<1x1x32xf32>
    %5 = vector.shape_cast %4 : vector<1x1x32xf32> to vector<1x32xf32>
    %cst = arith.constant dense<0.000000e+00> : vector<64xf32>
    %6 = vector.multi_reduction <add>, %1, %cst [1] : vector<64x32xf32> to vector<64xf32>
    %7 = vector.shape_cast %6 : vector<64xf32> to vector<64x1xf32>
    %cst_8 = arith.constant 3.200000e+01 : f32
    %8 = vector.broadcast %cst_8 : f32 to vector<64x1xf32>
    %9 = arith.divf %7, %8 : vector<64x1xf32>
    %10 = vector.broadcast %9 : vector<64x1xf32> to vector<64x32xf32>
    %11 = arith.subf %1, %10 : vector<64x32xf32>
    %12 = arith.mulf %11, %11 : vector<64x32xf32>
    %cst_9 = arith.constant dense<0.000000e+00> : vector<64xf32>
    %13 = vector.multi_reduction <add>, %12, %cst_9 [1] : vector<64x32xf32> to vector<64xf32>
    %14 = vector.shape_cast %13 : vector<64xf32> to vector<64x1xf32>
    %cst_10 = arith.constant 3.200000e+01 : f32
    %15 = vector.broadcast %cst_10 : f32 to vector<64x1xf32>
    %16 = arith.divf %14, %15 : vector<64x1xf32>
    %17 = vector.broadcast %9 : vector<64x1xf32> to vector<64x32xf32>
    %18 = arith.subf %1, %17 : vector<64x32xf32>
    %cst_11 = arith.constant 9.99999974E-6 : f32
    %19 = vector.broadcast %cst_11 : f32 to vector<64x1xf32>
    %20 = arith.addf %16, %19 : vector<64x1xf32>
    %21 = math.rsqrt %20 : vector<64x1xf32>
    %22 = vector.broadcast %21 : vector<64x1xf32> to vector<64x32xf32>
    %23 = arith.mulf %18, %22 : vector<64x32xf32>
    %24 = vector.broadcast %3 : vector<1x32xf32> to vector<64x32xf32>
    %25 = arith.mulf %23, %24 : vector<64x32xf32>
    %26 = vector.broadcast %5 : vector<1x32xf32> to vector<64x32xf32>
    %27 = arith.addf %25, %26 : vector<64x32xf32>
    %28 = vector.shape_cast %27 : vector<64x32xf32> to vector<8x8x32xf32>
    %29 = vector.extract_strided_slice %28 {offsets = [0, 0, 0], sizes = [4, 4, 32], strides = [1, 1, 1]} : vector<8x8x32xf32> to vector<4x4x32xf32>
    %30 = vector.shape_cast %29 : vector<4x4x32xf32> to vector<16x32xf32>
    %31 = vector.extract_strided_slice %28 {offsets = [0, 4, 0], sizes = [4, 4, 32], strides = [1, 1, 1]} : vector<8x8x32xf32> to vector<4x4x32xf32>
    %32 = vector.shape_cast %31 : vector<4x4x32xf32> to vector<16x32xf32>
    %33 = vector.extract_strided_slice %28 {offsets = [4, 0, 0], sizes = [4, 4, 32], strides = [1, 1, 1]} : vector<8x8x32xf32> to vector<4x4x32xf32>
    %34 = vector.shape_cast %33 : vector<4x4x32xf32> to vector<16x32xf32>
    %35 = vector.extract_strided_slice %28 {offsets = [4, 4, 0], sizes = [4, 4, 32], strides = [1, 1, 1]} : vector<8x8x32xf32> to vector<4x4x32xf32>
    %36 = vector.shape_cast %35 : vector<4x4x32xf32> to vector<16x32xf32>
    %37 = tpu.concatenate %30, %32, %34, %36 in 0 : vector<16x32xf32>, vector<16x32xf32>, vector<16x32xf32>, vector<16x32xf32> -> vector<64x32xf32>
    %c0_12 = arith.constant 0 : index
    %c0_13 = arith.constant 0 : index
    %c0_14 = arith.constant 0 : index
    %38 = vector.load %arg4[%c0_12, %c0_13, %c0_14] : memref<2x32x96xf32, #tpu.memory_space<vmem>>, vector<1x32x96xf32>
    %39 = vector.shape_cast %38 : vector<1x32x96xf32> to vector<32x96xf32>
    %c0_15 = arith.constant 0 : index
    %c0_16 = arith.constant 0 : index
    %c0_17 = arith.constant 0 : index
    %40 = vector.load %arg5[%c0_15, %c0_16, %c0_17] : memref<2x1x96xf32, #tpu.memory_space<vmem>>, vector<1x1x96xf32>
    %41 = vector.shape_cast %40 : vector<1x1x96xf32> to vector<1x96xf32>
    %c0_18 = arith.constant 0 : index
    %c0_19 = arith.constant 0 : index
    %c0_20 = arith.constant 0 : index
    %42 = vector.load %arg6[%c0_18, %c0_19, %c0_20] : memref<2x32x32xf32, #tpu.memory_space<vmem>>, vector<1x32x32xf32>
    %43 = vector.shape_cast %42 : vector<1x32x32xf32> to vector<32x32xf32>
    %c0_21 = arith.constant 0 : index
    %c0_22 = arith.constant 0 : index
    %c0_23 = arith.constant 0 : index
    %44 = vector.load %arg7[%c0_21, %c0_22, %c0_23] : memref<2x1x32xf32, #tpu.memory_space<vmem>>, vector<1x1x32xf32>
    %45 = vector.shape_cast %44 : vector<1x1x32xf32> to vector<1x32xf32>
    %cst_24 = arith.constant dense<0.000000e+00> : vector<64x96xf32>
    %46 = tpu.matmul %37, %39, %cst_24 {dimension_numbers = #tpu.dot_dimension_numbers<[1], [0], [0], [1], [0, 0, 1, 1], [], []>} : vector<64x32xf32>, vector<32x96xf32>, vector<64x96xf32> -> vector<64x96xf32>
    %47 = vector.broadcast %41 : vector<1x96xf32> to vector<64x96xf32>
    %48 = arith.addf %46, %47 : vector<64x96xf32>
    %49 = vector.extract_strided_slice %48 {offsets = [0, 0], sizes = [64, 32], strides = [1, 1]} : vector<64x96xf32> to vector<64x32xf32>
    %cst_25 = arith.constant 0.353553385 : f32
    %50 = vector.broadcast %cst_25 : f32 to vector<64x32xf32>
    %51 = arith.mulf %49, %50 : vector<64x32xf32>
    %52 = vector.extract_strided_slice %48 {offsets = [0, 32], sizes = [64, 32], strides = [1, 1]} : vector<64x96xf32> to vector<64x32xf32>
    %53 = vector.extract_strided_slice %48 {offsets = [0, 64], sizes = [64, 32], strides = [1, 1]} : vector<64x96xf32> to vector<64x32xf32>
    %54 = vector.extract_strided_slice %51 {offsets = [0, 0], sizes = [64, 8], strides = [1, 1]} : vector<64x32xf32> to vector<64x8xf32>
    %55 = vector.shape_cast %54 : vector<64x8xf32> to vector<4x16x8xf32>
    %56 = vector.extract_strided_slice %52 {offsets = [0, 0], sizes = [64, 8], strides = [1, 1]} : vector<64x32xf32> to vector<64x8xf32>
    %57 = vector.shape_cast %56 : vector<64x8xf32> to vector<4x16x8xf32>
    %58 = vector.extract_strided_slice %53 {offsets = [0, 0], sizes = [64, 8], strides = [1, 1]} : vector<64x32xf32> to vector<64x8xf32>
    %59 = vector.shape_cast %58 : vector<64x8xf32> to vector<4x16x8xf32>
    "tpu.trace_start"() <{level = 10 : i32, message = "wnd,wmd->wnm"}> : () -> ()
    %cst_26 = arith.constant dense<0.000000e+00> : vector<4x16x16xf32>
    %60 = tpu.matmul %55, %57, %cst_26 {dimension_numbers = #tpu.dot_dimension_numbers<[2], [2], [1], [1], [0, 0, 0, 1, 1, 1], [0], [0]>} : vector<4x16x8xf32>, vector<4x16x8xf32>, vector<4x16x16xf32> -> vector<4x16x16xf32>
    "tpu.trace_stop"() : () -> ()
    %c0_27 = arith.constant 0 : index
    %c0_28 = arith.constant 0 : index
    %c0_29 = arith.constant 0 : index
    %c0_30 = arith.constant 0 : index
    %61 = vector.load %arg14[%c0_27, %c0_28, %c0_29, %c0_30] : memref<8x4x16x16xf32, #tpu.memory_space<vmem>>, vector<1x4x16x16xf32>
    %62 = vector.shape_cast %61 : vector<1x4x16x16xf32> to vector<4x16x16xf32>
    %63 = arith.addf %60, %62 : vector<4x16x16xf32>
    %cst_31 = arith.constant dense<0xFF800000> : vector<4x16xf32>
    %64 = vector.multi_reduction <maximumf>, %63, %cst_31 [2] : vector<4x16x16xf32> to vector<4x16xf32>
    %65 = vector.shape_cast %64 : vector<4x16xf32> to vector<4x16x1xf32>
    %66 = vector.broadcast %65 : vector<4x16x1xf32> to vector<4x16x16xf32>
    %67 = arith.subf %63, %66 : vector<4x16x16xf32>
    %68 = math.exp %67 : vector<4x16x16xf32>
    %cst_32 = arith.constant dense<0.000000e+00> : vector<4x16xf32>
    %69 = vector.multi_reduction <add>, %68, %cst_32 [2] : vector<4x16x16xf32> to vector<4x16xf32>
    %70 = vector.shape_cast %69 : vector<4x16xf32> to vector<4x16x1xf32>
    %71 = tpu.reciprocal %70 {approx = true} : vector<4x16x1xf32> -> vector<4x16x1xf32>
    %72 = vector.broadcast %71 : vector<4x16x1xf32> to vector<4x16x16xf32>
    %73 = arith.mulf %68, %72 : vector<4x16x16xf32>
    "tpu.trace_start"() <{level = 10 : i32, message = "wnm,wmd->wnd"}> : () -> ()
    %cst_33 = arith.constant dense<0.000000e+00> : vector<4x16x8xf32>
    %74 = tpu.matmul %73, %59, %cst_33 {dimension_numbers = #tpu.dot_dimension_numbers<[2], [1], [1], [2], [0, 0, 0, 1, 1, 2], [0], [0]>} : vector<4x16x16xf32>, vector<4x16x8xf32>, vector<4x16x8xf32> -> vector<4x16x8xf32>
    "tpu.trace_stop"() : () -> ()
    %75 = vector.shape_cast %74 : vector<4x16x8xf32> to vector<64x8xf32>
    %76 = vector.extract_strided_slice %51 {offsets = [0, 8], sizes = [64, 8], strides = [1, 1]} : vector<64x32xf32> to vector<64x8xf32>
    %77 = vector.shape_cast %76 : vector<64x8xf32> to vector<4x16x8xf32>
    %78 = vector.extract_strided_slice %52 {offsets = [0, 8], sizes = [64, 8], strides = [1, 1]} : vector<64x32xf32> to vector<64x8xf32>
    %79 = vector.shape_cast %78 : vector<64x8xf32> to vector<4x16x8xf32>
    %80 = vector.extract_strided_slice %53 {offsets = [0, 8], sizes = [64, 8], strides = [1, 1]} : vector<64x32xf32> to vector<64x8xf32>
    %81 = vector.shape_cast %80 : vector<64x8xf32> to vector<4x16x8xf32>
    "tpu.trace_start"() <{level = 10 : i32, message = "wnd,wmd->wnm"}> : () -> ()
    %cst_34 = arith.constant dense<0.000000e+00> : vector<4x16x16xf32>
    %82 = tpu.matmul %77, %79, %cst_34 {dimension_numbers = #tpu.dot_dimension_numbers<[2], [2], [1], [1], [0, 0, 0, 1, 1, 1], [0], [0]>} : vector<4x16x8xf32>, vector<4x16x8xf32>, vector<4x16x16xf32> -> vector<4x16x16xf32>
    "tpu.trace_stop"() : () -> ()
    %c1 = arith.constant 1 : index
    %c0_35 = arith.constant 0 : index
    %c0_36 = arith.constant 0 : index
    %c0_37 = arith.constant 0 : index
    %83 = vector.load %arg14[%c1, %c0_35, %c0_36, %c0_37] : memref<8x4x16x16xf32, #tpu.memory_space<vmem>>, vector<1x4x16x16xf32>
    %84 = vector.shape_cast %83 : vector<1x4x16x16xf32> to vector<4x16x16xf32>
    %85 = arith.addf %82, %84 : vector<4x16x16xf32>
    %cst_38 = arith.constant dense<0xFF800000> : vector<4x16xf32>
    %86 = vector.multi_reduction <maximumf>, %85, %cst_38 [2] : vector<4x16x16xf32> to vector<4x16xf32>
    %87 = vector.shape_cast %86 : vector<4x16xf32> to vector<4x16x1xf32>
    %88 = vector.broadcast %87 : vector<4x16x1xf32> to vector<4x16x16xf32>
    %89 = arith.subf %85, %88 : vector<4x16x16xf32>
    %90 = math.exp %89 : vector<4x16x16xf32>
    %cst_39 = arith.constant dense<0.000000e+00> : vector<4x16xf32>
    %91 = vector.multi_reduction <add>, %90, %cst_39 [2] : vector<4x16x16xf32> to vector<4x16xf32>
    %92 = vector.shape_cast %91 : vector<4x16xf32> to vector<4x16x1xf32>
    %93 = tpu.reciprocal %92 {approx = true} : vector<4x16x1xf32> -> vector<4x16x1xf32>
    %94 = vector.broadcast %93 : vector<4x16x1xf32> to vector<4x16x16xf32>
    %95 = arith.mulf %90, %94 : vector<4x16x16xf32>
    "tpu.trace_start"() <{level = 10 : i32, message = "wnm,wmd->wnd"}> : () -> ()
    %cst_40 = arith.constant dense<0.000000e+00> : vector<4x16x8xf32>
    %96 = tpu.matmul %95, %81, %cst_40 {dimension_numbers = #tpu.dot_dimension_numbers<[2], [1], [1], [2], [0, 0, 0, 1, 1, 2], [0], [0]>} : vector<4x16x16xf32>, vector<4x16x8xf32>, vector<4x16x8xf32> -> vector<4x16x8xf32>
    "tpu.trace_stop"() : () -> ()
    %97 = vector.shape_cast %96 : vector<4x16x8xf32> to vector<64x8xf32>
    %98 = vector.extract_strided_slice %51 {offsets = [0, 16], sizes = [64, 8], strides = [1, 1]} : vector<64x32xf32> to vector<64x8xf32>
    %99 = vector.shape_cast %98 : vector<64x8xf32> to vector<4x16x8xf32>
    %100 = vector.extract_strided_slice %52 {offsets = [0, 16], sizes = [64, 8], strides = [1, 1]} : vector<64x32xf32> to vector<64x8xf32>
    %101 = vector.shape_cast %100 : vector<64x8xf32> to vector<4x16x8xf32>
    %102 = vector.extract_strided_slice %53 {offsets = [0, 16], sizes = [64, 8], strides = [1, 1]} : vector<64x32xf32> to vector<64x8xf32>
    %103 = vector.shape_cast %102 : vector<64x8xf32> to vector<4x16x8xf32>
    "tpu.trace_start"() <{level = 10 : i32, message = "wnd,wmd->wnm"}> : () -> ()
    %cst_41 = arith.constant dense<0.000000e+00> : vector<4x16x16xf32>
    %104 = tpu.matmul %99, %101, %cst_41 {dimension_numbers = #tpu.dot_dimension_numbers<[2], [2], [1], [1], [0, 0, 0, 1, 1, 1], [0], [0]>} : vector<4x16x8xf32>, vector<4x16x8xf32>, vector<4x16x16xf32> -> vector<4x16x16xf32>
    "tpu.trace_stop"() : () -> ()
    %c2 = arith.constant 2 : index
    %c0_42 = arith.constant 0 : index
    %c0_43 = arith.constant 0 : index
    %c0_44 = arith.constant 0 : index
    %105 = vector.load %arg14[%c2, %c0_42, %c0_43, %c0_44] : memref<8x4x16x16xf32, #tpu.memory_space<vmem>>, vector<1x4x16x16xf32>
    %106 = vector.shape_cast %105 : vector<1x4x16x16xf32> to vector<4x16x16xf32>
    %107 = arith.addf %104, %106 : vector<4x16x16xf32>
    %cst_45 = arith.constant dense<0xFF800000> : vector<4x16xf32>
    %108 = vector.multi_reduction <maximumf>, %107, %cst_45 [2] : vector<4x16x16xf32> to vector<4x16xf32>
    %109 = vector.shape_cast %108 : vector<4x16xf32> to vector<4x16x1xf32>
    %110 = vector.broadcast %109 : vector<4x16x1xf32> to vector<4x16x16xf32>
    %111 = arith.subf %107, %110 : vector<4x16x16xf32>
    %112 = math.exp %111 : vector<4x16x16xf32>
    %cst_46 = arith.constant dense<0.000000e+00> : vector<4x16xf32>
    %113 = vector.multi_reduction <add>, %112, %cst_46 [2] : vector<4x16x16xf32> to vector<4x16xf32>
    %114 = vector.shape_cast %113 : vector<4x16xf32> to vector<4x16x1xf32>
    %115 = tpu.reciprocal %114 {approx = true} : vector<4x16x1xf32> -> vector<4x16x1xf32>
    %116 = vector.broadcast %115 : vector<4x16x1xf32> to vector<4x16x16xf32>
    %117 = arith.mulf %112, %116 : vector<4x16x16xf32>
    "tpu.trace_start"() <{level = 10 : i32, message = "wnm,wmd->wnd"}> : () -> ()
    %cst_47 = arith.constant dense<0.000000e+00> : vector<4x16x8xf32>
    %118 = tpu.matmul %117, %103, %cst_47 {dimension_numbers = #tpu.dot_dimension_numbers<[2], [1], [1], [2], [0, 0, 0, 1, 1, 2], [0], [0]>} : vector<4x16x16xf32>, vector<4x16x8xf32>, vector<4x16x8xf32> -> vector<4x16x8xf32>
    "tpu.trace_stop"() : () -> ()
    %119 = vector.shape_cast %118 : vector<4x16x8xf32> to vector<64x8xf32>
    %120 = vector.extract_strided_slice %51 {offsets = [0, 24], sizes = [64, 8], strides = [1, 1]} : vector<64x32xf32> to vector<64x8xf32>
    %121 = vector.shape_cast %120 : vector<64x8xf32> to vector<4x16x8xf32>
    %122 = vector.extract_strided_slice %52 {offsets = [0, 24], sizes = [64, 8], strides = [1, 1]} : vector<64x32xf32> to vector<64x8xf32>
    %123 = vector.shape_cast %122 : vector<64x8xf32> to vector<4x16x8xf32>
    %124 = vector.extract_strided_slice %53 {offsets = [0, 24], sizes = [64, 8], strides = [1, 1]} : vector<64x32xf32> to vector<64x8xf32>
    %125 = vector.shape_cast %124 : vector<64x8xf32> to vector<4x16x8xf32>
    "tpu.trace_start"() <{level = 10 : i32, message = "wnd,wmd->wnm"}> : () -> ()
    %cst_48 = arith.constant dense<0.000000e+00> : vector<4x16x16xf32>
    %126 = tpu.matmul %121, %123, %cst_48 {dimension_numbers = #tpu.dot_dimension_numbers<[2], [2], [1], [1], [0, 0, 0, 1, 1, 1], [0], [0]>} : vector<4x16x8xf32>, vector<4x16x8xf32>, vector<4x16x16xf32> -> vector<4x16x16xf32>
    "tpu.trace_stop"() : () -> ()
    %c3 = arith.constant 3 : index
    %c0_49 = arith.constant 0 : index
    %c0_50 = arith.constant 0 : index
    %c0_51 = arith.constant 0 : index
    %127 = vector.load %arg14[%c3, %c0_49, %c0_50, %c0_51] : memref<8x4x16x16xf32, #tpu.memory_space<vmem>>, vector<1x4x16x16xf32>
    %128 = vector.shape_cast %127 : vector<1x4x16x16xf32> to vector<4x16x16xf32>
    %129 = arith.addf %126, %128 : vector<4x16x16xf32>
    %cst_52 = arith.constant dense<0xFF800000> : vector<4x16xf32>
    %130 = vector.multi_reduction <maximumf>, %129, %cst_52 [2] : vector<4x16x16xf32> to vector<4x16xf32>
    %131 = vector.shape_cast %130 : vector<4x16xf32> to vector<4x16x1xf32>
    %132 = vector.broadcast %131 : vector<4x16x1xf32> to vector<4x16x16xf32>
    %133 = arith.subf %129, %132 : vector<4x16x16xf32>
    %134 = math.exp %133 : vector<4x16x16xf32>
    %cst_53 = arith.constant dense<0.000000e+00> : vector<4x16xf32>
    %135 = vector.multi_reduction <add>, %134, %cst_53 [2] : vector<4x16x16xf32> to vector<4x16xf32>
    %136 = vector.shape_cast %135 : vector<4x16xf32> to vector<4x16x1xf32>
    %137 = tpu.reciprocal %136 {approx = true} : vector<4x16x1xf32> -> vector<4x16x1xf32>
    %138 = vector.broadcast %137 : vector<4x16x1xf32> to vector<4x16x16xf32>
    %139 = arith.mulf %134, %138 : vector<4x16x16xf32>
    "tpu.trace_start"() <{level = 10 : i32, message = "wnm,wmd->wnd"}> : () -> ()
    %cst_54 = arith.constant dense<0.000000e+00> : vector<4x16x8xf32>
    %140 = tpu.matmul %139, %125, %cst_54 {dimension_numbers = #tpu.dot_dimension_numbers<[2], [1], [1], [2], [0, 0, 0, 1, 1, 2], [0], [0]>} : vector<4x16x16xf32>, vector<4x16x8xf32>, vector<4x16x8xf32> -> vector<4x16x8xf32>
    "tpu.trace_stop"() : () -> ()
    %141 = vector.shape_cast %140 : vector<4x16x8xf32> to vector<64x8xf32>
    %142 = tpu.concatenate %75, %97, %119, %141 in 1 : vector<64x8xf32>, vector<64x8xf32>, vector<64x8xf32>, vector<64x8xf32> -> vector<64x32xf32>
    %cst_55 = arith.constant dense<0.000000e+00> : vector<64x32xf32>
    %143 = tpu.matmul %142, %43, %cst_55 {dimension_numbers = #tpu.dot_dimension_numbers<[1], [0], [0], [1], [0, 0, 1, 1], [], []>} : vector<64x32xf32>, vector<32x32xf32>, vector<64x32xf32> -> vector<64x32xf32>
    %144 = vector.broadcast %45 : vector<1x32xf32> to vector<64x32xf32>
    %145 = arith.addf %143, %144 : vector<64x32xf32>
    %146 = vector.extract_strided_slice %145 {offsets = [0, 0], sizes = [16, 32], strides = [1, 1]} : vector<64x32xf32> to vector<16x32xf32>
    %147 = vector.shape_cast %146 : vector<16x32xf32> to vector<4x4x32xf32>
    %148 = vector.extract_strided_slice %145 {offsets = [16, 0], sizes = [16, 32], strides = [1, 1]} : vector<64x32xf32> to vector<16x32xf32>
    %149 = vector.shape_cast %148 : vector<16x32xf32> to vector<4x4x32xf32>
    %150 = tpu.concatenate %147, %149 in 1 : vector<4x4x32xf32>, vector<4x4x32xf32> -> vector<4x8x32xf32>
    %151 = vector.extract_strided_slice %145 {offsets = [32, 0], sizes = [16, 32], strides = [1, 1]} : vector<64x32xf32> to vector<16x32xf32>
    %152 = vector.shape_cast %151 : vector<16x32xf32> to vector<4x4x32xf32>
    %153 = vector.extract_strided_slice %145 {offsets = [48, 0], sizes = [16, 32], strides = [1, 1]} : vector<64x32xf32> to vector<16x32xf32>
    %154 = vector.shape_cast %153 : vector<16x32xf32> to vector<4x4x32xf32>
    %155 = tpu.concatenate %152, %154 in 1 : vector<4x4x32xf32>, vector<4x4x32xf32> -> vector<4x8x32xf32>
    %156 = tpu.concatenate %150, %155 in 0 : vector<4x8x32xf32>, vector<4x8x32xf32> -> vector<8x8x32xf32>
    %157 = vector.shape_cast %156 : vector<8x8x32xf32> to vector<64x32xf32>
    %158 = arith.addf %1, %157 : vector<64x32xf32>
    %c0_56 = arith.constant 0 : index
    %c0_57 = arith.constant 0 : index
    %c0_58 = arith.constant 0 : index
    %159 = vector.load %arg8[%c0_56, %c0_57, %c0_58] : memref<2x1x32xf32, #tpu.memory_space<vmem>>, vector<1x1x32xf32>
    %160 = vector.shape_cast %159 : vector<1x1x32xf32> to vector<1x32xf32>
    %c0_59 = arith.constant 0 : index
    %c0_60 = arith.constant 0 : index
    %c0_61 = arith.constant 0 : index
    %161 = vector.load %arg9[%c0_59, %c0_60, %c0_61] : memref<2x1x32xf32, #tpu.memory_space<vmem>>, vector<1x1x32xf32>
    %162 = vector.shape_cast %161 : vector<1x1x32xf32> to vector<1x32xf32>
    %cst_62 = arith.constant dense<0.000000e+00> : vector<64xf32>
    %163 = vector.multi_reduction <add>, %158, %cst_62 [1] : vector<64x32xf32> to vector<64xf32>
    %164 = vector.shape_cast %163 : vector<64xf32> to vector<64x1xf32>
    %cst_63 = arith.constant 3.200000e+01 : f32
    %165 = vector.broadcast %cst_63 : f32 to vector<64x1xf32>
    %166 = arith.divf %164, %165 : vector<64x1xf32>
    %167 = vector.broadcast %166 : vector<64x1xf32> to vector<64x32xf32>
    %168 = arith.subf %158, %167 : vector<64x32xf32>
    %169 = arith.mulf %168, %168 : vector<64x32xf32>
    %cst_64 = arith.constant dense<0.000000e+00> : vector<64xf32>
    %170 = vector.multi_reduction <add>, %169, %cst_64 [1] : vector<64x32xf32> to vector<64xf32>
    %171 = vector.shape_cast %170 : vector<64xf32> to vector<64x1xf32>
    %cst_65 = arith.constant 3.200000e+01 : f32
    %172 = vector.broadcast %cst_65 : f32 to vector<64x1xf32>
    %173 = arith.divf %171, %172 : vector<64x1xf32>
    %174 = vector.broadcast %166 : vector<64x1xf32> to vector<64x32xf32>
    %175 = arith.subf %158, %174 : vector<64x32xf32>
    %cst_66 = arith.constant 9.99999974E-6 : f32
    %176 = vector.broadcast %cst_66 : f32 to vector<64x1xf32>
    %177 = arith.addf %173, %176 : vector<64x1xf32>
    %178 = math.rsqrt %177 : vector<64x1xf32>
    %179 = vector.broadcast %178 : vector<64x1xf32> to vector<64x32xf32>
    %180 = arith.mulf %175, %179 : vector<64x32xf32>
    %181 = vector.broadcast %160 : vector<1x32xf32> to vector<64x32xf32>
    %182 = arith.mulf %180, %181 : vector<64x32xf32>
    %183 = vector.broadcast %162 : vector<1x32xf32> to vector<64x32xf32>
    %184 = arith.addf %182, %183 : vector<64x32xf32>
    %c0_67 = arith.constant 0 : index
    %c0_68 = arith.constant 0 : index
    %c0_69 = arith.constant 0 : index
    %185 = vector.load %arg10[%c0_67, %c0_68, %c0_69] : memref<2x32x128xf32, #tpu.memory_space<vmem>>, vector<1x32x128xf32>
    %186 = vector.shape_cast %185 : vector<1x32x128xf32> to vector<32x128xf32>
    %cst_70 = arith.constant dense<0.000000e+00> : vector<64x128xf32>
    %187 = tpu.matmul %184, %186, %cst_70 {dimension_numbers = #tpu.dot_dimension_numbers<[1], [0], [0], [1], [0, 0, 1, 1], [], []>} : vector<64x32xf32>, vector<32x128xf32>, vector<64x128xf32> -> vector<64x128xf32>
    %c0_71 = arith.constant 0 : index
    %c0_72 = arith.constant 0 : index
    %c0_73 = arith.constant 0 : index
    %188 = vector.load %arg11[%c0_71, %c0_72, %c0_73] : memref<2x1x128xf32, #tpu.memory_space<vmem>>, vector<1x1x128xf32>
    %189 = vector.shape_cast %188 : vector<1x1x128xf32> to vector<1x128xf32>
    %190 = vector.broadcast %189 : vector<1x128xf32> to vector<64x128xf32>
    %191 = arith.addf %187, %190 : vector<64x128xf32>
    %cst_74 = arith.constant 5.000000e-01 : f32
    %192 = vector.broadcast %cst_74 : f32 to vector<64x128xf32>
    %193 = arith.mulf %192, %191 : vector<64x128xf32>
    %cst_75 = arith.constant 4.471500e-02 : f32
    %194 = vector.broadcast %cst_75 : f32 to vector<64x128xf32>
    %195 = arith.mulf %194, %191 : vector<64x128xf32>
    %196 = arith.mulf %195, %191 : vector<64x128xf32>
    %197 = arith.mulf %196, %191 : vector<64x128xf32>
    %198 = arith.addf %191, %197 : vector<64x128xf32>
    %cst_76 = arith.constant 0.797884583 : f32
    %199 = vector.broadcast %cst_76 : f32 to vector<64x128xf32>
    %200 = arith.mulf %199, %198 : vector<64x128xf32>
    %201 = math.tanh %200 : vector<64x128xf32>
    %cst_77 = arith.constant 1.000000e+00 : f32
    %202 = vector.broadcast %cst_77 : f32 to vector<64x128xf32>
    %203 = arith.addf %202, %201 : vector<64x128xf32>
    %204 = arith.mulf %193, %203 : vector<64x128xf32>
    %c0_78 = arith.constant 0 : index
    %c0_79 = arith.constant 0 : index
    %c0_80 = arith.constant 0 : index
    %205 = vector.load %arg12[%c0_78, %c0_79, %c0_80] : memref<2x128x32xf32, #tpu.memory_space<vmem>>, vector<1x128x32xf32>
    %206 = vector.shape_cast %205 : vector<1x128x32xf32> to vector<128x32xf32>
    %cst_81 = arith.constant dense<0.000000e+00> : vector<64x32xf32>
    %207 = tpu.matmul %204, %206, %cst_81 {dimension_numbers = #tpu.dot_dimension_numbers<[1], [0], [0], [1], [0, 0, 1, 1], [], []>} : vector<64x128xf32>, vector<128x32xf32>, vector<64x32xf32> -> vector<64x32xf32>
    %208 = arith.addf %158, %207 : vector<64x32xf32>
    %c0_82 = arith.constant 0 : index
    %c0_83 = arith.constant 0 : index
    %c0_84 = arith.constant 0 : index
    %209 = vector.load %arg13[%c0_82, %c0_83, %c0_84] : memref<2x1x32xf32, #tpu.memory_space<vmem>>, vector<1x1x32xf32>
    %210 = vector.shape_cast %209 : vector<1x1x32xf32> to vector<1x32xf32>
    %211 = vector.broadcast %210 : vector<1x32xf32> to vector<64x32xf32>
    %212 = arith.addf %208, %211 : vector<64x32xf32>
    %c1_85 = arith.constant 1 : index
    %c0_86 = arith.constant 0 : index
    %c0_87 = arith.constant 0 : index
    %213 = vector.load %arg2[%c1_85, %c0_86, %c0_87] : memref<2x1x32xf32, #tpu.memory_space<vmem>>, vector<1x1x32xf32>
    %214 = vector.shape_cast %213 : vector<1x1x32xf32> to vector<1x32xf32>
    %c1_88 = arith.constant 1 : index
    %c0_89 = arith.constant 0 : index
    %c0_90 = arith.constant 0 : index
    %215 = vector.load %arg3[%c1_88, %c0_89, %c0_90] : memref<2x1x32xf32, #tpu.memory_space<vmem>>, vector<1x1x32xf32>
    %216 = vector.shape_cast %215 : vector<1x1x32xf32> to vector<1x32xf32>
    %cst_91 = arith.constant dense<0.000000e+00> : vector<64xf32>
    %217 = vector.multi_reduction <add>, %212, %cst_91 [1] : vector<64x32xf32> to vector<64xf32>
    %218 = vector.shape_cast %217 : vector<64xf32> to vector<64x1xf32>
    %cst_92 = arith.constant 3.200000e+01 : f32
    %219 = vector.broadcast %cst_92 : f32 to vector<64x1xf32>
    %220 = arith.divf %218, %219 : vector<64x1xf32>
    %221 = vector.broadcast %220 : vector<64x1xf32> to vector<64x32xf32>
    %222 = arith.subf %212, %221 : vector<64x32xf32>
    %223 = arith.mulf %222, %222 : vector<64x32xf32>
    %cst_93 = arith.constant dense<0.000000e+00> : vector<64xf32>
    %224 = vector.multi_reduction <add>, %223, %cst_93 [1] : vector<64x32xf32> to vector<64xf32>
    %225 = vector.shape_cast %224 : vector<64xf32> to vector<64x1xf32>
    %cst_94 = arith.constant 3.200000e+01 : f32
    %226 = vector.broadcast %cst_94 : f32 to vector<64x1xf32>
    %227 = arith.divf %225, %226 : vector<64x1xf32>
    %228 = vector.broadcast %220 : vector<64x1xf32> to vector<64x32xf32>
    %229 = arith.subf %212, %228 : vector<64x32xf32>
    %cst_95 = arith.constant 9.99999974E-6 : f32
    %230 = vector.broadcast %cst_95 : f32 to vector<64x1xf32>
    %231 = arith.addf %227, %230 : vector<64x1xf32>
    %232 = math.rsqrt %231 : vector<64x1xf32>
    %233 = vector.broadcast %232 : vector<64x1xf32> to vector<64x32xf32>
    %234 = arith.mulf %229, %233 : vector<64x32xf32>
    %235 = vector.broadcast %214 : vector<1x32xf32> to vector<64x32xf32>
    %236 = arith.mulf %234, %235 : vector<64x32xf32>
    %237 = vector.broadcast %216 : vector<1x32xf32> to vector<64x32xf32>
    %238 = arith.addf %236, %237 : vector<64x32xf32>
    %239 = vector.shape_cast %238 : vector<64x32xf32> to vector<8x8x32xf32>
    %240 = vector.extract_strided_slice %239 {offsets = [2, 0, 0], sizes = [6, 8, 32], strides = [1, 1, 1]} : vector<8x8x32xf32> to vector<6x8x32xf32>
    %241 = vector.extract_strided_slice %239 {offsets = [0, 0, 0], sizes = [2, 8, 32], strides = [1, 1, 1]} : vector<8x8x32xf32> to vector<2x8x32xf32>
    %242 = tpu.concatenate %240, %241 in 0 : vector<6x8x32xf32>, vector<2x8x32xf32> -> vector<8x8x32xf32>
    %243 = vector.extract_strided_slice %242 {offsets = [0, 2, 0], sizes = [8, 6, 32], strides = [1, 1, 1]} : vector<8x8x32xf32> to vector<8x6x32xf32>
    %244 = vector.extract_strided_slice %242 {offsets = [0, 0, 0], sizes = [8, 2, 32], strides = [1, 1, 1]} : vector<8x8x32xf32> to vector<8x2x32xf32>
    %245 = tpu.concatenate %243, %244 in 1 : vector<8x6x32xf32>, vector<8x2x32xf32> -> vector<8x8x32xf32>
    %246 = vector.extract_strided_slice %245 {offsets = [0, 0, 0], sizes = [4, 4, 32], strides = [1, 1, 1]} : vector<8x8x32xf32> to vector<4x4x32xf32>
    %247 = vector.shape_cast %246 : vector<4x4x32xf32> to vector<16x32xf32>
    %248 = vector.extract_strided_slice %245 {offsets = [0, 4, 0], sizes = [4, 4, 32], strides = [1, 1, 1]} : vector<8x8x32xf32> to vector<4x4x32xf32>
    %249 = vector.shape_cast %248 : vector<4x4x32xf32> to vector<16x32xf32>
    %250 = vector.extract_strided_slice %245 {offsets = [4, 0, 0], sizes = [4, 4, 32], strides = [1, 1, 1]} : vector<8x8x32xf32> to vector<4x4x32xf32>
    %251 = vector.shape_cast %250 : vector<4x4x32xf32> to vector<16x32xf32>
    %252 = vector.extract_strided_slice %245 {offsets = [4, 4, 0], sizes = [4, 4, 32], strides = [1, 1, 1]} : vector<8x8x32xf32> to vector<4x4x32xf32>
    %253 = vector.shape_cast %252 : vector<4x4x32xf32> to vector<16x32xf32>
    %254 = tpu.concatenate %247, %249, %251, %253 in 0 : vector<16x32xf32>, vector<16x32xf32>, vector<16x32xf32>, vector<16x32xf32> -> vector<64x32xf32>
    %c1_96 = arith.constant 1 : index
    %c0_97 = arith.constant 0 : index
    %c0_98 = arith.constant 0 : index
    %255 = vector.load %arg4[%c1_96, %c0_97, %c0_98] : memref<2x32x96xf32, #tpu.memory_space<vmem>>, vector<1x32x96xf32>
    %256 = vector.shape_cast %255 : vector<1x32x96xf32> to vector<32x96xf32>
    %c1_99 = arith.constant 1 : index
    %c0_100 = arith.constant 0 : index
    %c0_101 = arith.constant 0 : index
    %257 = vector.load %arg5[%c1_99, %c0_100, %c0_101] : memref<2x1x96xf32, #tpu.memory_space<vmem>>, vector<1x1x96xf32>
    %258 = vector.shape_cast %257 : vector<1x1x96xf32> to vector<1x96xf32>
    %c1_102 = arith.constant 1 : index
    %c0_103 = arith.constant 0 : index
    %c0_104 = arith.constant 0 : index
    %259 = vector.load %arg6[%c1_102, %c0_103, %c0_104] : memref<2x32x32xf32, #tpu.memory_space<vmem>>, vector<1x32x32xf32>
    %260 = vector.shape_cast %259 : vector<1x32x32xf32> to vector<32x32xf32>
    %c1_105 = arith.constant 1 : index
    %c0_106 = arith.constant 0 : index
    %c0_107 = arith.constant 0 : index
    %261 = vector.load %arg7[%c1_105, %c0_106, %c0_107] : memref<2x1x32xf32, #tpu.memory_space<vmem>>, vector<1x1x32xf32>
    %262 = vector.shape_cast %261 : vector<1x1x32xf32> to vector<1x32xf32>
    %cst_108 = arith.constant dense<0.000000e+00> : vector<64x96xf32>
    %263 = tpu.matmul %254, %256, %cst_108 {dimension_numbers = #tpu.dot_dimension_numbers<[1], [0], [0], [1], [0, 0, 1, 1], [], []>} : vector<64x32xf32>, vector<32x96xf32>, vector<64x96xf32> -> vector<64x96xf32>
    %264 = vector.broadcast %258 : vector<1x96xf32> to vector<64x96xf32>
    %265 = arith.addf %263, %264 : vector<64x96xf32>
    %266 = vector.extract_strided_slice %265 {offsets = [0, 0], sizes = [64, 32], strides = [1, 1]} : vector<64x96xf32> to vector<64x32xf32>
    %cst_109 = arith.constant 0.353553385 : f32
    %267 = vector.broadcast %cst_109 : f32 to vector<64x32xf32>
    %268 = arith.mulf %266, %267 : vector<64x32xf32>
    %269 = vector.extract_strided_slice %265 {offsets = [0, 32], sizes = [64, 32], strides = [1, 1]} : vector<64x96xf32> to vector<64x32xf32>
    %270 = vector.extract_strided_slice %265 {offsets = [0, 64], sizes = [64, 32], strides = [1, 1]} : vector<64x96xf32> to vector<64x32xf32>
    %271 = vector.extract_strided_slice %268 {offsets = [0, 0], sizes = [64, 8], strides = [1, 1]} : vector<64x32xf32> to vector<64x8xf32>
    %272 = vector.shape_cast %271 : vector<64x8xf32> to vector<4x16x8xf32>
    %273 = vector.extract_strided_slice %269 {offsets = [0, 0], sizes = [64, 8], strides = [1, 1]} : vector<64x32xf32> to vector<64x8xf32>
    %274 = vector.shape_cast %273 : vector<64x8xf32> to vector<4x16x8xf32>
    %275 = vector.extract_strided_slice %270 {offsets = [0, 0], sizes = [64, 8], strides = [1, 1]} : vector<64x32xf32> to vector<64x8xf32>
    %276 = vector.shape_cast %275 : vector<64x8xf32> to vector<4x16x8xf32>
    "tpu.trace_start"() <{level = 10 : i32, message = "wnd,wmd->wnm"}> : () -> ()
    %cst_110 = arith.constant dense<0.000000e+00> : vector<4x16x16xf32>
    %277 = tpu.matmul %272, %274, %cst_110 {dimension_numbers = #tpu.dot_dimension_numbers<[2], [2], [1], [1], [0, 0, 0, 1, 1, 1], [0], [0]>} : vector<4x16x8xf32>, vector<4x16x8xf32>, vector<4x16x16xf32> -> vector<4x16x16xf32>
    "tpu.trace_stop"() : () -> ()
    %c4 = arith.constant 4 : index
    %c0_111 = arith.constant 0 : index
    %c0_112 = arith.constant 0 : index
    %c0_113 = arith.constant 0 : index
    %278 = vector.load %arg14[%c4, %c0_111, %c0_112, %c0_113] : memref<8x4x16x16xf32, #tpu.memory_space<vmem>>, vector<1x4x16x16xf32>
    %279 = vector.shape_cast %278 : vector<1x4x16x16xf32> to vector<4x16x16xf32>
    %280 = arith.addf %277, %279 : vector<4x16x16xf32>
    %cst_114 = arith.constant dense<0xFF800000> : vector<4x16xf32>
    %281 = vector.multi_reduction <maximumf>, %280, %cst_114 [2] : vector<4x16x16xf32> to vector<4x16xf32>
    %282 = vector.shape_cast %281 : vector<4x16xf32> to vector<4x16x1xf32>
    %283 = vector.broadcast %282 : vector<4x16x1xf32> to vector<4x16x16xf32>
    %284 = arith.subf %280, %283 : vector<4x16x16xf32>
    %285 = math.exp %284 : vector<4x16x16xf32>
    %cst_115 = arith.constant dense<0.000000e+00> : vector<4x16xf32>
    %286 = vector.multi_reduction <add>, %285, %cst_115 [2] : vector<4x16x16xf32> to vector<4x16xf32>
    %287 = vector.shape_cast %286 : vector<4x16xf32> to vector<4x16x1xf32>
    %288 = tpu.reciprocal %287 {approx = true} : vector<4x16x1xf32> -> vector<4x16x1xf32>
    %289 = vector.broadcast %288 : vector<4x16x1xf32> to vector<4x16x16xf32>
    %290 = arith.mulf %285, %289 : vector<4x16x16xf32>
    "tpu.trace_start"() <{level = 10 : i32, message = "wnm,wmd->wnd"}> : () -> ()
    %cst_116 = arith.constant dense<0.000000e+00> : vector<4x16x8xf32>
    %291 = tpu.matmul %290, %276, %cst_116 {dimension_numbers = #tpu.dot_dimension_numbers<[2], [1], [1], [2], [0, 0, 0, 1, 1, 2], [0], [0]>} : vector<4x16x16xf32>, vector<4x16x8xf32>, vector<4x16x8xf32> -> vector<4x16x8xf32>
    "tpu.trace_stop"() : () -> ()
    %292 = vector.shape_cast %291 : vector<4x16x8xf32> to vector<64x8xf32>
    %293 = vector.extract_strided_slice %268 {offsets = [0, 8], sizes = [64, 8], strides = [1, 1]} : vector<64x32xf32> to vector<64x8xf32>
    %294 = vector.shape_cast %293 : vector<64x8xf32> to vector<4x16x8xf32>
    %295 = vector.extract_strided_slice %269 {offsets = [0, 8], sizes = [64, 8], strides = [1, 1]} : vector<64x32xf32> to vector<64x8xf32>
    %296 = vector.shape_cast %295 : vector<64x8xf32> to vector<4x16x8xf32>
    %297 = vector.extract_strided_slice %270 {offsets = [0, 8], sizes = [64, 8], strides = [1, 1]} : vector<64x32xf32> to vector<64x8xf32>
    %298 = vector.shape_cast %297 : vector<64x8xf32> to vector<4x16x8xf32>
    "tpu.trace_start"() <{level = 10 : i32, message = "wnd,wmd->wnm"}> : () -> ()
    %cst_117 = arith.constant dense<0.000000e+00> : vector<4x16x16xf32>
    %299 = tpu.matmul %294, %296, %cst_117 {dimension_numbers = #tpu.dot_dimension_numbers<[2], [2], [1], [1], [0, 0, 0, 1, 1, 1], [0], [0]>} : vector<4x16x8xf32>, vector<4x16x8xf32>, vector<4x16x16xf32> -> vector<4x16x16xf32>
    "tpu.trace_stop"() : () -> ()
    %c5 = arith.constant 5 : index
    %c0_118 = arith.constant 0 : index
    %c0_119 = arith.constant 0 : index
    %c0_120 = arith.constant 0 : index
    %300 = vector.load %arg14[%c5, %c0_118, %c0_119, %c0_120] : memref<8x4x16x16xf32, #tpu.memory_space<vmem>>, vector<1x4x16x16xf32>
    %301 = vector.shape_cast %300 : vector<1x4x16x16xf32> to vector<4x16x16xf32>
    %302 = arith.addf %299, %301 : vector<4x16x16xf32>
    %cst_121 = arith.constant dense<0xFF800000> : vector<4x16xf32>
    %303 = vector.multi_reduction <maximumf>, %302, %cst_121 [2] : vector<4x16x16xf32> to vector<4x16xf32>
    %304 = vector.shape_cast %303 : vector<4x16xf32> to vector<4x16x1xf32>
    %305 = vector.broadcast %304 : vector<4x16x1xf32> to vector<4x16x16xf32>
    %306 = arith.subf %302, %305 : vector<4x16x16xf32>
    %307 = math.exp %306 : vector<4x16x16xf32>
    %cst_122 = arith.constant dense<0.000000e+00> : vector<4x16xf32>
    %308 = vector.multi_reduction <add>, %307, %cst_122 [2] : vector<4x16x16xf32> to vector<4x16xf32>
    %309 = vector.shape_cast %308 : vector<4x16xf32> to vector<4x16x1xf32>
    %310 = tpu.reciprocal %309 {approx = true} : vector<4x16x1xf32> -> vector<4x16x1xf32>
    %311 = vector.broadcast %310 : vector<4x16x1xf32> to vector<4x16x16xf32>
    %312 = arith.mulf %307, %311 : vector<4x16x16xf32>
    "tpu.trace_start"() <{level = 10 : i32, message = "wnm,wmd->wnd"}> : () -> ()
    %cst_123 = arith.constant dense<0.000000e+00> : vector<4x16x8xf32>
    %313 = tpu.matmul %312, %298, %cst_123 {dimension_numbers = #tpu.dot_dimension_numbers<[2], [1], [1], [2], [0, 0, 0, 1, 1, 2], [0], [0]>} : vector<4x16x16xf32>, vector<4x16x8xf32>, vector<4x16x8xf32> -> vector<4x16x8xf32>
    "tpu.trace_stop"() : () -> ()
    %314 = vector.shape_cast %313 : vector<4x16x8xf32> to vector<64x8xf32>
    %315 = vector.extract_strided_slice %268 {offsets = [0, 16], sizes = [64, 8], strides = [1, 1]} : vector<64x32xf32> to vector<64x8xf32>
    %316 = vector.shape_cast %315 : vector<64x8xf32> to vector<4x16x8xf32>
    %317 = vector.extract_strided_slice %269 {offsets = [0, 16], sizes = [64, 8], strides = [1, 1]} : vector<64x32xf32> to vector<64x8xf32>
    %318 = vector.shape_cast %317 : vector<64x8xf32> to vector<4x16x8xf32>
    %319 = vector.extract_strided_slice %270 {offsets = [0, 16], sizes = [64, 8], strides = [1, 1]} : vector<64x32xf32> to vector<64x8xf32>
    %320 = vector.shape_cast %319 : vector<64x8xf32> to vector<4x16x8xf32>
    "tpu.trace_start"() <{level = 10 : i32, message = "wnd,wmd->wnm"}> : () -> ()
    %cst_124 = arith.constant dense<0.000000e+00> : vector<4x16x16xf32>
    %321 = tpu.matmul %316, %318, %cst_124 {dimension_numbers = #tpu.dot_dimension_numbers<[2], [2], [1], [1], [0, 0, 0, 1, 1, 1], [0], [0]>} : vector<4x16x8xf32>, vector<4x16x8xf32>, vector<4x16x16xf32> -> vector<4x16x16xf32>
    "tpu.trace_stop"() : () -> ()
    %c6 = arith.constant 6 : index
    %c0_125 = arith.constant 0 : index
    %c0_126 = arith.constant 0 : index
    %c0_127 = arith.constant 0 : index
    %322 = vector.load %arg14[%c6, %c0_125, %c0_126, %c0_127] : memref<8x4x16x16xf32, #tpu.memory_space<vmem>>, vector<1x4x16x16xf32>
    %323 = vector.shape_cast %322 : vector<1x4x16x16xf32> to vector<4x16x16xf32>
    %324 = arith.addf %321, %323 : vector<4x16x16xf32>
    %cst_128 = arith.constant dense<0xFF800000> : vector<4x16xf32>
    %325 = vector.multi_reduction <maximumf>, %324, %cst_128 [2] : vector<4x16x16xf32> to vector<4x16xf32>
    %326 = vector.shape_cast %325 : vector<4x16xf32> to vector<4x16x1xf32>
    %327 = vector.broadcast %326 : vector<4x16x1xf32> to vector<4x16x16xf32>
    %328 = arith.subf %324, %327 : vector<4x16x16xf32>
    %329 = math.exp %328 : vector<4x16x16xf32>
    %cst_129 = arith.constant dense<0.000000e+00> : vector<4x16xf32>
    %330 = vector.multi_reduction <add>, %329, %cst_129 [2] : vector<4x16x16xf32> to vector<4x16xf32>
    %331 = vector.shape_cast %330 : vector<4x16xf32> to vector<4x16x1xf32>
    %332 = tpu.reciprocal %331 {approx = true} : vector<4x16x1xf32> -> vector<4x16x1xf32>
    %333 = vector.broadcast %332 : vector<4x16x1xf32> to vector<4x16x16xf32>
    %334 = arith.mulf %329, %333 : vector<4x16x16xf32>
    "tpu.trace_start"() <{level = 10 : i32, message = "wnm,wmd->wnd"}> : () -> ()
    %cst_130 = arith.constant dense<0.000000e+00> : vector<4x16x8xf32>
    %335 = tpu.matmul %334, %320, %cst_130 {dimension_numbers = #tpu.dot_dimension_numbers<[2], [1], [1], [2], [0, 0, 0, 1, 1, 2], [0], [0]>} : vector<4x16x16xf32>, vector<4x16x8xf32>, vector<4x16x8xf32> -> vector<4x16x8xf32>
    "tpu.trace_stop"() : () -> ()
    %336 = vector.shape_cast %335 : vector<4x16x8xf32> to vector<64x8xf32>
    %337 = vector.extract_strided_slice %268 {offsets = [0, 24], sizes = [64, 8], strides = [1, 1]} : vector<64x32xf32> to vector<64x8xf32>
    %338 = vector.shape_cast %337 : vector<64x8xf32> to vector<4x16x8xf32>
    %339 = vector.extract_strided_slice %269 {offsets = [0, 24], sizes = [64, 8], strides = [1, 1]} : vector<64x32xf32> to vector<64x8xf32>
    %340 = vector.shape_cast %339 : vector<64x8xf32> to vector<4x16x8xf32>
    %341 = vector.extract_strided_slice %270 {offsets = [0, 24], sizes = [64, 8], strides = [1, 1]} : vector<64x32xf32> to vector<64x8xf32>
    %342 = vector.shape_cast %341 : vector<64x8xf32> to vector<4x16x8xf32>
    "tpu.trace_start"() <{level = 10 : i32, message = "wnd,wmd->wnm"}> : () -> ()
    %cst_131 = arith.constant dense<0.000000e+00> : vector<4x16x16xf32>
    %343 = tpu.matmul %338, %340, %cst_131 {dimension_numbers = #tpu.dot_dimension_numbers<[2], [2], [1], [1], [0, 0, 0, 1, 1, 1], [0], [0]>} : vector<4x16x8xf32>, vector<4x16x8xf32>, vector<4x16x16xf32> -> vector<4x16x16xf32>
    "tpu.trace_stop"() : () -> ()
    %c7 = arith.constant 7 : index
    %c0_132 = arith.constant 0 : index
    %c0_133 = arith.constant 0 : index
    %c0_134 = arith.constant 0 : index
    %344 = vector.load %arg14[%c7, %c0_132, %c0_133, %c0_134] : memref<8x4x16x16xf32, #tpu.memory_space<vmem>>, vector<1x4x16x16xf32>
    %345 = vector.shape_cast %344 : vector<1x4x16x16xf32> to vector<4x16x16xf32>
    %346 = arith.addf %343, %345 : vector<4x16x16xf32>
    %cst_135 = arith.constant dense<0xFF800000> : vector<4x16xf32>
    %347 = vector.multi_reduction <maximumf>, %346, %cst_135 [2] : vector<4x16x16xf32> to vector<4x16xf32>
    %348 = vector.shape_cast %347 : vector<4x16xf32> to vector<4x16x1xf32>
    %349 = vector.broadcast %348 : vector<4x16x1xf32> to vector<4x16x16xf32>
    %350 = arith.subf %346, %349 : vector<4x16x16xf32>
    %351 = math.exp %350 : vector<4x16x16xf32>
    %cst_136 = arith.constant dense<0.000000e+00> : vector<4x16xf32>
    %352 = vector.multi_reduction <add>, %351, %cst_136 [2] : vector<4x16x16xf32> to vector<4x16xf32>
    %353 = vector.shape_cast %352 : vector<4x16xf32> to vector<4x16x1xf32>
    %354 = tpu.reciprocal %353 {approx = true} : vector<4x16x1xf32> -> vector<4x16x1xf32>
    %355 = vector.broadcast %354 : vector<4x16x1xf32> to vector<4x16x16xf32>
    %356 = arith.mulf %351, %355 : vector<4x16x16xf32>
    "tpu.trace_start"() <{level = 10 : i32, message = "wnm,wmd->wnd"}> : () -> ()
    %cst_137 = arith.constant dense<0.000000e+00> : vector<4x16x8xf32>
    %357 = tpu.matmul %356, %342, %cst_137 {dimension_numbers = #tpu.dot_dimension_numbers<[2], [1], [1], [2], [0, 0, 0, 1, 1, 2], [0], [0]>} : vector<4x16x16xf32>, vector<4x16x8xf32>, vector<4x16x8xf32> -> vector<4x16x8xf32>
    "tpu.trace_stop"() : () -> ()
    %358 = vector.shape_cast %357 : vector<4x16x8xf32> to vector<64x8xf32>
    %359 = tpu.concatenate %292, %314, %336, %358 in 1 : vector<64x8xf32>, vector<64x8xf32>, vector<64x8xf32>, vector<64x8xf32> -> vector<64x32xf32>
    %cst_138 = arith.constant dense<0.000000e+00> : vector<64x32xf32>
    %360 = tpu.matmul %359, %260, %cst_138 {dimension_numbers = #tpu.dot_dimension_numbers<[1], [0], [0], [1], [0, 0, 1, 1], [], []>} : vector<64x32xf32>, vector<32x32xf32>, vector<64x32xf32> -> vector<64x32xf32>
    %361 = vector.broadcast %262 : vector<1x32xf32> to vector<64x32xf32>
    %362 = arith.addf %360, %361 : vector<64x32xf32>
    %363 = vector.extract_strided_slice %362 {offsets = [0, 0], sizes = [16, 32], strides = [1, 1]} : vector<64x32xf32> to vector<16x32xf32>
    %364 = vector.shape_cast %363 : vector<16x32xf32> to vector<4x4x32xf32>
    %365 = vector.extract_strided_slice %362 {offsets = [16, 0], sizes = [16, 32], strides = [1, 1]} : vector<64x32xf32> to vector<16x32xf32>
    %366 = vector.shape_cast %365 : vector<16x32xf32> to vector<4x4x32xf32>
    %367 = tpu.concatenate %364, %366 in 1 : vector<4x4x32xf32>, vector<4x4x32xf32> -> vector<4x8x32xf32>
    %368 = vector.extract_strided_slice %362 {offsets = [32, 0], sizes = [16, 32], strides = [1, 1]} : vector<64x32xf32> to vector<16x32xf32>
    %369 = vector.shape_cast %368 : vector<16x32xf32> to vector<4x4x32xf32>
    %370 = vector.extract_strided_slice %362 {offsets = [48, 0], sizes = [16, 32], strides = [1, 1]} : vector<64x32xf32> to vector<16x32xf32>
    %371 = vector.shape_cast %370 : vector<16x32xf32> to vector<4x4x32xf32>
    %372 = tpu.concatenate %369, %371 in 1 : vector<4x4x32xf32>, vector<4x4x32xf32> -> vector<4x8x32xf32>
    %373 = tpu.concatenate %367, %372 in 0 : vector<4x8x32xf32>, vector<4x8x32xf32> -> vector<8x8x32xf32>
    %374 = vector.extract_strided_slice %373 {offsets = [6, 0, 0], sizes = [2, 8, 32], strides = [1, 1, 1]} : vector<8x8x32xf32> to vector<2x8x32xf32>
    %375 = vector.extract_strided_slice %373 {offsets = [0, 0, 0], sizes = [6, 8, 32], strides = [1, 1, 1]} : vector<8x8x32xf32> to vector<6x8x32xf32>
    %376 = tpu.concatenate %374, %375 in 0 : vector<2x8x32xf32>, vector<6x8x32xf32> -> vector<8x8x32xf32>
    %377 = vector.extract_strided_slice %376 {offsets = [0, 6, 0], sizes = [8, 2, 32], strides = [1, 1, 1]} : vector<8x8x32xf32> to vector<8x2x32xf32>
    %378 = vector.extract_strided_slice %376 {offsets = [0, 0, 0], sizes = [8, 6, 32], strides = [1, 1, 1]} : vector<8x8x32xf32> to vector<8x6x32xf32>
    %379 = tpu.concatenate %377, %378 in 1 : vector<8x2x32xf32>, vector<8x6x32xf32> -> vector<8x8x32xf32>
    %380 = vector.shape_cast %379 : vector<8x8x32xf32> to vector<64x32xf32>
    %381 = arith.addf %212, %380 : vector<64x32xf32>
    %c1_139 = arith.constant 1 : index
    %c0_140 = arith.constant 0 : index
    %c0_141 = arith.constant 0 : index
    %382 = vector.load %arg8[%c1_139, %c0_140, %c0_141] : memref<2x1x32xf32, #tpu.memory_space<vmem>>, vector<1x1x32xf32>
    %383 = vector.shape_cast %382 : vector<1x1x32xf32> to vector<1x32xf32>
    %c1_142 = arith.constant 1 : index
    %c0_143 = arith.constant 0 : index
    %c0_144 = arith.constant 0 : index
    %384 = vector.load %arg9[%c1_142, %c0_143, %c0_144] : memref<2x1x32xf32, #tpu.memory_space<vmem>>, vector<1x1x32xf32>
    %385 = vector.shape_cast %384 : vector<1x1x32xf32> to vector<1x32xf32>
    %cst_145 = arith.constant dense<0.000000e+00> : vector<64xf32>
    %386 = vector.multi_reduction <add>, %381, %cst_145 [1] : vector<64x32xf32> to vector<64xf32>
    %387 = vector.shape_cast %386 : vector<64xf32> to vector<64x1xf32>
    %cst_146 = arith.constant 3.200000e+01 : f32
    %388 = vector.broadcast %cst_146 : f32 to vector<64x1xf32>
    %389 = arith.divf %387, %388 : vector<64x1xf32>
    %390 = vector.broadcast %389 : vector<64x1xf32> to vector<64x32xf32>
    %391 = arith.subf %381, %390 : vector<64x32xf32>
    %392 = arith.mulf %391, %391 : vector<64x32xf32>
    %cst_147 = arith.constant dense<0.000000e+00> : vector<64xf32>
    %393 = vector.multi_reduction <add>, %392, %cst_147 [1] : vector<64x32xf32> to vector<64xf32>
    %394 = vector.shape_cast %393 : vector<64xf32> to vector<64x1xf32>
    %cst_148 = arith.constant 3.200000e+01 : f32
    %395 = vector.broadcast %cst_148 : f32 to vector<64x1xf32>
    %396 = arith.divf %394, %395 : vector<64x1xf32>
    %397 = vector.broadcast %389 : vector<64x1xf32> to vector<64x32xf32>
    %398 = arith.subf %381, %397 : vector<64x32xf32>
    %cst_149 = arith.constant 9.99999974E-6 : f32
    %399 = vector.broadcast %cst_149 : f32 to vector<64x1xf32>
    %400 = arith.addf %396, %399 : vector<64x1xf32>
    %401 = math.rsqrt %400 : vector<64x1xf32>
    %402 = vector.broadcast %401 : vector<64x1xf32> to vector<64x32xf32>
    %403 = arith.mulf %398, %402 : vector<64x32xf32>
    %404 = vector.broadcast %383 : vector<1x32xf32> to vector<64x32xf32>
    %405 = arith.mulf %403, %404 : vector<64x32xf32>
    %406 = vector.broadcast %385 : vector<1x32xf32> to vector<64x32xf32>
    %407 = arith.addf %405, %406 : vector<64x32xf32>
    %c1_150 = arith.constant 1 : index
    %c0_151 = arith.constant 0 : index
    %c0_152 = arith.constant 0 : index
    %408 = vector.load %arg10[%c1_150, %c0_151, %c0_152] : memref<2x32x128xf32, #tpu.memory_space<vmem>>, vector<1x32x128xf32>
    %409 = vector.shape_cast %408 : vector<1x32x128xf32> to vector<32x128xf32>
    %cst_153 = arith.constant dense<0.000000e+00> : vector<64x128xf32>
    %410 = tpu.matmul %407, %409, %cst_153 {dimension_numbers = #tpu.dot_dimension_numbers<[1], [0], [0], [1], [0, 0, 1, 1], [], []>} : vector<64x32xf32>, vector<32x128xf32>, vector<64x128xf32> -> vector<64x128xf32>
    %c1_154 = arith.constant 1 : index
    %c0_155 = arith.constant 0 : index
    %c0_156 = arith.constant 0 : index
    %411 = vector.load %arg11[%c1_154, %c0_155, %c0_156] : memref<2x1x128xf32, #tpu.memory_space<vmem>>, vector<1x1x128xf32>
    %412 = vector.shape_cast %411 : vector<1x1x128xf32> to vector<1x128xf32>
    %413 = vector.broadcast %412 : vector<1x128xf32> to vector<64x128xf32>
    %414 = arith.addf %410, %413 : vector<64x128xf32>
    %cst_157 = arith.constant 5.000000e-01 : f32
    %415 = vector.broadcast %cst_157 : f32 to vector<64x128xf32>
    %416 = arith.mulf %415, %414 : vector<64x128xf32>
    %cst_158 = arith.constant 4.471500e-02 : f32
    %417 = vector.broadcast %cst_158 : f32 to vector<64x128xf32>
    %418 = arith.mulf %417, %414 : vector<64x128xf32>
    %419 = arith.mulf %418, %414 : vector<64x128xf32>
    %420 = arith.mulf %419, %414 : vector<64x128xf32>
    %421 = arith.addf %414, %420 : vector<64x128xf32>
    %cst_159 = arith.constant 0.797884583 : f32
    %422 = vector.broadcast %cst_159 : f32 to vector<64x128xf32>
    %423 = arith.mulf %422, %421 : vector<64x128xf32>
    %424 = math.tanh %423 : vector<64x128xf32>
    %cst_160 = arith.constant 1.000000e+00 : f32
    %425 = vector.broadcast %cst_160 : f32 to vector<64x128xf32>
    %426 = arith.addf %425, %424 : vector<64x128xf32>
    %427 = arith.mulf %416, %426 : vector<64x128xf32>
    %c1_161 = arith.constant 1 : index
    %c0_162 = arith.constant 0 : index
    %c0_163 = arith.constant 0 : index
    %428 = vector.load %arg12[%c1_161, %c0_162, %c0_163] : memref<2x128x32xf32, #tpu.memory_space<vmem>>, vector<1x128x32xf32>
    %429 = vector.shape_cast %428 : vector<1x128x32xf32> to vector<128x32xf32>
    %cst_164 = arith.constant dense<0.000000e+00> : vector<64x32xf32>
    %430 = tpu.matmul %427, %429, %cst_164 {dimension_numbers = #tpu.dot_dimension_numbers<[1], [0], [0], [1], [0, 0, 1, 1], [], []>} : vector<64x128xf32>, vector<128x32xf32>, vector<64x32xf32> -> vector<64x32xf32>
    %431 = arith.addf %381, %430 : vector<64x32xf32>
    %c1_165 = arith.constant 1 : index
    %c0_166 = arith.constant 0 : index
    %c0_167 = arith.constant 0 : index
    %432 = vector.load %arg13[%c1_165, %c0_166, %c0_167] : memref<2x1x32xf32, #tpu.memory_space<vmem>>, vector<1x1x32xf32>
    %433 = vector.shape_cast %432 : vector<1x1x32xf32> to vector<1x32xf32>
    %434 = vector.broadcast %433 : vector<1x32xf32> to vector<64x32xf32>
    %435 = arith.addf %431, %434 : vector<64x32xf32>
    %c0_168 = arith.constant 0 : index
    %c0_169 = arith.constant 0 : index
    %c0_170 = arith.constant 0 : index
    %436 = vector.load %arg15[%c0_168, %c0_169, %c0_170] : memref<1x64x32xf32, #tpu.memory_space<vmem>>, vector<1x64x32xf32>
    %437 = vector.shape_cast %436 : vector<1x64x32xf32> to vector<64x32xf32>
    %438 = vector.shape_cast %435 : vector<64x32xf32> to vector<1x64x32xf32>
    tpu.vector_store %arg15[%c0_168, %c0_169, %c0_170], %438 {strides = array<i32>} : memref<1x64x32xf32, #tpu.memory_space<vmem>>, vector<1x64x32xf32>,
    return
  }
  func.func @transform_0(%arg0: i32) -> (i32, i32, i32) {
    %c0_i32 = arith.constant 0 : i32
    %c0_i32_0 = arith.constant 0 : i32
    %c0_i32_1 = arith.constant 0 : i32
    return %arg0, %c0_i32, %c0_i32_0 : i32, i32, i32
  }
  func.func @transform_1(%arg0: i32) -> (i32, i32, i32) {
    %c0_i32 = arith.constant 0 : i32
    %c0_i32_0 = arith.constant 0 : i32
    %c0_i32_1 = arith.constant 0 : i32
    %c0_i32_2 = arith.constant 0 : i32
    return %c0_i32, %c0_i32_0, %c0_i32_1 : i32, i32, i32
  }
  func.func @transform_2(%arg0: i32) -> (i32, i32, i32) {
    %c0_i32 = arith.constant 0 : i32
    %c0_i32_0 = arith.constant 0 : i32
    %c0_i32_1 = arith.constant 0 : i32
    %c0_i32_2 = arith.constant 0 : i32
    return %c0_i32, %c0_i32_0, %c0_i32_1 : i32, i32, i32
  }
  func.func @transform_3(%arg0: i32) -> (i32, i32, i32) {
    %c0_i32 = arith.constant 0 : i32
    %c0_i32_0 = arith.constant 0 : i32
    %c0_i32_1 = arith.constant 0 : i32
    %c0_i32_2 = arith.constant 0 : i32
    return %c0_i32, %c0_i32_0, %c0_i32_1 : i32, i32, i32
  }
  func.func @transform_4(%arg0: i32) -> (i32, i32, i32) {
    %c0_i32 = arith.constant 0 : i32
    %c0_i32_0 = arith.constant 0 : i32
    %c0_i32_1 = arith.constant 0 : i32
    %c0_i32_2 = arith.constant 0 : i32
    return %c0_i32, %c0_i32_0, %c0_i32_1 : i32, i32, i32
  }
  func.func @transform_5(%arg0: i32) -> (i32, i32, i32) {
    %c0_i32 = arith.constant 0 : i32
    %c0_i32_0 = arith.constant 0 : i32
    %c0_i32_1 = arith.constant 0 : i32
    %c0_i32_2 = arith.constant 0 : i32
    return %c0_i32, %c0_i32_0, %c0_i32_1 : i32, i32, i32
  }
  func.func @transform_6(%arg0: i32) -> (i32, i32, i32) {
    %c0_i32 = arith.constant 0 : i32
    %c0_i32_0 = arith.constant 0 : i32
    %c0_i32_1 = arith.constant 0 : i32
    %c0_i32_2 = arith.constant 0 : i32
    return %c0_i32, %c0_i32_0, %c0_i32_1 : i32, i32, i32
  }
  func.func @transform_7(%arg0: i32) -> (i32, i32, i32) {
    %c0_i32 = arith.constant 0 : i32
    %c0_i32_0 = arith.constant 0 : i32
    %c0_i32_1 = arith.constant 0 : i32
    %c0_i32_2 = arith.constant 0 : i32
    return %c0_i32, %c0_i32_0, %c0_i32_1 : i32, i32, i32
  }
  func.func @transform_8(%arg0: i32) -> (i32, i32, i32) {
    %c0_i32 = arith.constant 0 : i32
    %c0_i32_0 = arith.constant 0 : i32
    %c0_i32_1 = arith.constant 0 : i32
    %c0_i32_2 = arith.constant 0 : i32
    return %c0_i32, %c0_i32_0, %c0_i32_1 : i32, i32, i32
  }
  func.func @transform_9(%arg0: i32) -> (i32, i32, i32) {
    %c0_i32 = arith.constant 0 : i32
    %c0_i32_0 = arith.constant 0 : i32
    %c0_i32_1 = arith.constant 0 : i32
    %c0_i32_2 = arith.constant 0 : i32
    return %c0_i32, %c0_i32_0, %c0_i32_1 : i32, i32, i32
  }
  func.func @transform_10(%arg0: i32) -> (i32, i32, i32) {
    %c0_i32 = arith.constant 0 : i32
    %c0_i32_0 = arith.constant 0 : i32
    %c0_i32_1 = arith.constant 0 : i32
    %c0_i32_2 = arith.constant 0 : i32
    return %c0_i32, %c0_i32_0, %c0_i32_1 : i32, i32, i32
  }
  func.func @transform_11(%arg0: i32) -> (i32, i32, i32) {
    %c0_i32 = arith.constant 0 : i32
    %c0_i32_0 = arith.constant 0 : i32
    %c0_i32_1 = arith.constant 0 : i32
    %c0_i32_2 = arith.constant 0 : i32
    return %c0_i32, %c0_i32_0, %c0_i32_1 : i32, i32, i32
  }
  func.func @transform_12(%arg0: i32) -> (i32, i32, i32) {
    %c0_i32 = arith.constant 0 : i32
    %c0_i32_0 = arith.constant 0 : i32
    %c0_i32_1 = arith.constant 0 : i32
    %c0_i32_2 = arith.constant 0 : i32
    return %c0_i32, %c0_i32_0, %c0_i32_1 : i32, i32, i32
  }
  func.func @transform_13(%arg0: i32) -> (i32, i32, i32, i32) {
    %c0_i32 = arith.constant 0 : i32
    %c0_i32_0 = arith.constant 0 : i32
    %c0_i32_1 = arith.constant 0 : i32
    %c0_i32_2 = arith.constant 0 : i32
    %c0_i32_3 = arith.constant 0 : i32
    return %c0_i32, %c0_i32_0, %c0_i32_1, %c0_i32_2 : i32, i32, i32, i32
  }
  func.func @transform_14(%arg0: i32) -> (i32, i32, i32) {
    %c0_i32 = arith.constant 0 : i32
    %c0_i32_0 = arith.constant 0 : i32
    %c0_i32_1 = arith.constant 0 : i32
    return %arg0, %c0_i32, %c0_i32_0 : i32, i32, i32
  }
}

</mosaic_0001>

<llo_original>
// kernel: tpu_custom_call.1
$region0: #{tpu_custom_call.1}
  #allocation0 [shape = 'u32[]', space=smem, size = 0x4, offset = 0x4, fixed_abs, tag = 'smem constant byte address 0x4 - core index']
  #allocation1 [shape = 'u32[72,128]{1,0:T(1,128)}', space=vmem, size = 0x9000, scoped, tag = 'internal scratch']
  %s0 = inlined_call_operand.vmem [shape: f32[2,64,32], index: 0, kind: input, shape index: {}]
  %s1 = inlined_call_operand.vmem [shape: f32[2,1,32], index: 1, kind: input, shape index: {}]
  %s2 = inlined_call_operand.vmem [shape: f32[2,1,32], index: 2, kind: input, shape index: {}]
  %s3 = inlined_call_operand.vmem [shape: f32[2,32,96], index: 3, kind: input, shape index: {}]
  %s4 = inlined_call_operand.vmem [shape: f32[2,1,96], index: 4, kind: input, shape index: {}]
  %s5 = inlined_call_operand.vmem [shape: f32[2,32,32], index: 5, kind: input, shape index: {}]
  %s6 = inlined_call_operand.vmem [shape: f32[2,1,32], index: 6, kind: input, shape index: {}]
  %s7 = inlined_call_operand.vmem [shape: f32[2,1,32], index: 7, kind: input, shape index: {}]
  %s8 = inlined_call_operand.vmem [shape: f32[2,1,32], index: 8, kind: input, shape index: {}]
  %s9 = inlined_call_operand.vmem [shape: f32[2,32,128], index: 9, kind: input, shape index: {}]
  %s10 = inlined_call_operand.vmem [shape: f32[2,1,128], index: 10, kind: input, shape index: {}]
  %s11 = inlined_call_operand.vmem [shape: f32[2,128,32], index: 11, kind: input, shape index: {}]
  %s12 = inlined_call_operand.vmem [shape: f32[2,1,32], index: 12, kind: input, shape index: {}]
  %s13 = inlined_call_operand.hbm [shape: f32[8,4,16,16], index: 13, kind: input, shape index: {}]
  %s14 = inlined_call_operand.vmem [shape: f32[2,64,32], index: 14, kind: output, shape index: {}]
  %s15 = sld [smem:[#allocation0]]
  $region93: #{tpu_custom_call.1} parent=0
    _
  %s17 = ssub.s32 1, %s15
  %s18 = scalar_select 0, %s17, %s15
  $region1: #{tpu_custom_call.1} parent=0
    #allocation2 [shape = 'u8[262144]{0}', space=vmem, size = 0x40000, scoped, tag = 'input window, operand 13, single buffered']
    #allocation3 [shape = 's32[2]{0}', space=sflag, size = 0x8, scoped, tag = 'scoped memory for tpu_custom_call.1']
    %19 = vsyncpa [#allocation3], 0
    loop: start=0, step=1, limit=4
    $region2: #{tpu_custom_call.1} parent=1 // loop_pre_header
      _
    $region3: #{tpu_custom_call.1} parent=1 // loop_header
      %s21 = sphi 0, %s25
      %p22 = scmp.ge.s32.totalorder %s21, 4
      %s31 = sphi 0, %s33
      %s34 = sphi 0, %s31
      %s35 = sphi 0, %s34
      %s51 = sphi 0, %s35
      %s55 = sphi 0, %s55
      %s57 = sphi 0, %s55
      %s58 = sphi 0, %s57
      %s72 = sphi 0, %s58
      %s76 = sphi 0, %s76
      %s78 = sphi 0, %s76
      %s79 = sphi 0, %s78
      %s93 = sphi 0, %s79
      %s97 = sphi 0, %s97
      %s99 = sphi 0, %s97
      %s100 = sphi 0, %s99
      %s114 = sphi 0, %s100
      %s118 = sphi 0, %s118
      %s120 = sphi 0, %s118
      %s121 = sphi 0, %s120
      %s135 = sphi 0, %s121
      %s139 = sphi 0, %s139
      %s141 = sphi 0, %s139
      %s142 = sphi 0, %s141
      %s156 = sphi 0, %s142
      %s160 = sphi 0, %s160
      %s162 = sphi 0, %s160
      %s163 = sphi 0, %s162
      %s177 = sphi 0, %s163
      %s181 = sphi 0, %s181
      %s183 = sphi 0, %s181
      %s184 = sphi 0, %s183
      %s198 = sphi 0, %s184
      %s202 = sphi 0, %s202
      %s204 = sphi 0, %s202
      %s205 = sphi 0, %s204
      %s219 = sphi 0, %s205
      %s223 = sphi 0, %s223
      %s225 = sphi 0, %s223
      %s226 = sphi 0, %s225
      %s240 = sphi 0, %s226
      %s244 = sphi 0, %s244
      %s246 = sphi 0, %s244
      %s247 = sphi 0, %s246
      %s261 = sphi 0, %s247
      %s265 = sphi 0, %s265
      %s267 = sphi 0, %s265
      %s268 = sphi 0, %s267
      %s282 = sphi 0, %s268
      %s286 = sphi 0, %s286
      %s288 = sphi 0, %s286
      %s289 = sphi 0, %s288
      %s303 = sphi 0, %s289
      %s307 = sphi 0, %s307
      %s309 = sphi 0, %s307
      %s310 = sphi 0, %s309
      %s324 = sphi 0, %s310
      %s330 = sphi 0, %s332
      %s333 = sphi 0, %s330
      %s334 = sphi 0, %s333
      %s350 = sphi 0, %s334
    $region4: #{tpu_custom_call.1} parent=1 // loop_header_branch
      %24 = sbr.rel (%p22) target = $region8
    $region5: #{tpu_custom_call.1} parent=1 // loop_body
      %s26 = ssub.s32 %s21, 1
      %s27 = ssub.s32 %s21, 2
      %s28 = sadd.s32 %s21, 1
      %s29 = ssub.s32 %s21, %s28
      %p30 = scmp.eq.s32.totalorder %s29, 0
      %s32 = sadd.s32 %s31, 1
      %s33 = scalar_select %p30, %s31, %s32
      %p36 = pneg %p30
      %p37 = scmp.eq.s32.totalorder %s21, 1
      %p38 = por %p36, %p37
      %p39 = scmp.ne.s32.totalorder %s31, %s34
      %p40 = scmp.eq.s32.totalorder %s21, 0
      %p41 = por %p39, %p40
      %p42 = scmp.ne.s32.totalorder %s31, %s34
      %p43 = scmp.eq.s32.totalorder %s26, 1
      %p44 = por %p42, %p43
      %p45 = scmp.ne.s32.totalorder %s34, %s35
      %p46 = scmp.eq.s32.totalorder %s26, 0
      %p47 = por %p45, %p46
      %p48 = scmp.ne.s32.totalorder %s34, %s35
      %p49 = scmp.eq.s32.totalorder %s27, 1
      %p50 = por %p48, %p49
      %p52 = scmp.ne.s32.totalorder %s35, %s51
      %p53 = scmp.eq.s32.totalorder %s27, 0
      %p54 = por %p52, %p53
      %s56 = sadd.s32 %s55, 1
      %p59 = scmp.eq.s32.totalorder %s21, 1
      %p60 = scmp.ne.s32.totalorder %s55, %s57
      %p61 = scmp.eq.s32.totalorder %s21, 0
      %p62 = por %p60, %p61
      %p63 = scmp.ne.s32.totalorder %s55, %s57
      %p64 = scmp.eq.s32.totalorder %s26, 1
      %p65 = por %p63, %p64
      %p66 = scmp.ne.s32.totalorder %s57, %s58
      %p67 = scmp.eq.s32.totalorder %s26, 0
      %p68 = por %p66, %p67
      %p69 = scmp.ne.s32.totalorder %s57, %s58
      %p70 = scmp.eq.s32.totalorder %s27, 1
      %p71 = por %p69, %p70
      %p73 = scmp.ne.s32.totalorder %s58, %s72
      %p74 = scmp.eq.s32.totalorder %s27, 0
      %p75 = por %p73, %p74
      %s77 = sadd.s32 %s76, 1
      %p80 = scmp.eq.s32.totalorder %s21, 1
      %p81 = scmp.ne.s32.totalorder %s76, %s78
      %p82 = scmp.eq.s32.totalorder %s21, 0
      %p83 = por %p81, %p82
      %p84 = scmp.ne.s32.totalorder %s76, %s78
      %p85 = scmp.eq.s32.totalorder %s26, 1
      %p86 = por %p84, %p85
      %p87 = scmp.ne.s32.totalorder %s78, %s79
      %p88 = scmp.eq.s32.totalorder %s26, 0
      %p89 = por %p87, %p88
      %p90 = scmp.ne.s32.totalorder %s78, %s79
      %p91 = scmp.eq.s32.totalorder %s27, 1
      %p92 = por %p90, %p91
      %p94 = scmp.ne.s32.totalorder %s79, %s93
      %p95 = scmp.eq.s32.totalorder %s27, 0
      %p96 = por %p94, %p95
      %s98 = sadd.s32 %s97, 1
      %p101 = scmp.eq.s32.totalorder %s21, 1
      %p102 = scmp.ne.s32.totalorder %s97, %s99
      %p103 = scmp.eq.s32.totalorder %s21, 0
      %p104 = por %p102, %p103
      %p105 = scmp.ne.s32.totalorder %s97, %s99
      %p106 = scmp.eq.s32.totalorder %s26, 1
      %p107 = por %p105, %p106
      %p108 = scmp.ne.s32.totalorder %s99, %s100
      %p109 = scmp.eq.s32.totalorder %s26, 0
      %p110 = por %p108, %p109
      %p111 = scmp.ne.s32.totalorder %s99, %s100
      %p112 = scmp.eq.s32.totalorder %s27, 1
      %p113 = por %p111, %p112
      %p115 = scmp.ne.s32.totalorder %s100, %s114
      %p116 = scmp.eq.s32.totalorder %s27, 0
      %p117 = por %p115, %p116
      %s119 = sadd.s32 %s118, 1
      %p122 = scmp.eq.s32.totalorder %s21, 1
      %p123 = scmp.ne.s32.totalorder %s118, %s120
      %p124 = scmp.eq.s32.totalorder %s21, 0
      %p125 = por %p123, %p124
      %p126 = scmp.ne.s32.totalorder %s118, %s120
      %p127 = scmp.eq.s32.totalorder %s26, 1
      %p128 = por %p126, %p127
      %p129 = scmp.ne.s32.totalorder %s120, %s121
      %p130 = scmp.eq.s32.totalorder %s26, 0
      %p131 = por %p129, %p130
      %p132 = scmp.ne.s32.totalorder %s120, %s121
      %p133 = scmp.eq.s32.totalorder %s27, 1
      %p134 = por %p132, %p133
      %p136 = scmp.ne.s32.totalorder %s121, %s135
      %p137 = scmp.eq.s32.totalorder %s27, 0
      %p138 = por %p136, %p137
      %s140 = sadd.s32 %s139, 1
      %p143 = scmp.eq.s32.totalorder %s21, 1
      %p144 = scmp.ne.s32.totalorder %s139, %s141
      %p145 = scmp.eq.s32.totalorder %s21, 0
      %p146 = por %p144, %p145
      %p147 = scmp.ne.s32.totalorder %s139, %s141
      %p148 = scmp.eq.s32.totalorder %s26, 1
      %p149 = por %p147, %p148
      %p150 = scmp.ne.s32.totalorder %s141, %s142
      %p151 = scmp.eq.s32.totalorder %s26, 0
      %p152 = por %p150, %p151
      %p153 = scmp.ne.s32.totalorder %s141, %s142
      %p154 = scmp.eq.s32.totalorder %s27, 1
      %p155 = por %p153, %p154
      %p157 = scmp.ne.s32.totalorder %s142, %s156
      %p158 = scmp.eq.s32.totalorder %s27, 0
      %p159 = por %p157, %p158
      %s161 = sadd.s32 %s160, 1
      %p164 = scmp.eq.s32.totalorder %s21, 1
      %p165 = scmp.ne.s32.totalorder %s160, %s162
      %p166 = scmp.eq.s32.totalorder %s21, 0
      %p167 = por %p165, %p166
      %p168 = scmp.ne.s32.totalorder %s160, %s162
      %p169 = scmp.eq.s32.totalorder %s26, 1
      %p170 = por %p168, %p169
      %p171 = scmp.ne.s32.totalorder %s162, %s163
      %p172 = scmp.eq.s32.totalorder %s26, 0
      %p173 = por %p171, %p172
      %p174 = scmp.ne.s32.totalorder %s162, %s163
      %p175 = scmp.eq.s32.totalorder %s27, 1
      %p176 = por %p174, %p175
      %p178 = scmp.ne.s32.totalorder %s163, %s177
      %p179 = scmp.eq.s32.totalorder %s27, 0
      %p180 = por %p178, %p179
      %s182 = sadd.s32 %s181, 1
      %p185 = scmp.eq.s32.totalorder %s21, 1
      %p186 = scmp.ne.s32.totalorder %s181, %s183
      %p187 = scmp.eq.s32.totalorder %s21, 0
      %p188 = por %p186, %p187
      %p189 = scmp.ne.s32.totalorder %s181, %s183
      %p190 = scmp.eq.s32.totalorder %s26, 1
      %p191 = por %p189, %p190
      %p192 = scmp.ne.s32.totalorder %s183, %s184
      %p193 = scmp.eq.s32.totalorder %s26, 0
      %p194 = por %p192, %p193
      %p195 = scmp.ne.s32.totalorder %s183, %s184
      %p196 = scmp.eq.s32.totalorder %s27, 1
      %p197 = por %p195, %p196
      %p199 = scmp.ne.s32.totalorder %s184, %s198
      %p200 = scmp.eq.s32.totalorder %s27, 0
      %p201 = por %p199, %p200
      %s203 = sadd.s32 %s202, 1
      %p206 = scmp.eq.s32.totalorder %s21, 1
      %p207 = scmp.ne.s32.totalorder %s202, %s204
      %p208 = scmp.eq.s32.totalorder %s21, 0
      %p209 = por %p207, %p208
      %p210 = scmp.ne.s32.totalorder %s202, %s204
      %p211 = scmp.eq.s32.totalorder %s26, 1
      %p212 = por %p210, %p211
      %p213 = scmp.ne.s32.totalorder %s204, %s205
      %p214 = scmp.eq.s32.totalorder %s26, 0
      %p215 = por %p213, %p214
      %p216 = scmp.ne.s32.totalorder %s204, %s205
      %p217 = scmp.eq.s32.totalorder %s27, 1
      %p218 = por %p216, %p217
      %p220 = scmp.ne.s32.totalorder %s205, %s219
      %p221 = scmp.eq.s32.totalorder %s27, 0
      %p222 = por %p220, %p221
      %s224 = sadd.s32 %s223, 1
      %p227 = scmp.eq.s32.totalorder %s21, 1
      %p228 = scmp.ne.s32.totalorder %s223, %s225
      %p229 = scmp.eq.s32.totalorder %s21, 0
      %p230 = por %p228, %p229
      %p231 = scmp.ne.s32.totalorder %s223, %s225
      %p232 = scmp.eq.s32.totalorder %s26, 1
      %p233 = por %p231, %p232
      %p234 = scmp.ne.s32.totalorder %s225, %s226
      %p235 = scmp.eq.s32.totalorder %s26, 0
      %p236 = por %p234, %p235
      %p237 = scmp.ne.s32.totalorder %s225, %s226
      %p238 = scmp.eq.s32.totalorder %s27, 1
      %p239 = por %p237, %p238
      %p241 = scmp.ne.s32.totalorder %s226, %s240
      %p242 = scmp.eq.s32.totalorder %s27, 0
      %p243 = por %p241, %p242
      %s245 = sadd.s32 %s244, 1
      %p248 = scmp.eq.s32.totalorder %s21, 1
      %p249 = scmp.ne.s32.totalorder %s244, %s246
      %p250 = scmp.eq.s32.totalorder %s21, 0
      %p251 = por %p249, %p250
      %p252 = scmp.ne.s32.totalorder %s244, %s246
      %p253 = scmp.eq.s32.totalorder %s26, 1
      %p254 = por %p252, %p253
      %p255 = scmp.ne.s32.totalorder %s246, %s247
      %p256 = scmp.eq.s32.totalorder %s26, 0
      %p257 = por %p255, %p256
      %p258 = scmp.ne.s32.totalorder %s246, %s247
      %p259 = scmp.eq.s32.totalorder %s27, 1
      %p260 = por %p258, %p259
      %p262 = scmp.ne.s32.totalorder %s247, %s261
      %p263 = scmp.eq.s32.totalorder %s27, 0
      %p264 = por %p262, %p263
      %s266 = sadd.s32 %s265, 1
      %p269 = scmp.eq.s32.totalorder %s21, 1
      %p270 = scmp.ne.s32.totalorder %s265, %s267
      %p271 = scmp.eq.s32.totalorder %s21, 0
      %p272 = por %p270, %p271
      %p273 = scmp.ne.s32.totalorder %s265, %s267
      %p274 = scmp.eq.s32.totalorder %s26, 1
      %p275 = por %p273, %p274
      %p276 = scmp.ne.s32.totalorder %s267, %s268
      %p277 = scmp.eq.s32.totalorder %s26, 0
      %p278 = por %p276, %p277
      %p279 = scmp.ne.s32.totalorder %s267, %s268
      %p280 = scmp.eq.s32.totalorder %s27, 1
      %p281 = por %p279, %p280
      %p283 = scmp.ne.s32.totalorder %s268, %s282
      %p284 = scmp.eq.s32.totalorder %s27, 0
      %p285 = por %p283, %p284
      %s287 = sadd.s32 %s286, 1
      %p290 = scmp.eq.s32.totalorder %s21, 1
      %p291 = scmp.ne.s32.totalorder %s286, %s288
      %p292 = scmp.eq.s32.totalorder %s21, 0
      %p293 = por %p291, %p292
      %p294 = scmp.ne.s32.totalorder %s286, %s288
      %p295 = scmp.eq.s32.totalorder %s26, 1
      %p296 = por %p294, %p295
      %p297 = scmp.ne.s32.totalorder %s288, %s289
      %p298 = scmp.eq.s32.totalorder %s26, 0
      %p299 = por %p297, %p298
      %p300 = scmp.ne.s32.totalorder %s288, %s289
      %p301 = scmp.eq.s32.totalorder %s27, 1
      %p302 = por %p300, %p301
      %p304 = scmp.ne.s32.totalorder %s289, %s303
      %p305 = scmp.eq.s32.totalorder %s27, 0
      %p306 = por %p304, %p305
      %s308 = sadd.s32 %s307, 1
      %p311 = scmp.eq.s32.totalorder %s21, 1
      %p312 = scmp.ne.s32.totalorder %s307, %s309
      %p313 = scmp.eq.s32.totalorder %s21, 0
      %p314 = por %p312, %p313
      %p315 = scmp.ne.s32.totalorder %s307, %s309
      %p316 = scmp.eq.s32.totalorder %s26, 1
      %p317 = por %p315, %p316
      %p318 = scmp.ne.s32.totalorder %s309, %s310
      %p319 = scmp.eq.s32.totalorder %s26, 0
      %p320 = por %p318, %p319
      %p321 = scmp.ne.s32.totalorder %s309, %s310
      %p322 = scmp.eq.s32.totalorder %s27, 1
      %p323 = por %p321, %p322
      %p325 = scmp.ne.s32.totalorder %s310, %s324
      %p326 = scmp.eq.s32.totalorder %s27, 0
      %p327 = por %p325, %p326
      %s328 = ssub.s32 %s21, %s28
      %p329 = scmp.eq.s32.totalorder %s328, 0
      %s331 = sadd.s32 %s330, 1
      %s332 = scalar_select %p329, %s330, %s331
      %p335 = pneg %p329
      %p336 = scmp.eq.s32.totalorder %s21, 1
      %p337 = por %p335, %p336
      %p338 = scmp.ne.s32.totalorder %s330, %s333
      %p339 = scmp.eq.s32.totalorder %s21, 0
      %p340 = por %p338, %p339
      %p341 = scmp.ne.s32.totalorder %s330, %s333
      %p342 = scmp.eq.s32.totalorder %s26, 1
      %p343 = por %p341, %p342
      %p344 = scmp.ne.s32.totalorder %s333, %s334
      %p345 = scmp.eq.s32.totalorder %s26, 0
      %p346 = por %p344, %p345
      %p347 = scmp.ne.s32.totalorder %s333, %s334
      %p348 = scmp.eq.s32.totalorder %s27, 1
      %p349 = por %p347, %p348
      %p351 = scmp.ne.s32.totalorder %s334, %s350
      %p352 = scmp.eq.s32.totalorder %s27, 0
      %p353 = por %p351, %p352
      %p354 = scmp.le.s32.totalorder 1, %s21
      %p355 = scmp.lt.s32.totalorder %s21, 3
      %p356 = pnand %p354, %p355
      %p357 = pneg %p356
      // Predicated region
      $region9: #{tpu_custom_call.1} parent=5 // pred_check
        _
      $region10: #{tpu_custom_call.1} parent=5 // pred_check_branch
        %359 = sbr.rel (%p356) target = $region12
      $region11: #{tpu_custom_call.1} parent=5 // pred_region
        %s360 = ssub.s32 %s21, 1
        // Predicated region
        $region13: #{tpu_custom_call.1} parent=11 // pred_check
          %p361 = pneg %p68
        $region14: #{tpu_custom_call.1} parent=11 // pred_check_branch
          %363 = sbr.rel (%p361) target = $region16
        $region15: #{tpu_custom_call.1} parent=11 // pred_region
          _
        $region16: #{tpu_custom_call.1} parent=11 // pred_fallthru
          _
        // Predicated region
        $region17: #{tpu_custom_call.1} parent=11 // pred_check
          %p364 = pneg %p89
        $region18: #{tpu_custom_call.1} parent=11 // pred_check_branch
          %366 = sbr.rel (%p364) target = $region20
        $region19: #{tpu_custom_call.1} parent=11 // pred_region
          _
        $region20: #{tpu_custom_call.1} parent=11 // pred_fallthru
          _
        // Predicated region
        $region21: #{tpu_custom_call.1} parent=11 // pred_check
          %p367 = pneg %p110
        $region22: #{tpu_custom_call.1} parent=11 // pred_check_branch
          %369 = sbr.rel (%p367) target = $region24
        $region23: #{tpu_custom_call.1} parent=11 // pred_region
          _
        $region24: #{tpu_custom_call.1} parent=11 // pred_fallthru
          _
        // Predicated region
        $region25: #{tpu_custom_call.1} parent=11 // pred_check
          %p370 = pneg %p131
        $region26: #{tpu_custom_call.1} parent=11 // pred_check_branch
          %372 = sbr.rel (%p370) target = $region28
        $region27: #{tpu_custom_call.1} parent=11 // pred_region
          _
        $region28: #{tpu_custom_call.1} parent=11 // pred_fallthru
          _
        // Predicated region
        $region29: #{tpu_custom_call.1} parent=11 // pred_check
          %p373 = pneg %p152
        $region30: #{tpu_custom_call.1} parent=11 // pred_check_branch
          %375 = sbr.rel (%p373) target = $region32
        $region31: #{tpu_custom_call.1} parent=11 // pred_region
          _
        $region32: #{tpu_custom_call.1} parent=11 // pred_fallthru
          _
        // Predicated region
        $region33: #{tpu_custom_call.1} parent=11 // pred_check
          %p376 = pneg %p173
        $region34: #{tpu_custom_call.1} parent=11 // pred_check_branch
          %378 = sbr.rel (%p376) target = $region36
        $region35: #{tpu_custom_call.1} parent=11 // pred_region
          _
        $region36: #{tpu_custom_call.1} parent=11 // pred_fallthru
          _
        // Predicated region
        $region37: #{tpu_custom_call.1} parent=11 // pred_check
          %p379 = pneg %p194
        $region38: #{tpu_custom_call.1} parent=11 // pred_check_branch
          %381 = sbr.rel (%p379) target = $region40
        $region39: #{tpu_custom_call.1} parent=11 // pred_region
          _
        $region40: #{tpu_custom_call.1} parent=11 // pred_fallthru
          _
        // Predicated region
        $region41: #{tpu_custom_call.1} parent=11 // pred_check
          %p382 = pneg %p215
        $region42: #{tpu_custom_call.1} parent=11 // pred_check_branch
          %384 = sbr.rel (%p382) target = $region44
        $region43: #{tpu_custom_call.1} parent=11 // pred_region
          _
        $region44: #{tpu_custom_call.1} parent=11 // pred_fallthru
          _
        // Predicated region
        $region45: #{tpu_custom_call.1} parent=11 // pred_check
          %p385 = pneg %p236
        $region46: #{tpu_custom_call.1} parent=11 // pred_check_branch
          %387 = sbr.rel (%p385) target = $region48
        $region47: #{tpu_custom_call.1} parent=11 // pred_region
          _
        $region48: #{tpu_custom_call.1} parent=11 // pred_fallthru
          _
        // Predicated region
        $region49: #{tpu_custom_call.1} parent=11 // pred_check
          %p388 = pneg %p257
        $region50: #{tpu_custom_call.1} parent=11 // pred_check_branch
          %390 = sbr.rel (%p388) target = $region52
        $region51: #{tpu_custom_call.1} parent=11 // pred_region
          _
        $region52: #{tpu_custom_call.1} parent=11 // pred_fallthru
          _
        // Predicated region
        $region53: #{tpu_custom_call.1} parent=11 // pred_check
          %p391 = pneg %p278
        $region54: #{tpu_custom_call.1} parent=11 // pred_check_branch
          %393 = sbr.rel (%p391) target = $region56
        $region55: #{tpu_custom_call.1} parent=11 // pred_region
          _
        $region56: #{tpu_custom_call.1} parent=11 // pred_fallthru
          _
        // Predicated region
        $region57: #{tpu_custom_call.1} parent=11 // pred_check
          %p394 = pneg %p299
        $region58: #{tpu_custom_call.1} parent=11 // pred_check_branch
          %396 = sbr.rel (%p394) target = $region60
        $region59: #{tpu_custom_call.1} parent=11 // pred_region
          _
        $region60: #{tpu_custom_call.1} parent=11 // pred_fallthru
          _
        // Predicated region
        $region61: #{tpu_custom_call.1} parent=11 // pred_check
          %p397 = pneg %p320
        $region62: #{tpu_custom_call.1} parent=11 // pred_check_branch
          %399 = sbr.rel (%p397) target = $region64
        $region63: #{tpu_custom_call.1} parent=11 // pred_region
          %401 = vsyncadd [#allocation3], 0
          %s402 = sshll.u32 %s13, 4
          %s403 = int_to_ptr.hbm [resolvable:$true] %s402
          %s404 = sshll.u32 [#allocation2], 4
          %s405 = int_to_ptr.vmem [resolvable:$true] %s404
          %410 = dma.hbm_to_vmem [thread:$0]  %s403, 8192, %s405, [#allocation3], 128, 128, 8
        $region64: #{tpu_custom_call.1} parent=11 // pred_fallthru
          _
      $region12: #{tpu_custom_call.1} parent=5 // pred_fallthru
        _
      %p411 = scmp.lt.s32.totalorder %s21, 2
      // Predicated region
      $region65: #{tpu_custom_call.1} parent=5 // pred_check
        %p412 = pneg %p411
      $region66: #{tpu_custom_call.1} parent=5 // pred_check_branch
        %414 = sbr.rel (%p412) target = $region68
      $region67: #{tpu_custom_call.1} parent=5 // pred_region
        // Predicated region
        $region69: #{tpu_custom_call.1} parent=67 // pred_check
          %p415 = pneg %p41
        $region70: #{tpu_custom_call.1} parent=67 // pred_check_branch
          %417 = sbr.rel (%p415) target = $region72
        $region71: #{tpu_custom_call.1} parent=67 // pred_region
          %p418 = scmp.lt.s32.totalorder %s21, 1
          %s419 = scalar_select %p418, %s21, 1
          %s420 = smul.addr %s419, 8
          %s421 = smul.addr %s420, 8
          %s422 = scalar_lea.vmem %s0, %s421
        $region72: #{tpu_custom_call.1} parent=67 // pred_fallthru
          _
      $region68: #{tpu_custom_call.1} parent=5 // pred_fallthru
        _
      %p423 = scmp.le.s32.totalorder 1, %s21
      %p424 = scmp.lt.s32.totalorder %s21, 3
      %p425 = pnand %p423, %p424
      %p426 = pneg %p425
      // Predicated region
      $region73: #{tpu_custom_call.1} parent=5 // pred_check
        _
      $region74: #{tpu_custom_call.1} parent=5 // pred_check_branch
        %428 = sbr.rel (%p425) target = $region76
      $region75: #{tpu_custom_call.1} parent=5 // pred_region
        %s429 = ssub.s32 %s21, 1
        // Predicated region
        $region77: #{tpu_custom_call.1} parent=75 // pred_check
          %p430 = pneg %p320
        $region78: #{tpu_custom_call.1} parent=75 // pred_check_branch
          %432 = sbr.rel (%p430) target = $region80
        $region79: #{tpu_custom_call.1} parent=75 // pred_region
          %434 = dma.done [#allocation3], 8192
        $region80: #{tpu_custom_call.1} parent=75 // pred_fallthru
          _
        %p435 = scmp.lt.s32.totalorder %s26, 1
        %s436 = scalar_select %p435, %s26, 1
        %s437 = smul.addr %s436, 8
        %s438 = smul.addr %s437, 8
        %s439 = scalar_lea.vmem %s0, %s438
        %p440 = pneg %p47
        %p441 = pneg %p44
        %p442 = pneg %p68
        %p443 = pneg %p65
        %p444 = pneg %p89
        %p445 = pneg %p86
        %p446 = pneg %p110
        %p447 = pneg %p107
        %p448 = pneg %p131
        %p449 = pneg %p128
        %p450 = pneg %p152
        %p451 = pneg %p149
        %p452 = pneg %p173
        %p453 = pneg %p170
        %p454 = pneg %p194
        %p455 = pneg %p191
        %p456 = pneg %p215
        %p457 = pneg %p212
        %p458 = pneg %p236
        %p459 = pneg %p233
        %p460 = pneg %p257
        %p461 = pneg %p254
        %p462 = pneg %p278
        %p463 = pneg %p275
        %p464 = pneg %p299
        %p465 = pneg %p296
        %p466 = pneg %p320
        %p467 = pneg %p317
        %p468 = pneg %p346
        %p469 = pneg %p343
        %p470 = scmp.lt.s32.totalorder %s26, 1
        %s471 = scalar_select %p470, %s26, 1
        %s472 = smul.addr %s471, 8
        %s473 = smul.addr %s472, 8
        %s474 = scalar_lea.vmem %s14, %s473
        %p475 = scmp.lt.s32.totalorder %s26, 1
        %s476 = scalar_select %p475, %s26, 1
        %s477 = smul.addr %s476, 8
        %s478 = smul.addr %s477, 8
        %s479 = scalar_lea.vmem %s0, %s478
        %p480 = scmp.lt.s32.totalorder %s26, 1
        %s481 = scalar_select %p480, %s26, 1
        %s482 = smul.addr %s481, 8
        %s483 = smul.addr %s482, 8
        %s484 = scalar_lea.vmem %s14, %s483
        %v485 = vld [vmem:[%s479] sm:$0xff]
        %v486 = vld [vmem:[%s479 + $0x8] sm:$0xff]
        %v487 = vld [vmem:[%s479 + $0x10] sm:$0xff]
        %v488 = vld [vmem:[%s479 + $0x18] sm:$0xff]
        %v489 = vld [vmem:[%s479 + $0x20] sm:$0xff]
        %v490 = vld [vmem:[%s479 + $0x28] sm:$0xff]
        %v491 = vld [vmem:[%s479 + $0x30] sm:$0xff]
        %v492 = vld [vmem:[%s479 + $0x38] sm:$0xff]
        %v493 = vld [vmem:[%s1] sm:$0x1]
        %v494 = vld [vmem:[%s2] sm:$0x1]
        %vm495 = vcmask 261120
        %v496 = vsel %vm495, %v485, 0.0
        %497 = vadd.xlane.f32.xlu0 %v496
        %v498 = vpop.xlane.xlu0 %497
        %v499 = vsel %vm495, %v486, 0.0
        %500 = vadd.xlane.f32.xlu0 %v499
        %v501 = vpop.xlane.xlu0 %500
        %v502 = vsel %vm495, %v487, 0.0
        %503 = vadd.xlane.f32.xlu0 %v502
        %v504 = vpop.xlane.xlu0 %503
        %v505 = vsel %vm495, %v488, 0.0
        %506 = vadd.xlane.f32.xlu0 %v505
        %v507 = vpop.xlane.xlu0 %506
        %v508 = vsel %vm495, %v489, 0.0
        %509 = vadd.xlane.f32.xlu0 %v508
        %v510 = vpop.xlane.xlu0 %509
        %v511 = vsel %vm495, %v490, 0.0
        %512 = vadd.xlane.f32.xlu0 %v511
        %v513 = vpop.xlane.xlu0 %512
        %v514 = vsel %vm495, %v491, 0.0
        %515 = vadd.xlane.f32.xlu0 %v514
        %v516 = vpop.xlane.xlu0 %515
        %v517 = vsel %vm495, %v492, 0.0
        %518 = vadd.xlane.f32.xlu0 %v517
        %v519 = vpop.xlane.xlu0 %518
        %v520 = vrcp.pop 32.0
        %v521 = vmul.f32 32.0, %v520
        %v522 = vsub.f32 1.0, %v521
        %v523 = vmul.f32 %v520, %v522
        %v524 = vadd.f32 %v520, %v523
        %vm525 = vweird.f32 %v520
        %v526 = vsel %vm525, %v520, %v524
        %v527 = vmul.f32 %v498, %v526
        %v528 = vmul.f32 %v501, %v526
        %v529 = vmul.f32 %v504, %v526
        %v530 = vmul.f32 %v507, %v526
        %v531 = vmul.f32 %v510, %v526
        %v532 = vmul.f32 %v513, %v526
        %v533 = vmul.f32 %v516, %v526
        %v534 = vmul.f32 %v519, %v526
        %v535 = vsub.f32 %v485, %v527
        %v536 = vsub.f32 %v486, %v528
        %v537 = vsub.f32 %v487, %v529
        %v538 = vsub.f32 %v488, %v530
        %v539 = vsub.f32 %v489, %v531
        %v540 = vsub.f32 %v490, %v532
        %v541 = vsub.f32 %v491, %v533
        %v542 = vsub.f32 %v492, %v534
        %v543 = vmul.f32 %v535, %v535
        %v544 = vmul.f32 %v536, %v536
        %v545 = vmul.f32 %v537, %v537
        %v546 = vmul.f32 %v538, %v538
        %v547 = vmul.f32 %v539, %v539
        %v548 = vmul.f32 %v540, %v540
        %v549 = vmul.f32 %v541, %v541
        %v550 = vmul.f32 %v542, %v542
        %v551 = vsel %vm495, %v543, 0.0
        %552 = vadd.xlane.f32.xlu0 %v551
        %v553 = vpop.xlane.xlu0 %552
        %v554 = vsel %vm495, %v544, 0.0
        %555 = vadd.xlane.f32.xlu0 %v554
        %v556 = vpop.xlane.xlu0 %555
        %v557 = vsel %vm495, %v545, 0.0
        %558 = vadd.xlane.f32.xlu0 %v557
        %v559 = vpop.xlane.xlu0 %558
        %v560 = vsel %vm495, %v546, 0.0
        %561 = vadd.xlane.f32.xlu0 %v560
        %v562 = vpop.xlane.xlu0 %561
        %v563 = vsel %vm495, %v547, 0.0
        %564 = vadd.xlane.f32.xlu0 %v563
        %v565 = vpop.xlane.xlu0 %564
        %v566 = vsel %vm495, %v548, 0.0
        %567 = vadd.xlane.f32.xlu0 %v566
        %v568 = vpop.xlane.xlu0 %567
        %v569 = vsel %vm495, %v549, 0.0
        %570 = vadd.xlane.f32.xlu0 %v569
        %v571 = vpop.xlane.xlu0 %570
        %v572 = vsel %vm495, %v550, 0.0
        %573 = vadd.xlane.f32.xlu0 %v572
        %v574 = vpop.xlane.xlu0 %573
        %v575 = vmul.f32 %v553, %v526
        %v576 = vmul.f32 %v556, %v526
        %v577 = vmul.f32 %v559, %v526
        %v578 = vmul.f32 %v562, %v526
        %v579 = vmul.f32 %v565, %v526
        %v580 = vmul.f32 %v568, %v526
        %v581 = vmul.f32 %v571, %v526
        %v582 = vmul.f32 %v574, %v526
        %v583 = vadd.f32 %v575, 1e-05
        %v584 = vadd.f32 %v576, 1e-05
        %v585 = vadd.f32 %v577, 1e-05
        %v586 = vadd.f32 %v578, 1e-05
        %v587 = vadd.f32 %v579, 1e-05
        %v588 = vadd.f32 %v580, 1e-05
        %v589 = vadd.f32 %v581, 1e-05
        %v590 = vadd.f32 %v582, 1e-05
        %v591 = vrsqrt.pop %v583
        %v592 = vmul.f32 %v591, %v583
        %v593 = vmul.f32 %v592, %v591
        %v594 = vmul.f32 0.5, %v593
        %v595 = vsub.f32 1.5, %v594
        %v596 = vmul.f32 %v591, %v595
        %vm597 = vweird.f32 %v583
        %vm598 = vweird.f32 %v591
        %vm599 = vmor %vm597, %vm598
        %v600 = vsel %vm599, %v591, %v596
        %v601 = vrsqrt.pop %v584
        %v602 = vmul.f32 %v601, %v584
        %v603 = vmul.f32 %v602, %v601
        %v604 = vmul.f32 0.5, %v603
        %v605 = vsub.f32 1.5, %v604
        %v606 = vmul.f32 %v601, %v605
        %vm607 = vweird.f32 %v584
        %vm608 = vweird.f32 %v601
        %vm609 = vmor %vm607, %vm608
        %v610 = vsel %vm609, %v601, %v606
        %v611 = vrsqrt.pop %v585
        %v612 = vmul.f32 %v611, %v585
        %v613 = vmul.f32 %v612, %v611
        %v614 = vmul.f32 0.5, %v613
        %v615 = vsub.f32 1.5, %v614
        %v616 = vmul.f32 %v611, %v615
        %vm617 = vweird.f32 %v585
        %vm618 = vweird.f32 %v611
        %vm619 = vmor %vm617, %vm618
        %v620 = vsel %vm619, %v611, %v616
        %v621 = vrsqrt.pop %v586
        %v622 = vmul.f32 %v621, %v586
        %v623 = vmul.f32 %v622, %v621
        %v624 = vmul.f32 0.5, %v623
        %v625 = vsub.f32 1.5, %v624
        %v626 = vmul.f32 %v621, %v625
        %vm627 = vweird.f32 %v586
        %vm628 = vweird.f32 %v621
        %vm629 = vmor %vm627, %vm628
        %v630 = vsel %vm629, %v621, %v626
        %v631 = vrsqrt.pop %v587
        %v632 = vmul.f32 %v631, %v587
        %v633 = vmul.f32 %v632, %v631
        %v634 = vmul.f32 0.5, %v633
        %v635 = vsub.f32 1.5, %v634
        %v636 = vmul.f32 %v631, %v635
        %vm637 = vweird.f32 %v587
        %vm638 = vweird.f32 %v631
        %vm639 = vmor %vm637, %vm638
        %v640 = vsel %vm639, %v631, %v636
        %v641 = vrsqrt.pop %v588
        %v642 = vmul.f32 %v641, %v588
        %v643 = vmul.f32 %v642, %v641
        %v644 = vmul.f32 0.5, %v643
        %v645 = vsub.f32 1.5, %v644
        %v646 = vmul.f32 %v641, %v645
        %vm647 = vweird.f32 %v588
        %vm648 = vweird.f32 %v641
        %vm649 = vmor %vm647, %vm648
        %v650 = vsel %vm649, %v641, %v646
        %v651 = vrsqrt.pop %v589
        %v652 = vmul.f32 %v651, %v589
        %v653 = vmul.f32 %v652, %v651
        %v654 = vmul.f32 0.5, %v653
        %v655 = vsub.f32 1.5, %v654
        %v656 = vmul.f32 %v651, %v655
        %vm657 = vweird.f32 %v589
        %vm658 = vweird.f32 %v651
        %vm659 = vmor %vm657, %vm658
        %v660 = vsel %vm659, %v651, %v656
        %v661 = vrsqrt.pop %v590
        %v662 = vmul.f32 %v661, %v590
        %v663 = vmul.f32 %v662, %v661
        %v664 = vmul.f32 0.5, %v663
        %v665 = vsub.f32 1.5, %v664
        %v666 = vmul.f32 %v661, %v665
        %vm667 = vweird.f32 %v590
        %vm668 = vweird.f32 %v661
        %vm669 = vmor %vm667, %vm668
        %v670 = vsel %vm669, %v661, %v666
        %v671 = vmul.f32 %v535, %v600
        %v672 = vmul.f32 %v536, %v610
        %v673 = vmul.f32 %v537, %v620
        %v674 = vmul.f32 %v538, %v630
        %v675 = vmul.f32 %v539, %v640
        %v676 = vmul.f32 %v540, %v650
        %v677 = vmul.f32 %v541, %v660
        %v678 = vmul.f32 %v542, %v670
        %v680 = vperm.slane %v493, 0
        %v682 = vmul.f32 %v671, %v680
        %v683 = vmul.f32 %v672, %v680
        %v684 = vmul.f32 %v673, %v680
        %v685 = vmul.f32 %v674, %v680
        %v686 = vmul.f32 %v675, %v680
        %v687 = vmul.f32 %v676, %v680
        %v688 = vmul.f32 %v677, %v680
        %v689 = vmul.f32 %v678, %v680
        %v691 = vperm.slane %v494, 0
        %v693 = vadd.f32 %v682, %v691
        %v694 = vadd.f32 %v683, %v691
        %v695 = vadd.f32 %v684, %v691
        %v696 = vadd.f32 %v685, %v691
        %v697 = vadd.f32 %v686, %v691
        %v698 = vadd.f32 %v687, %v691
        %v699 = vadd.f32 %v688, %v691
        %v700 = vadd.f32 %v689, %v691
        %705 = vst.sshfl [vmem:[#allocation1] sm:$0xff pattern:$0x75316420] %v693
        %s706 = scalar_lea.vmem [#allocation1], 1
        %v707 = vld [vmem:[%s706] ss:$2 sm:$0xff]
        %708 = vst.sshfl [vmem:[#allocation1 + $0x10] sm:$0xff pattern:$0x75316420] %v694
        %s709 = scalar_lea.vmem [#allocation1], 17
        %v710 = vld [vmem:[%s709] ss:$2 sm:$0xff]
        %711 = vst.sshfl [vmem:[#allocation1 + $0x20] sm:$0xff pattern:$0x75316420] %v695
        %s712 = scalar_lea.vmem [#allocation1], 33
        %v713 = vld [vmem:[%s712] ss:$2 sm:$0xff]
        %714 = vst.sshfl [vmem:[#allocation1 + $0x30] sm:$0xff pattern:$0x75316420] %v696
        %s715 = scalar_lea.vmem [#allocation1], 49
        %v716 = vld [vmem:[%s715] ss:$2 sm:$0xff]
        %721 = vst.sshfl [vmem:[#allocation1] sm:$0xff pattern:$0x75316420] %v697
        %s722 = scalar_lea.vmem [#allocation1], 1
        %v723 = vld [vmem:[%s722] ss:$2 sm:$0xff]
        %724 = vst.sshfl [vmem:[#allocation1 + $0x10] sm:$0xff pattern:$0x75316420] %v698
        %s725 = scalar_lea.vmem [#allocation1], 17
        %v726 = vld [vmem:[%s725] ss:$2 sm:$0xff]
        %727 = vst.sshfl [vmem:[#allocation1 + $0x20] sm:$0xff pattern:$0x75316420] %v699
        %s728 = scalar_lea.vmem [#allocation1], 33
        %v729 = vld [vmem:[%s728] ss:$2 sm:$0xff]
        %730 = vst.sshfl [vmem:[#allocation1 + $0x30] sm:$0xff pattern:$0x75316420] %v700
        %s731 = scalar_lea.vmem [#allocation1], 49
        %v732 = vld [vmem:[%s731] ss:$2 sm:$0xff]
        %733 = vst [vmem:[#allocation1] ss:$2 sm:$0xff] %v693
        %s734 = scalar_lea.vmem [#allocation1], 1
        %735 = vst [vmem:[%s734] ss:$2 sm:$0xff] %v694
        %s736 = scalar_lea.vmem [#allocation1], 16
        %737 = vst [vmem:[%s736] ss:$2 sm:$0xff] %v695
        %s738 = scalar_lea.vmem [#allocation1], 17
        %739 = vst [vmem:[%s738] ss:$2 sm:$0xff] %v696
        %v740 = vld.sshfl [vmem:[#allocation1] sm:$0xff pattern:$0x75316420]
        %v741 = vld.sshfl [vmem:[#allocation1 + $0x10] sm:$0xff pattern:$0x75316420]
        %742 = vst [vmem:[#allocation1] ss:$2 sm:$0xff] %v707
        %s743 = scalar_lea.vmem [#allocation1], 1
        %744 = vst [vmem:[%s743] ss:$2 sm:$0xff] %v710
        %s745 = scalar_lea.vmem [#allocation1], 16
        %746 = vst [vmem:[%s745] ss:$2 sm:$0xff] %v713
        %s747 = scalar_lea.vmem [#allocation1], 17
        %748 = vst [vmem:[%s747] ss:$2 sm:$0xff] %v716
        %v749 = vld.sshfl [vmem:[#allocation1] sm:$0xff pattern:$0x75316420]
        %v750 = vld.sshfl [vmem:[#allocation1 + $0x10] sm:$0xff pattern:$0x75316420]
        %751 = vst [vmem:[#allocation1] ss:$2 sm:$0xff] %v697
        %s752 = scalar_lea.vmem [#allocation1], 1
        %753 = vst [vmem:[%s752] ss:$2 sm:$0xff] %v698
        %s754 = scalar_lea.vmem [#allocation1], 16
        %755 = vst [vmem:[%s754] ss:$2 sm:$0xff] %v699
        %s756 = scalar_lea.vmem [#allocation1], 17
        %757 = vst [vmem:[%s756] ss:$2 sm:$0xff] %v700
        %v758 = vld.sshfl [vmem:[#allocation1] sm:$0xff pattern:$0x75316420]
        %v759 = vld.sshfl [vmem:[#allocation1 + $0x10] sm:$0xff pattern:$0x75316420]
        %760 = vst [vmem:[#allocation1] ss:$2 sm:$0xff] %v723
        %s761 = scalar_lea.vmem [#allocation1], 1
        %762 = vst [vmem:[%s761] ss:$2 sm:$0xff] %v726
        %s763 = scalar_lea.vmem [#allocation1], 16
        %764 = vst [vmem:[%s763] ss:$2 sm:$0xff] %v729
        %s765 = scalar_lea.vmem [#allocation1], 17
        %766 = vst [vmem:[%s765] ss:$2 sm:$0xff] %v732
        %v767 = vld.sshfl [vmem:[#allocation1] sm:$0xff pattern:$0x75316420]
        %v768 = vld.sshfl [vmem:[#allocation1 + $0x10] sm:$0xff pattern:$0x75316420]
        %v769 = vld [vmem:[%s3] sm:$0xff]
        %v770 = vld [vmem:[%s3 + $0x8] sm:$0xff]
        %v771 = vld [vmem:[%s3 + $0x10] sm:$0xff]
        %v772 = vld [vmem:[%s3 + $0x18] sm:$0xff]
        %v773 = vld [vmem:[%s4] sm:$0x1]
        %v774 = vld [vmem:[%s5] sm:$0xff]
        %v775 = vld [vmem:[%s5 + $0x8] sm:$0xff]
        %v776 = vld [vmem:[%s5 + $0x10] sm:$0xff]
        %v777 = vld [vmem:[%s5 + $0x18] sm:$0xff]
        %v778 = vld [vmem:[%s6] sm:$0x1]
        %v780 = vperm.slane %v773, 0
        %v782 = vsel %vm495, %v740, 0
        %v784 = vsel %vm495, %v741, 0
        %v786 = vsel %vm495, %v749, 0
        %v788 = vsel %vm495, %v750, 0
        %v790 = vsel %vm495, %v758, 0
        %v792 = vsel %vm495, %v759, 0
        %v794 = vsel %vm495, %v767, 0
        %v796 = vsel %vm495, %v768, 0
        %798 = vmatpush.msra.mxu0 0.0
        %799 = vmatpush.msra.mxu0 0.0
        %800 = vmatpush.msra.mxu0 0.0
        %801 = vmatpush.msra.mxu0 0.0
        %802 = vmatpush.msra.mxu0 0.0
        %803 = vmatpush.msra.mxu0 0.0
        %804 = vmatpush.msra.mxu0 0.0
        %805 = vmatpush.msra.mxu0 0.0
        %806 = vmatpush.msra.mxu0 0.0
        %807 = vmatpush.msra.mxu0 0.0
        %808 = vmatpush.msra.mxu0 0.0
        %809 = vmatpush.msra.mxu0 0.0
        %810 = vmatpush.msra.mxu0 %v772
        %811 = vmatpush.msra.mxu0 %v771
        %812 = vmatpush.msra.mxu0 %v770
        %813 = vmatpush.msra.mxu0 %v769
        %814 = vmatmul.f32.gmra.mxu0 %v782
        %v815 = vpop.f32.mrf.mxu0
        %v816 = vadd.f32 %v780, %v815
        %817 = vmatmul.f32.gmra.mxu0 %v784
        %v818 = vpop.f32.mrf.mxu0
        %v819 = vadd.f32 %v780, %v818
        %820 = vmatmul.f32.gmra.mxu0 %v786
        %v821 = vpop.f32.mrf.mxu0
        %v822 = vadd.f32 %v780, %v821
        %823 = vmatmul.f32.gmra.mxu0 %v788
        %v824 = vpop.f32.mrf.mxu0
        %v825 = vadd.f32 %v780, %v824
        %826 = vmatmul.f32.gmra.mxu0 %v790
        %v827 = vpop.f32.mrf.mxu0
        %v828 = vadd.f32 %v780, %v827
        %829 = vmatmul.f32.gmra.mxu0 %v792
        %v830 = vpop.f32.mrf.mxu0
        %v831 = vadd.f32 %v780, %v830
        %832 = vmatmul.f32.gmra.mxu0 %v794
        %v833 = vpop.f32.mrf.mxu0
        %v834 = vadd.f32 %v780, %v833
        %835 = vmatmul.f32.gmra.mxu0 %v796
        %v836 = vpop.f32.mrf.mxu0
        %v837 = vadd.f32 %v780, %v836
        %838 = vdwg.mxu0
        %v839 = vmul.f32 %v816, 0.35355338
        %v840 = vmul.f32 %v819, 0.35355338
        %v841 = vmul.f32 %v822, 0.35355338
        %v842 = vmul.f32 %v825, 0.35355338
        %v843 = vmul.f32 %v828, 0.35355338
        %v844 = vmul.f32 %v831, 0.35355338
        %v845 = vmul.f32 %v834, 0.35355338
        %v846 = vmul.f32 %v837, 0.35355338
        %v847 = vld [vmem:[#allocation2] sm:$0xff]
        %v848 = vld [vmem:[#allocation2 + $0x8] sm:$0xff]
        %v849 = vld [vmem:[#allocation2 + $0x10] sm:$0xff]
        %v850 = vld [vmem:[#allocation2 + $0x18] sm:$0xff]
        %v851 = vld [vmem:[#allocation2 + $0x20] sm:$0xff]
        %v852 = vld [vmem:[#allocation2 + $0x28] sm:$0xff]
        %v853 = vld [vmem:[#allocation2 + $0x30] sm:$0xff]
        %v854 = vld [vmem:[#allocation2 + $0x38] sm:$0xff]
        %857 = vrot.lane.b32.xlu0 %v816, 96
        %v858 = vpop.permute.xlu0 %857
        %859 = vrot.lane.b32.xlu0 %v819, 96
        %v860 = vpop.permute.xlu0 %859
        %vm861 = vcmask 64512
        %v863 = vsel %vm861, %v839, 0
        %v866 = vsel %vm861, %v840, 0
        %v868 = vsel %vm861, %v858, 0
        %v870 = vsel %vm861, %v860, 0
        %872 = vmatpush.xpose.msra.mxu0 0.0
        %873 = vmatpush.xpose.msra.mxu0 0.0
        %874 = vmatpush.xpose.msra.mxu0 0.0
        %875 = vmatpush.xpose.msra.mxu0 0.0
        %876 = vmatpush.xpose.msra.mxu0 0.0
        %877 = vmatpush.xpose.msra.mxu0 0.0
        %878 = vmatpush.xpose.msra.mxu0 0.0
        %879 = vmatpush.xpose.msra.mxu0 0.0
        %880 = vmatpush.xpose.msra.mxu0 0.0
        %881 = vmatpush.xpose.msra.mxu0 0.0
        %882 = vmatpush.xpose.msra.mxu0 0.0
        %883 = vmatpush.xpose.msra.mxu0 0.0
        %884 = vmatpush.xpose.msra.mxu0 0.0
        %885 = vmatpush.xpose.msra.mxu0 0.0
        %886 = vmatpush.xpose.msra.mxu0 %v870
        %887 = vmatpush.xpose.msra.mxu0 %v868
        %888 = vmatmul.f32.gmra.mxu0 %v863
        %v889 = vpop.f32.mrf.mxu0
        %v890 = vadd.f32 %v847, %v889
        %891 = vmatmul.f32.gmra.mxu0 %v866
        %v892 = vpop.f32.mrf.mxu0
        %v893 = vadd.f32 %v848, %v892
        %894 = vdwg.mxu0
        %897 = vrot.lane.b32.xlu0 %v822, 96
        %v898 = vpop.permute.xlu0 %897
        %899 = vrot.lane.b32.xlu0 %v825, 96
        %v900 = vpop.permute.xlu0 %899
        %v902 = vsel %vm861, %v841, 0
        %v905 = vsel %vm861, %v842, 0
        %v907 = vsel %vm861, %v898, 0
        %v909 = vsel %vm861, %v900, 0
        %911 = vmatpush.xpose.msra.mxu0 0.0
        %912 = vmatpush.xpose.msra.mxu0 0.0
        %913 = vmatpush.xpose.msra.mxu0 0.0
        %914 = vmatpush.xpose.msra.mxu0 0.0
        %915 = vmatpush.xpose.msra.mxu0 0.0
        %916 = vmatpush.xpose.msra.mxu0 0.0
        %917 = vmatpush.xpose.msra.mxu0 0.0
        %918 = vmatpush.xpose.msra.mxu0 0.0
        %919 = vmatpush.xpose.msra.mxu0 0.0
        %920 = vmatpush.xpose.msra.mxu0 0.0
        %921 = vmatpush.xpose.msra.mxu0 0.0
        %922 = vmatpush.xpose.msra.mxu0 0.0
        %923 = vmatpush.xpose.msra.mxu0 0.0
        %924 = vmatpush.xpose.msra.mxu0 0.0
        %925 = vmatpush.xpose.msra.mxu0 %v909
        %926 = vmatpush.xpose.msra.mxu0 %v907
        %927 = vmatmul.f32.gmra.mxu0 %v902
        %v928 = vpop.f32.mrf.mxu0
        %v929 = vadd.f32 %v849, %v928
        %930 = vmatmul.f32.gmra.mxu0 %v905
        %v931 = vpop.f32.mrf.mxu0
        %v932 = vadd.f32 %v850, %v931
        %933 = vdwg.mxu0
        %936 = vrot.lane.b32.xlu0 %v828, 96
        %v937 = vpop.permute.xlu0 %936
        %938 = vrot.lane.b32.xlu0 %v831, 96
        %v939 = vpop.permute.xlu0 %938
        %v941 = vsel %vm861, %v843, 0
        %v944 = vsel %vm861, %v844, 0
        %v946 = vsel %vm861, %v937, 0
        %v948 = vsel %vm861, %v939, 0
        %950 = vmatpush.xpose.msra.mxu0 0.0
        %951 = vmatpush.xpose.msra.mxu0 0.0
        %952 = vmatpush.xpose.msra.mxu0 0.0
        %953 = vmatpush.xpose.msra.mxu0 0.0
        %954 = vmatpush.xpose.msra.mxu0 0.0
        %955 = vmatpush.xpose.msra.mxu0 0.0
        %956 = vmatpush.xpose.msra.mxu0 0.0
        %957 = vmatpush.xpose.msra.mxu0 0.0
        %958 = vmatpush.xpose.msra.mxu0 0.0
        %959 = vmatpush.xpose.msra.mxu0 0.0
        %960 = vmatpush.xpose.msra.mxu0 0.0
        %961 = vmatpush.xpose.msra.mxu0 0.0
        %962 = vmatpush.xpose.msra.mxu0 0.0
        %963 = vmatpush.xpose.msra.mxu0 0.0
        %964 = vmatpush.xpose.msra.mxu0 %v948
        %965 = vmatpush.xpose.msra.mxu0 %v946
        %966 = vmatmul.f32.gmra.mxu0 %v941
        %v967 = vpop.f32.mrf.mxu0
        %v968 = vadd.f32 %v851, %v967
        %969 = vmatmul.f32.gmra.mxu0 %v944
        %v970 = vpop.f32.mrf.mxu0
        %v971 = vadd.f32 %v852, %v970
        %972 = vdwg.mxu0
        %975 = vrot.lane.b32.xlu0 %v834, 96
        %v976 = vpop.permute.xlu0 %975
        %977 = vrot.lane.b32.xlu0 %v837, 96
        %v978 = vpop.permute.xlu0 %977
        %v980 = vsel %vm861, %v845, 0
        %v983 = vsel %vm861, %v846, 0
        %v985 = vsel %vm861, %v976, 0
        %v987 = vsel %vm861, %v978, 0
        %989 = vmatpush.xpose.msra.mxu0 0.0
        %990 = vmatpush.xpose.msra.mxu0 0.0
        %991 = vmatpush.xpose.msra.mxu0 0.0
        %992 = vmatpush.xpose.msra.mxu0 0.0
        %993 = vmatpush.xpose.msra.mxu0 0.0
        %994 = vmatpush.xpose.msra.mxu0 0.0
        %995 = vmatpush.xpose.msra.mxu0 0.0
        %996 = vmatpush.xpose.msra.mxu0 0.0
        %997 = vmatpush.xpose.msra.mxu0 0.0
        %998 = vmatpush.xpose.msra.mxu0 0.0
        %999 = vmatpush.xpose.msra.mxu0 0.0
        %1000 = vmatpush.xpose.msra.mxu0 0.0
        %1001 = vmatpush.xpose.msra.mxu0 0.0
        %1002 = vmatpush.xpose.msra.mxu0 0.0
        %1003 = vmatpush.xpose.msra.mxu0 %v987
        %1004 = vmatpush.xpose.msra.mxu0 %v985
        %1005 = vmatmul.f32.gmra.mxu0 %v980
        %v1006 = vpop.f32.mrf.mxu0
        %v1007 = vadd.f32 %v853, %v1006
        %1008 = vmatmul.f32.gmra.mxu0 %v983
        %v1009 = vpop.f32.mrf.mxu0
        %v1010 = vadd.f32 %v854, %v1009
        %1011 = vdwg.mxu0
        %vm1012 = vcmask 130048
        %v1013 = vsel %vm1012, %v890, -inf
        %1014 = vmax.xlane.f32.xlu0 %v1013
        %v1015 = vpop.xlane.xlu0 %1014
        %v1016 = vsel %vm1012, %v893, -inf
        %1017 = vmax.xlane.f32.xlu0 %v1016
        %v1018 = vpop.xlane.xlu0 %1017
        %v1019 = vsel %vm1012, %v929, -inf
        %1020 = vmax.xlane.f32.xlu0 %v1019
        %v1021 = vpop.xlane.xlu0 %1020
        %v1022 = vsel %vm1012, %v932, -inf
        %1023 = vmax.xlane.f32.xlu0 %v1022
        %v1024 = vpop.xlane.xlu0 %1023
        %v1025 = vsel %vm1012, %v968, -inf
        %1026 = vmax.xlane.f32.xlu0 %v1025
        %v1027 = vpop.xlane.xlu0 %1026
        %v1028 = vsel %vm1012, %v971, -inf
        %1029 = vmax.xlane.f32.xlu0 %v1028
        %v1030 = vpop.xlane.xlu0 %1029
        %v1031 = vsel %vm1012, %v1007, -inf
        %1032 = vmax.xlane.f32.xlu0 %v1031
        %v1033 = vpop.xlane.xlu0 %1032
        %v1034 = vsel %vm1012, %v1010, -inf
        %1035 = vmax.xlane.f32.xlu0 %v1034
        %v1036 = vpop.xlane.xlu0 %1035
        %v1037 = vsub.f32 %v890, %v1015
        %v1038 = vsub.f32 %v893, %v1018
        %v1039 = vsub.f32 %v929, %v1021
        %v1040 = vsub.f32 %v932, %v1024
        %v1041 = vsub.f32 %v968, %v1027
        %v1042 = vsub.f32 %v971, %v1030
        %v1043 = vsub.f32 %v1007, %v1033
        %v1044 = vsub.f32 %v1010, %v1036
        %v1045 = vmul.f32 %v1037, 1.442695
        %v1046 = vpow.pop %v1045
        %v1047 = vmul.f32 %v1038, 1.442695
        %v1048 = vpow.pop %v1047
        %v1049 = vmul.f32 %v1039, 1.442695
        %v1050 = vpow.pop %v1049
        %v1051 = vmul.f32 %v1040, 1.442695
        %v1052 = vpow.pop %v1051
        %v1053 = vmul.f32 %v1041, 1.442695
        %v1054 = vpow.pop %v1053
        %v1055 = vmul.f32 %v1042, 1.442695
        %v1056 = vpow.pop %v1055
        %v1057 = vmul.f32 %v1043, 1.442695
        %v1058 = vpow.pop %v1057
        %v1059 = vmul.f32 %v1044, 1.442695
        %v1060 = vpow.pop %v1059
        %v1061 = vsel %vm1012, %v1046, 0.0
        %1062 = vadd.xlane.f32.xlu0 %v1061
        %v1063 = vpop.xlane.xlu0 %1062
        %v1064 = vsel %vm1012, %v1048, 0.0
        %1065 = vadd.xlane.f32.xlu0 %v1064
        %v1066 = vpop.xlane.xlu0 %1065
        %v1067 = vsel %vm1012, %v1050, 0.0
        %1068 = vadd.xlane.f32.xlu0 %v1067
        %v1069 = vpop.xlane.xlu0 %1068
        %v1070 = vsel %vm1012, %v1052, 0.0
        %1071 = vadd.xlane.f32.xlu0 %v1070
        %v1072 = vpop.xlane.xlu0 %1071
        %v1073 = vsel %vm1012, %v1054, 0.0
        %1074 = vadd.xlane.f32.xlu0 %v1073
        %v1075 = vpop.xlane.xlu0 %1074
        %v1076 = vsel %vm1012, %v1056, 0.0
        %1077 = vadd.xlane.f32.xlu0 %v1076
        %v1078 = vpop.xlane.xlu0 %1077
        %v1079 = vsel %vm1012, %v1058, 0.0
        %1080 = vadd.xlane.f32.xlu0 %v1079
        %v1081 = vpop.xlane.xlu0 %1080
        %v1082 = vsel %vm1012, %v1060, 0.0
        %1083 = vadd.xlane.f32.xlu0 %v1082
        %v1084 = vpop.xlane.xlu0 %1083
        %v1085 = vrcp.pop %v1063
        %v1086 = vrcp.pop %v1066
        %v1087 = vrcp.pop %v1069
        %v1088 = vrcp.pop %v1072
        %v1089 = vrcp.pop %v1075
        %v1090 = vrcp.pop %v1078
        %v1091 = vrcp.pop %v1081
        %v1092 = vrcp.pop %v1084
        %v1093 = vmul.f32 %v1046, %v1085
        %v1094 = vmul.f32 %v1048, %v1086
        %v1095 = vmul.f32 %v1050, %v1087
        %v1096 = vmul.f32 %v1052, %v1088
        %v1097 = vmul.f32 %v1054, %v1089
        %v1098 = vmul.f32 %v1056, %v1090
        %v1099 = vmul.f32 %v1058, %v1091
        %v1100 = vmul.f32 %v1060, %v1092
        %1101 = vrot.lane.b32.xlu0 %v816, 64
        %v1102 = vpop.permute.xlu0 %1101
        %1103 = vrot.lane.b32.xlu0 %v819, 64
        %v1104 = vpop.permute.xlu0 %1103
        %v1108 = vsel %vm1012, %v1093, 0
        %v1111 = vsel %vm1012, %v1094, 0
        %1113 = vmatpush.msra.mxu0 0.0
        %1114 = vmatpush.msra.mxu0 0.0
        %1115 = vmatpush.msra.mxu0 0.0
        %1116 = vmatpush.msra.mxu0 0.0
        %1117 = vmatpush.msra.mxu0 0.0
        %1118 = vmatpush.msra.mxu0 0.0
        %1119 = vmatpush.msra.mxu0 0.0
        %1120 = vmatpush.msra.mxu0 0.0
        %1121 = vmatpush.msra.mxu0 0.0
        %1122 = vmatpush.msra.mxu0 0.0
        %1123 = vmatpush.msra.mxu0 0.0
        %1124 = vmatpush.msra.mxu0 0.0
        %1125 = vmatpush.msra.mxu0 0.0
        %1126 = vmatpush.msra.mxu0 0.0
        %1127 = vmatpush.msra.mxu0 %v1104
        %1128 = vmatpush.msra.mxu0 %v1102
        %1129 = vmatmul.f32.gmra.mxu0 %v1108
        %v1130 = vpop.f32.mrf.mxu0
        %v1131 = vadd.f32 0.0, %v1130
        %1132 = vmatmul.f32.gmra.mxu0 %v1111
        %v1133 = vpop.f32.mrf.mxu0
        %v1134 = vadd.f32 0.0, %v1133
        %1135 = vdwg.mxu0
        %1136 = vrot.lane.b32.xlu0 %v822, 64
        %v1137 = vpop.permute.xlu0 %1136
        %1138 = vrot.lane.b32.xlu0 %v825, 64
        %v1139 = vpop.permute.xlu0 %1138
        %v1143 = vsel %vm1012, %v1095, 0
        %v1146 = vsel %vm1012, %v1096, 0
        %1148 = vmatpush.msra.mxu0 0.0
        %1149 = vmatpush.msra.mxu0 0.0
        %1150 = vmatpush.msra.mxu0 0.0
        %1151 = vmatpush.msra.mxu0 0.0
        %1152 = vmatpush.msra.mxu0 0.0
        %1153 = vmatpush.msra.mxu0 0.0
        %1154 = vmatpush.msra.mxu0 0.0
        %1155 = vmatpush.msra.mxu0 0.0
        %1156 = vmatpush.msra.mxu0 0.0
        %1157 = vmatpush.msra.mxu0 0.0
        %1158 = vmatpush.msra.mxu0 0.0
        %1159 = vmatpush.msra.mxu0 0.0
        %1160 = vmatpush.msra.mxu0 0.0
        %1161 = vmatpush.msra.mxu0 0.0
        %1162 = vmatpush.msra.mxu0 %v1139
        %1163 = vmatpush.msra.mxu0 %v1137
        %1164 = vmatmul.f32.gmra.mxu0 %v1143
        %v1165 = vpop.f32.mrf.mxu0
        %v1166 = vadd.f32 0.0, %v1165
        %1167 = vmatmul.f32.gmra.mxu0 %v1146
        %v1168 = vpop.f32.mrf.mxu0
        %v1169 = vadd.f32 0.0, %v1168
        %1170 = vdwg.mxu0
        %1171 = vrot.lane.b32.xlu0 %v828, 64
        %v1172 = vpop.permute.xlu0 %1171
        %1173 = vrot.lane.b32.xlu0 %v831, 64
        %v1174 = vpop.permute.xlu0 %1173
        %v1178 = vsel %vm1012, %v1097, 0
        %v1181 = vsel %vm1012, %v1098, 0
        %1183 = vmatpush.msra.mxu0 0.0
        %1184 = vmatpush.msra.mxu0 0.0
        %1185 = vmatpush.msra.mxu0 0.0
        %1186 = vmatpush.msra.mxu0 0.0
        %1187 = vmatpush.msra.mxu0 0.0
        %1188 = vmatpush.msra.mxu0 0.0
        %1189 = vmatpush.msra.mxu0 0.0
        %1190 = vmatpush.msra.mxu0 0.0
        %1191 = vmatpush.msra.mxu0 0.0
        %1192 = vmatpush.msra.mxu0 0.0
        %1193 = vmatpush.msra.mxu0 0.0
        %1194 = vmatpush.msra.mxu0 0.0
        %1195 = vmatpush.msra.mxu0 0.0
        %1196 = vmatpush.msra.mxu0 0.0
        %1197 = vmatpush.msra.mxu0 %v1174
        %1198 = vmatpush.msra.mxu0 %v1172
        %1199 = vmatmul.f32.gmra.mxu0 %v1178
        %v1200 = vpop.f32.mrf.mxu0
        %v1201 = vadd.f32 0.0, %v1200
        %1202 = vmatmul.f32.gmra.mxu0 %v1181
        %v1203 = vpop.f32.mrf.mxu0
        %v1204 = vadd.f32 0.0, %v1203
        %1205 = vdwg.mxu0
        %1206 = vrot.lane.b32.xlu0 %v834, 64
        %v1207 = vpop.permute.xlu0 %1206
        %1208 = vrot.lane.b32.xlu0 %v837, 64
        %v1209 = vpop.permute.xlu0 %1208
        %v1213 = vsel %vm1012, %v1099, 0
        %v1216 = vsel %vm1012, %v1100, 0
        %1218 = vmatpush.msra.mxu0 0.0
        %1219 = vmatpush.msra.mxu0 0.0
        %1220 = vmatpush.msra.mxu0 0.0
        %1221 = vmatpush.msra.mxu0 0.0
        %1222 = vmatpush.msra.mxu0 0.0
        %1223 = vmatpush.msra.mxu0 0.0
        %1224 = vmatpush.msra.mxu0 0.0
        %1225 = vmatpush.msra.mxu0 0.0
        %1226 = vmatpush.msra.mxu0 0.0
        %1227 = vmatpush.msra.mxu0 0.0
        %1228 = vmatpush.msra.mxu0 0.0
        %1229 = vmatpush.msra.mxu0 0.0
        %1230 = vmatpush.msra.mxu0 0.0
        %1231 = vmatpush.msra.mxu0 0.0
        %1232 = vmatpush.msra.mxu0 %v1209
        %1233 = vmatpush.msra.mxu0 %v1207
        %1234 = vmatmul.f32.gmra.mxu0 %v1213
        %v1235 = vpop.f32.mrf.mxu0
        %v1236 = vadd.f32 0.0, %v1235
        %1237 = vmatmul.f32.gmra.mxu0 %v1216
        %v1238 = vpop.f32.mrf.mxu0
        %v1239 = vadd.f32 0.0, %v1238
        %1240 = vdwg.mxu0
        %s1241 = scalar_lea.vmem [#allocation2], 64
        %v1242 = vld [vmem:[%s1241] sm:$0xff]
        %v1243 = vld [vmem:[%s1241 + $0x8] sm:$0xff]
        %v1244 = vld [vmem:[%s1241 + $0x10] sm:$0xff]
        %v1245 = vld [vmem:[%s1241 + $0x18] sm:$0xff]
        %v1246 = vld [vmem:[%s1241 + $0x20] sm:$0xff]
        %v1247 = vld [vmem:[%s1241 + $0x28] sm:$0xff]
        %v1248 = vld [vmem:[%s1241 + $0x30] sm:$0xff]
        %v1249 = vld [vmem:[%s1241 + $0x38] sm:$0xff]
        %1250 = vrot.lane.b32.xlu0 %v839, 120
        %v1251 = vpop.permute.xlu0 %1250
        %1252 = vrot.lane.b32.xlu0 %v840, 120
        %v1253 = vpop.permute.xlu0 %1252
        %1254 = vrot.lane.b32.xlu0 %v816, 88
        %v1255 = vpop.permute.xlu0 %1254
        %1256 = vrot.lane.b32.xlu0 %v819, 88
        %v1257 = vpop.permute.xlu0 %1256
        %v1258 = vsel %vm861, %v1251, 0
        %v1260 = vsel %vm861, %v1253, 0
        %v1262 = vsel %vm861, %v1255, 0
        %v1264 = vsel %vm861, %v1257, 0
        %1266 = vmatpush.xpose.msra.mxu0 0.0
        %1267 = vmatpush.xpose.msra.mxu0 0.0
        %1268 = vmatpush.xpose.msra.mxu0 0.0
        %1269 = vmatpush.xpose.msra.mxu0 0.0
        %1270 = vmatpush.xpose.msra.mxu0 0.0
        %1271 = vmatpush.xpose.msra.mxu0 0.0
        %1272 = vmatpush.xpose.msra.mxu0 0.0
        %1273 = vmatpush.xpose.msra.mxu0 0.0
        %1274 = vmatpush.xpose.msra.mxu0 0.0
        %1275 = vmatpush.xpose.msra.mxu0 0.0
        %1276 = vmatpush.xpose.msra.mxu0 0.0
        %1277 = vmatpush.xpose.msra.mxu0 0.0
        %1278 = vmatpush.xpose.msra.mxu0 0.0
        %1279 = vmatpush.xpose.msra.mxu0 0.0
        %1280 = vmatpush.xpose.msra.mxu0 %v1264
        %1281 = vmatpush.xpose.msra.mxu0 %v1262
        %1282 = vmatmul.f32.gmra.mxu0 %v1258
        %v1283 = vpop.f32.mrf.mxu0
        %v1284 = vadd.f32 %v1242, %v1283
        %1285 = vmatmul.f32.gmra.mxu0 %v1260
        %v1286 = vpop.f32.mrf.mxu0
        %v1287 = vadd.f32 %v1243, %v1286
        %1288 = vdwg.mxu0
        %1289 = vrot.lane.b32.xlu0 %v841, 120
        %v1290 = vpop.permute.xlu0 %1289
        %1291 = vrot.lane.b32.xlu0 %v842, 120
        %v1292 = vpop.permute.xlu0 %1291
        %1293 = vrot.lane.b32.xlu0 %v822, 88
        %v1294 = vpop.permute.xlu0 %1293
        %1295 = vrot.lane.b32.xlu0 %v825, 88
        %v1296 = vpop.permute.xlu0 %1295
        %v1297 = vsel %vm861, %v1290, 0
        %v1299 = vsel %vm861, %v1292, 0
        %v1301 = vsel %vm861, %v1294, 0
        %v1303 = vsel %vm861, %v1296, 0
        %1305 = vmatpush.xpose.msra.mxu0 0.0
        %1306 = vmatpush.xpose.msra.mxu0 0.0
        %1307 = vmatpush.xpose.msra.mxu0 0.0
        %1308 = vmatpush.xpose.msra.mxu0 0.0
        %1309 = vmatpush.xpose.msra.mxu0 0.0
        %1310 = vmatpush.xpose.msra.mxu0 0.0
        %1311 = vmatpush.xpose.msra.mxu0 0.0
        %1312 = vmatpush.xpose.msra.mxu0 0.0
        %1313 = vmatpush.xpose.msra.mxu0 0.0
        %1314 = vmatpush.xpose.msra.mxu0 0.0
        %1315 = vmatpush.xpose.msra.mxu0 0.0
        %1316 = vmatpush.xpose.msra.mxu0 0.0
        %1317 = vmatpush.xpose.msra.mxu0 0.0
        %1318 = vmatpush.xpose.msra.mxu0 0.0
        %1319 = vmatpush.xpose.msra.mxu0 %v1303
        %1320 = vmatpush.xpose.msra.mxu0 %v1301
        %1321 = vmatmul.f32.gmra.mxu0 %v1297
        %v1322 = vpop.f32.mrf.mxu0
        %v1323 = vadd.f32 %v1244, %v1322
        %1324 = vmatmul.f32.gmra.mxu0 %v1299
        %v1325 = vpop.f32.mrf.mxu0
        %v1326 = vadd.f32 %v1245, %v1325
        %1327 = vdwg.mxu0
        %1328 = vrot.lane.b32.xlu0 %v843, 120
        %v1329 = vpop.permute.xlu0 %1328
        %1330 = vrot.lane.b32.xlu0 %v844, 120
        %v1331 = vpop.permute.xlu0 %1330
        %1332 = vrot.lane.b32.xlu0 %v828, 88
        %v1333 = vpop.permute.xlu0 %1332
        %1334 = vrot.lane.b32.xlu0 %v831, 88
        %v1335 = vpop.permute.xlu0 %1334
        %v1336 = vsel %vm861, %v1329, 0
        %v1338 = vsel %vm861, %v1331, 0
        %v1340 = vsel %vm861, %v1333, 0
        %v1342 = vsel %vm861, %v1335, 0
        %1344 = vmatpush.xpose.msra.mxu0 0.0
        %1345 = vmatpush.xpose.msra.mxu0 0.0
        %1346 = vmatpush.xpose.msra.mxu0 0.0
        %1347 = vmatpush.xpose.msra.mxu0 0.0
        %1348 = vmatpush.xpose.msra.mxu0 0.0
        %1349 = vmatpush.xpose.msra.mxu0 0.0
        %1350 = vmatpush.xpose.msra.mxu0 0.0
        %1351 = vmatpush.xpose.msra.mxu0 0.0
        %1352 = vmatpush.xpose.msra.mxu0 0.0
        %1353 = vmatpush.xpose.msra.mxu0 0.0
        %1354 = vmatpush.xpose.msra.mxu0 0.0
        %1355 = vmatpush.xpose.msra.mxu0 0.0
        %1356 = vmatpush.xpose.msra.mxu0 0.0
        %1357 = vmatpush.xpose.msra.mxu0 0.0
        %1358 = vmatpush.xpose.msra.mxu0 %v1342
        %1359 = vmatpush.xpose.msra.mxu0 %v1340
        %1360 = vmatmul.f32.gmra.mxu0 %v1336
        %v1361 = vpop.f32.mrf.mxu0
        %v1362 = vadd.f32 %v1246, %v1361
        %1363 = vmatmul.f32.gmra.mxu0 %v1338
        %v1364 = vpop.f32.mrf.mxu0
        %v1365 = vadd.f32 %v1247, %v1364
        %1366 = vdwg.mxu0
        %1367 = vrot.lane.b32.xlu0 %v845, 120
        %v1368 = vpop.permute.xlu0 %1367
        %1369 = vrot.lane.b32.xlu0 %v846, 120
        %v1370 = vpop.permute.xlu0 %1369
        %1371 = vrot.lane.b32.xlu0 %v834, 88
        %v1372 = vpop.permute.xlu0 %1371
        %1373 = vrot.lane.b32.xlu0 %v837, 88
        %v1374 = vpop.permute.xlu0 %1373
        %v1375 = vsel %vm861, %v1368, 0
        %v1377 = vsel %vm861, %v1370, 0
        %v1379 = vsel %vm861, %v1372, 0
        %v1381 = vsel %vm861, %v1374, 0
        %1383 = vmatpush.xpose.msra.mxu0 0.0
        %1384 = vmatpush.xpose.msra.mxu0 0.0
        %1385 = vmatpush.xpose.msra.mxu0 0.0
        %1386 = vmatpush.xpose.msra.mxu0 0.0
        %1387 = vmatpush.xpose.msra.mxu0 0.0
        %1388 = vmatpush.xpose.msra.mxu0 0.0
        %1389 = vmatpush.xpose.msra.mxu0 0.0
        %1390 = vmatpush.xpose.msra.mxu0 0.0
        %1391 = vmatpush.xpose.msra.mxu0 0.0
        %1392 = vmatpush.xpose.msra.mxu0 0.0
        %1393 = vmatpush.xpose.msra.mxu0 0.0
        %1394 = vmatpush.xpose.msra.mxu0 0.0
        %1395 = vmatpush.xpose.msra.mxu0 0.0
        %1396 = vmatpush.xpose.msra.mxu0 0.0
        %1397 = vmatpush.xpose.msra.mxu0 %v1381
        %1398 = vmatpush.xpose.msra.mxu0 %v1379
        %1399 = vmatmul.f32.gmra.mxu0 %v1375
        %v1400 = vpop.f32.mrf.mxu0
        %v1401 = vadd.f32 %v1248, %v1400
        %1402 = vmatmul.f32.gmra.mxu0 %v1377
        %v1403 = vpop.f32.mrf.mxu0
        %v1404 = vadd.f32 %v1249, %v1403
        %1405 = vdwg.mxu0
        %v1406 = vsel %vm1012, %v1284, -inf
        %1407 = vmax.xlane.f32.xlu0 %v1406
        %v1408 = vpop.xlane.xlu0 %1407
        %v1409 = vsel %vm1012, %v1287, -inf
        %1410 = vmax.xlane.f32.xlu0 %v1409
        %v1411 = vpop.xlane.xlu0 %1410
        %v1412 = vsel %vm1012, %v1323, -inf
        %1413 = vmax.xlane.f32.xlu0 %v1412
        %v1414 = vpop.xlane.xlu0 %1413
        %v1415 = vsel %vm1012, %v1326, -inf
        %1416 = vmax.xlane.f32.xlu0 %v1415
        %v1417 = vpop.xlane.xlu0 %1416
        %v1418 = vsel %vm1012, %v1362, -inf
        %1419 = vmax.xlane.f32.xlu0 %v1418
        %v1420 = vpop.xlane.xlu0 %1419
        %v1421 = vsel %vm1012, %v1365, -inf
        %1422 = vmax.xlane.f32.xlu0 %v1421
        %v1423 = vpop.xlane.xlu0 %1422
        %v1424 = vsel %vm1012, %v1401, -inf
        %1425 = vmax.xlane.f32.xlu0 %v1424
        %v1426 = vpop.xlane.xlu0 %1425
        %v1427 = vsel %vm1012, %v1404, -inf
        %1428 = vmax.xlane.f32.xlu0 %v1427
        %v1429 = vpop.xlane.xlu0 %1428
        %v1430 = vsub.f32 %v1284, %v1408
        %v1431 = vsub.f32 %v1287, %v1411
        %v1432 = vsub.f32 %v1323, %v1414
        %v1433 = vsub.f32 %v1326, %v1417
        %v1434 = vsub.f32 %v1362, %v1420
        %v1435 = vsub.f32 %v1365, %v1423
        %v1436 = vsub.f32 %v1401, %v1426
        %v1437 = vsub.f32 %v1404, %v1429
        %v1438 = vmul.f32 %v1430, 1.442695
        %v1439 = vpow.pop %v1438
        %v1440 = vmul.f32 %v1431, 1.442695
        %v1441 = vpow.pop %v1440
        %v1442 = vmul.f32 %v1432, 1.442695
        %v1443 = vpow.pop %v1442
        %v1444 = vmul.f32 %v1433, 1.442695
        %v1445 = vpow.pop %v1444
        %v1446 = vmul.f32 %v1434, 1.442695
        %v1447 = vpow.pop %v1446
        %v1448 = vmul.f32 %v1435, 1.442695
        %v1449 = vpow.pop %v1448
        %v1450 = vmul.f32 %v1436, 1.442695
        %v1451 = vpow.pop %v1450
        %v1452 = vmul.f32 %v1437, 1.442695
        %v1453 = vpow.pop %v1452
        %v1454 = vsel %vm1012, %v1439, 0.0
        %1455 = vadd.xlane.f32.xlu0 %v1454
        %v1456 = vpop.xlane.xlu0 %1455
        %v1457 = vsel %vm1012, %v1441, 0.0
        %1458 = vadd.xlane.f32.xlu0 %v1457
        %v1459 = vpop.xlane.xlu0 %1458
        %v1460 = vsel %vm1012, %v1443, 0.0
        %1461 = vadd.xlane.f32.xlu0 %v1460
        %v1462 = vpop.xlane.xlu0 %1461
        %v1463 = vsel %vm1012, %v1445, 0.0
        %1464 = vadd.xlane.f32.xlu0 %v1463
        %v1465 = vpop.xlane.xlu0 %1464
        %v1466 = vsel %vm1012, %v1447, 0.0
        %1467 = vadd.xlane.f32.xlu0 %v1466
        %v1468 = vpop.xlane.xlu0 %1467
        %v1469 = vsel %vm1012, %v1449, 0.0
        %1470 = vadd.xlane.f32.xlu0 %v1469
        %v1471 = vpop.xlane.xlu0 %1470
        %v1472 = vsel %vm1012, %v1451, 0.0
        %1473 = vadd.xlane.f32.xlu0 %v1472
        %v1474 = vpop.xlane.xlu0 %1473
        %v1475 = vsel %vm1012, %v1453, 0.0
        %1476 = vadd.xlane.f32.xlu0 %v1475
        %v1477 = vpop.xlane.xlu0 %1476
        %v1478 = vrcp.pop %v1456
        %v1479 = vrcp.pop %v1459
        %v1480 = vrcp.pop %v1462
        %v1481 = vrcp.pop %v1465
        %v1482 = vrcp.pop %v1468
        %v1483 = vrcp.pop %v1471
        %v1484 = vrcp.pop %v1474
        %v1485 = vrcp.pop %v1477
        %v1486 = vmul.f32 %v1439, %v1478
        %v1487 = vmul.f32 %v1441, %v1479
        %v1488 = vmul.f32 %v1443, %v1480
        %v1489 = vmul.f32 %v1445, %v1481
        %v1490 = vmul.f32 %v1447, %v1482
        %v1491 = vmul.f32 %v1449, %v1483
        %v1492 = vmul.f32 %v1451, %v1484
        %v1493 = vmul.f32 %v1453, %v1485
        %1494 = vrot.lane.b32.xlu0 %v816, 56
        %v1495 = vpop.permute.xlu0 %1494
        %1496 = vrot.lane.b32.xlu0 %v819, 56
        %v1497 = vpop.permute.xlu0 %1496
        %v1501 = vsel %vm1012, %v1486, 0
        %v1504 = vsel %vm1012, %v1487, 0
        %1506 = vmatpush.msra.mxu0 0.0
        %1507 = vmatpush.msra.mxu0 0.0
        %1508 = vmatpush.msra.mxu0 0.0
        %1509 = vmatpush.msra.mxu0 0.0
        %1510 = vmatpush.msra.mxu0 0.0
        %1511 = vmatpush.msra.mxu0 0.0
        %1512 = vmatpush.msra.mxu0 0.0
        %1513 = vmatpush.msra.mxu0 0.0
        %1514 = vmatpush.msra.mxu0 0.0
        %1515 = vmatpush.msra.mxu0 0.0
        %1516 = vmatpush.msra.mxu0 0.0
        %1517 = vmatpush.msra.mxu0 0.0
        %1518 = vmatpush.msra.mxu0 0.0
        %1519 = vmatpush.msra.mxu0 0.0
        %1520 = vmatpush.msra.mxu0 %v1497
        %1521 = vmatpush.msra.mxu0 %v1495
        %1522 = vmatmul.f32.gmra.mxu0 %v1501
        %v1523 = vpop.f32.mrf.mxu0
        %v1524 = vadd.f32 0.0, %v1523
        %1525 = vmatmul.f32.gmra.mxu0 %v1504
        %v1526 = vpop.f32.mrf.mxu0
        %v1527 = vadd.f32 0.0, %v1526
        %1528 = vdwg.mxu0
        %1529 = vrot.lane.b32.xlu0 %v822, 56
        %v1530 = vpop.permute.xlu0 %1529
        %1531 = vrot.lane.b32.xlu0 %v825, 56
        %v1532 = vpop.permute.xlu0 %1531
        %v1536 = vsel %vm1012, %v1488, 0
        %v1539 = vsel %vm1012, %v1489, 0
        %1541 = vmatpush.msra.mxu0 0.0
        %1542 = vmatpush.msra.mxu0 0.0
        %1543 = vmatpush.msra.mxu0 0.0
        %1544 = vmatpush.msra.mxu0 0.0
        %1545 = vmatpush.msra.mxu0 0.0
        %1546 = vmatpush.msra.mxu0 0.0
        %1547 = vmatpush.msra.mxu0 0.0
        %1548 = vmatpush.msra.mxu0 0.0
        %1549 = vmatpush.msra.mxu0 0.0
        %1550 = vmatpush.msra.mxu0 0.0
        %1551 = vmatpush.msra.mxu0 0.0
        %1552 = vmatpush.msra.mxu0 0.0
        %1553 = vmatpush.msra.mxu0 0.0
        %1554 = vmatpush.msra.mxu0 0.0
        %1555 = vmatpush.msra.mxu0 %v1532
        %1556 = vmatpush.msra.mxu0 %v1530
        %1557 = vmatmul.f32.gmra.mxu0 %v1536
        %v1558 = vpop.f32.mrf.mxu0
        %v1559 = vadd.f32 0.0, %v1558
        %1560 = vmatmul.f32.gmra.mxu0 %v1539
        %v1561 = vpop.f32.mrf.mxu0
        %v1562 = vadd.f32 0.0, %v1561
        %1563 = vdwg.mxu0
        %1564 = vrot.lane.b32.xlu0 %v828, 56
        %v1565 = vpop.permute.xlu0 %1564
        %1566 = vrot.lane.b32.xlu0 %v831, 56
        %v1567 = vpop.permute.xlu0 %1566
        %v1571 = vsel %vm1012, %v1490, 0
        %v1574 = vsel %vm1012, %v1491, 0
        %1576 = vmatpush.msra.mxu0 0.0
        %1577 = vmatpush.msra.mxu0 0.0
        %1578 = vmatpush.msra.mxu0 0.0
        %1579 = vmatpush.msra.mxu0 0.0
        %1580 = vmatpush.msra.mxu0 0.0
        %1581 = vmatpush.msra.mxu0 0.0
        %1582 = vmatpush.msra.mxu0 0.0
        %1583 = vmatpush.msra.mxu0 0.0
        %1584 = vmatpush.msra.mxu0 0.0
        %1585 = vmatpush.msra.mxu0 0.0
        %1586 = vmatpush.msra.mxu0 0.0
        %1587 = vmatpush.msra.mxu0 0.0
        %1588 = vmatpush.msra.mxu0 0.0
        %1589 = vmatpush.msra.mxu0 0.0
        %1590 = vmatpush.msra.mxu0 %v1567
        %1591 = vmatpush.msra.mxu0 %v1565
        %1592 = vmatmul.f32.gmra.mxu0 %v1571
        %v1593 = vpop.f32.mrf.mxu0
        %v1594 = vadd.f32 0.0, %v1593
        %1595 = vmatmul.f32.gmra.mxu0 %v1574
        %v1596 = vpop.f32.mrf.mxu0
        %v1597 = vadd.f32 0.0, %v1596
        %1598 = vdwg.mxu0
        %1599 = vrot.lane.b32.xlu0 %v834, 56
        %v1600 = vpop.permute.xlu0 %1599
        %1601 = vrot.lane.b32.xlu0 %v837, 56
        %v1602 = vpop.permute.xlu0 %1601
        %v1606 = vsel %vm1012, %v1492, 0
        %v1609 = vsel %vm1012, %v1493, 0
        %1611 = vmatpush.msra.mxu0 0.0
        %1612 = vmatpush.msra.mxu0 0.0
        %1613 = vmatpush.msra.mxu0 0.0
        %1614 = vmatpush.msra.mxu0 0.0
        %1615 = vmatpush.msra.mxu0 0.0
        %1616 = vmatpush.msra.mxu0 0.0
        %1617 = vmatpush.msra.mxu0 0.0
        %1618 = vmatpush.msra.mxu0 0.0
        %1619 = vmatpush.msra.mxu0 0.0
        %1620 = vmatpush.msra.mxu0 0.0
        %1621 = vmatpush.msra.mxu0 0.0
        %1622 = vmatpush.msra.mxu0 0.0
        %1623 = vmatpush.msra.mxu0 0.0
        %1624 = vmatpush.msra.mxu0 0.0
        %1625 = vmatpush.msra.mxu0 %v1602
        %1626 = vmatpush.msra.mxu0 %v1600
        %1627 = vmatmul.f32.gmra.mxu0 %v1606
        %v1628 = vpop.f32.mrf.mxu0
        %v1629 = vadd.f32 0.0, %v1628
        %1630 = vmatmul.f32.gmra.mxu0 %v1609
        %v1631 = vpop.f32.mrf.mxu0
        %v1632 = vadd.f32 0.0, %v1631
        %1633 = vdwg.mxu0
        %s1634 = scalar_lea.vmem [#allocation2], 128
        %v1635 = vld [vmem:[%s1634] sm:$0xff]
        %v1636 = vld [vmem:[%s1634 + $0x8] sm:$0xff]
        %v1637 = vld [vmem:[%s1634 + $0x10] sm:$0xff]
        %v1638 = vld [vmem:[%s1634 + $0x18] sm:$0xff]
        %v1639 = vld [vmem:[%s1634 + $0x20] sm:$0xff]
        %v1640 = vld [vmem:[%s1634 + $0x28] sm:$0xff]
        %v1641 = vld [vmem:[%s1634 + $0x30] sm:$0xff]
        %v1642 = vld [vmem:[%s1634 + $0x38] sm:$0xff]
        %1643 = vrot.lane.b32.xlu0 %v839, 112
        %v1644 = vpop.permute.xlu0 %1643
        %1645 = vrot.lane.b32.xlu0 %v840, 112
        %v1646 = vpop.permute.xlu0 %1645
        %1647 = vrot.lane.b32.xlu0 %v816, 80
        %v1648 = vpop.permute.xlu0 %1647
        %1649 = vrot.lane.b32.xlu0 %v819, 80
        %v1650 = vpop.permute.xlu0 %1649
        %v1651 = vsel %vm861, %v1644, 0
        %v1653 = vsel %vm861, %v1646, 0
        %v1655 = vsel %vm861, %v1648, 0
        %v1657 = vsel %vm861, %v1650, 0
        %1659 = vmatpush.xpose.msra.mxu0 0.0
        %1660 = vmatpush.xpose.msra.mxu0 0.0
        %1661 = vmatpush.xpose.msra.mxu0 0.0
        %1662 = vmatpush.xpose.msra.mxu0 0.0
        %1663 = vmatpush.xpose.msra.mxu0 0.0
        %1664 = vmatpush.xpose.msra.mxu0 0.0
        %1665 = vmatpush.xpose.msra.mxu0 0.0
        %1666 = vmatpush.xpose.msra.mxu0 0.0
        %1667 = vmatpush.xpose.msra.mxu0 0.0
        %1668 = vmatpush.xpose.msra.mxu0 0.0
        %1669 = vmatpush.xpose.msra.mxu0 0.0
        %1670 = vmatpush.xpose.msra.mxu0 0.0
        %1671 = vmatpush.xpose.msra.mxu0 0.0
        %1672 = vmatpush.xpose.msra.mxu0 0.0
        %1673 = vmatpush.xpose.msra.mxu0 %v1657
        %1674 = vmatpush.xpose.msra.mxu0 %v1655
        %1675 = vmatmul.f32.gmra.mxu0 %v1651
        %v1676 = vpop.f32.mrf.mxu0
        %v1677 = vadd.f32 %v1635, %v1676
        %1678 = vmatmul.f32.gmra.mxu0 %v1653
        %v1679 = vpop.f32.mrf.mxu0
        %v1680 = vadd.f32 %v1636, %v1679
        %1681 = vdwg.mxu0
        %1682 = vrot.lane.b32.xlu0 %v841, 112
        %v1683 = vpop.permute.xlu0 %1682
        %1684 = vrot.lane.b32.xlu0 %v842, 112
        %v1685 = vpop.permute.xlu0 %1684
        %1686 = vrot.lane.b32.xlu0 %v822, 80
        %v1687 = vpop.permute.xlu0 %1686
        %1688 = vrot.lane.b32.xlu0 %v825, 80
        %v1689 = vpop.permute.xlu0 %1688
        %v1690 = vsel %vm861, %v1683, 0
        %v1692 = vsel %vm861, %v1685, 0
        %v1694 = vsel %vm861, %v1687, 0
        %v1696 = vsel %vm861, %v1689, 0
        %1698 = vmatpush.xpose.msra.mxu0 0.0
        %1699 = vmatpush.xpose.msra.mxu0 0.0
        %1700 = vmatpush.xpose.msra.mxu0 0.0
        %1701 = vmatpush.xpose.msra.mxu0 0.0
        %1702 = vmatpush.xpose.msra.mxu0 0.0
        %1703 = vmatpush.xpose.msra.mxu0 0.0
        %1704 = vmatpush.xpose.msra.mxu0 0.0
        %1705 = vmatpush.xpose.msra.mxu0 0.0
        %1706 = vmatpush.xpose.msra.mxu0 0.0
        %1707 = vmatpush.xpose.msra.mxu0 0.0
        %1708 = vmatpush.xpose.msra.mxu0 0.0
        %1709 = vmatpush.xpose.msra.mxu0 0.0
        %1710 = vmatpush.xpose.msra.mxu0 0.0
        %1711 = vmatpush.xpose.msra.mxu0 0.0
        %1712 = vmatpush.xpose.msra.mxu0 %v1696
        %1713 = vmatpush.xpose.msra.mxu0 %v1694
        %1714 = vmatmul.f32.gmra.mxu0 %v1690
        %v1715 = vpop.f32.mrf.mxu0
        %v1716 = vadd.f32 %v1637, %v1715
        %1717 = vmatmul.f32.gmra.mxu0 %v1692
        %v1718 = vpop.f32.mrf.mxu0
        %v1719 = vadd.f32 %v1638, %v1718
        %1720 = vdwg.mxu0
        %1721 = vrot.lane.b32.xlu0 %v843, 112
        %v1722 = vpop.permute.xlu0 %1721
        %1723 = vrot.lane.b32.xlu0 %v844, 112
        %v1724 = vpop.permute.xlu0 %1723
        %1725 = vrot.lane.b32.xlu0 %v828, 80
        %v1726 = vpop.permute.xlu0 %1725
        %1727 = vrot.lane.b32.xlu0 %v831, 80
        %v1728 = vpop.permute.xlu0 %1727
        %v1729 = vsel %vm861, %v1722, 0
        %v1731 = vsel %vm861, %v1724, 0
        %v1733 = vsel %vm861, %v1726, 0
        %v1735 = vsel %vm861, %v1728, 0
        %1737 = vmatpush.xpose.msra.mxu0 0.0
        %1738 = vmatpush.xpose.msra.mxu0 0.0
        %1739 = vmatpush.xpose.msra.mxu0 0.0
        %1740 = vmatpush.xpose.msra.mxu0 0.0
        %1741 = vmatpush.xpose.msra.mxu0 0.0
        %1742 = vmatpush.xpose.msra.mxu0 0.0
        %1743 = vmatpush.xpose.msra.mxu0 0.0
        %1744 = vmatpush.xpose.msra.mxu0 0.0
        %1745 = vmatpush.xpose.msra.mxu0 0.0
        %1746 = vmatpush.xpose.msra.mxu0 0.0
        %1747 = vmatpush.xpose.msra.mxu0 0.0
        %1748 = vmatpush.xpose.msra.mxu0 0.0
        %1749 = vmatpush.xpose.msra.mxu0 0.0
        %1750 = vmatpush.xpose.msra.mxu0 0.0
        %1751 = vmatpush.xpose.msra.mxu0 %v1735
        %1752 = vmatpush.xpose.msra.mxu0 %v1733
        %1753 = vmatmul.f32.gmra.mxu0 %v1729
        %v1754 = vpop.f32.mrf.mxu0
        %v1755 = vadd.f32 %v1639, %v1754
        %1756 = vmatmul.f32.gmra.mxu0 %v1731
        %v1757 = vpop.f32.mrf.mxu0
        %v1758 = vadd.f32 %v1640, %v1757
        %1759 = vdwg.mxu0
        %1760 = vrot.lane.b32.xlu0 %v845, 112
        %v1761 = vpop.permute.xlu0 %1760
        %1762 = vrot.lane.b32.xlu0 %v846, 112
        %v1763 = vpop.permute.xlu0 %1762
        %1764 = vrot.lane.b32.xlu0 %v834, 80
        %v1765 = vpop.permute.xlu0 %1764
        %1766 = vrot.lane.b32.xlu0 %v837, 80
        %v1767 = vpop.permute.xlu0 %1766
        %v1768 = vsel %vm861, %v1761, 0
        %v1770 = vsel %vm861, %v1763, 0
        %v1772 = vsel %vm861, %v1765, 0
        %v1774 = vsel %vm861, %v1767, 0
        %1776 = vmatpush.xpose.msra.mxu0 0.0
        %1777 = vmatpush.xpose.msra.mxu0 0.0
        %1778 = vmatpush.xpose.msra.mxu0 0.0
        %1779 = vmatpush.xpose.msra.mxu0 0.0
        %1780 = vmatpush.xpose.msra.mxu0 0.0
        %1781 = vmatpush.xpose.msra.mxu0 0.0
        %1782 = vmatpush.xpose.msra.mxu0 0.0
        %1783 = vmatpush.xpose.msra.mxu0 0.0
        %1784 = vmatpush.xpose.msra.mxu0 0.0
        %1785 = vmatpush.xpose.msra.mxu0 0.0
        %1786 = vmatpush.xpose.msra.mxu0 0.0
        %1787 = vmatpush.xpose.msra.mxu0 0.0
        %1788 = vmatpush.xpose.msra.mxu0 0.0
        %1789 = vmatpush.xpose.msra.mxu0 0.0
        %1790 = vmatpush.xpose.msra.mxu0 %v1774
        %1791 = vmatpush.xpose.msra.mxu0 %v1772
        %1792 = vmatmul.f32.gmra.mxu0 %v1768
        %v1793 = vpop.f32.mrf.mxu0
        %v1794 = vadd.f32 %v1641, %v1793
        %1795 = vmatmul.f32.gmra.mxu0 %v1770
        %v1796 = vpop.f32.mrf.mxu0
        %v1797 = vadd.f32 %v1642, %v1796
        %1798 = vdwg.mxu0
        %v1799 = vsel %vm1012, %v1677, -inf
        %1800 = vmax.xlane.f32.xlu0 %v1799
        %v1801 = vpop.xlane.xlu0 %1800
        %v1802 = vsel %vm1012, %v1680, -inf
        %1803 = vmax.xlane.f32.xlu0 %v1802
        %v1804 = vpop.xlane.xlu0 %1803
        %v1805 = vsel %vm1012, %v1716, -inf
        %1806 = vmax.xlane.f32.xlu0 %v1805
        %v1807 = vpop.xlane.xlu0 %1806
        %v1808 = vsel %vm1012, %v1719, -inf
        %1809 = vmax.xlane.f32.xlu0 %v1808
        %v1810 = vpop.xlane.xlu0 %1809
        %v1811 = vsel %vm1012, %v1755, -inf
        %1812 = vmax.xlane.f32.xlu0 %v1811
        %v1813 = vpop.xlane.xlu0 %1812
        %v1814 = vsel %vm1012, %v1758, -inf
        %1815 = vmax.xlane.f32.xlu0 %v1814
        %v1816 = vpop.xlane.xlu0 %1815
        %v1817 = vsel %vm1012, %v1794, -inf
        %1818 = vmax.xlane.f32.xlu0 %v1817
        %v1819 = vpop.xlane.xlu0 %1818
        %v1820 = vsel %vm1012, %v1797, -inf
        %1821 = vmax.xlane.f32.xlu0 %v1820
        %v1822 = vpop.xlane.xlu0 %1821
        %v1823 = vsub.f32 %v1677, %v1801
        %v1824 = vsub.f32 %v1680, %v1804
        %v1825 = vsub.f32 %v1716, %v1807
        %v1826 = vsub.f32 %v1719, %v1810
        %v1827 = vsub.f32 %v1755, %v1813
        %v1828 = vsub.f32 %v1758, %v1816
        %v1829 = vsub.f32 %v1794, %v1819
        %v1830 = vsub.f32 %v1797, %v1822
        %v1831 = vmul.f32 %v1823, 1.442695
        %v1832 = vpow.pop %v1831
        %v1833 = vmul.f32 %v1824, 1.442695
        %v1834 = vpow.pop %v1833
        %v1835 = vmul.f32 %v1825, 1.442695
        %v1836 = vpow.pop %v1835
        %v1837 = vmul.f32 %v1826, 1.442695
        %v1838 = vpow.pop %v1837
        %v1839 = vmul.f32 %v1827, 1.442695
        %v1840 = vpow.pop %v1839
        %v1841 = vmul.f32 %v1828, 1.442695
        %v1842 = vpow.pop %v1841
        %v1843 = vmul.f32 %v1829, 1.442695
        %v1844 = vpow.pop %v1843
        %v1845 = vmul.f32 %v1830, 1.442695
        %v1846 = vpow.pop %v1845
        %v1847 = vsel %vm1012, %v1832, 0.0
        %1848 = vadd.xlane.f32.xlu0 %v1847
        %v1849 = vpop.xlane.xlu0 %1848
        %v1850 = vsel %vm1012, %v1834, 0.0
        %1851 = vadd.xlane.f32.xlu0 %v1850
        %v1852 = vpop.xlane.xlu0 %1851
        %v1853 = vsel %vm1012, %v1836, 0.0
        %1854 = vadd.xlane.f32.xlu0 %v1853
        %v1855 = vpop.xlane.xlu0 %1854
        %v1856 = vsel %vm1012, %v1838, 0.0
        %1857 = vadd.xlane.f32.xlu0 %v1856
        %v1858 = vpop.xlane.xlu0 %1857
        %v1859 = vsel %vm1012, %v1840, 0.0
        %1860 = vadd.xlane.f32.xlu0 %v1859
        %v1861 = vpop.xlane.xlu0 %1860
        %v1862 = vsel %vm1012, %v1842, 0.0
        %1863 = vadd.xlane.f32.xlu0 %v1862
        %v1864 = vpop.xlane.xlu0 %1863
        %v1865 = vsel %vm1012, %v1844, 0.0
        %1866 = vadd.xlane.f32.xlu0 %v1865
        %v1867 = vpop.xlane.xlu0 %1866
        %v1868 = vsel %vm1012, %v1846, 0.0
        %1869 = vadd.xlane.f32.xlu0 %v1868
        %v1870 = vpop.xlane.xlu0 %1869
        %v1871 = vrcp.pop %v1849
        %v1872 = vrcp.pop %v1852
        %v1873 = vrcp.pop %v1855
        %v1874 = vrcp.pop %v1858
        %v1875 = vrcp.pop %v1861
        %v1876 = vrcp.pop %v1864
        %v1877 = vrcp.pop %v1867
        %v1878 = vrcp.pop %v1870
        %v1879 = vmul.f32 %v1832, %v1871
        %v1880 = vmul.f32 %v1834, %v1872
        %v1881 = vmul.f32 %v1836, %v1873
        %v1882 = vmul.f32 %v1838, %v1874
        %v1883 = vmul.f32 %v1840, %v1875
        %v1884 = vmul.f32 %v1842, %v1876
        %v1885 = vmul.f32 %v1844, %v1877
        %v1886 = vmul.f32 %v1846, %v1878
        %1887 = vrot.lane.b32.xlu0 %v816, 48
        %v1888 = vpop.permute.xlu0 %1887
        %1889 = vrot.lane.b32.xlu0 %v819, 48
        %v1890 = vpop.permute.xlu0 %1889
        %v1894 = vsel %vm1012, %v1879, 0
        %v1897 = vsel %vm1012, %v1880, 0
        %1899 = vmatpush.msra.mxu0 0.0
        %1900 = vmatpush.msra.mxu0 0.0
        %1901 = vmatpush.msra.mxu0 0.0
        %1902 = vmatpush.msra.mxu0 0.0
        %1903 = vmatpush.msra.mxu0 0.0
        %1904 = vmatpush.msra.mxu0 0.0
        %1905 = vmatpush.msra.mxu0 0.0
        %1906 = vmatpush.msra.mxu0 0.0
        %1907 = vmatpush.msra.mxu0 0.0
        %1908 = vmatpush.msra.mxu0 0.0
        %1909 = vmatpush.msra.mxu0 0.0
        %1910 = vmatpush.msra.mxu0 0.0
        %1911 = vmatpush.msra.mxu0 0.0
        %1912 = vmatpush.msra.mxu0 0.0
        %1913 = vmatpush.msra.mxu0 %v1890
        %1914 = vmatpush.msra.mxu0 %v1888
        %1915 = vmatmul.f32.gmra.mxu0 %v1894
        %v1916 = vpop.f32.mrf.mxu0
        %v1917 = vadd.f32 0.0, %v1916
        %1918 = vmatmul.f32.gmra.mxu0 %v1897
        %v1919 = vpop.f32.mrf.mxu0
        %v1920 = vadd.f32 0.0, %v1919
        %1921 = vdwg.mxu0
        %1922 = vrot.lane.b32.xlu0 %v822, 48
        %v1923 = vpop.permute.xlu0 %1922
        %1924 = vrot.lane.b32.xlu0 %v825, 48
        %v1925 = vpop.permute.xlu0 %1924
        %v1929 = vsel %vm1012, %v1881, 0
        %v1932 = vsel %vm1012, %v1882, 0
        %1934 = vmatpush.msra.mxu0 0.0
        %1935 = vmatpush.msra.mxu0 0.0
        %1936 = vmatpush.msra.mxu0 0.0
        %1937 = vmatpush.msra.mxu0 0.0
        %1938 = vmatpush.msra.mxu0 0.0
        %1939 = vmatpush.msra.mxu0 0.0
        %1940 = vmatpush.msra.mxu0 0.0
        %1941 = vmatpush.msra.mxu0 0.0
        %1942 = vmatpush.msra.mxu0 0.0
        %1943 = vmatpush.msra.mxu0 0.0
        %1944 = vmatpush.msra.mxu0 0.0
        %1945 = vmatpush.msra.mxu0 0.0
        %1946 = vmatpush.msra.mxu0 0.0
        %1947 = vmatpush.msra.mxu0 0.0
        %1948 = vmatpush.msra.mxu0 %v1925
        %1949 = vmatpush.msra.mxu0 %v1923
        %1950 = vmatmul.f32.gmra.mxu0 %v1929
        %v1951 = vpop.f32.mrf.mxu0
        %v1952 = vadd.f32 0.0, %v1951
        %1953 = vmatmul.f32.gmra.mxu0 %v1932
        %v1954 = vpop.f32.mrf.mxu0
        %v1955 = vadd.f32 0.0, %v1954
        %1956 = vdwg.mxu0
        %1957 = vrot.lane.b32.xlu0 %v828, 48
        %v1958 = vpop.permute.xlu0 %1957
        %1959 = vrot.lane.b32.xlu0 %v831, 48
        %v1960 = vpop.permute.xlu0 %1959
        %v1964 = vsel %vm1012, %v1883, 0
        %v1967 = vsel %vm1012, %v1884, 0
        %1969 = vmatpush.msra.mxu0 0.0
        %1970 = vmatpush.msra.mxu0 0.0
        %1971 = vmatpush.msra.mxu0 0.0
        %1972 = vmatpush.msra.mxu0 0.0
        %1973 = vmatpush.msra.mxu0 0.0
        %1974 = vmatpush.msra.mxu0 0.0
        %1975 = vmatpush.msra.mxu0 0.0
        %1976 = vmatpush.msra.mxu0 0.0
        %1977 = vmatpush.msra.mxu0 0.0
        %1978 = vmatpush.msra.mxu0 0.0
        %1979 = vmatpush.msra.mxu0 0.0
        %1980 = vmatpush.msra.mxu0 0.0
        %1981 = vmatpush.msra.mxu0 0.0
        %1982 = vmatpush.msra.mxu0 0.0
        %1983 = vmatpush.msra.mxu0 %v1960
        %1984 = vmatpush.msra.mxu0 %v1958
        %1985 = vmatmul.f32.gmra.mxu0 %v1964
        %v1986 = vpop.f32.mrf.mxu0
        %v1987 = vadd.f32 0.0, %v1986
        %1988 = vmatmul.f32.gmra.mxu0 %v1967
        %v1989 = vpop.f32.mrf.mxu0
        %v1990 = vadd.f32 0.0, %v1989
        %1991 = vdwg.mxu0
        %1992 = vrot.lane.b32.xlu0 %v834, 48
        %v1993 = vpop.permute.xlu0 %1992
        %1994 = vrot.lane.b32.xlu0 %v837, 48
        %v1995 = vpop.permute.xlu0 %1994
        %v1999 = vsel %vm1012, %v1885, 0
        %v2002 = vsel %vm1012, %v1886, 0
        %2004 = vmatpush.msra.mxu0 0.0
        %2005 = vmatpush.msra.mxu0 0.0
        %2006 = vmatpush.msra.mxu0 0.0
        %2007 = vmatpush.msra.mxu0 0.0
        %2008 = vmatpush.msra.mxu0 0.0
        %2009 = vmatpush.msra.mxu0 0.0
        %2010 = vmatpush.msra.mxu0 0.0
        %2011 = vmatpush.msra.mxu0 0.0
        %2012 = vmatpush.msra.mxu0 0.0
        %2013 = vmatpush.msra.mxu0 0.0
        %2014 = vmatpush.msra.mxu0 0.0
        %2015 = vmatpush.msra.mxu0 0.0
        %2016 = vmatpush.msra.mxu0 0.0
        %2017 = vmatpush.msra.mxu0 0.0
        %2018 = vmatpush.msra.mxu0 %v1995
        %2019 = vmatpush.msra.mxu0 %v1993
        %2020 = vmatmul.f32.gmra.mxu0 %v1999
        %v2021 = vpop.f32.mrf.mxu0
        %v2022 = vadd.f32 0.0, %v2021
        %2023 = vmatmul.f32.gmra.mxu0 %v2002
        %v2024 = vpop.f32.mrf.mxu0
        %v2025 = vadd.f32 0.0, %v2024
        %2026 = vdwg.mxu0
        %s2027 = scalar_lea.vmem [#allocation2], 192
        %v2028 = vld [vmem:[%s2027] sm:$0xff]
        %v2029 = vld [vmem:[%s2027 + $0x8] sm:$0xff]
        %v2030 = vld [vmem:[%s2027 + $0x10] sm:$0xff]
        %v2031 = vld [vmem:[%s2027 + $0x18] sm:$0xff]
        %v2032 = vld [vmem:[%s2027 + $0x20] sm:$0xff]
        %v2033 = vld [vmem:[%s2027 + $0x28] sm:$0xff]
        %v2034 = vld [vmem:[%s2027 + $0x30] sm:$0xff]
        %v2035 = vld [vmem:[%s2027 + $0x38] sm:$0xff]
        %2036 = vrot.lane.b32.xlu0 %v839, 104
        %v2037 = vpop.permute.xlu0 %2036
        %2038 = vrot.lane.b32.xlu0 %v840, 104
        %v2039 = vpop.permute.xlu0 %2038
        %2040 = vrot.lane.b32.xlu0 %v816, 72
        %v2041 = vpop.permute.xlu0 %2040
        %2042 = vrot.lane.b32.xlu0 %v819, 72
        %v2043 = vpop.permute.xlu0 %2042
        %v2044 = vsel %vm861, %v2037, 0
        %v2046 = vsel %vm861, %v2039, 0
        %v2048 = vsel %vm861, %v2041, 0
        %v2050 = vsel %vm861, %v2043, 0
        %2052 = vmatpush.xpose.msra.mxu0 0.0
        %2053 = vmatpush.xpose.msra.mxu0 0.0
        %2054 = vmatpush.xpose.msra.mxu0 0.0
        %2055 = vmatpush.xpose.msra.mxu0 0.0
        %2056 = vmatpush.xpose.msra.mxu0 0.0
        %2057 = vmatpush.xpose.msra.mxu0 0.0
        %2058 = vmatpush.xpose.msra.mxu0 0.0
        %2059 = vmatpush.xpose.msra.mxu0 0.0
        %2060 = vmatpush.xpose.msra.mxu0 0.0
        %2061 = vmatpush.xpose.msra.mxu0 0.0
        %2062 = vmatpush.xpose.msra.mxu0 0.0
        %2063 = vmatpush.xpose.msra.mxu0 0.0
        %2064 = vmatpush.xpose.msra.mxu0 0.0
        %2065 = vmatpush.xpose.msra.mxu0 0.0
        %2066 = vmatpush.xpose.msra.mxu0 %v2050
        %2067 = vmatpush.xpose.msra.mxu0 %v2048
        %2068 = vmatmul.f32.gmra.mxu0 %v2044
        %v2069 = vpop.f32.mrf.mxu0
        %v2070 = vadd.f32 %v2028, %v2069
        %2071 = vmatmul.f32.gmra.mxu0 %v2046
        %v2072 = vpop.f32.mrf.mxu0
        %v2073 = vadd.f32 %v2029, %v2072
        %2074 = vdwg.mxu0
        %2075 = vrot.lane.b32.xlu0 %v841, 104
        %v2076 = vpop.permute.xlu0 %2075
        %2077 = vrot.lane.b32.xlu0 %v842, 104
        %v2078 = vpop.permute.xlu0 %2077
        %2079 = vrot.lane.b32.xlu0 %v822, 72
        %v2080 = vpop.permute.xlu0 %2079
        %2081 = vrot.lane.b32.xlu0 %v825, 72
        %v2082 = vpop.permute.xlu0 %2081
        %v2083 = vsel %vm861, %v2076, 0
        %v2085 = vsel %vm861, %v2078, 0
        %v2087 = vsel %vm861, %v2080, 0
        %v2089 = vsel %vm861, %v2082, 0
        %2091 = vmatpush.xpose.msra.mxu0 0.0
        %2092 = vmatpush.xpose.msra.mxu0 0.0
        %2093 = vmatpush.xpose.msra.mxu0 0.0
        %2094 = vmatpush.xpose.msra.mxu0 0.0
        %2095 = vmatpush.xpose.msra.mxu0 0.0
        %2096 = vmatpush.xpose.msra.mxu0 0.0
        %2097 = vmatpush.xpose.msra.mxu0 0.0
        %2098 = vmatpush.xpose.msra.mxu0 0.0
        %2099 = vmatpush.xpose.msra.mxu0 0.0
        %2100 = vmatpush.xpose.msra.mxu0 0.0
        %2101 = vmatpush.xpose.msra.mxu0 0.0
        %2102 = vmatpush.xpose.msra.mxu0 0.0
        %2103 = vmatpush.xpose.msra.mxu0 0.0
        %2104 = vmatpush.xpose.msra.mxu0 0.0
        %2105 = vmatpush.xpose.msra.mxu0 %v2089
        %2106 = vmatpush.xpose.msra.mxu0 %v2087
        %2107 = vmatmul.f32.gmra.mxu0 %v2083
        %v2108 = vpop.f32.mrf.mxu0
        %v2109 = vadd.f32 %v2030, %v2108
        %2110 = vmatmul.f32.gmra.mxu0 %v2085
        %v2111 = vpop.f32.mrf.mxu0
        %v2112 = vadd.f32 %v2031, %v2111
        %2113 = vdwg.mxu0
        %2114 = vrot.lane.b32.xlu0 %v843, 104
        %v2115 = vpop.permute.xlu0 %2114
        %2116 = vrot.lane.b32.xlu0 %v844, 104
        %v2117 = vpop.permute.xlu0 %2116
        %2118 = vrot.lane.b32.xlu0 %v828, 72
        %v2119 = vpop.permute.xlu0 %2118
        %2120 = vrot.lane.b32.xlu0 %v831, 72
        %v2121 = vpop.permute.xlu0 %2120
        %v2122 = vsel %vm861, %v2115, 0
        %v2124 = vsel %vm861, %v2117, 0
        %v2126 = vsel %vm861, %v2119, 0
        %v2128 = vsel %vm861, %v2121, 0
        %2130 = vmatpush.xpose.msra.mxu0 0.0
        %2131 = vmatpush.xpose.msra.mxu0 0.0
        %2132 = vmatpush.xpose.msra.mxu0 0.0
        %2133 = vmatpush.xpose.msra.mxu0 0.0
        %2134 = vmatpush.xpose.msra.mxu0 0.0
        %2135 = vmatpush.xpose.msra.mxu0 0.0
        %2136 = vmatpush.xpose.msra.mxu0 0.0
        %2137 = vmatpush.xpose.msra.mxu0 0.0
        %2138 = vmatpush.xpose.msra.mxu0 0.0
        %2139 = vmatpush.xpose.msra.mxu0 0.0
        %2140 = vmatpush.xpose.msra.mxu0 0.0
        %2141 = vmatpush.xpose.msra.mxu0 0.0
        %2142 = vmatpush.xpose.msra.mxu0 0.0
        %2143 = vmatpush.xpose.msra.mxu0 0.0
        %2144 = vmatpush.xpose.msra.mxu0 %v2128
        %2145 = vmatpush.xpose.msra.mxu0 %v2126
        %2146 = vmatmul.f32.gmra.mxu0 %v2122
        %v2147 = vpop.f32.mrf.mxu0
        %v2148 = vadd.f32 %v2032, %v2147
        %2149 = vmatmul.f32.gmra.mxu0 %v2124
        %v2150 = vpop.f32.mrf.mxu0
        %v2151 = vadd.f32 %v2033, %v2150
        %2152 = vdwg.mxu0
        %2153 = vrot.lane.b32.xlu0 %v845, 104
        %v2154 = vpop.permute.xlu0 %2153
        %2155 = vrot.lane.b32.xlu0 %v846, 104
        %v2156 = vpop.permute.xlu0 %2155
        %2157 = vrot.lane.b32.xlu0 %v834, 72
        %v2158 = vpop.permute.xlu0 %2157
        %2159 = vrot.lane.b32.xlu0 %v837, 72
        %v2160 = vpop.permute.xlu0 %2159
        %v2161 = vsel %vm861, %v2154, 0
        %v2163 = vsel %vm861, %v2156, 0
        %v2165 = vsel %vm861, %v2158, 0
        %v2167 = vsel %vm861, %v2160, 0
        %2169 = vmatpush.xpose.msra.mxu0 0.0
        %2170 = vmatpush.xpose.msra.mxu0 0.0
        %2171 = vmatpush.xpose.msra.mxu0 0.0
        %2172 = vmatpush.xpose.msra.mxu0 0.0
        %2173 = vmatpush.xpose.msra.mxu0 0.0
        %2174 = vmatpush.xpose.msra.mxu0 0.0
        %2175 = vmatpush.xpose.msra.mxu0 0.0
        %2176 = vmatpush.xpose.msra.mxu0 0.0
        %2177 = vmatpush.xpose.msra.mxu0 0.0
        %2178 = vmatpush.xpose.msra.mxu0 0.0
        %2179 = vmatpush.xpose.msra.mxu0 0.0
        %2180 = vmatpush.xpose.msra.mxu0 0.0
        %2181 = vmatpush.xpose.msra.mxu0 0.0
        %2182 = vmatpush.xpose.msra.mxu0 0.0
        %2183 = vmatpush.xpose.msra.mxu0 %v2167
        %2184 = vmatpush.xpose.msra.mxu0 %v2165
        %2185 = vmatmul.f32.gmra.mxu0 %v2161
        %v2186 = vpop.f32.mrf.mxu0
        %v2187 = vadd.f32 %v2034, %v2186
        %2188 = vmatmul.f32.gmra.mxu0 %v2163
        %v2189 = vpop.f32.mrf.mxu0
        %v2190 = vadd.f32 %v2035, %v2189
        %2191 = vdwg.mxu0
        %v2192 = vsel %vm1012, %v2070, -inf
        %2193 = vmax.xlane.f32.xlu0 %v2192
        %v2194 = vpop.xlane.xlu0 %2193
        %v2195 = vsel %vm1012, %v2073, -inf
        %2196 = vmax.xlane.f32.xlu0 %v2195
        %v2197 = vpop.xlane.xlu0 %2196
        %v2198 = vsel %vm1012, %v2109, -inf
        %2199 = vmax.xlane.f32.xlu0 %v2198
        %v2200 = vpop.xlane.xlu0 %2199
        %v2201 = vsel %vm1012, %v2112, -inf
        %2202 = vmax.xlane.f32.xlu0 %v2201
        %v2203 = vpop.xlane.xlu0 %2202
        %v2204 = vsel %vm1012, %v2148, -inf
        %2205 = vmax.xlane.f32.xlu0 %v2204
        %v2206 = vpop.xlane.xlu0 %2205
        %v2207 = vsel %vm1012, %v2151, -inf
        %2208 = vmax.xlane.f32.xlu0 %v2207
        %v2209 = vpop.xlane.xlu0 %2208
        %v2210 = vsel %vm1012, %v2187, -inf
        %2211 = vmax.xlane.f32.xlu0 %v2210
        %v2212 = vpop.xlane.xlu0 %2211
        %v2213 = vsel %vm1012, %v2190, -inf
        %2214 = vmax.xlane.f32.xlu0 %v2213
        %v2215 = vpop.xlane.xlu0 %2214
        %v2216 = vsub.f32 %v2070, %v2194
        %v2217 = vsub.f32 %v2073, %v2197
        %v2218 = vsub.f32 %v2109, %v2200
        %v2219 = vsub.f32 %v2112, %v2203
        %v2220 = vsub.f32 %v2148, %v2206
        %v2221 = vsub.f32 %v2151, %v2209
        %v2222 = vsub.f32 %v2187, %v2212
        %v2223 = vsub.f32 %v2190, %v2215
        %v2224 = vmul.f32 %v2216, 1.442695
        %v2225 = vpow.pop %v2224
        %v2226 = vmul.f32 %v2217, 1.442695
        %v2227 = vpow.pop %v2226
        %v2228 = vmul.f32 %v2218, 1.442695
        %v2229 = vpow.pop %v2228
        %v2230 = vmul.f32 %v2219, 1.442695
        %v2231 = vpow.pop %v2230
        %v2232 = vmul.f32 %v2220, 1.442695
        %v2233 = vpow.pop %v2232
        %v2234 = vmul.f32 %v2221, 1.442695
        %v2235 = vpow.pop %v2234
        %v2236 = vmul.f32 %v2222, 1.442695
        %v2237 = vpow.pop %v2236
        %v2238 = vmul.f32 %v2223, 1.442695
        %v2239 = vpow.pop %v2238
        %v2240 = vsel %vm1012, %v2225, 0.0
        %2241 = vadd.xlane.f32.xlu0 %v2240
        %v2242 = vpop.xlane.xlu0 %2241
        %v2243 = vsel %vm1012, %v2227, 0.0
        %2244 = vadd.xlane.f32.xlu0 %v2243
        %v2245 = vpop.xlane.xlu0 %2244
        %v2246 = vsel %vm1012, %v2229, 0.0
        %2247 = vadd.xlane.f32.xlu0 %v2246
        %v2248 = vpop.xlane.xlu0 %2247
        %v2249 = vsel %vm1012, %v2231, 0.0
        %2250 = vadd.xlane.f32.xlu0 %v2249
        %v2251 = vpop.xlane.xlu0 %2250
        %v2252 = vsel %vm1012, %v2233, 0.0
        %2253 = vadd.xlane.f32.xlu0 %v2252
        %v2254 = vpop.xlane.xlu0 %2253
        %v2255 = vsel %vm1012, %v2235, 0.0
        %2256 = vadd.xlane.f32.xlu0 %v2255
        %v2257 = vpop.xlane.xlu0 %2256
        %v2258 = vsel %vm1012, %v2237, 0.0
        %2259 = vadd.xlane.f32.xlu0 %v2258
        %v2260 = vpop.xlane.xlu0 %2259
        %v2261 = vsel %vm1012, %v2239, 0.0
        %2262 = vadd.xlane.f32.xlu0 %v2261
        %v2263 = vpop.xlane.xlu0 %2262
        %v2264 = vrcp.pop %v2242
        %v2265 = vrcp.pop %v2245
        %v2266 = vrcp.pop %v2248
        %v2267 = vrcp.pop %v2251
        %v2268 = vrcp.pop %v2254
        %v2269 = vrcp.pop %v2257
        %v2270 = vrcp.pop %v2260
        %v2271 = vrcp.pop %v2263
        %v2272 = vmul.f32 %v2225, %v2264
        %v2273 = vmul.f32 %v2227, %v2265
        %v2274 = vmul.f32 %v2229, %v2266
        %v2275 = vmul.f32 %v2231, %v2267
        %v2276 = vmul.f32 %v2233, %v2268
        %v2277 = vmul.f32 %v2235, %v2269
        %v2278 = vmul.f32 %v2237, %v2270
        %v2279 = vmul.f32 %v2239, %v2271
        %2280 = vrot.lane.b32.xlu0 %v816, 40
        %v2281 = vpop.permute.xlu0 %2280
        %2282 = vrot.lane.b32.xlu0 %v819, 40
        %v2283 = vpop.permute.xlu0 %2282
        %v2287 = vsel %vm1012, %v2272, 0
        %v2290 = vsel %vm1012, %v2273, 0
        %2292 = vmatpush.msra.mxu0 0.0
        %2293 = vmatpush.msra.mxu0 0.0
        %2294 = vmatpush.msra.mxu0 0.0
        %2295 = vmatpush.msra.mxu0 0.0
        %2296 = vmatpush.msra.mxu0 0.0
        %2297 = vmatpush.msra.mxu0 0.0
        %2298 = vmatpush.msra.mxu0 0.0
        %2299 = vmatpush.msra.mxu0 0.0
        %2300 = vmatpush.msra.mxu0 0.0
        %2301 = vmatpush.msra.mxu0 0.0
        %2302 = vmatpush.msra.mxu0 0.0
        %2303 = vmatpush.msra.mxu0 0.0
        %2304 = vmatpush.msra.mxu0 0.0
        %2305 = vmatpush.msra.mxu0 0.0
        %2306 = vmatpush.msra.mxu0 %v2283
        %2307 = vmatpush.msra.mxu0 %v2281
        %2308 = vmatmul.f32.gmra.mxu0 %v2287
        %v2309 = vpop.f32.mrf.mxu0
        %v2310 = vadd.f32 0.0, %v2309
        %2311 = vmatmul.f32.gmra.mxu0 %v2290
        %v2312 = vpop.f32.mrf.mxu0
        %v2313 = vadd.f32 0.0, %v2312
        %2314 = vdwg.mxu0
        %2315 = vrot.lane.b32.xlu0 %v822, 40
        %v2316 = vpop.permute.xlu0 %2315
        %2317 = vrot.lane.b32.xlu0 %v825, 40
        %v2318 = vpop.permute.xlu0 %2317
        %v2322 = vsel %vm1012, %v2274, 0
        %v2325 = vsel %vm1012, %v2275, 0
        %2327 = vmatpush.msra.mxu0 0.0
        %2328 = vmatpush.msra.mxu0 0.0
        %2329 = vmatpush.msra.mxu0 0.0
        %2330 = vmatpush.msra.mxu0 0.0
        %2331 = vmatpush.msra.mxu0 0.0
        %2332 = vmatpush.msra.mxu0 0.0
        %2333 = vmatpush.msra.mxu0 0.0
        %2334 = vmatpush.msra.mxu0 0.0
        %2335 = vmatpush.msra.mxu0 0.0
        %2336 = vmatpush.msra.mxu0 0.0
        %2337 = vmatpush.msra.mxu0 0.0
        %2338 = vmatpush.msra.mxu0 0.0
        %2339 = vmatpush.msra.mxu0 0.0
        %2340 = vmatpush.msra.mxu0 0.0
        %2341 = vmatpush.msra.mxu0 %v2318
        %2342 = vmatpush.msra.mxu0 %v2316
        %2343 = vmatmul.f32.gmra.mxu0 %v2322
        %v2344 = vpop.f32.mrf.mxu0
        %v2345 = vadd.f32 0.0, %v2344
        %2346 = vmatmul.f32.gmra.mxu0 %v2325
        %v2347 = vpop.f32.mrf.mxu0
        %v2348 = vadd.f32 0.0, %v2347
        %2349 = vdwg.mxu0
        %2350 = vrot.lane.b32.xlu0 %v828, 40
        %v2351 = vpop.permute.xlu0 %2350
        %2352 = vrot.lane.b32.xlu0 %v831, 40
        %v2353 = vpop.permute.xlu0 %2352
        %v2357 = vsel %vm1012, %v2276, 0
        %v2360 = vsel %vm1012, %v2277, 0
        %2362 = vmatpush.msra.mxu0 0.0
        %2363 = vmatpush.msra.mxu0 0.0
        %2364 = vmatpush.msra.mxu0 0.0
        %2365 = vmatpush.msra.mxu0 0.0
        %2366 = vmatpush.msra.mxu0 0.0
        %2367 = vmatpush.msra.mxu0 0.0
        %2368 = vmatpush.msra.mxu0 0.0
        %2369 = vmatpush.msra.mxu0 0.0
        %2370 = vmatpush.msra.mxu0 0.0
        %2371 = vmatpush.msra.mxu0 0.0
        %2372 = vmatpush.msra.mxu0 0.0
        %2373 = vmatpush.msra.mxu0 0.0
        %2374 = vmatpush.msra.mxu0 0.0
        %2375 = vmatpush.msra.mxu0 0.0
        %2376 = vmatpush.msra.mxu0 %v2353
        %2377 = vmatpush.msra.mxu0 %v2351
        %2378 = vmatmul.f32.gmra.mxu0 %v2357
        %v2379 = vpop.f32.mrf.mxu0
        %v2380 = vadd.f32 0.0, %v2379
        %2381 = vmatmul.f32.gmra.mxu0 %v2360
        %v2382 = vpop.f32.mrf.mxu0
        %v2383 = vadd.f32 0.0, %v2382
        %2384 = vdwg.mxu0
        %2385 = vrot.lane.b32.xlu0 %v834, 40
        %v2386 = vpop.permute.xlu0 %2385
        %2387 = vrot.lane.b32.xlu0 %v837, 40
        %v2388 = vpop.permute.xlu0 %2387
        %v2392 = vsel %vm1012, %v2278, 0
        %v2395 = vsel %vm1012, %v2279, 0
        %2397 = vmatpush.msra.mxu0 0.0
        %2398 = vmatpush.msra.mxu0 0.0
        %2399 = vmatpush.msra.mxu0 0.0
        %2400 = vmatpush.msra.mxu0 0.0
        %2401 = vmatpush.msra.mxu0 0.0
        %2402 = vmatpush.msra.mxu0 0.0
        %2403 = vmatpush.msra.mxu0 0.0
        %2404 = vmatpush.msra.mxu0 0.0
        %2405 = vmatpush.msra.mxu0 0.0
        %2406 = vmatpush.msra.mxu0 0.0
        %2407 = vmatpush.msra.mxu0 0.0
        %2408 = vmatpush.msra.mxu0 0.0
        %2409 = vmatpush.msra.mxu0 0.0
        %2410 = vmatpush.msra.mxu0 0.0
        %2411 = vmatpush.msra.mxu0 %v2388
        %2412 = vmatpush.msra.mxu0 %v2386
        %2413 = vmatmul.f32.gmra.mxu0 %v2392
        %v2414 = vpop.f32.mrf.mxu0
        %v2415 = vadd.f32 0.0, %v2414
        %2416 = vmatmul.f32.gmra.mxu0 %v2395
        %v2417 = vpop.f32.mrf.mxu0
        %v2418 = vadd.f32 0.0, %v2417
        %2419 = vdwg.mxu0
        %2428 = vrot.lane.b32.xlu0 %v1524, 8
        %v2429 = vpop.permute.xlu0 %2428
        %2430 = vrot.lane.b32.xlu0 %v1527, 8
        %v2431 = vpop.permute.xlu0 %2430
        %2432 = vrot.lane.b32.xlu0 %v1559, 8
        %v2433 = vpop.permute.xlu0 %2432
        %2434 = vrot.lane.b32.xlu0 %v1562, 8
        %v2435 = vpop.permute.xlu0 %2434
        %2436 = vrot.lane.b32.xlu0 %v1594, 8
        %v2437 = vpop.permute.xlu0 %2436
        %2438 = vrot.lane.b32.xlu0 %v1597, 8
        %v2439 = vpop.permute.xlu0 %2438
        %2440 = vrot.lane.b32.xlu0 %v1629, 8
        %v2441 = vpop.permute.xlu0 %2440
        %2442 = vrot.lane.b32.xlu0 %v1632, 8
        %v2443 = vpop.permute.xlu0 %2442
        %2460 = vrot.lane.b32.xlu0 %v1917, 16
        %v2461 = vpop.permute.xlu0 %2460
        %2462 = vrot.lane.b32.xlu0 %v1920, 16
        %v2463 = vpop.permute.xlu0 %2462
        %2464 = vrot.lane.b32.xlu0 %v1952, 16
        %v2465 = vpop.permute.xlu0 %2464
        %2466 = vrot.lane.b32.xlu0 %v1955, 16
        %v2467 = vpop.permute.xlu0 %2466
        %2468 = vrot.lane.b32.xlu0 %v1987, 16
        %v2469 = vpop.permute.xlu0 %2468
        %2470 = vrot.lane.b32.xlu0 %v1990, 16
        %v2471 = vpop.permute.xlu0 %2470
        %2472 = vrot.lane.b32.xlu0 %v2022, 16
        %v2473 = vpop.permute.xlu0 %2472
        %2474 = vrot.lane.b32.xlu0 %v2025, 16
        %v2475 = vpop.permute.xlu0 %2474
        %2492 = vrot.lane.b32.xlu0 %v2310, 24
        %v2493 = vpop.permute.xlu0 %2492
        %2494 = vrot.lane.b32.xlu0 %v2313, 24
        %v2495 = vpop.permute.xlu0 %2494
        %2496 = vrot.lane.b32.xlu0 %v2345, 24
        %v2497 = vpop.permute.xlu0 %2496
        %2498 = vrot.lane.b32.xlu0 %v2348, 24
        %v2499 = vpop.permute.xlu0 %2498
        %2500 = vrot.lane.b32.xlu0 %v2380, 24
        %v2501 = vpop.permute.xlu0 %2500
        %2502 = vrot.lane.b32.xlu0 %v2383, 24
        %v2503 = vpop.permute.xlu0 %2502
        %2504 = vrot.lane.b32.xlu0 %v2415, 24
        %v2505 = vpop.permute.xlu0 %2504
        %2506 = vrot.lane.b32.xlu0 %v2418, 24
        %v2507 = vpop.permute.xlu0 %2506
        %v2516 = vsel %vm861, %v1131, %v2429
        %v2517 = vsel %vm861, %v1134, %v2431
        %v2518 = vsel %vm861, %v1166, %v2433
        %v2519 = vsel %vm861, %v1169, %v2435
        %v2520 = vsel %vm861, %v1201, %v2437
        %v2521 = vsel %vm861, %v1204, %v2439
        %v2522 = vsel %vm861, %v1236, %v2441
        %v2523 = vsel %vm861, %v1239, %v2443
        %v2524 = vsel %vm1012, %v2516, %v2461
        %v2525 = vsel %vm1012, %v2517, %v2463
        %v2526 = vsel %vm1012, %v2518, %v2465
        %v2527 = vsel %vm1012, %v2519, %v2467
        %v2528 = vsel %vm1012, %v2520, %v2469
        %v2529 = vsel %vm1012, %v2521, %v2471
        %v2530 = vsel %vm1012, %v2522, %v2473
        %v2531 = vsel %vm1012, %v2523, %v2475
        %vm2532 = vcmask 195584
        %v2533 = vsel %vm2532, %v2524, %v2493
        %v2534 = vsel %vm2532, %v2525, %v2495
        %v2535 = vsel %vm2532, %v2526, %v2497
        %v2536 = vsel %vm2532, %v2527, %v2499
        %v2537 = vsel %vm2532, %v2528, %v2501
        %v2538 = vsel %vm2532, %v2529, %v2503
        %v2539 = vsel %vm2532, %v2530, %v2505
        %v2540 = vsel %vm2532, %v2531, %v2507
        %v2542 = vperm.slane %v778, 0
        %v2545 = vsel %vm495, %v2533, 0
        %v2548 = vsel %vm495, %v2534, 0
        %v2551 = vsel %vm495, %v2535, 0
        %v2554 = vsel %vm495, %v2536, 0
        %v2557 = vsel %vm495, %v2537, 0
        %v2560 = vsel %vm495, %v2538, 0
        %v2563 = vsel %vm495, %v2539, 0
        %v2566 = vsel %vm495, %v2540, 0
        %2568 = vmatpush.msra.mxu0 0.0
        %2569 = vmatpush.msra.mxu0 0.0
        %2570 = vmatpush.msra.mxu0 0.0
        %2571 = vmatpush.msra.mxu0 0.0
        %2572 = vmatpush.msra.mxu0 0.0
        %2573 = vmatpush.msra.mxu0 0.0
        %2574 = vmatpush.msra.mxu0 0.0
        %2575 = vmatpush.msra.mxu0 0.0
        %2576 = vmatpush.msra.mxu0 0.0
        %2577 = vmatpush.msra.mxu0 0.0
        %2578 = vmatpush.msra.mxu0 0.0
        %2579 = vmatpush.msra.mxu0 0.0
        %2580 = vmatpush.msra.mxu0 %v777
        %2581 = vmatpush.msra.mxu0 %v776
        %2582 = vmatpush.msra.mxu0 %v775
        %2583 = vmatpush.msra.mxu0 %v774
        %2584 = vmatmul.f32.gmra.mxu0 %v2545
        %v2585 = vpop.f32.mrf.mxu0
        %v2586 = vadd.f32 %v2542, %v2585
        %2587 = vmatmul.f32.gmra.mxu0 %v2548
        %v2588 = vpop.f32.mrf.mxu0
        %v2589 = vadd.f32 %v2542, %v2588
        %2590 = vmatmul.f32.gmra.mxu0 %v2551
        %v2591 = vpop.f32.mrf.mxu0
        %v2592 = vadd.f32 %v2542, %v2591
        %2593 = vmatmul.f32.gmra.mxu0 %v2554
        %v2594 = vpop.f32.mrf.mxu0
        %v2595 = vadd.f32 %v2542, %v2594
        %2596 = vmatmul.f32.gmra.mxu0 %v2557
        %v2597 = vpop.f32.mrf.mxu0
        %v2598 = vadd.f32 %v2542, %v2597
        %2599 = vmatmul.f32.gmra.mxu0 %v2560
        %v2600 = vpop.f32.mrf.mxu0
        %v2601 = vadd.f32 %v2542, %v2600
        %2602 = vmatmul.f32.gmra.mxu0 %v2563
        %v2603 = vpop.f32.mrf.mxu0
        %v2604 = vadd.f32 %v2542, %v2603
        %2605 = vmatmul.f32.gmra.mxu0 %v2566
        %v2606 = vpop.f32.mrf.mxu0
        %v2607 = vadd.f32 %v2542, %v2606
        %2608 = vdwg.mxu0
        %v2611 = vrot.slane %v2586, 4
        %v2612 = vrot.slane %v2589, 4
        %v2617 = vrot.slane %v2592, 4
        %v2618 = vrot.slane %v2595, 4
        %s2619 = scalar_lea.vmem [#allocation1], 1
        %2620 = vst [vmem:[%s2619] ss:$2 sm:$0xff] %v2592
        %v2621 = vld.sshfl [vmem:[#allocation1] sm:$0xff pattern:$0x75316420]
        %s2622 = scalar_lea.vmem [#allocation1], 17
        %2623 = vst [vmem:[%s2622] ss:$2 sm:$0xff] %v2617
        %v2624 = vld.sshfl [vmem:[#allocation1 + $0x10] sm:$0xff pattern:$0x75316420]
        %s2625 = scalar_lea.vmem [#allocation1], 33
        %2626 = vst [vmem:[%s2625] ss:$2 sm:$0xff] %v2595
        %v2627 = vld.sshfl [vmem:[#allocation1 + $0x20] sm:$0xff pattern:$0x75316420]
        %s2628 = scalar_lea.vmem [#allocation1], 49
        %2629 = vst [vmem:[%s2628] ss:$2 sm:$0xff] %v2618
        %v2630 = vld.sshfl [vmem:[#allocation1 + $0x30] sm:$0xff pattern:$0x75316420]
        %vm2635 = vcmask 1043456
        %v2636 = vsel %vm2635, %v2586, %v2621
        %v2637 = vsel %vm2635, %v2611, %v2624
        %v2638 = vsel %vm2635, %v2589, %v2627
        %v2639 = vsel %vm2635, %v2612, %v2630
        %v2642 = vrot.slane %v2598, 4
        %v2643 = vrot.slane %v2601, 4
        %v2648 = vrot.slane %v2604, 4
        %v2649 = vrot.slane %v2607, 4
        %s2650 = scalar_lea.vmem [#allocation1], 1
        %2651 = vst [vmem:[%s2650] ss:$2 sm:$0xff] %v2604
        %v2652 = vld.sshfl [vmem:[#allocation1] sm:$0xff pattern:$0x75316420]
        %s2653 = scalar_lea.vmem [#allocation1], 17
        %2654 = vst [vmem:[%s2653] ss:$2 sm:$0xff] %v2648
        %v2655 = vld.sshfl [vmem:[#allocation1 + $0x10] sm:$0xff pattern:$0x75316420]
        %s2656 = scalar_lea.vmem [#allocation1], 33
        %2657 = vst [vmem:[%s2656] ss:$2 sm:$0xff] %v2607
        %v2658 = vld.sshfl [vmem:[#allocation1 + $0x20] sm:$0xff pattern:$0x75316420]
        %s2659 = scalar_lea.vmem [#allocation1], 49
        %2660 = vst [vmem:[%s2659] ss:$2 sm:$0xff] %v2649
        %v2661 = vld.sshfl [vmem:[#allocation1 + $0x30] sm:$0xff pattern:$0x75316420]
        %v2666 = vsel %vm2635, %v2598, %v2652
        %v2667 = vsel %vm2635, %v2642, %v2655
        %v2668 = vsel %vm2635, %v2601, %v2658
        %v2669 = vsel %vm2635, %v2643, %v2661
        %v2670 = vadd.f32 %v485, %v2636
        %v2671 = vadd.f32 %v486, %v2637
        %v2672 = vadd.f32 %v487, %v2638
        %v2673 = vadd.f32 %v488, %v2639
        %v2674 = vadd.f32 %v489, %v2666
        %v2675 = vadd.f32 %v490, %v2667
        %v2676 = vadd.f32 %v491, %v2668
        %v2677 = vadd.f32 %v492, %v2669
        %v2678 = vld [vmem:[%s7] sm:$0x1]
        %v2679 = vld [vmem:[%s8] sm:$0x1]
        %v2680 = vsel %vm495, %v2670, 0.0
        %2681 = vadd.xlane.f32.xlu0 %v2680
        %v2682 = vpop.xlane.xlu0 %2681
        %v2683 = vsel %vm495, %v2671, 0.0
        %2684 = vadd.xlane.f32.xlu0 %v2683
        %v2685 = vpop.xlane.xlu0 %2684
        %v2686 = vsel %vm495, %v2672, 0.0
        %2687 = vadd.xlane.f32.xlu0 %v2686
        %v2688 = vpop.xlane.xlu0 %2687
        %v2689 = vsel %vm495, %v2673, 0.0
        %2690 = vadd.xlane.f32.xlu0 %v2689
        %v2691 = vpop.xlane.xlu0 %2690
        %v2692 = vsel %vm495, %v2674, 0.0
        %2693 = vadd.xlane.f32.xlu0 %v2692
        %v2694 = vpop.xlane.xlu0 %2693
        %v2695 = vsel %vm495, %v2675, 0.0
        %2696 = vadd.xlane.f32.xlu0 %v2695
        %v2697 = vpop.xlane.xlu0 %2696
        %v2698 = vsel %vm495, %v2676, 0.0
        %2699 = vadd.xlane.f32.xlu0 %v2698
        %v2700 = vpop.xlane.xlu0 %2699
        %v2701 = vsel %vm495, %v2677, 0.0
        %2702 = vadd.xlane.f32.xlu0 %v2701
        %v2703 = vpop.xlane.xlu0 %2702
        %v2704 = vmul.f32 %v2682, %v526
        %v2705 = vmul.f32 %v2685, %v526
        %v2706 = vmul.f32 %v2688, %v526
        %v2707 = vmul.f32 %v2691, %v526
        %v2708 = vmul.f32 %v2694, %v526
        %v2709 = vmul.f32 %v2697, %v526
        %v2710 = vmul.f32 %v2700, %v526
        %v2711 = vmul.f32 %v2703, %v526
        %v2712 = vsub.f32 %v2670, %v2704
        %v2713 = vsub.f32 %v2671, %v2705
        %v2714 = vsub.f32 %v2672, %v2706
        %v2715 = vsub.f32 %v2673, %v2707
        %v2716 = vsub.f32 %v2674, %v2708
        %v2717 = vsub.f32 %v2675, %v2709
        %v2718 = vsub.f32 %v2676, %v2710
        %v2719 = vsub.f32 %v2677, %v2711
        %v2720 = vmul.f32 %v2712, %v2712
        %v2721 = vmul.f32 %v2713, %v2713
        %v2722 = vmul.f32 %v2714, %v2714
        %v2723 = vmul.f32 %v2715, %v2715
        %v2724 = vmul.f32 %v2716, %v2716
        %v2725 = vmul.f32 %v2717, %v2717
        %v2726 = vmul.f32 %v2718, %v2718
        %v2727 = vmul.f32 %v2719, %v2719
        %v2728 = vsel %vm495, %v2720, 0.0
        %2729 = vadd.xlane.f32.xlu0 %v2728
        %v2730 = vpop.xlane.xlu0 %2729
        %v2731 = vsel %vm495, %v2721, 0.0
        %2732 = vadd.xlane.f32.xlu0 %v2731
        %v2733 = vpop.xlane.xlu0 %2732
        %v2734 = vsel %vm495, %v2722, 0.0
        %2735 = vadd.xlane.f32.xlu0 %v2734
        %v2736 = vpop.xlane.xlu0 %2735
        %v2737 = vsel %vm495, %v2723, 0.0
        %2738 = vadd.xlane.f32.xlu0 %v2737
        %v2739 = vpop.xlane.xlu0 %2738
        %v2740 = vsel %vm495, %v2724, 0.0
        %2741 = vadd.xlane.f32.xlu0 %v2740
        %v2742 = vpop.xlane.xlu0 %2741
        %v2743 = vsel %vm495, %v2725, 0.0
        %2744 = vadd.xlane.f32.xlu0 %v2743
        %v2745 = vpop.xlane.xlu0 %2744
        %v2746 = vsel %vm495, %v2726, 0.0
        %2747 = vadd.xlane.f32.xlu0 %v2746
        %v2748 = vpop.xlane.xlu0 %2747
        %v2749 = vsel %vm495, %v2727, 0.0
        %2750 = vadd.xlane.f32.xlu0 %v2749
        %v2751 = vpop.xlane.xlu0 %2750
        %v2752 = vmul.f32 %v2730, %v526
        %v2753 = vmul.f32 %v2733, %v526
        %v2754 = vmul.f32 %v2736, %v526
        %v2755 = vmul.f32 %v2739, %v526
        %v2756 = vmul.f32 %v2742, %v526
        %v2757 = vmul.f32 %v2745, %v526
        %v2758 = vmul.f32 %v2748, %v526
        %v2759 = vmul.f32 %v2751, %v526
        %v2760 = vadd.f32 %v2752, 1e-05
        %v2761 = vadd.f32 %v2753, 1e-05
        %v2762 = vadd.f32 %v2754, 1e-05
        %v2763 = vadd.f32 %v2755, 1e-05
        %v2764 = vadd.f32 %v2756, 1e-05
        %v2765 = vadd.f32 %v2757, 1e-05
        %v2766 = vadd.f32 %v2758, 1e-05
        %v2767 = vadd.f32 %v2759, 1e-05
        %v2768 = vrsqrt.pop %v2760
        %v2769 = vmul.f32 %v2768, %v2760
        %v2770 = vmul.f32 %v2769, %v2768
        %v2771 = vmul.f32 0.5, %v2770
        %v2772 = vsub.f32 1.5, %v2771
        %v2773 = vmul.f32 %v2768, %v2772
        %vm2774 = vweird.f32 %v2760
        %vm2775 = vweird.f32 %v2768
        %vm2776 = vmor %vm2774, %vm2775
        %v2777 = vsel %vm2776, %v2768, %v2773
        %v2778 = vrsqrt.pop %v2761
        %v2779 = vmul.f32 %v2778, %v2761
        %v2780 = vmul.f32 %v2779, %v2778
        %v2781 = vmul.f32 0.5, %v2780
        %v2782 = vsub.f32 1.5, %v2781
        %v2783 = vmul.f32 %v2778, %v2782
        %vm2784 = vweird.f32 %v2761
        %vm2785 = vweird.f32 %v2778
        %vm2786 = vmor %vm2784, %vm2785
        %v2787 = vsel %vm2786, %v2778, %v2783
        %v2788 = vrsqrt.pop %v2762
        %v2789 = vmul.f32 %v2788, %v2762
        %v2790 = vmul.f32 %v2789, %v2788
        %v2791 = vmul.f32 0.5, %v2790
        %v2792 = vsub.f32 1.5, %v2791
        %v2793 = vmul.f32 %v2788, %v2792
        %vm2794 = vweird.f32 %v2762
        %vm2795 = vweird.f32 %v2788
        %vm2796 = vmor %vm2794, %vm2795
        %v2797 = vsel %vm2796, %v2788, %v2793
        %v2798 = vrsqrt.pop %v2763
        %v2799 = vmul.f32 %v2798, %v2763
        %v2800 = vmul.f32 %v2799, %v2798
        %v2801 = vmul.f32 0.5, %v2800
        %v2802 = vsub.f32 1.5, %v2801
        %v2803 = vmul.f32 %v2798, %v2802
        %vm2804 = vweird.f32 %v2763
        %vm2805 = vweird.f32 %v2798
        %vm2806 = vmor %vm2804, %vm2805
        %v2807 = vsel %vm2806, %v2798, %v2803
        %v2808 = vrsqrt.pop %v2764
        %v2809 = vmul.f32 %v2808, %v2764
        %v2810 = vmul.f32 %v2809, %v2808
        %v2811 = vmul.f32 0.5, %v2810
        %v2812 = vsub.f32 1.5, %v2811
        %v2813 = vmul.f32 %v2808, %v2812
        %vm2814 = vweird.f32 %v2764
        %vm2815 = vweird.f32 %v2808
        %vm2816 = vmor %vm2814, %vm2815
        %v2817 = vsel %vm2816, %v2808, %v2813
        %v2818 = vrsqrt.pop %v2765
        %v2819 = vmul.f32 %v2818, %v2765
        %v2820 = vmul.f32 %v2819, %v2818
        %v2821 = vmul.f32 0.5, %v2820
        %v2822 = vsub.f32 1.5, %v2821
        %v2823 = vmul.f32 %v2818, %v2822
        %vm2824 = vweird.f32 %v2765
        %vm2825 = vweird.f32 %v2818
        %vm2826 = vmor %vm2824, %vm2825
        %v2827 = vsel %vm2826, %v2818, %v2823
        %v2828 = vrsqrt.pop %v2766
        %v2829 = vmul.f32 %v2828, %v2766
        %v2830 = vmul.f32 %v2829, %v2828
        %v2831 = vmul.f32 0.5, %v2830
        %v2832 = vsub.f32 1.5, %v2831
        %v2833 = vmul.f32 %v2828, %v2832
        %vm2834 = vweird.f32 %v2766
        %vm2835 = vweird.f32 %v2828
        %vm2836 = vmor %vm2834, %vm2835
        %v2837 = vsel %vm2836, %v2828, %v2833
        %v2838 = vrsqrt.pop %v2767
        %v2839 = vmul.f32 %v2838, %v2767
        %v2840 = vmul.f32 %v2839, %v2838
        %v2841 = vmul.f32 0.5, %v2840
        %v2842 = vsub.f32 1.5, %v2841
        %v2843 = vmul.f32 %v2838, %v2842
        %vm2844 = vweird.f32 %v2767
        %vm2845 = vweird.f32 %v2838
        %vm2846 = vmor %vm2844, %vm2845
        %v2847 = vsel %vm2846, %v2838, %v2843
        %v2848 = vmul.f32 %v2712, %v2777
        %v2849 = vmul.f32 %v2713, %v2787
        %v2850 = vmul.f32 %v2714, %v2797
        %v2851 = vmul.f32 %v2715, %v2807
        %v2852 = vmul.f32 %v2716, %v2817
        %v2853 = vmul.f32 %v2717, %v2827
        %v2854 = vmul.f32 %v2718, %v2837
        %v2855 = vmul.f32 %v2719, %v2847
        %v2857 = vperm.slane %v2678, 0
        %v2859 = vmul.f32 %v2848, %v2857
        %v2860 = vmul.f32 %v2849, %v2857
        %v2861 = vmul.f32 %v2850, %v2857
        %v2862 = vmul.f32 %v2851, %v2857
        %v2863 = vmul.f32 %v2852, %v2857
        %v2864 = vmul.f32 %v2853, %v2857
        %v2865 = vmul.f32 %v2854, %v2857
        %v2866 = vmul.f32 %v2855, %v2857
        %v2868 = vperm.slane %v2679, 0
        %v2870 = vadd.f32 %v2859, %v2868
        %v2871 = vadd.f32 %v2860, %v2868
        %v2872 = vadd.f32 %v2861, %v2868
        %v2873 = vadd.f32 %v2862, %v2868
        %v2874 = vadd.f32 %v2863, %v2868
        %v2875 = vadd.f32 %v2864, %v2868
        %v2876 = vadd.f32 %v2865, %v2868
        %v2877 = vadd.f32 %v2866, %v2868
        %v2878 = vld [vmem:[%s9] sm:$0xff]
        %v2879 = vld [vmem:[%s9 + $0x8] sm:$0xff]
        %v2880 = vld [vmem:[%s9 + $0x10] sm:$0xff]
        %v2881 = vld [vmem:[%s9 + $0x18] sm:$0xff]
        %v2882 = vld [vmem:[%s10] sm:$0x1]
        %v2884 = vperm.slane %v2882, 0
        %v2887 = vsel %vm495, %v2870, 0
        %v2890 = vsel %vm495, %v2871, 0
        %v2893 = vsel %vm495, %v2872, 0
        %v2896 = vsel %vm495, %v2873, 0
        %v2899 = vsel %vm495, %v2874, 0
        %v2902 = vsel %vm495, %v2875, 0
        %v2905 = vsel %vm495, %v2876, 0
        %v2908 = vsel %vm495, %v2877, 0
        %2910 = vmatpush.msra.mxu0 0.0
        %2911 = vmatpush.msra.mxu0 0.0
        %2912 = vmatpush.msra.mxu0 0.0
        %2913 = vmatpush.msra.mxu0 0.0
        %2914 = vmatpush.msra.mxu0 0.0
        %2915 = vmatpush.msra.mxu0 0.0
        %2916 = vmatpush.msra.mxu0 0.0
        %2917 = vmatpush.msra.mxu0 0.0
        %2918 = vmatpush.msra.mxu0 0.0
        %2919 = vmatpush.msra.mxu0 0.0
        %2920 = vmatpush.msra.mxu0 0.0
        %2921 = vmatpush.msra.mxu0 0.0
        %2922 = vmatpush.msra.mxu0 %v2881
        %2923 = vmatpush.msra.mxu0 %v2880
        %2924 = vmatpush.msra.mxu0 %v2879
        %2925 = vmatpush.msra.mxu0 %v2878
        %2926 = vmatmul.f32.gmra.mxu0 %v2887
        %v2927 = vpop.f32.mrf.mxu0
        %v2928 = vadd.f32 %v2884, %v2927
        %2929 = vmatmul.f32.gmra.mxu0 %v2890
        %v2930 = vpop.f32.mrf.mxu0
        %v2931 = vadd.f32 %v2884, %v2930
        %2932 = vmatmul.f32.gmra.mxu0 %v2893
        %v2933 = vpop.f32.mrf.mxu0
        %v2934 = vadd.f32 %v2884, %v2933
        %2935 = vmatmul.f32.gmra.mxu0 %v2896
        %v2936 = vpop.f32.mrf.mxu0
        %v2937 = vadd.f32 %v2884, %v2936
        %2938 = vmatmul.f32.gmra.mxu0 %v2899
        %v2939 = vpop.f32.mrf.mxu0
        %v2940 = vadd.f32 %v2884, %v2939
        %2941 = vmatmul.f32.gmra.mxu0 %v2902
        %v2942 = vpop.f32.mrf.mxu0
        %v2943 = vadd.f32 %v2884, %v2942
        %2944 = vmatmul.f32.gmra.mxu0 %v2905
        %v2945 = vpop.f32.mrf.mxu0
        %v2946 = vadd.f32 %v2884, %v2945
        %2947 = vmatmul.f32.gmra.mxu0 %v2908
        %v2948 = vpop.f32.mrf.mxu0
        %v2949 = vadd.f32 %v2884, %v2948
        %2950 = vdwg.mxu0
        %v2951 = vmul.f32 %v2928, 0.5
        %v2952 = vmul.f32 %v2931, 0.5
        %v2953 = vmul.f32 %v2934, 0.5
        %v2954 = vmul.f32 %v2937, 0.5
        %v2955 = vmul.f32 %v2940, 0.5
        %v2956 = vmul.f32 %v2943, 0.5
        %v2957 = vmul.f32 %v2946, 0.5
        %v2958 = vmul.f32 %v2949, 0.5
        %v2959 = vmul.f32 %v2928, 0.044715
        %v2960 = vmul.f32 %v2931, 0.044715
        %v2961 = vmul.f32 %v2934, 0.044715
        %v2962 = vmul.f32 %v2937, 0.044715
        %v2963 = vmul.f32 %v2940, 0.044715
        %v2964 = vmul.f32 %v2943, 0.044715
        %v2965 = vmul.f32 %v2946, 0.044715
        %v2966 = vmul.f32 %v2949, 0.044715
        %v2967 = vmul.f32 %v2959, %v2928
        %v2968 = vmul.f32 %v2960, %v2931
        %v2969 = vmul.f32 %v2961, %v2934
        %v2970 = vmul.f32 %v2962, %v2937
        %v2971 = vmul.f32 %v2963, %v2940
        %v2972 = vmul.f32 %v2964, %v2943
        %v2973 = vmul.f32 %v2965, %v2946
        %v2974 = vmul.f32 %v2966, %v2949
        %v2975 = vmul.f32 %v2967, %v2928
        %v2976 = vmul.f32 %v2968, %v2931
        %v2977 = vmul.f32 %v2969, %v2934
        %v2978 = vmul.f32 %v2970, %v2937
        %v2979 = vmul.f32 %v2971, %v2940
        %v2980 = vmul.f32 %v2972, %v2943
        %v2981 = vmul.f32 %v2973, %v2946
        %v2982 = vmul.f32 %v2974, %v2949
        %v2983 = vadd.f32 %v2928, %v2975
        %v2984 = vadd.f32 %v2931, %v2976
        %v2985 = vadd.f32 %v2934, %v2977
        %v2986 = vadd.f32 %v2937, %v2978
        %v2987 = vadd.f32 %v2940, %v2979
        %v2988 = vadd.f32 %v2943, %v2980
        %v2989 = vadd.f32 %v2946, %v2981
        %v2990 = vadd.f32 %v2949, %v2982
        %v2991 = vmul.f32 %v2983, 0.7978846
        %v2992 = vmul.f32 %v2984, 0.7978846
        %v2993 = vmul.f32 %v2985, 0.7978846
        %v2994 = vmul.f32 %v2986, 0.7978846
        %v2995 = vmul.f32 %v2987, 0.7978846
        %v2996 = vmul.f32 %v2988, 0.7978846
        %v2997 = vmul.f32 %v2989, 0.7978846
        %v2998 = vmul.f32 %v2990, 0.7978846
        %v2999 = vtanh.pop %v2991
        %v3000 = vtanh.pop %v2992
        %v3001 = vtanh.pop %v2993
        %v3002 = vtanh.pop %v2994
        %v3003 = vtanh.pop %v2995
        %v3004 = vtanh.pop %v2996
        %v3005 = vtanh.pop %v2997
        %v3006 = vtanh.pop %v2998
        %v3007 = vadd.f32 %v2999, 1.0
        %v3008 = vadd.f32 %v3000, 1.0
        %v3009 = vadd.f32 %v3001, 1.0
        %v3010 = vadd.f32 %v3002, 1.0
        %v3011 = vadd.f32 %v3003, 1.0
        %v3012 = vadd.f32 %v3004, 1.0
        %v3013 = vadd.f32 %v3005, 1.0
        %v3014 = vadd.f32 %v3006, 1.0
        %v3015 = vmul.f32 %v2951, %v3007
        %v3016 = vmul.f32 %v2952, %v3008
        %v3017 = vmul.f32 %v2953, %v3009
        %v3018 = vmul.f32 %v2954, %v3010
        %v3019 = vmul.f32 %v2955, %v3011
        %v3020 = vmul.f32 %v2956, %v3012
        %v3021 = vmul.f32 %v2957, %v3013
        %v3022 = vmul.f32 %v2958, %v3014
        %v3023 = vld [vmem:[%s11] sm:$0xff]
        %v3024 = vld [vmem:[%s11 + $0x8] sm:$0xff]
        %v3025 = vld [vmem:[%s11 + $0x10] sm:$0xff]
        %v3026 = vld [vmem:[%s11 + $0x18] sm:$0xff]
        %v3027 = vld [vmem:[%s11 + $0x20] sm:$0xff]
        %v3028 = vld [vmem:[%s11 + $0x28] sm:$0xff]
        %v3029 = vld [vmem:[%s11 + $0x30] sm:$0xff]
        %v3030 = vld [vmem:[%s11 + $0x38] sm:$0xff]
        %v3031 = vld [vmem:[%s11 + $0x40] sm:$0xff]
        %v3032 = vld [vmem:[%s11 + $0x48] sm:$0xff]
        %v3033 = vld [vmem:[%s11 + $0x50] sm:$0xff]
        %v3034 = vld [vmem:[%s11 + $0x58] sm:$0xff]
        %v3035 = vld [vmem:[%s11 + $0x60] sm:$0xff]
        %v3036 = vld [vmem:[%s11 + $0x68] sm:$0xff]
        %v3037 = vld [vmem:[%s11 + $0x70] sm:$0xff]
        %v3038 = vld [vmem:[%s11 + $0x78] sm:$0xff]
        %3039 = vmatpush.msra.mxu0 %v3038
        %3040 = vmatpush.msra.mxu0 %v3037
        %3041 = vmatpush.msra.mxu0 %v3036
        %3042 = vmatpush.msra.mxu0 %v3035
        %3043 = vmatpush.msra.mxu0 %v3034
        %3044 = vmatpush.msra.mxu0 %v3033
        %3045 = vmatpush.msra.mxu0 %v3032
        %3046 = vmatpush.msra.mxu0 %v3031
        %3047 = vmatpush.msra.mxu0 %v3030
        %3048 = vmatpush.msra.mxu0 %v3029
        %3049 = vmatpush.msra.mxu0 %v3028
        %3050 = vmatpush.msra.mxu0 %v3027
        %3051 = vmatpush.msra.mxu0 %v3026
        %3052 = vmatpush.msra.mxu0 %v3025
        %3053 = vmatpush.msra.mxu0 %v3024
        %3054 = vmatpush.msra.mxu0 %v3023
        %3055 = vmatmul.f32.gmra.mxu0 %v3015
        %v3056 = vpop.f32.mrf.mxu0
        %v3057 = vadd.f32 0.0, %v3056
        %3058 = vmatmul.f32.gmra.mxu0 %v3016
        %v3059 = vpop.f32.mrf.mxu0
        %v3060 = vadd.f32 0.0, %v3059
        %3061 = vmatmul.f32.gmra.mxu0 %v3017
        %v3062 = vpop.f32.mrf.mxu0
        %v3063 = vadd.f32 0.0, %v3062
        %3064 = vmatmul.f32.gmra.mxu0 %v3018
        %v3065 = vpop.f32.mrf.mxu0
        %v3066 = vadd.f32 0.0, %v3065
        %3067 = vmatmul.f32.gmra.mxu0 %v3019
        %v3068 = vpop.f32.mrf.mxu0
        %v3069 = vadd.f32 0.0, %v3068
        %3070 = vmatmul.f32.gmra.mxu0 %v3020
        %v3071 = vpop.f32.mrf.mxu0
        %v3072 = vadd.f32 0.0, %v3071
        %3073 = vmatmul.f32.gmra.mxu0 %v3021
        %v3074 = vpop.f32.mrf.mxu0
        %v3075 = vadd.f32 0.0, %v3074
        %3076 = vmatmul.f32.gmra.mxu0 %v3022
        %v3077 = vpop.f32.mrf.mxu0
        %v3078 = vadd.f32 0.0, %v3077
        %3079 = vdwg.mxu0
        %v3080 = vadd.f32 %v2670, %v3057
        %v3081 = vadd.f32 %v2671, %v3060
        %v3082 = vadd.f32 %v2672, %v3063
        %v3083 = vadd.f32 %v2673, %v3066
        %v3084 = vadd.f32 %v2674, %v3069
        %v3085 = vadd.f32 %v2675, %v3072
        %v3086 = vadd.f32 %v2676, %v3075
        %v3087 = vadd.f32 %v2677, %v3078
        %v3088 = vld [vmem:[%s12] sm:$0x1]
        %v3090 = vperm.slane %v3088, 0
        %v3092 = vadd.f32 %v3080, %v3090
        %v3093 = vadd.f32 %v3081, %v3090
        %v3094 = vadd.f32 %v3082, %v3090
        %v3095 = vadd.f32 %v3083, %v3090
        %v3096 = vadd.f32 %v3084, %v3090
        %v3097 = vadd.f32 %v3085, %v3090
        %v3098 = vadd.f32 %v3086, %v3090
        %v3099 = vadd.f32 %v3087, %v3090
        %s3100 = scalar_lea.vmem %s1, 1
        %v3101 = vld [vmem:[%s3100] sm:$0x1]
        %s3102 = scalar_lea.vmem %s2, 1
        %v3103 = vld [vmem:[%s3102] sm:$0x1]
        %v3104 = vsel %vm495, %v3092, 0.0
        %3105 = vadd.xlane.f32.xlu0 %v3104
        %v3106 = vpop.xlane.xlu0 %3105
        %v3107 = vsel %vm495, %v3093, 0.0
        %3108 = vadd.xlane.f32.xlu0 %v3107
        %v3109 = vpop.xlane.xlu0 %3108
        %v3110 = vsel %vm495, %v3094, 0.0
        %3111 = vadd.xlane.f32.xlu0 %v3110
        %v3112 = vpop.xlane.xlu0 %3111
        %v3113 = vsel %vm495, %v3095, 0.0
        %3114 = vadd.xlane.f32.xlu0 %v3113
        %v3115 = vpop.xlane.xlu0 %3114
        %v3116 = vsel %vm495, %v3096, 0.0
        %3117 = vadd.xlane.f32.xlu0 %v3116
        %v3118 = vpop.xlane.xlu0 %3117
        %v3119 = vsel %vm495, %v3097, 0.0
        %3120 = vadd.xlane.f32.xlu0 %v3119
        %v3121 = vpop.xlane.xlu0 %3120
        %v3122 = vsel %vm495, %v3098, 0.0
        %3123 = vadd.xlane.f32.xlu0 %v3122
        %v3124 = vpop.xlane.xlu0 %3123
        %v3125 = vsel %vm495, %v3099, 0.0
        %3126 = vadd.xlane.f32.xlu0 %v3125
        %v3127 = vpop.xlane.xlu0 %3126
        %v3128 = vmul.f32 %v3106, %v526
        %v3129 = vmul.f32 %v3109, %v526
        %v3130 = vmul.f32 %v3112, %v526
        %v3131 = vmul.f32 %v3115, %v526
        %v3132 = vmul.f32 %v3118, %v526
        %v3133 = vmul.f32 %v3121, %v526
        %v3134 = vmul.f32 %v3124, %v526
        %v3135 = vmul.f32 %v3127, %v526
        %v3136 = vsub.f32 %v3092, %v3128
        %v3137 = vsub.f32 %v3093, %v3129
        %v3138 = vsub.f32 %v3094, %v3130
        %v3139 = vsub.f32 %v3095, %v3131
        %v3140 = vsub.f32 %v3096, %v3132
        %v3141 = vsub.f32 %v3097, %v3133
        %v3142 = vsub.f32 %v3098, %v3134
        %v3143 = vsub.f32 %v3099, %v3135
        %v3144 = vmul.f32 %v3136, %v3136
        %v3145 = vmul.f32 %v3137, %v3137
        %v3146 = vmul.f32 %v3138, %v3138
        %v3147 = vmul.f32 %v3139, %v3139
        %v3148 = vmul.f32 %v3140, %v3140
        %v3149 = vmul.f32 %v3141, %v3141
        %v3150 = vmul.f32 %v3142, %v3142
        %v3151 = vmul.f32 %v3143, %v3143
        %v3152 = vsel %vm495, %v3144, 0.0
        %3153 = vadd.xlane.f32.xlu0 %v3152
        %v3154 = vpop.xlane.xlu0 %3153
        %v3155 = vsel %vm495, %v3145, 0.0
        %3156 = vadd.xlane.f32.xlu0 %v3155
        %v3157 = vpop.xlane.xlu0 %3156
        %v3158 = vsel %vm495, %v3146, 0.0
        %3159 = vadd.xlane.f32.xlu0 %v3158
        %v3160 = vpop.xlane.xlu0 %3159
        %v3161 = vsel %vm495, %v3147, 0.0
        %3162 = vadd.xlane.f32.xlu0 %v3161
        %v3163 = vpop.xlane.xlu0 %3162
        %v3164 = vsel %vm495, %v3148, 0.0
        %3165 = vadd.xlane.f32.xlu0 %v3164
        %v3166 = vpop.xlane.xlu0 %3165
        %v3167 = vsel %vm495, %v3149, 0.0
        %3168 = vadd.xlane.f32.xlu0 %v3167
        %v3169 = vpop.xlane.xlu0 %3168
        %v3170 = vsel %vm495, %v3150, 0.0
        %3171 = vadd.xlane.f32.xlu0 %v3170
        %v3172 = vpop.xlane.xlu0 %3171
        %v3173 = vsel %vm495, %v3151, 0.0
        %3174 = vadd.xlane.f32.xlu0 %v3173
        %v3175 = vpop.xlane.xlu0 %3174
        %v3176 = vmul.f32 %v3154, %v526
        %v3177 = vmul.f32 %v3157, %v526
        %v3178 = vmul.f32 %v3160, %v526
        %v3179 = vmul.f32 %v3163, %v526
        %v3180 = vmul.f32 %v3166, %v526
        %v3181 = vmul.f32 %v3169, %v526
        %v3182 = vmul.f32 %v3172, %v526
        %v3183 = vmul.f32 %v3175, %v526
        %v3184 = vadd.f32 %v3176, 1e-05
        %v3185 = vadd.f32 %v3177, 1e-05
        %v3186 = vadd.f32 %v3178, 1e-05
        %v3187 = vadd.f32 %v3179, 1e-05
        %v3188 = vadd.f32 %v3180, 1e-05
        %v3189 = vadd.f32 %v3181, 1e-05
        %v3190 = vadd.f32 %v3182, 1e-05
        %v3191 = vadd.f32 %v3183, 1e-05
        %v3192 = vrsqrt.pop %v3184
        %v3193 = vmul.f32 %v3192, %v3184
        %v3194 = vmul.f32 %v3193, %v3192
        %v3195 = vmul.f32 0.5, %v3194
        %v3196 = vsub.f32 1.5, %v3195
        %v3197 = vmul.f32 %v3192, %v3196
        %vm3198 = vweird.f32 %v3184
        %vm3199 = vweird.f32 %v3192
        %vm3200 = vmor %vm3198, %vm3199
        %v3201 = vsel %vm3200, %v3192, %v3197
        %v3202 = vrsqrt.pop %v3185
        %v3203 = vmul.f32 %v3202, %v3185
        %v3204 = vmul.f32 %v3203, %v3202
        %v3205 = vmul.f32 0.5, %v3204
        %v3206 = vsub.f32 1.5, %v3205
        %v3207 = vmul.f32 %v3202, %v3206
        %vm3208 = vweird.f32 %v3185
        %vm3209 = vweird.f32 %v3202
        %vm3210 = vmor %vm3208, %vm3209
        %v3211 = vsel %vm3210, %v3202, %v3207
        %v3212 = vrsqrt.pop %v3186
        %v3213 = vmul.f32 %v3212, %v3186
        %v3214 = vmul.f32 %v3213, %v3212
        %v3215 = vmul.f32 0.5, %v3214
        %v3216 = vsub.f32 1.5, %v3215
        %v3217 = vmul.f32 %v3212, %v3216
        %vm3218 = vweird.f32 %v3186
        %vm3219 = vweird.f32 %v3212
        %vm3220 = vmor %vm3218, %vm3219
        %v3221 = vsel %vm3220, %v3212, %v3217
        %v3222 = vrsqrt.pop %v3187
        %v3223 = vmul.f32 %v3222, %v3187
        %v3224 = vmul.f32 %v3223, %v3222
        %v3225 = vmul.f32 0.5, %v3224
        %v3226 = vsub.f32 1.5, %v3225
        %v3227 = vmul.f32 %v3222, %v3226
        %vm3228 = vweird.f32 %v3187
        %vm3229 = vweird.f32 %v3222
        %vm3230 = vmor %vm3228, %vm3229
        %v3231 = vsel %vm3230, %v3222, %v3227
        %v3232 = vrsqrt.pop %v3188
        %v3233 = vmul.f32 %v3232, %v3188
        %v3234 = vmul.f32 %v3233, %v3232
        %v3235 = vmul.f32 0.5, %v3234
        %v3236 = vsub.f32 1.5, %v3235
        %v3237 = vmul.f32 %v3232, %v3236
        %vm3238 = vweird.f32 %v3188
        %vm3239 = vweird.f32 %v3232
        %vm3240 = vmor %vm3238, %vm3239
        %v3241 = vsel %vm3240, %v3232, %v3237
        %v3242 = vrsqrt.pop %v3189
        %v3243 = vmul.f32 %v3242, %v3189
        %v3244 = vmul.f32 %v3243, %v3242
        %v3245 = vmul.f32 0.5, %v3244
        %v3246 = vsub.f32 1.5, %v3245
        %v3247 = vmul.f32 %v3242, %v3246
        %vm3248 = vweird.f32 %v3189
        %vm3249 = vweird.f32 %v3242
        %vm3250 = vmor %vm3248, %vm3249
        %v3251 = vsel %vm3250, %v3242, %v3247
        %v3252 = vrsqrt.pop %v3190
        %v3253 = vmul.f32 %v3252, %v3190
        %v3254 = vmul.f32 %v3253, %v3252
        %v3255 = vmul.f32 0.5, %v3254
        %v3256 = vsub.f32 1.5, %v3255
        %v3257 = vmul.f32 %v3252, %v3256
        %vm3258 = vweird.f32 %v3190
        %vm3259 = vweird.f32 %v3252
        %vm3260 = vmor %vm3258, %vm3259
        %v3261 = vsel %vm3260, %v3252, %v3257
        %v3262 = vrsqrt.pop %v3191
        %v3263 = vmul.f32 %v3262, %v3191
        %v3264 = vmul.f32 %v3263, %v3262
        %v3265 = vmul.f32 0.5, %v3264
        %v3266 = vsub.f32 1.5, %v3265
        %v3267 = vmul.f32 %v3262, %v3266
        %vm3268 = vweird.f32 %v3191
        %vm3269 = vweird.f32 %v3262
        %vm3270 = vmor %vm3268, %vm3269
        %v3271 = vsel %vm3270, %v3262, %v3267
        %v3272 = vmul.f32 %v3136, %v3201
        %v3273 = vmul.f32 %v3137, %v3211
        %v3274 = vmul.f32 %v3138, %v3221
        %v3275 = vmul.f32 %v3139, %v3231
        %v3276 = vmul.f32 %v3140, %v3241
        %v3277 = vmul.f32 %v3141, %v3251
        %v3278 = vmul.f32 %v3142, %v3261
        %v3279 = vmul.f32 %v3143, %v3271
        %v3281 = vperm.slane %v3101, 0
        %v3283 = vmul.f32 %v3272, %v3281
        %v3284 = vmul.f32 %v3273, %v3281
        %v3285 = vmul.f32 %v3274, %v3281
        %v3286 = vmul.f32 %v3275, %v3281
        %v3287 = vmul.f32 %v3276, %v3281
        %v3288 = vmul.f32 %v3277, %v3281
        %v3289 = vmul.f32 %v3278, %v3281
        %v3290 = vmul.f32 %v3279, %v3281
        %v3292 = vperm.slane %v3103, 0
        %v3294 = vadd.f32 %v3283, %v3292
        %v3295 = vadd.f32 %v3284, %v3292
        %v3296 = vadd.f32 %v3285, %v3292
        %v3297 = vadd.f32 %v3286, %v3292
        %v3298 = vadd.f32 %v3287, %v3292
        %v3299 = vadd.f32 %v3288, %v3292
        %v3300 = vadd.f32 %v3289, %v3292
        %v3301 = vadd.f32 %v3290, %v3292
        %v3310 = vrot.slane %v3296, 2
        %v3311 = vrot.slane %v3297, 2
        %v3312 = vrot.slane %v3298, 2
        %v3313 = vrot.slane %v3299, 2
        %v3314 = vrot.slane %v3300, 2
        %v3315 = vrot.slane %v3301, 2
        %v3316 = vrot.slane %v3294, 2
        %v3317 = vrot.slane %v3295, 2
        %vm3326 = vcmask 1045504
        %v3327 = vsel %vm3326, %v3310, %v3310
        %v3328 = vsel %vm3326, %v3311, %v3311
        %v3329 = vsel %vm3326, %v3312, %v3312
        %v3330 = vsel %vm3326, %v3313, %v3313
        %v3331 = vsel %vm3326, %v3314, %v3314
        %v3332 = vsel %vm3326, %v3315, %v3315
        %v3333 = vsel %vm3326, %v3316, %v3316
        %v3334 = vsel %vm3326, %v3317, %v3317
        %3339 = vst.sshfl [vmem:[#allocation1] sm:$0xff pattern:$0x75316420] %v3327
        %s3340 = scalar_lea.vmem [#allocation1], 1
        %v3341 = vld [vmem:[%s3340] ss:$2 sm:$0xff]
        %3342 = vst.sshfl [vmem:[#allocation1 + $0x10] sm:$0xff pattern:$0x75316420] %v3328
        %s3343 = scalar_lea.vmem [#allocation1], 17
        %v3344 = vld [vmem:[%s3343] ss:$2 sm:$0xff]
        %3345 = vst.sshfl [vmem:[#allocation1 + $0x20] sm:$0xff pattern:$0x75316420] %v3329
        %s3346 = scalar_lea.vmem [#allocation1], 33
        %v3347 = vld [vmem:[%s3346] ss:$2 sm:$0xff]
        %3348 = vst.sshfl [vmem:[#allocation1 + $0x30] sm:$0xff pattern:$0x75316420] %v3330
        %s3349 = scalar_lea.vmem [#allocation1], 49
        %v3350 = vld [vmem:[%s3349] ss:$2 sm:$0xff]
        %3355 = vst.sshfl [vmem:[#allocation1] sm:$0xff pattern:$0x75316420] %v3331
        %s3356 = scalar_lea.vmem [#allocation1], 1
        %v3357 = vld [vmem:[%s3356] ss:$2 sm:$0xff]
        %3358 = vst.sshfl [vmem:[#allocation1 + $0x10] sm:$0xff pattern:$0x75316420] %v3332
        %s3359 = scalar_lea.vmem [#allocation1], 17
        %v3360 = vld [vmem:[%s3359] ss:$2 sm:$0xff]
        %3361 = vst.sshfl [vmem:[#allocation1 + $0x20] sm:$0xff pattern:$0x75316420] %v3333
        %s3362 = scalar_lea.vmem [#allocation1], 33
        %v3363 = vld [vmem:[%s3362] ss:$2 sm:$0xff]
        %3364 = vst.sshfl [vmem:[#allocation1 + $0x30] sm:$0xff pattern:$0x75316420] %v3334
        %s3365 = scalar_lea.vmem [#allocation1], 49
        %v3366 = vld [vmem:[%s3365] ss:$2 sm:$0xff]
        %3367 = vst [vmem:[#allocation1] ss:$2 sm:$0xff] %v3327
        %s3368 = scalar_lea.vmem [#allocation1], 1
        %3369 = vst [vmem:[%s3368] ss:$2 sm:$0xff] %v3328
        %s3370 = scalar_lea.vmem [#allocation1], 16
        %3371 = vst [vmem:[%s3370] ss:$2 sm:$0xff] %v3329
        %s3372 = scalar_lea.vmem [#allocation1], 17
        %3373 = vst [vmem:[%s3372] ss:$2 sm:$0xff] %v3330
        %v3374 = vld.sshfl [vmem:[#allocation1] sm:$0xff pattern:$0x75316420]
        %v3375 = vld.sshfl [vmem:[#allocation1 + $0x10] sm:$0xff pattern:$0x75316420]
        %3376 = vst [vmem:[#allocation1] ss:$2 sm:$0xff] %v3341
        %s3377 = scalar_lea.vmem [#allocation1], 1
        %3378 = vst [vmem:[%s3377] ss:$2 sm:$0xff] %v3344
        %s3379 = scalar_lea.vmem [#allocation1], 16
        %3380 = vst [vmem:[%s3379] ss:$2 sm:$0xff] %v3347
        %s3381 = scalar_lea.vmem [#allocation1], 17
        %3382 = vst [vmem:[%s3381] ss:$2 sm:$0xff] %v3350
        %v3383 = vld.sshfl [vmem:[#allocation1] sm:$0xff pattern:$0x75316420]
        %v3384 = vld.sshfl [vmem:[#allocation1 + $0x10] sm:$0xff pattern:$0x75316420]
        %3385 = vst [vmem:[#allocation1] ss:$2 sm:$0xff] %v3331
        %s3386 = scalar_lea.vmem [#allocation1], 1
        %3387 = vst [vmem:[%s3386] ss:$2 sm:$0xff] %v3332
        %s3388 = scalar_lea.vmem [#allocation1], 16
        %3389 = vst [vmem:[%s3388] ss:$2 sm:$0xff] %v3333
        %s3390 = scalar_lea.vmem [#allocation1], 17
        %3391 = vst [vmem:[%s3390] ss:$2 sm:$0xff] %v3334
        %v3392 = vld.sshfl [vmem:[#allocation1] sm:$0xff pattern:$0x75316420]
        %v3393 = vld.sshfl [vmem:[#allocation1 + $0x10] sm:$0xff pattern:$0x75316420]
        %3394 = vst [vmem:[#allocation1] ss:$2 sm:$0xff] %v3357
        %s3395 = scalar_lea.vmem [#allocation1], 1
        %3396 = vst [vmem:[%s3395] ss:$2 sm:$0xff] %v3360
        %s3397 = scalar_lea.vmem [#allocation1], 16
        %3398 = vst [vmem:[%s3397] ss:$2 sm:$0xff] %v3363
        %s3399 = scalar_lea.vmem [#allocation1], 17
        %3400 = vst [vmem:[%s3399] ss:$2 sm:$0xff] %v3366
        %v3401 = vld.sshfl [vmem:[#allocation1] sm:$0xff pattern:$0x75316420]
        %v3402 = vld.sshfl [vmem:[#allocation1 + $0x10] sm:$0xff pattern:$0x75316420]
        %s3403 = scalar_lea.vmem %s3, 32
        %v3404 = vld [vmem:[%s3403] sm:$0xff]
        %v3405 = vld [vmem:[%s3403 + $0x8] sm:$0xff]
        %v3406 = vld [vmem:[%s3403 + $0x10] sm:$0xff]
        %v3407 = vld [vmem:[%s3403 + $0x18] sm:$0xff]
        %s3408 = scalar_lea.vmem %s4, 1
        %v3409 = vld [vmem:[%s3408] sm:$0x1]
        %s3410 = scalar_lea.vmem %s5, 32
        %v3411 = vld [vmem:[%s3410] sm:$0xff]
        %v3412 = vld [vmem:[%s3410 + $0x8] sm:$0xff]
        %v3413 = vld [vmem:[%s3410 + $0x10] sm:$0xff]
        %v3414 = vld [vmem:[%s3410 + $0x18] sm:$0xff]
        %s3415 = scalar_lea.vmem %s6, 1
        %v3416 = vld [vmem:[%s3415] sm:$0x1]
        %v3418 = vperm.slane %v3409, 0
        %v3420 = vsel %vm495, %v3374, 0
        %v3422 = vsel %vm495, %v3375, 0
        %v3424 = vsel %vm495, %v3383, 0
        %v3426 = vsel %vm495, %v3384, 0
        %v3428 = vsel %vm495, %v3392, 0
        %v3430 = vsel %vm495, %v3393, 0
        %v3432 = vsel %vm495, %v3401, 0
        %v3434 = vsel %vm495, %v3402, 0
        %3436 = vmatpush.msra.mxu0 0.0
        %3437 = vmatpush.msra.mxu0 0.0
        %3438 = vmatpush.msra.mxu0 0.0
        %3439 = vmatpush.msra.mxu0 0.0
        %3440 = vmatpush.msra.mxu0 0.0
        %3441 = vmatpush.msra.mxu0 0.0
        %3442 = vmatpush.msra.mxu0 0.0
        %3443 = vmatpush.msra.mxu0 0.0
        %3444 = vmatpush.msra.mxu0 0.0
        %3445 = vmatpush.msra.mxu0 0.0
        %3446 = vmatpush.msra.mxu0 0.0
        %3447 = vmatpush.msra.mxu0 0.0
        %3448 = vmatpush.msra.mxu0 %v3407
        %3449 = vmatpush.msra.mxu0 %v3406
        %3450 = vmatpush.msra.mxu0 %v3405
        %3451 = vmatpush.msra.mxu0 %v3404
        %3452 = vmatmul.f32.gmra.mxu0 %v3420
        %v3453 = vpop.f32.mrf.mxu0
        %v3454 = vadd.f32 %v3418, %v3453
        %3455 = vmatmul.f32.gmra.mxu0 %v3422
        %v3456 = vpop.f32.mrf.mxu0
        %v3457 = vadd.f32 %v3418, %v3456
        %3458 = vmatmul.f32.gmra.mxu0 %v3424
        %v3459 = vpop.f32.mrf.mxu0
        %v3460 = vadd.f32 %v3418, %v3459
        %3461 = vmatmul.f32.gmra.mxu0 %v3426
        %v3462 = vpop.f32.mrf.mxu0
        %v3463 = vadd.f32 %v3418, %v3462
        %3464 = vmatmul.f32.gmra.mxu0 %v3428
        %v3465 = vpop.f32.mrf.mxu0
        %v3466 = vadd.f32 %v3418, %v3465
        %3467 = vmatmul.f32.gmra.mxu0 %v3430
        %v3468 = vpop.f32.mrf.mxu0
        %v3469 = vadd.f32 %v3418, %v3468
        %3470 = vmatmul.f32.gmra.mxu0 %v3432
        %v3471 = vpop.f32.mrf.mxu0
        %v3472 = vadd.f32 %v3418, %v3471
        %3473 = vmatmul.f32.gmra.mxu0 %v3434
        %v3474 = vpop.f32.mrf.mxu0
        %v3475 = vadd.f32 %v3418, %v3474
        %3476 = vdwg.mxu0
        %v3477 = vmul.f32 %v3454, 0.35355338
        %v3478 = vmul.f32 %v3457, 0.35355338
        %v3479 = vmul.f32 %v3460, 0.35355338
        %v3480 = vmul.f32 %v3463, 0.35355338
        %v3481 = vmul.f32 %v3466, 0.35355338
        %v3482 = vmul.f32 %v3469, 0.35355338
        %v3483 = vmul.f32 %v3472, 0.35355338
        %v3484 = vmul.f32 %v3475, 0.35355338
        %s3485 = scalar_lea.vmem [#allocation2], 256
        %v3486 = vld [vmem:[%s3485] sm:$0xff]
        %v3487 = vld [vmem:[%s3485 + $0x8] sm:$0xff]
        %v3488 = vld [vmem:[%s3485 + $0x10] sm:$0xff]
        %v3489 = vld [vmem:[%s3485 + $0x18] sm:$0xff]
        %v3490 = vld [vmem:[%s3485 + $0x20] sm:$0xff]
        %v3491 = vld [vmem:[%s3485 + $0x28] sm:$0xff]
        %v3492 = vld [vmem:[%s3485 + $0x30] sm:$0xff]
        %v3493 = vld [vmem:[%s3485 + $0x38] sm:$0xff]
        %3496 = vrot.lane.b32.xlu0 %v3454, 96
        %v3497 = vpop.permute.xlu0 %3496
        %3498 = vrot.lane.b32.xlu0 %v3457, 96
        %v3499 = vpop.permute.xlu0 %3498
        %v3501 = vsel %vm861, %v3477, 0
        %v3504 = vsel %vm861, %v3478, 0
        %v3506 = vsel %vm861, %v3497, 0
        %v3508 = vsel %vm861, %v3499, 0
        %3510 = vmatpush.xpose.msra.mxu0 0.0
        %3511 = vmatpush.xpose.msra.mxu0 0.0
        %3512 = vmatpush.xpose.msra.mxu0 0.0
        %3513 = vmatpush.xpose.msra.mxu0 0.0
        %3514 = vmatpush.xpose.msra.mxu0 0.0
        %3515 = vmatpush.xpose.msra.mxu0 0.0
        %3516 = vmatpush.xpose.msra.mxu0 0.0
        %3517 = vmatpush.xpose.msra.mxu0 0.0
        %3518 = vmatpush.xpose.msra.mxu0 0.0
        %3519 = vmatpush.xpose.msra.mxu0 0.0
        %3520 = vmatpush.xpose.msra.mxu0 0.0
        %3521 = vmatpush.xpose.msra.mxu0 0.0
        %3522 = vmatpush.xpose.msra.mxu0 0.0
        %3523 = vmatpush.xpose.msra.mxu0 0.0
        %3524 = vmatpush.xpose.msra.mxu0 %v3508
        %3525 = vmatpush.xpose.msra.mxu0 %v3506
        %3526 = vmatmul.f32.gmra.mxu0 %v3501
        %v3527 = vpop.f32.mrf.mxu0
        %v3528 = vadd.f32 %v3486, %v3527
        %3529 = vmatmul.f32.gmra.mxu0 %v3504
        %v3530 = vpop.f32.mrf.mxu0
        %v3531 = vadd.f32 %v3487, %v3530
        %3532 = vdwg.mxu0
        %3535 = vrot.lane.b32.xlu0 %v3460, 96
        %v3536 = vpop.permute.xlu0 %3535
        %3537 = vrot.lane.b32.xlu0 %v3463, 96
        %v3538 = vpop.permute.xlu0 %3537
        %v3540 = vsel %vm861, %v3479, 0
        %v3543 = vsel %vm861, %v3480, 0
        %v3545 = vsel %vm861, %v3536, 0
        %v3547 = vsel %vm861, %v3538, 0
        %3549 = vmatpush.xpose.msra.mxu0 0.0
        %3550 = vmatpush.xpose.msra.mxu0 0.0
        %3551 = vmatpush.xpose.msra.mxu0 0.0
        %3552 = vmatpush.xpose.msra.mxu0 0.0
        %3553 = vmatpush.xpose.msra.mxu0 0.0
        %3554 = vmatpush.xpose.msra.mxu0 0.0
        %3555 = vmatpush.xpose.msra.mxu0 0.0
        %3556 = vmatpush.xpose.msra.mxu0 0.0
        %3557 = vmatpush.xpose.msra.mxu0 0.0
        %3558 = vmatpush.xpose.msra.mxu0 0.0
        %3559 = vmatpush.xpose.msra.mxu0 0.0
        %3560 = vmatpush.xpose.msra.mxu0 0.0
        %3561 = vmatpush.xpose.msra.mxu0 0.0
        %3562 = vmatpush.xpose.msra.mxu0 0.0
        %3563 = vmatpush.xpose.msra.mxu0 %v3547
        %3564 = vmatpush.xpose.msra.mxu0 %v3545
        %3565 = vmatmul.f32.gmra.mxu0 %v3540
        %v3566 = vpop.f32.mrf.mxu0
        %v3567 = vadd.f32 %v3488, %v3566
        %3568 = vmatmul.f32.gmra.mxu0 %v3543
        %v3569 = vpop.f32.mrf.mxu0
        %v3570 = vadd.f32 %v3489, %v3569
        %3571 = vdwg.mxu0
        %3574 = vrot.lane.b32.xlu0 %v3466, 96
        %v3575 = vpop.permute.xlu0 %3574
        %3576 = vrot.lane.b32.xlu0 %v3469, 96
        %v3577 = vpop.permute.xlu0 %3576
        %v3579 = vsel %vm861, %v3481, 0
        %v3582 = vsel %vm861, %v3482, 0
        %v3584 = vsel %vm861, %v3575, 0
        %v3586 = vsel %vm861, %v3577, 0
        %3588 = vmatpush.xpose.msra.mxu0 0.0
        %3589 = vmatpush.xpose.msra.mxu0 0.0
        %3590 = vmatpush.xpose.msra.mxu0 0.0
        %3591 = vmatpush.xpose.msra.mxu0 0.0
        %3592 = vmatpush.xpose.msra.mxu0 0.0
        %3593 = vmatpush.xpose.msra.mxu0 0.0
        %3594 = vmatpush.xpose.msra.mxu0 0.0
        %3595 = vmatpush.xpose.msra.mxu0 0.0
        %3596 = vmatpush.xpose.msra.mxu0 0.0
        %3597 = vmatpush.xpose.msra.mxu0 0.0
        %3598 = vmatpush.xpose.msra.mxu0 0.0
        %3599 = vmatpush.xpose.msra.mxu0 0.0
        %3600 = vmatpush.xpose.msra.mxu0 0.0
        %3601 = vmatpush.xpose.msra.mxu0 0.0
        %3602 = vmatpush.xpose.msra.mxu0 %v3586
        %3603 = vmatpush.xpose.msra.mxu0 %v3584
        %3604 = vmatmul.f32.gmra.mxu0 %v3579
        %v3605 = vpop.f32.mrf.mxu0
        %v3606 = vadd.f32 %v3490, %v3605
        %3607 = vmatmul.f32.gmra.mxu0 %v3582
        %v3608 = vpop.f32.mrf.mxu0
        %v3609 = vadd.f32 %v3491, %v3608
        %3610 = vdwg.mxu0
        %3613 = vrot.lane.b32.xlu0 %v3472, 96
        %v3614 = vpop.permute.xlu0 %3613
        %3615 = vrot.lane.b32.xlu0 %v3475, 96
        %v3616 = vpop.permute.xlu0 %3615
        %v3618 = vsel %vm861, %v3483, 0
        %v3621 = vsel %vm861, %v3484, 0
        %v3623 = vsel %vm861, %v3614, 0
        %v3625 = vsel %vm861, %v3616, 0
        %3627 = vmatpush.xpose.msra.mxu0 0.0
        %3628 = vmatpush.xpose.msra.mxu0 0.0
        %3629 = vmatpush.xpose.msra.mxu0 0.0
        %3630 = vmatpush.xpose.msra.mxu0 0.0
        %3631 = vmatpush.xpose.msra.mxu0 0.0
        %3632 = vmatpush.xpose.msra.mxu0 0.0
        %3633 = vmatpush.xpose.msra.mxu0 0.0
        %3634 = vmatpush.xpose.msra.mxu0 0.0
        %3635 = vmatpush.xpose.msra.mxu0 0.0
        %3636 = vmatpush.xpose.msra.mxu0 0.0
        %3637 = vmatpush.xpose.msra.mxu0 0.0
        %3638 = vmatpush.xpose.msra.mxu0 0.0
        %3639 = vmatpush.xpose.msra.mxu0 0.0
        %3640 = vmatpush.xpose.msra.mxu0 0.0
        %3641 = vmatpush.xpose.msra.mxu0 %v3625
        %3642 = vmatpush.xpose.msra.mxu0 %v3623
        %3643 = vmatmul.f32.gmra.mxu0 %v3618
        %v3644 = vpop.f32.mrf.mxu0
        %v3645 = vadd.f32 %v3492, %v3644
        %3646 = vmatmul.f32.gmra.mxu0 %v3621
        %v3647 = vpop.f32.mrf.mxu0
        %v3648 = vadd.f32 %v3493, %v3647
        %3649 = vdwg.mxu0
        %v3650 = vsel %vm1012, %v3528, -inf
        %3651 = vmax.xlane.f32.xlu0 %v3650
        %v3652 = vpop.xlane.xlu0 %3651
        %v3653 = vsel %vm1012, %v3531, -inf
        %3654 = vmax.xlane.f32.xlu0 %v3653
        %v3655 = vpop.xlane.xlu0 %3654
        %v3656 = vsel %vm1012, %v3567, -inf
        %3657 = vmax.xlane.f32.xlu0 %v3656
        %v3658 = vpop.xlane.xlu0 %3657
        %v3659 = vsel %vm1012, %v3570, -inf
        %3660 = vmax.xlane.f32.xlu0 %v3659
        %v3661 = vpop.xlane.xlu0 %3660
        %v3662 = vsel %vm1012, %v3606, -inf
        %3663 = vmax.xlane.f32.xlu0 %v3662
        %v3664 = vpop.xlane.xlu0 %3663
        %v3665 = vsel %vm1012, %v3609, -inf
        %3666 = vmax.xlane.f32.xlu0 %v3665
        %v3667 = vpop.xlane.xlu0 %3666
        %v3668 = vsel %vm1012, %v3645, -inf
        %3669 = vmax.xlane.f32.xlu0 %v3668
        %v3670 = vpop.xlane.xlu0 %3669
        %v3671 = vsel %vm1012, %v3648, -inf
        %3672 = vmax.xlane.f32.xlu0 %v3671
        %v3673 = vpop.xlane.xlu0 %3672
        %v3674 = vsub.f32 %v3528, %v3652
        %v3675 = vsub.f32 %v3531, %v3655
        %v3676 = vsub.f32 %v3567, %v3658
        %v3677 = vsub.f32 %v3570, %v3661
        %v3678 = vsub.f32 %v3606, %v3664
        %v3679 = vsub.f32 %v3609, %v3667
        %v3680 = vsub.f32 %v3645, %v3670
        %v3681 = vsub.f32 %v3648, %v3673
        %v3682 = vmul.f32 %v3674, 1.442695
        %v3683 = vpow.pop %v3682
        %v3684 = vmul.f32 %v3675, 1.442695
        %v3685 = vpow.pop %v3684
        %v3686 = vmul.f32 %v3676, 1.442695
        %v3687 = vpow.pop %v3686
        %v3688 = vmul.f32 %v3677, 1.442695
        %v3689 = vpow.pop %v3688
        %v3690 = vmul.f32 %v3678, 1.442695
        %v3691 = vpow.pop %v3690
        %v3692 = vmul.f32 %v3679, 1.442695
        %v3693 = vpow.pop %v3692
        %v3694 = vmul.f32 %v3680, 1.442695
        %v3695 = vpow.pop %v3694
        %v3696 = vmul.f32 %v3681, 1.442695
        %v3697 = vpow.pop %v3696
        %v3698 = vsel %vm1012, %v3683, 0.0
        %3699 = vadd.xlane.f32.xlu0 %v3698
        %v3700 = vpop.xlane.xlu0 %3699
        %v3701 = vsel %vm1012, %v3685, 0.0
        %3702 = vadd.xlane.f32.xlu0 %v3701
        %v3703 = vpop.xlane.xlu0 %3702
        %v3704 = vsel %vm1012, %v3687, 0.0
        %3705 = vadd.xlane.f32.xlu0 %v3704
        %v3706 = vpop.xlane.xlu0 %3705
        %v3707 = vsel %vm1012, %v3689, 0.0
        %3708 = vadd.xlane.f32.xlu0 %v3707
        %v3709 = vpop.xlane.xlu0 %3708
        %v3710 = vsel %vm1012, %v3691, 0.0
        %3711 = vadd.xlane.f32.xlu0 %v3710
        %v3712 = vpop.xlane.xlu0 %3711
        %v3713 = vsel %vm1012, %v3693, 0.0
        %3714 = vadd.xlane.f32.xlu0 %v3713
        %v3715 = vpop.xlane.xlu0 %3714
        %v3716 = vsel %vm1012, %v3695, 0.0
        %3717 = vadd.xlane.f32.xlu0 %v3716
        %v3718 = vpop.xlane.xlu0 %3717
        %v3719 = vsel %vm1012, %v3697, 0.0
        %3720 = vadd.xlane.f32.xlu0 %v3719
        %v3721 = vpop.xlane.xlu0 %3720
        %v3722 = vrcp.pop %v3700
        %v3723 = vrcp.pop %v3703
        %v3724 = vrcp.pop %v3706
        %v3725 = vrcp.pop %v3709
        %v3726 = vrcp.pop %v3712
        %v3727 = vrcp.pop %v3715
        %v3728 = vrcp.pop %v3718
        %v3729 = vrcp.pop %v3721
        %v3730 = vmul.f32 %v3683, %v3722
        %v3731 = vmul.f32 %v3685, %v3723
        %v3732 = vmul.f32 %v3687, %v3724
        %v3733 = vmul.f32 %v3689, %v3725
        %v3734 = vmul.f32 %v3691, %v3726
        %v3735 = vmul.f32 %v3693, %v3727
        %v3736 = vmul.f32 %v3695, %v3728
        %v3737 = vmul.f32 %v3697, %v3729
        %3738 = vrot.lane.b32.xlu0 %v3454, 64
        %v3739 = vpop.permute.xlu0 %3738
        %3740 = vrot.lane.b32.xlu0 %v3457, 64
        %v3741 = vpop.permute.xlu0 %3740
        %v3745 = vsel %vm1012, %v3730, 0
        %v3748 = vsel %vm1012, %v3731, 0
        %3750 = vmatpush.msra.mxu0 0.0
        %3751 = vmatpush.msra.mxu0 0.0
        %3752 = vmatpush.msra.mxu0 0.0
        %3753 = vmatpush.msra.mxu0 0.0
        %3754 = vmatpush.msra.mxu0 0.0
        %3755 = vmatpush.msra.mxu0 0.0
        %3756 = vmatpush.msra.mxu0 0.0
        %3757 = vmatpush.msra.mxu0 0.0
        %3758 = vmatpush.msra.mxu0 0.0
        %3759 = vmatpush.msra.mxu0 0.0
        %3760 = vmatpush.msra.mxu0 0.0
        %3761 = vmatpush.msra.mxu0 0.0
        %3762 = vmatpush.msra.mxu0 0.0
        %3763 = vmatpush.msra.mxu0 0.0
        %3764 = vmatpush.msra.mxu0 %v3741
        %3765 = vmatpush.msra.mxu0 %v3739
        %3766 = vmatmul.f32.gmra.mxu0 %v3745
        %v3767 = vpop.f32.mrf.mxu0
        %v3768 = vadd.f32 0.0, %v3767
        %3769 = vmatmul.f32.gmra.mxu0 %v3748
        %v3770 = vpop.f32.mrf.mxu0
        %v3771 = vadd.f32 0.0, %v3770
        %3772 = vdwg.mxu0
        %3773 = vrot.lane.b32.xlu0 %v3460, 64
        %v3774 = vpop.permute.xlu0 %3773
        %3775 = vrot.lane.b32.xlu0 %v3463, 64
        %v3776 = vpop.permute.xlu0 %3775
        %v3780 = vsel %vm1012, %v3732, 0
        %v3783 = vsel %vm1012, %v3733, 0
        %3785 = vmatpush.msra.mxu0 0.0
        %3786 = vmatpush.msra.mxu0 0.0
        %3787 = vmatpush.msra.mxu0 0.0
        %3788 = vmatpush.msra.mxu0 0.0
        %3789 = vmatpush.msra.mxu0 0.0
        %3790 = vmatpush.msra.mxu0 0.0
        %3791 = vmatpush.msra.mxu0 0.0
        %3792 = vmatpush.msra.mxu0 0.0
        %3793 = vmatpush.msra.mxu0 0.0
        %3794 = vmatpush.msra.mxu0 0.0
        %3795 = vmatpush.msra.mxu0 0.0
        %3796 = vmatpush.msra.mxu0 0.0
        %3797 = vmatpush.msra.mxu0 0.0
        %3798 = vmatpush.msra.mxu0 0.0
        %3799 = vmatpush.msra.mxu0 %v3776
        %3800 = vmatpush.msra.mxu0 %v3774
        %3801 = vmatmul.f32.gmra.mxu0 %v3780
        %v3802 = vpop.f32.mrf.mxu0
        %v3803 = vadd.f32 0.0, %v3802
        %3804 = vmatmul.f32.gmra.mxu0 %v3783
        %v3805 = vpop.f32.mrf.mxu0
        %v3806 = vadd.f32 0.0, %v3805
        %3807 = vdwg.mxu0
        %3808 = vrot.lane.b32.xlu0 %v3466, 64
        %v3809 = vpop.permute.xlu0 %3808
        %3810 = vrot.lane.b32.xlu0 %v3469, 64
        %v3811 = vpop.permute.xlu0 %3810
        %v3815 = vsel %vm1012, %v3734, 0
        %v3818 = vsel %vm1012, %v3735, 0
        %3820 = vmatpush.msra.mxu0 0.0
        %3821 = vmatpush.msra.mxu0 0.0
        %3822 = vmatpush.msra.mxu0 0.0
        %3823 = vmatpush.msra.mxu0 0.0
        %3824 = vmatpush.msra.mxu0 0.0
        %3825 = vmatpush.msra.mxu0 0.0
        %3826 = vmatpush.msra.mxu0 0.0
        %3827 = vmatpush.msra.mxu0 0.0
        %3828 = vmatpush.msra.mxu0 0.0
        %3829 = vmatpush.msra.mxu0 0.0
        %3830 = vmatpush.msra.mxu0 0.0
        %3831 = vmatpush.msra.mxu0 0.0
        %3832 = vmatpush.msra.mxu0 0.0
        %3833 = vmatpush.msra.mxu0 0.0
        %3834 = vmatpush.msra.mxu0 %v3811
        %3835 = vmatpush.msra.mxu0 %v3809
        %3836 = vmatmul.f32.gmra.mxu0 %v3815
        %v3837 = vpop.f32.mrf.mxu0
        %v3838 = vadd.f32 0.0, %v3837
        %3839 = vmatmul.f32.gmra.mxu0 %v3818
        %v3840 = vpop.f32.mrf.mxu0
        %v3841 = vadd.f32 0.0, %v3840
        %3842 = vdwg.mxu0
        %3843 = vrot.lane.b32.xlu0 %v3472, 64
        %v3844 = vpop.permute.xlu0 %3843
        %3845 = vrot.lane.b32.xlu0 %v3475, 64
        %v3846 = vpop.permute.xlu0 %3845
        %v3850 = vsel %vm1012, %v3736, 0
        %v3853 = vsel %vm1012, %v3737, 0
        %3855 = vmatpush.msra.mxu0 0.0
        %3856 = vmatpush.msra.mxu0 0.0
        %3857 = vmatpush.msra.mxu0 0.0
        %3858 = vmatpush.msra.mxu0 0.0
        %3859 = vmatpush.msra.mxu0 0.0
        %3860 = vmatpush.msra.mxu0 0.0
        %3861 = vmatpush.msra.mxu0 0.0
        %3862 = vmatpush.msra.mxu0 0.0
        %3863 = vmatpush.msra.mxu0 0.0
        %3864 = vmatpush.msra.mxu0 0.0
        %3865 = vmatpush.msra.mxu0 0.0
        %3866 = vmatpush.msra.mxu0 0.0
        %3867 = vmatpush.msra.mxu0 0.0
        %3868 = vmatpush.msra.mxu0 0.0
        %3869 = vmatpush.msra.mxu0 %v3846
        %3870 = vmatpush.msra.mxu0 %v3844
        %3871 = vmatmul.f32.gmra.mxu0 %v3850
        %v3872 = vpop.f32.mrf.mxu0
        %v3873 = vadd.f32 0.0, %v3872
        %3874 = vmatmul.f32.gmra.mxu0 %v3853
        %v3875 = vpop.f32.mrf.mxu0
        %v3876 = vadd.f32 0.0, %v3875
        %3877 = vdwg.mxu0
        %s3878 = scalar_lea.vmem [#allocation2], 320
        %v3879 = vld [vmem:[%s3878] sm:$0xff]
        %v3880 = vld [vmem:[%s3878 + $0x8] sm:$0xff]
        %v3881 = vld [vmem:[%s3878 + $0x10] sm:$0xff]
        %v3882 = vld [vmem:[%s3878 + $0x18] sm:$0xff]
        %v3883 = vld [vmem:[%s3878 + $0x20] sm:$0xff]
        %v3884 = vld [vmem:[%s3878 + $0x28] sm:$0xff]
        %v3885 = vld [vmem:[%s3878 + $0x30] sm:$0xff]
        %v3886 = vld [vmem:[%s3878 + $0x38] sm:$0xff]
        %3887 = vrot.lane.b32.xlu0 %v3477, 120
        %v3888 = vpop.permute.xlu0 %3887
        %3889 = vrot.lane.b32.xlu0 %v3478, 120
        %v3890 = vpop.permute.xlu0 %3889
        %3891 = vrot.lane.b32.xlu0 %v3454, 88
        %v3892 = vpop.permute.xlu0 %3891
        %3893 = vrot.lane.b32.xlu0 %v3457, 88
        %v3894 = vpop.permute.xlu0 %3893
        %v3895 = vsel %vm861, %v3888, 0
        %v3897 = vsel %vm861, %v3890, 0
        %v3899 = vsel %vm861, %v3892, 0
        %v3901 = vsel %vm861, %v3894, 0
        %3903 = vmatpush.xpose.msra.mxu0 0.0
        %3904 = vmatpush.xpose.msra.mxu0 0.0
        %3905 = vmatpush.xpose.msra.mxu0 0.0
        %3906 = vmatpush.xpose.msra.mxu0 0.0
        %3907 = vmatpush.xpose.msra.mxu0 0.0
        %3908 = vmatpush.xpose.msra.mxu0 0.0
        %3909 = vmatpush.xpose.msra.mxu0 0.0
        %3910 = vmatpush.xpose.msra.mxu0 0.0
        %3911 = vmatpush.xpose.msra.mxu0 0.0
        %3912 = vmatpush.xpose.msra.mxu0 0.0
        %3913 = vmatpush.xpose.msra.mxu0 0.0
        %3914 = vmatpush.xpose.msra.mxu0 0.0
        %3915 = vmatpush.xpose.msra.mxu0 0.0
        %3916 = vmatpush.xpose.msra.mxu0 0.0
        %3917 = vmatpush.xpose.msra.mxu0 %v3901
        %3918 = vmatpush.xpose.msra.mxu0 %v3899
        %3919 = vmatmul.f32.gmra.mxu0 %v3895
        %v3920 = vpop.f32.mrf.mxu0
        %v3921 = vadd.f32 %v3879, %v3920
        %3922 = vmatmul.f32.gmra.mxu0 %v3897
        %v3923 = vpop.f32.mrf.mxu0
        %v3924 = vadd.f32 %v3880, %v3923
        %3925 = vdwg.mxu0
        %3926 = vrot.lane.b32.xlu0 %v3479, 120
        %v3927 = vpop.permute.xlu0 %3926
        %3928 = vrot.lane.b32.xlu0 %v3480, 120
        %v3929 = vpop.permute.xlu0 %3928
        %3930 = vrot.lane.b32.xlu0 %v3460, 88
        %v3931 = vpop.permute.xlu0 %3930
        %3932 = vrot.lane.b32.xlu0 %v3463, 88
        %v3933 = vpop.permute.xlu0 %3932
        %v3934 = vsel %vm861, %v3927, 0
        %v3936 = vsel %vm861, %v3929, 0
        %v3938 = vsel %vm861, %v3931, 0
        %v3940 = vsel %vm861, %v3933, 0
        %3942 = vmatpush.xpose.msra.mxu0 0.0
        %3943 = vmatpush.xpose.msra.mxu0 0.0
        %3944 = vmatpush.xpose.msra.mxu0 0.0
        %3945 = vmatpush.xpose.msra.mxu0 0.0
        %3946 = vmatpush.xpose.msra.mxu0 0.0
        %3947 = vmatpush.xpose.msra.mxu0 0.0
        %3948 = vmatpush.xpose.msra.mxu0 0.0
        %3949 = vmatpush.xpose.msra.mxu0 0.0
        %3950 = vmatpush.xpose.msra.mxu0 0.0
        %3951 = vmatpush.xpose.msra.mxu0 0.0
        %3952 = vmatpush.xpose.msra.mxu0 0.0
        %3953 = vmatpush.xpose.msra.mxu0 0.0
        %3954 = vmatpush.xpose.msra.mxu0 0.0
        %3955 = vmatpush.xpose.msra.mxu0 0.0
        %3956 = vmatpush.xpose.msra.mxu0 %v3940
        %3957 = vmatpush.xpose.msra.mxu0 %v3938
        %3958 = vmatmul.f32.gmra.mxu0 %v3934
        %v3959 = vpop.f32.mrf.mxu0
        %v3960 = vadd.f32 %v3881, %v3959
        %3961 = vmatmul.f32.gmra.mxu0 %v3936
        %v3962 = vpop.f32.mrf.mxu0
        %v3963 = vadd.f32 %v3882, %v3962
        %3964 = vdwg.mxu0
        %3965 = vrot.lane.b32.xlu0 %v3481, 120
        %v3966 = vpop.permute.xlu0 %3965
        %3967 = vrot.lane.b32.xlu0 %v3482, 120
        %v3968 = vpop.permute.xlu0 %3967
        %3969 = vrot.lane.b32.xlu0 %v3466, 88
        %v3970 = vpop.permute.xlu0 %3969
        %3971 = vrot.lane.b32.xlu0 %v3469, 88
        %v3972 = vpop.permute.xlu0 %3971
        %v3973 = vsel %vm861, %v3966, 0
        %v3975 = vsel %vm861, %v3968, 0
        %v3977 = vsel %vm861, %v3970, 0
        %v3979 = vsel %vm861, %v3972, 0
        %3981 = vmatpush.xpose.msra.mxu0 0.0
        %3982 = vmatpush.xpose.msra.mxu0 0.0
        %3983 = vmatpush.xpose.msra.mxu0 0.0
        %3984 = vmatpush.xpose.msra.mxu0 0.0
        %3985 = vmatpush.xpose.msra.mxu0 0.0
        %3986 = vmatpush.xpose.msra.mxu0 0.0
        %3987 = vmatpush.xpose.msra.mxu0 0.0
        %3988 = vmatpush.xpose.msra.mxu0 0.0
        %3989 = vmatpush.xpose.msra.mxu0 0.0
        %3990 = vmatpush.xpose.msra.mxu0 0.0
        %3991 = vmatpush.xpose.msra.mxu0 0.0
        %3992 = vmatpush.xpose.msra.mxu0 0.0
        %3993 = vmatpush.xpose.msra.mxu0 0.0
        %3994 = vmatpush.xpose.msra.mxu0 0.0
        %3995 = vmatpush.xpose.msra.mxu0 %v3979
        %3996 = vmatpush.xpose.msra.mxu0 %v3977
        %3997 = vmatmul.f32.gmra.mxu0 %v3973
        %v3998 = vpop.f32.mrf.mxu0
        %v3999 = vadd.f32 %v3883, %v3998
        %4000 = vmatmul.f32.gmra.mxu0 %v3975
        %v4001 = vpop.f32.mrf.mxu0
        %v4002 = vadd.f32 %v3884, %v4001
        %4003 = vdwg.mxu0
        %4004 = vrot.lane.b32.xlu0 %v3483, 120
        %v4005 = vpop.permute.xlu0 %4004
        %4006 = vrot.lane.b32.xlu0 %v3484, 120
        %v4007 = vpop.permute.xlu0 %4006
        %4008 = vrot.lane.b32.xlu0 %v3472, 88
        %v4009 = vpop.permute.xlu0 %4008
        %4010 = vrot.lane.b32.xlu0 %v3475, 88
        %v4011 = vpop.permute.xlu0 %4010
        %v4012 = vsel %vm861, %v4005, 0
        %v4014 = vsel %vm861, %v4007, 0
        %v4016 = vsel %vm861, %v4009, 0
        %v4018 = vsel %vm861, %v4011, 0
        %4020 = vmatpush.xpose.msra.mxu0 0.0
        %4021 = vmatpush.xpose.msra.mxu0 0.0
        %4022 = vmatpush.xpose.msra.mxu0 0.0
        %4023 = vmatpush.xpose.msra.mxu0 0.0
        %4024 = vmatpush.xpose.msra.mxu0 0.0
        %4025 = vmatpush.xpose.msra.mxu0 0.0
        %4026 = vmatpush.xpose.msra.mxu0 0.0
        %4027 = vmatpush.xpose.msra.mxu0 0.0
        %4028 = vmatpush.xpose.msra.mxu0 0.0
        %4029 = vmatpush.xpose.msra.mxu0 0.0
        %4030 = vmatpush.xpose.msra.mxu0 0.0
        %4031 = vmatpush.xpose.msra.mxu0 0.0
        %4032 = vmatpush.xpose.msra.mxu0 0.0
        %4033 = vmatpush.xpose.msra.mxu0 0.0
        %4034 = vmatpush.xpose.msra.mxu0 %v4018
        %4035 = vmatpush.xpose.msra.mxu0 %v4016
        %4036 = vmatmul.f32.gmra.mxu0 %v4012
        %v4037 = vpop.f32.mrf.mxu0
        %v4038 = vadd.f32 %v3885, %v4037
        %4039 = vmatmul.f32.gmra.mxu0 %v4014
        %v4040 = vpop.f32.mrf.mxu0
        %v4041 = vadd.f32 %v3886, %v4040
        %4042 = vdwg.mxu0
        %v4043 = vsel %vm1012, %v3921, -inf
        %4044 = vmax.xlane.f32.xlu0 %v4043
        %v4045 = vpop.xlane.xlu0 %4044
        %v4046 = vsel %vm1012, %v3924, -inf
        %4047 = vmax.xlane.f32.xlu0 %v4046
        %v4048 = vpop.xlane.xlu0 %4047
        %v4049 = vsel %vm1012, %v3960, -inf
        %4050 = vmax.xlane.f32.xlu0 %v4049
        %v4051 = vpop.xlane.xlu0 %4050
        %v4052 = vsel %vm1012, %v3963, -inf
        %4053 = vmax.xlane.f32.xlu0 %v4052
        %v4054 = vpop.xlane.xlu0 %4053
        %v4055 = vsel %vm1012, %v3999, -inf
        %4056 = vmax.xlane.f32.xlu0 %v4055
        %v4057 = vpop.xlane.xlu0 %4056
        %v4058 = vsel %vm1012, %v4002, -inf
        %4059 = vmax.xlane.f32.xlu0 %v4058
        %v4060 = vpop.xlane.xlu0 %4059
        %v4061 = vsel %vm1012, %v4038, -inf
        %4062 = vmax.xlane.f32.xlu0 %v4061
        %v4063 = vpop.xlane.xlu0 %4062
        %v4064 = vsel %vm1012, %v4041, -inf
        %4065 = vmax.xlane.f32.xlu0 %v4064
        %v4066 = vpop.xlane.xlu0 %4065
        %v4067 = vsub.f32 %v3921, %v4045
        %v4068 = vsub.f32 %v3924, %v4048
        %v4069 = vsub.f32 %v3960, %v4051
        %v4070 = vsub.f32 %v3963, %v4054
        %v4071 = vsub.f32 %v3999, %v4057
        %v4072 = vsub.f32 %v4002, %v4060
        %v4073 = vsub.f32 %v4038, %v4063
        %v4074 = vsub.f32 %v4041, %v4066
        %v4075 = vmul.f32 %v4067, 1.442695
        %v4076 = vpow.pop %v4075
        %v4077 = vmul.f32 %v4068, 1.442695
        %v4078 = vpow.pop %v4077
        %v4079 = vmul.f32 %v4069, 1.442695
        %v4080 = vpow.pop %v4079
        %v4081 = vmul.f32 %v4070, 1.442695
        %v4082 = vpow.pop %v4081
        %v4083 = vmul.f32 %v4071, 1.442695
        %v4084 = vpow.pop %v4083
        %v4085 = vmul.f32 %v4072, 1.442695
        %v4086 = vpow.pop %v4085
        %v4087 = vmul.f32 %v4073, 1.442695
        %v4088 = vpow.pop %v4087
        %v4089 = vmul.f32 %v4074, 1.442695
        %v4090 = vpow.pop %v4089
        %v4091 = vsel %vm1012, %v4076, 0.0
        %4092 = vadd.xlane.f32.xlu0 %v4091
        %v4093 = vpop.xlane.xlu0 %4092
        %v4094 = vsel %vm1012, %v4078, 0.0
        %4095 = vadd.xlane.f32.xlu0 %v4094
        %v4096 = vpop.xlane.xlu0 %4095
        %v4097 = vsel %vm1012, %v4080, 0.0
        %4098 = vadd.xlane.f32.xlu0 %v4097
        %v4099 = vpop.xlane.xlu0 %4098
        %v4100 = vsel %vm1012, %v4082, 0.0
        %4101 = vadd.xlane.f32.xlu0 %v4100
        %v4102 = vpop.xlane.xlu0 %4101
        %v4103 = vsel %vm1012, %v4084, 0.0
        %4104 = vadd.xlane.f32.xlu0 %v4103
        %v4105 = vpop.xlane.xlu0 %4104
        %v4106 = vsel %vm1012, %v4086, 0.0
        %4107 = vadd.xlane.f32.xlu0 %v4106
        %v4108 = vpop.xlane.xlu0 %4107
        %v4109 = vsel %vm1012, %v4088, 0.0
        %4110 = vadd.xlane.f32.xlu0 %v4109
        %v4111 = vpop.xlane.xlu0 %4110
        %v4112 = vsel %vm1012, %v4090, 0.0
        %4113 = vadd.xlane.f32.xlu0 %v4112
        %v4114 = vpop.xlane.xlu0 %4113
        %v4115 = vrcp.pop %v4093
        %v4116 = vrcp.pop %v4096
        %v4117 = vrcp.pop %v4099
        %v4118 = vrcp.pop %v4102
        %v4119 = vrcp.pop %v4105
        %v4120 = vrcp.pop %v4108
        %v4121 = vrcp.pop %v4111
        %v4122 = vrcp.pop %v4114
        %v4123 = vmul.f32 %v4076, %v4115
        %v4124 = vmul.f32 %v4078, %v4116
        %v4125 = vmul.f32 %v4080, %v4117
        %v4126 = vmul.f32 %v4082, %v4118
        %v4127 = vmul.f32 %v4084, %v4119
        %v4128 = vmul.f32 %v4086, %v4120
        %v4129 = vmul.f32 %v4088, %v4121
        %v4130 = vmul.f32 %v4090, %v4122
        %4131 = vrot.lane.b32.xlu0 %v3454, 56
        %v4132 = vpop.permute.xlu0 %4131
        %4133 = vrot.lane.b32.xlu0 %v3457, 56
        %v4134 = vpop.permute.xlu0 %4133
        %v4138 = vsel %vm1012, %v4123, 0
        %v4141 = vsel %vm1012, %v4124, 0
        %4143 = vmatpush.msra.mxu0 0.0
        %4144 = vmatpush.msra.mxu0 0.0
        %4145 = vmatpush.msra.mxu0 0.0
        %4146 = vmatpush.msra.mxu0 0.0
        %4147 = vmatpush.msra.mxu0 0.0
        %4148 = vmatpush.msra.mxu0 0.0
        %4149 = vmatpush.msra.mxu0 0.0
        %4150 = vmatpush.msra.mxu0 0.0
        %4151 = vmatpush.msra.mxu0 0.0
        %4152 = vmatpush.msra.mxu0 0.0
        %4153 = vmatpush.msra.mxu0 0.0
        %4154 = vmatpush.msra.mxu0 0.0
        %4155 = vmatpush.msra.mxu0 0.0
        %4156 = vmatpush.msra.mxu0 0.0
        %4157 = vmatpush.msra.mxu0 %v4134
        %4158 = vmatpush.msra.mxu0 %v4132
        %4159 = vmatmul.f32.gmra.mxu0 %v4138
        %v4160 = vpop.f32.mrf.mxu0
        %v4161 = vadd.f32 0.0, %v4160
        %4162 = vmatmul.f32.gmra.mxu0 %v4141
        %v4163 = vpop.f32.mrf.mxu0
        %v4164 = vadd.f32 0.0, %v4163
        %4165 = vdwg.mxu0
        %4166 = vrot.lane.b32.xlu0 %v3460, 56
        %v4167 = vpop.permute.xlu0 %4166
        %4168 = vrot.lane.b32.xlu0 %v3463, 56
        %v4169 = vpop.permute.xlu0 %4168
        %v4173 = vsel %vm1012, %v4125, 0
        %v4176 = vsel %vm1012, %v4126, 0
        %4178 = vmatpush.msra.mxu0 0.0
        %4179 = vmatpush.msra.mxu0 0.0
        %4180 = vmatpush.msra.mxu0 0.0
        %4181 = vmatpush.msra.mxu0 0.0
        %4182 = vmatpush.msra.mxu0 0.0
        %4183 = vmatpush.msra.mxu0 0.0
        %4184 = vmatpush.msra.mxu0 0.0
        %4185 = vmatpush.msra.mxu0 0.0
        %4186 = vmatpush.msra.mxu0 0.0
        %4187 = vmatpush.msra.mxu0 0.0
        %4188 = vmatpush.msra.mxu0 0.0
        %4189 = vmatpush.msra.mxu0 0.0
        %4190 = vmatpush.msra.mxu0 0.0
        %4191 = vmatpush.msra.mxu0 0.0
        %4192 = vmatpush.msra.mxu0 %v4169
        %4193 = vmatpush.msra.mxu0 %v4167
        %4194 = vmatmul.f32.gmra.mxu0 %v4173
        %v4195 = vpop.f32.mrf.mxu0
        %v4196 = vadd.f32 0.0, %v4195
        %4197 = vmatmul.f32.gmra.mxu0 %v4176
        %v4198 = vpop.f32.mrf.mxu0
        %v4199 = vadd.f32 0.0, %v4198
        %4200 = vdwg.mxu0
        %4201 = vrot.lane.b32.xlu0 %v3466, 56
        %v4202 = vpop.permute.xlu0 %4201
        %4203 = vrot.lane.b32.xlu0 %v3469, 56
        %v4204 = vpop.permute.xlu0 %4203
        %v4208 = vsel %vm1012, %v4127, 0
        %v4211 = vsel %vm1012, %v4128, 0
        %4213 = vmatpush.msra.mxu0 0.0
        %4214 = vmatpush.msra.mxu0 0.0
        %4215 = vmatpush.msra.mxu0 0.0
        %4216 = vmatpush.msra.mxu0 0.0
        %4217 = vmatpush.msra.mxu0 0.0
        %4218 = vmatpush.msra.mxu0 0.0
        %4219 = vmatpush.msra.mxu0 0.0
        %4220 = vmatpush.msra.mxu0 0.0
        %4221 = vmatpush.msra.mxu0 0.0
        %4222 = vmatpush.msra.mxu0 0.0
        %4223 = vmatpush.msra.mxu0 0.0
        %4224 = vmatpush.msra.mxu0 0.0
        %4225 = vmatpush.msra.mxu0 0.0
        %4226 = vmatpush.msra.mxu0 0.0
        %4227 = vmatpush.msra.mxu0 %v4204
        %4228 = vmatpush.msra.mxu0 %v4202
        %4229 = vmatmul.f32.gmra.mxu0 %v4208
        %v4230 = vpop.f32.mrf.mxu0
        %v4231 = vadd.f32 0.0, %v4230
        %4232 = vmatmul.f32.gmra.mxu0 %v4211
        %v4233 = vpop.f32.mrf.mxu0
        %v4234 = vadd.f32 0.0, %v4233
        %4235 = vdwg.mxu0
        %4236 = vrot.lane.b32.xlu0 %v3472, 56
        %v4237 = vpop.permute.xlu0 %4236
        %4238 = vrot.lane.b32.xlu0 %v3475, 56
        %v4239 = vpop.permute.xlu0 %4238
        %v4243 = vsel %vm1012, %v4129, 0
        %v4246 = vsel %vm1012, %v4130, 0
        %4248 = vmatpush.msra.mxu0 0.0
        %4249 = vmatpush.msra.mxu0 0.0
        %4250 = vmatpush.msra.mxu0 0.0
        %4251 = vmatpush.msra.mxu0 0.0
        %4252 = vmatpush.msra.mxu0 0.0
        %4253 = vmatpush.msra.mxu0 0.0
        %4254 = vmatpush.msra.mxu0 0.0
        %4255 = vmatpush.msra.mxu0 0.0
        %4256 = vmatpush.msra.mxu0 0.0
        %4257 = vmatpush.msra.mxu0 0.0
        %4258 = vmatpush.msra.mxu0 0.0
        %4259 = vmatpush.msra.mxu0 0.0
        %4260 = vmatpush.msra.mxu0 0.0
        %4261 = vmatpush.msra.mxu0 0.0
        %4262 = vmatpush.msra.mxu0 %v4239
        %4263 = vmatpush.msra.mxu0 %v4237
        %4264 = vmatmul.f32.gmra.mxu0 %v4243
        %v4265 = vpop.f32.mrf.mxu0
        %v4266 = vadd.f32 0.0, %v4265
        %4267 = vmatmul.f32.gmra.mxu0 %v4246
        %v4268 = vpop.f32.mrf.mxu0
        %v4269 = vadd.f32 0.0, %v4268
        %4270 = vdwg.mxu0
        %s4271 = scalar_lea.vmem [#allocation2], 384
        %v4272 = vld [vmem:[%s4271] sm:$0xff]
        %v4273 = vld [vmem:[%s4271 + $0x8] sm:$0xff]
        %v4274 = vld [vmem:[%s4271 + $0x10] sm:$0xff]
        %v4275 = vld [vmem:[%s4271 + $0x18] sm:$0xff]
        %v4276 = vld [vmem:[%s4271 + $0x20] sm:$0xff]
        %v4277 = vld [vmem:[%s4271 + $0x28] sm:$0xff]
        %v4278 = vld [vmem:[%s4271 + $0x30] sm:$0xff]
        %v4279 = vld [vmem:[%s4271 + $0x38] sm:$0xff]
        %4280 = vrot.lane.b32.xlu0 %v3477, 112
        %v4281 = vpop.permute.xlu0 %4280
        %4282 = vrot.lane.b32.xlu0 %v3478, 112
        %v4283 = vpop.permute.xlu0 %4282
        %4284 = vrot.lane.b32.xlu0 %v3454, 80
        %v4285 = vpop.permute.xlu0 %4284
        %4286 = vrot.lane.b32.xlu0 %v3457, 80
        %v4287 = vpop.permute.xlu0 %4286
        %v4288 = vsel %vm861, %v4281, 0
        %v4290 = vsel %vm861, %v4283, 0
        %v4292 = vsel %vm861, %v4285, 0
        %v4294 = vsel %vm861, %v4287, 0
        %4296 = vmatpush.xpose.msra.mxu0 0.0
        %4297 = vmatpush.xpose.msra.mxu0 0.0
        %4298 = vmatpush.xpose.msra.mxu0 0.0
        %4299 = vmatpush.xpose.msra.mxu0 0.0
        %4300 = vmatpush.xpose.msra.mxu0 0.0
        %4301 = vmatpush.xpose.msra.mxu0 0.0
        %4302 = vmatpush.xpose.msra.mxu0 0.0
        %4303 = vmatpush.xpose.msra.mxu0 0.0
        %4304 = vmatpush.xpose.msra.mxu0 0.0
        %4305 = vmatpush.xpose.msra.mxu0 0.0
        %4306 = vmatpush.xpose.msra.mxu0 0.0
        %4307 = vmatpush.xpose.msra.mxu0 0.0
        %4308 = vmatpush.xpose.msra.mxu0 0.0
        %4309 = vmatpush.xpose.msra.mxu0 0.0
        %4310 = vmatpush.xpose.msra.mxu0 %v4294
        %4311 = vmatpush.xpose.msra.mxu0 %v4292
        %4312 = vmatmul.f32.gmra.mxu0 %v4288
        %v4313 = vpop.f32.mrf.mxu0
        %v4314 = vadd.f32 %v4272, %v4313
        %4315 = vmatmul.f32.gmra.mxu0 %v4290
        %v4316 = vpop.f32.mrf.mxu0
        %v4317 = vadd.f32 %v4273, %v4316
        %4318 = vdwg.mxu0
        %4319 = vrot.lane.b32.xlu0 %v3479, 112
        %v4320 = vpop.permute.xlu0 %4319
        %4321 = vrot.lane.b32.xlu0 %v3480, 112
        %v4322 = vpop.permute.xlu0 %4321
        %4323 = vrot.lane.b32.xlu0 %v3460, 80
        %v4324 = vpop.permute.xlu0 %4323
        %4325 = vrot.lane.b32.xlu0 %v3463, 80
        %v4326 = vpop.permute.xlu0 %4325
        %v4327 = vsel %vm861, %v4320, 0
        %v4329 = vsel %vm861, %v4322, 0
        %v4331 = vsel %vm861, %v4324, 0
        %v4333 = vsel %vm861, %v4326, 0
        %4335 = vmatpush.xpose.msra.mxu0 0.0
        %4336 = vmatpush.xpose.msra.mxu0 0.0
        %4337 = vmatpush.xpose.msra.mxu0 0.0
        %4338 = vmatpush.xpose.msra.mxu0 0.0
        %4339 = vmatpush.xpose.msra.mxu0 0.0
        %4340 = vmatpush.xpose.msra.mxu0 0.0
        %4341 = vmatpush.xpose.msra.mxu0 0.0
        %4342 = vmatpush.xpose.msra.mxu0 0.0
        %4343 = vmatpush.xpose.msra.mxu0 0.0
        %4344 = vmatpush.xpose.msra.mxu0 0.0
        %4345 = vmatpush.xpose.msra.mxu0 0.0
        %4346 = vmatpush.xpose.msra.mxu0 0.0
        %4347 = vmatpush.xpose.msra.mxu0 0.0
        %4348 = vmatpush.xpose.msra.mxu0 0.0
        %4349 = vmatpush.xpose.msra.mxu0 %v4333
        %4350 = vmatpush.xpose.msra.mxu0 %v4331
        %4351 = vmatmul.f32.gmra.mxu0 %v4327
        %v4352 = vpop.f32.mrf.mxu0
        %v4353 = vadd.f32 %v4274, %v4352
        %4354 = vmatmul.f32.gmra.mxu0 %v4329
        %v4355 = vpop.f32.mrf.mxu0
        %v4356 = vadd.f32 %v4275, %v4355
        %4357 = vdwg.mxu0
        %4358 = vrot.lane.b32.xlu0 %v3481, 112
        %v4359 = vpop.permute.xlu0 %4358
        %4360 = vrot.lane.b32.xlu0 %v3482, 112
        %v4361 = vpop.permute.xlu0 %4360
        %4362 = vrot.lane.b32.xlu0 %v3466, 80
        %v4363 = vpop.permute.xlu0 %4362
        %4364 = vrot.lane.b32.xlu0 %v3469, 80
        %v4365 = vpop.permute.xlu0 %4364
        %v4366 = vsel %vm861, %v4359, 0
        %v4368 = vsel %vm861, %v4361, 0
        %v4370 = vsel %vm861, %v4363, 0
        %v4372 = vsel %vm861, %v4365, 0
        %4374 = vmatpush.xpose.msra.mxu0 0.0
        %4375 = vmatpush.xpose.msra.mxu0 0.0
        %4376 = vmatpush.xpose.msra.mxu0 0.0
        %4377 = vmatpush.xpose.msra.mxu0 0.0
        %4378 = vmatpush.xpose.msra.mxu0 0.0
        %4379 = vmatpush.xpose.msra.mxu0 0.0
        %4380 = vmatpush.xpose.msra.mxu0 0.0
        %4381 = vmatpush.xpose.msra.mxu0 0.0
        %4382 = vmatpush.xpose.msra.mxu0 0.0
        %4383 = vmatpush.xpose.msra.mxu0 0.0
        %4384 = vmatpush.xpose.msra.mxu0 0.0
        %4385 = vmatpush.xpose.msra.mxu0 0.0
        %4386 = vmatpush.xpose.msra.mxu0 0.0
        %4387 = vmatpush.xpose.msra.mxu0 0.0
        %4388 = vmatpush.xpose.msra.mxu0 %v4372
        %4389 = vmatpush.xpose.msra.mxu0 %v4370
        %4390 = vmatmul.f32.gmra.mxu0 %v4366
        %v4391 = vpop.f32.mrf.mxu0
        %v4392 = vadd.f32 %v4276, %v4391
        %4393 = vmatmul.f32.gmra.mxu0 %v4368
        %v4394 = vpop.f32.mrf.mxu0
        %v4395 = vadd.f32 %v4277, %v4394
        %4396 = vdwg.mxu0
        %4397 = vrot.lane.b32.xlu0 %v3483, 112
        %v4398 = vpop.permute.xlu0 %4397
        %4399 = vrot.lane.b32.xlu0 %v3484, 112
        %v4400 = vpop.permute.xlu0 %4399
        %4401 = vrot.lane.b32.xlu0 %v3472, 80
        %v4402 = vpop.permute.xlu0 %4401
        %4403 = vrot.lane.b32.xlu0 %v3475, 80
        %v4404 = vpop.permute.xlu0 %4403
        %v4405 = vsel %vm861, %v4398, 0
        %v4407 = vsel %vm861, %v4400, 0
        %v4409 = vsel %vm861, %v4402, 0
        %v4411 = vsel %vm861, %v4404, 0
        %4413 = vmatpush.xpose.msra.mxu0 0.0
        %4414 = vmatpush.xpose.msra.mxu0 0.0
        %4415 = vmatpush.xpose.msra.mxu0 0.0
        %4416 = vmatpush.xpose.msra.mxu0 0.0
        %4417 = vmatpush.xpose.msra.mxu0 0.0
        %4418 = vmatpush.xpose.msra.mxu0 0.0
        %4419 = vmatpush.xpose.msra.mxu0 0.0
        %4420 = vmatpush.xpose.msra.mxu0 0.0
        %4421 = vmatpush.xpose.msra.mxu0 0.0
        %4422 = vmatpush.xpose.msra.mxu0 0.0
        %4423 = vmatpush.xpose.msra.mxu0 0.0
        %4424 = vmatpush.xpose.msra.mxu0 0.0
        %4425 = vmatpush.xpose.msra.mxu0 0.0
        %4426 = vmatpush.xpose.msra.mxu0 0.0
        %4427 = vmatpush.xpose.msra.mxu0 %v4411
        %4428 = vmatpush.xpose.msra.mxu0 %v4409
        %4429 = vmatmul.f32.gmra.mxu0 %v4405
        %v4430 = vpop.f32.mrf.mxu0
        %v4431 = vadd.f32 %v4278, %v4430
        %4432 = vmatmul.f32.gmra.mxu0 %v4407
        %v4433 = vpop.f32.mrf.mxu0
        %v4434 = vadd.f32 %v4279, %v4433
        %4435 = vdwg.mxu0
        %v4436 = vsel %vm1012, %v4314, -inf
        %4437 = vmax.xlane.f32.xlu0 %v4436
        %v4438 = vpop.xlane.xlu0 %4437
        %v4439 = vsel %vm1012, %v4317, -inf
        %4440 = vmax.xlane.f32.xlu0 %v4439
        %v4441 = vpop.xlane.xlu0 %4440
        %v4442 = vsel %vm1012, %v4353, -inf
        %4443 = vmax.xlane.f32.xlu0 %v4442
        %v4444 = vpop.xlane.xlu0 %4443
        %v4445 = vsel %vm1012, %v4356, -inf
        %4446 = vmax.xlane.f32.xlu0 %v4445
        %v4447 = vpop.xlane.xlu0 %4446
        %v4448 = vsel %vm1012, %v4392, -inf
        %4449 = vmax.xlane.f32.xlu0 %v4448
        %v4450 = vpop.xlane.xlu0 %4449
        %v4451 = vsel %vm1012, %v4395, -inf
        %4452 = vmax.xlane.f32.xlu0 %v4451
        %v4453 = vpop.xlane.xlu0 %4452
        %v4454 = vsel %vm1012, %v4431, -inf
        %4455 = vmax.xlane.f32.xlu0 %v4454
        %v4456 = vpop.xlane.xlu0 %4455
        %v4457 = vsel %vm1012, %v4434, -inf
        %4458 = vmax.xlane.f32.xlu0 %v4457
        %v4459 = vpop.xlane.xlu0 %4458
        %v4460 = vsub.f32 %v4314, %v4438
        %v4461 = vsub.f32 %v4317, %v4441
        %v4462 = vsub.f32 %v4353, %v4444
        %v4463 = vsub.f32 %v4356, %v4447
        %v4464 = vsub.f32 %v4392, %v4450
        %v4465 = vsub.f32 %v4395, %v4453
        %v4466 = vsub.f32 %v4431, %v4456
        %v4467 = vsub.f32 %v4434, %v4459
        %v4468 = vmul.f32 %v4460, 1.442695
        %v4469 = vpow.pop %v4468
        %v4470 = vmul.f32 %v4461, 1.442695
        %v4471 = vpow.pop %v4470
        %v4472 = vmul.f32 %v4462, 1.442695
        %v4473 = vpow.pop %v4472
        %v4474 = vmul.f32 %v4463, 1.442695
        %v4475 = vpow.pop %v4474
        %v4476 = vmul.f32 %v4464, 1.442695
        %v4477 = vpow.pop %v4476
        %v4478 = vmul.f32 %v4465, 1.442695
        %v4479 = vpow.pop %v4478
        %v4480 = vmul.f32 %v4466, 1.442695
        %v4481 = vpow.pop %v4480
        %v4482 = vmul.f32 %v4467, 1.442695
        %v4483 = vpow.pop %v4482
        %v4484 = vsel %vm1012, %v4469, 0.0
        %4485 = vadd.xlane.f32.xlu0 %v4484
        %v4486 = vpop.xlane.xlu0 %4485
        %v4487 = vsel %vm1012, %v4471, 0.0
        %4488 = vadd.xlane.f32.xlu0 %v4487
        %v4489 = vpop.xlane.xlu0 %4488
        %v4490 = vsel %vm1012, %v4473, 0.0
        %4491 = vadd.xlane.f32.xlu0 %v4490
        %v4492 = vpop.xlane.xlu0 %4491
        %v4493 = vsel %vm1012, %v4475, 0.0
        %4494 = vadd.xlane.f32.xlu0 %v4493
        %v4495 = vpop.xlane.xlu0 %4494
        %v4496 = vsel %vm1012, %v4477, 0.0
        %4497 = vadd.xlane.f32.xlu0 %v4496
        %v4498 = vpop.xlane.xlu0 %4497
        %v4499 = vsel %vm1012, %v4479, 0.0
        %4500 = vadd.xlane.f32.xlu0 %v4499
        %v4501 = vpop.xlane.xlu0 %4500
        %v4502 = vsel %vm1012, %v4481, 0.0
        %4503 = vadd.xlane.f32.xlu0 %v4502
        %v4504 = vpop.xlane.xlu0 %4503
        %v4505 = vsel %vm1012, %v4483, 0.0
        %4506 = vadd.xlane.f32.xlu0 %v4505
        %v4507 = vpop.xlane.xlu0 %4506
        %v4508 = vrcp.pop %v4486
        %v4509 = vrcp.pop %v4489
        %v4510 = vrcp.pop %v4492
        %v4511 = vrcp.pop %v4495
        %v4512 = vrcp.pop %v4498
        %v4513 = vrcp.pop %v4501
        %v4514 = vrcp.pop %v4504
        %v4515 = vrcp.pop %v4507
        %v4516 = vmul.f32 %v4469, %v4508
        %v4517 = vmul.f32 %v4471, %v4509
        %v4518 = vmul.f32 %v4473, %v4510
        %v4519 = vmul.f32 %v4475, %v4511
        %v4520 = vmul.f32 %v4477, %v4512
        %v4521 = vmul.f32 %v4479, %v4513
        %v4522 = vmul.f32 %v4481, %v4514
        %v4523 = vmul.f32 %v4483, %v4515
        %4524 = vrot.lane.b32.xlu0 %v3454, 48
        %v4525 = vpop.permute.xlu0 %4524
        %4526 = vrot.lane.b32.xlu0 %v3457, 48
        %v4527 = vpop.permute.xlu0 %4526
        %v4531 = vsel %vm1012, %v4516, 0
        %v4534 = vsel %vm1012, %v4517, 0
        %4536 = vmatpush.msra.mxu0 0.0
        %4537 = vmatpush.msra.mxu0 0.0
        %4538 = vmatpush.msra.mxu0 0.0
        %4539 = vmatpush.msra.mxu0 0.0
        %4540 = vmatpush.msra.mxu0 0.0
        %4541 = vmatpush.msra.mxu0 0.0
        %4542 = vmatpush.msra.mxu0 0.0
        %4543 = vmatpush.msra.mxu0 0.0
        %4544 = vmatpush.msra.mxu0 0.0
        %4545 = vmatpush.msra.mxu0 0.0
        %4546 = vmatpush.msra.mxu0 0.0
        %4547 = vmatpush.msra.mxu0 0.0
        %4548 = vmatpush.msra.mxu0 0.0
        %4549 = vmatpush.msra.mxu0 0.0
        %4550 = vmatpush.msra.mxu0 %v4527
        %4551 = vmatpush.msra.mxu0 %v4525
        %4552 = vmatmul.f32.gmra.mxu0 %v4531
        %v4553 = vpop.f32.mrf.mxu0
        %v4554 = vadd.f32 0.0, %v4553
        %4555 = vmatmul.f32.gmra.mxu0 %v4534
        %v4556 = vpop.f32.mrf.mxu0
        %v4557 = vadd.f32 0.0, %v4556
        %4558 = vdwg.mxu0
        %4559 = vrot.lane.b32.xlu0 %v3460, 48
        %v4560 = vpop.permute.xlu0 %4559
        %4561 = vrot.lane.b32.xlu0 %v3463, 48
        %v4562 = vpop.permute.xlu0 %4561
        %v4566 = vsel %vm1012, %v4518, 0
        %v4569 = vsel %vm1012, %v4519, 0
        %4571 = vmatpush.msra.mxu0 0.0
        %4572 = vmatpush.msra.mxu0 0.0
        %4573 = vmatpush.msra.mxu0 0.0
        %4574 = vmatpush.msra.mxu0 0.0
        %4575 = vmatpush.msra.mxu0 0.0
        %4576 = vmatpush.msra.mxu0 0.0
        %4577 = vmatpush.msra.mxu0 0.0
        %4578 = vmatpush.msra.mxu0 0.0
        %4579 = vmatpush.msra.mxu0 0.0
        %4580 = vmatpush.msra.mxu0 0.0
        %4581 = vmatpush.msra.mxu0 0.0
        %4582 = vmatpush.msra.mxu0 0.0
        %4583 = vmatpush.msra.mxu0 0.0
        %4584 = vmatpush.msra.mxu0 0.0
        %4585 = vmatpush.msra.mxu0 %v4562
        %4586 = vmatpush.msra.mxu0 %v4560
        %4587 = vmatmul.f32.gmra.mxu0 %v4566
        %v4588 = vpop.f32.mrf.mxu0
        %v4589 = vadd.f32 0.0, %v4588
        %4590 = vmatmul.f32.gmra.mxu0 %v4569
        %v4591 = vpop.f32.mrf.mxu0
        %v4592 = vadd.f32 0.0, %v4591
        %4593 = vdwg.mxu0
        %4594 = vrot.lane.b32.xlu0 %v3466, 48
        %v4595 = vpop.permute.xlu0 %4594
        %4596 = vrot.lane.b32.xlu0 %v3469, 48
        %v4597 = vpop.permute.xlu0 %4596
        %v4601 = vsel %vm1012, %v4520, 0
        %v4604 = vsel %vm1012, %v4521, 0
        %4606 = vmatpush.msra.mxu0 0.0
        %4607 = vmatpush.msra.mxu0 0.0
        %4608 = vmatpush.msra.mxu0 0.0
        %4609 = vmatpush.msra.mxu0 0.0
        %4610 = vmatpush.msra.mxu0 0.0
        %4611 = vmatpush.msra.mxu0 0.0
        %4612 = vmatpush.msra.mxu0 0.0
        %4613 = vmatpush.msra.mxu0 0.0
        %4614 = vmatpush.msra.mxu0 0.0
        %4615 = vmatpush.msra.mxu0 0.0
        %4616 = vmatpush.msra.mxu0 0.0
        %4617 = vmatpush.msra.mxu0 0.0
        %4618 = vmatpush.msra.mxu0 0.0
        %4619 = vmatpush.msra.mxu0 0.0
        %4620 = vmatpush.msra.mxu0 %v4597
        %4621 = vmatpush.msra.mxu0 %v4595
        %4622 = vmatmul.f32.gmra.mxu0 %v4601
        %v4623 = vpop.f32.mrf.mxu0
        %v4624 = vadd.f32 0.0, %v4623
        %4625 = vmatmul.f32.gmra.mxu0 %v4604
        %v4626 = vpop.f32.mrf.mxu0
        %v4627 = vadd.f32 0.0, %v4626
        %4628 = vdwg.mxu0
        %4629 = vrot.lane.b32.xlu0 %v3472, 48
        %v4630 = vpop.permute.xlu0 %4629
        %4631 = vrot.lane.b32.xlu0 %v3475, 48
        %v4632 = vpop.permute.xlu0 %4631
        %v4636 = vsel %vm1012, %v4522, 0
        %v4639 = vsel %vm1012, %v4523, 0
        %4641 = vmatpush.msra.mxu0 0.0
        %4642 = vmatpush.msra.mxu0 0.0
        %4643 = vmatpush.msra.mxu0 0.0
        %4644 = vmatpush.msra.mxu0 0.0
        %4645 = vmatpush.msra.mxu0 0.0
        %4646 = vmatpush.msra.mxu0 0.0
        %4647 = vmatpush.msra.mxu0 0.0
        %4648 = vmatpush.msra.mxu0 0.0
        %4649 = vmatpush.msra.mxu0 0.0
        %4650 = vmatpush.msra.mxu0 0.0
        %4651 = vmatpush.msra.mxu0 0.0
        %4652 = vmatpush.msra.mxu0 0.0
        %4653 = vmatpush.msra.mxu0 0.0
        %4654 = vmatpush.msra.mxu0 0.0
        %4655 = vmatpush.msra.mxu0 %v4632
        %4656 = vmatpush.msra.mxu0 %v4630
        %4657 = vmatmul.f32.gmra.mxu0 %v4636
        %v4658 = vpop.f32.mrf.mxu0
        %v4659 = vadd.f32 0.0, %v4658
        %4660 = vmatmul.f32.gmra.mxu0 %v4639
        %v4661 = vpop.f32.mrf.mxu0
        %v4662 = vadd.f32 0.0, %v4661
        %4663 = vdwg.mxu0
        %s4664 = scalar_lea.vmem [#allocation2], 448
        %v4665 = vld [vmem:[%s4664] sm:$0xff]
        %v4666 = vld [vmem:[%s4664 + $0x8] sm:$0xff]
        %v4667 = vld [vmem:[%s4664 + $0x10] sm:$0xff]
        %v4668 = vld [vmem:[%s4664 + $0x18] sm:$0xff]
        %v4669 = vld [vmem:[%s4664 + $0x20] sm:$0xff]
        %v4670 = vld [vmem:[%s4664 + $0x28] sm:$0xff]
        %v4671 = vld [vmem:[%s4664 + $0x30] sm:$0xff]
        %v4672 = vld [vmem:[%s4664 + $0x38] sm:$0xff]
        %4673 = vrot.lane.b32.xlu0 %v3477, 104
        %v4674 = vpop.permute.xlu0 %4673
        %4675 = vrot.lane.b32.xlu0 %v3478, 104
        %v4676 = vpop.permute.xlu0 %4675
        %4677 = vrot.lane.b32.xlu0 %v3454, 72
        %v4678 = vpop.permute.xlu0 %4677
        %4679 = vrot.lane.b32.xlu0 %v3457, 72
        %v4680 = vpop.permute.xlu0 %4679
        %v4681 = vsel %vm861, %v4674, 0
        %v4683 = vsel %vm861, %v4676, 0
        %v4685 = vsel %vm861, %v4678, 0
        %v4687 = vsel %vm861, %v4680, 0
        %4689 = vmatpush.xpose.msra.mxu0 0.0
        %4690 = vmatpush.xpose.msra.mxu0 0.0
        %4691 = vmatpush.xpose.msra.mxu0 0.0
        %4692 = vmatpush.xpose.msra.mxu0 0.0
        %4693 = vmatpush.xpose.msra.mxu0 0.0
        %4694 = vmatpush.xpose.msra.mxu0 0.0
        %4695 = vmatpush.xpose.msra.mxu0 0.0
        %4696 = vmatpush.xpose.msra.mxu0 0.0
        %4697 = vmatpush.xpose.msra.mxu0 0.0
        %4698 = vmatpush.xpose.msra.mxu0 0.0
        %4699 = vmatpush.xpose.msra.mxu0 0.0
        %4700 = vmatpush.xpose.msra.mxu0 0.0
        %4701 = vmatpush.xpose.msra.mxu0 0.0
        %4702 = vmatpush.xpose.msra.mxu0 0.0
        %4703 = vmatpush.xpose.msra.mxu0 %v4687
        %4704 = vmatpush.xpose.msra.mxu0 %v4685
        %4705 = vmatmul.f32.gmra.mxu0 %v4681
        %v4706 = vpop.f32.mrf.mxu0
        %v4707 = vadd.f32 %v4665, %v4706
        %4708 = vmatmul.f32.gmra.mxu0 %v4683
        %v4709 = vpop.f32.mrf.mxu0
        %v4710 = vadd.f32 %v4666, %v4709
        %4711 = vdwg.mxu0
        %4712 = vrot.lane.b32.xlu0 %v3479, 104
        %v4713 = vpop.permute.xlu0 %4712
        %4714 = vrot.lane.b32.xlu0 %v3480, 104
        %v4715 = vpop.permute.xlu0 %4714
        %4716 = vrot.lane.b32.xlu0 %v3460, 72
        %v4717 = vpop.permute.xlu0 %4716
        %4718 = vrot.lane.b32.xlu0 %v3463, 72
        %v4719 = vpop.permute.xlu0 %4718
        %v4720 = vsel %vm861, %v4713, 0
        %v4722 = vsel %vm861, %v4715, 0
        %v4724 = vsel %vm861, %v4717, 0
        %v4726 = vsel %vm861, %v4719, 0
        %4728 = vmatpush.xpose.msra.mxu0 0.0
        %4729 = vmatpush.xpose.msra.mxu0 0.0
        %4730 = vmatpush.xpose.msra.mxu0 0.0
        %4731 = vmatpush.xpose.msra.mxu0 0.0
        %4732 = vmatpush.xpose.msra.mxu0 0.0
        %4733 = vmatpush.xpose.msra.mxu0 0.0
        %4734 = vmatpush.xpose.msra.mxu0 0.0
        %4735 = vmatpush.xpose.msra.mxu0 0.0
        %4736 = vmatpush.xpose.msra.mxu0 0.0
        %4737 = vmatpush.xpose.msra.mxu0 0.0
        %4738 = vmatpush.xpose.msra.mxu0 0.0
        %4739 = vmatpush.xpose.msra.mxu0 0.0
        %4740 = vmatpush.xpose.msra.mxu0 0.0
        %4741 = vmatpush.xpose.msra.mxu0 0.0
        %4742 = vmatpush.xpose.msra.mxu0 %v4726
        %4743 = vmatpush.xpose.msra.mxu0 %v4724
        %4744 = vmatmul.f32.gmra.mxu0 %v4720
        %v4745 = vpop.f32.mrf.mxu0
        %v4746 = vadd.f32 %v4667, %v4745
        %4747 = vmatmul.f32.gmra.mxu0 %v4722
        %v4748 = vpop.f32.mrf.mxu0
        %v4749 = vadd.f32 %v4668, %v4748
        %4750 = vdwg.mxu0
        %4751 = vrot.lane.b32.xlu0 %v3481, 104
        %v4752 = vpop.permute.xlu0 %4751
        %4753 = vrot.lane.b32.xlu0 %v3482, 104
        %v4754 = vpop.permute.xlu0 %4753
        %4755 = vrot.lane.b32.xlu0 %v3466, 72
        %v4756 = vpop.permute.xlu0 %4755
        %4757 = vrot.lane.b32.xlu0 %v3469, 72
        %v4758 = vpop.permute.xlu0 %4757
        %v4759 = vsel %vm861, %v4752, 0
        %v4761 = vsel %vm861, %v4754, 0
        %v4763 = vsel %vm861, %v4756, 0
        %v4765 = vsel %vm861, %v4758, 0
        %4767 = vmatpush.xpose.msra.mxu0 0.0
        %4768 = vmatpush.xpose.msra.mxu0 0.0
        %4769 = vmatpush.xpose.msra.mxu0 0.0
        %4770 = vmatpush.xpose.msra.mxu0 0.0
        %4771 = vmatpush.xpose.msra.mxu0 0.0
        %4772 = vmatpush.xpose.msra.mxu0 0.0
        %4773 = vmatpush.xpose.msra.mxu0 0.0
        %4774 = vmatpush.xpose.msra.mxu0 0.0
        %4775 = vmatpush.xpose.msra.mxu0 0.0
        %4776 = vmatpush.xpose.msra.mxu0 0.0
        %4777 = vmatpush.xpose.msra.mxu0 0.0
        %4778 = vmatpush.xpose.msra.mxu0 0.0
        %4779 = vmatpush.xpose.msra.mxu0 0.0
        %4780 = vmatpush.xpose.msra.mxu0 0.0
        %4781 = vmatpush.xpose.msra.mxu0 %v4765
        %4782 = vmatpush.xpose.msra.mxu0 %v4763
        %4783 = vmatmul.f32.gmra.mxu0 %v4759
        %v4784 = vpop.f32.mrf.mxu0
        %v4785 = vadd.f32 %v4669, %v4784
        %4786 = vmatmul.f32.gmra.mxu0 %v4761
        %v4787 = vpop.f32.mrf.mxu0
        %v4788 = vadd.f32 %v4670, %v4787
        %4789 = vdwg.mxu0
        %4790 = vrot.lane.b32.xlu0 %v3483, 104
        %v4791 = vpop.permute.xlu0 %4790
        %4792 = vrot.lane.b32.xlu0 %v3484, 104
        %v4793 = vpop.permute.xlu0 %4792
        %4794 = vrot.lane.b32.xlu0 %v3472, 72
        %v4795 = vpop.permute.xlu0 %4794
        %4796 = vrot.lane.b32.xlu0 %v3475, 72
        %v4797 = vpop.permute.xlu0 %4796
        %v4798 = vsel %vm861, %v4791, 0
        %v4800 = vsel %vm861, %v4793, 0
        %v4802 = vsel %vm861, %v4795, 0
        %v4804 = vsel %vm861, %v4797, 0
        %4806 = vmatpush.xpose.msra.mxu0 0.0
        %4807 = vmatpush.xpose.msra.mxu0 0.0
        %4808 = vmatpush.xpose.msra.mxu0 0.0
        %4809 = vmatpush.xpose.msra.mxu0 0.0
        %4810 = vmatpush.xpose.msra.mxu0 0.0
        %4811 = vmatpush.xpose.msra.mxu0 0.0
        %4812 = vmatpush.xpose.msra.mxu0 0.0
        %4813 = vmatpush.xpose.msra.mxu0 0.0
        %4814 = vmatpush.xpose.msra.mxu0 0.0
        %4815 = vmatpush.xpose.msra.mxu0 0.0
        %4816 = vmatpush.xpose.msra.mxu0 0.0
        %4817 = vmatpush.xpose.msra.mxu0 0.0
        %4818 = vmatpush.xpose.msra.mxu0 0.0
        %4819 = vmatpush.xpose.msra.mxu0 0.0
        %4820 = vmatpush.xpose.msra.mxu0 %v4804
        %4821 = vmatpush.xpose.msra.mxu0 %v4802
        %4822 = vmatmul.f32.gmra.mxu0 %v4798
        %v4823 = vpop.f32.mrf.mxu0
        %v4824 = vadd.f32 %v4671, %v4823
        %4825 = vmatmul.f32.gmra.mxu0 %v4800
        %v4826 = vpop.f32.mrf.mxu0
        %v4827 = vadd.f32 %v4672, %v4826
        %4828 = vdwg.mxu0
        %v4829 = vsel %vm1012, %v4707, -inf
        %4830 = vmax.xlane.f32.xlu0 %v4829
        %v4831 = vpop.xlane.xlu0 %4830
        %v4832 = vsel %vm1012, %v4710, -inf
        %4833 = vmax.xlane.f32.xlu0 %v4832
        %v4834 = vpop.xlane.xlu0 %4833
        %v4835 = vsel %vm1012, %v4746, -inf
        %4836 = vmax.xlane.f32.xlu0 %v4835
        %v4837 = vpop.xlane.xlu0 %4836
        %v4838 = vsel %vm1012, %v4749, -inf
        %4839 = vmax.xlane.f32.xlu0 %v4838
        %v4840 = vpop.xlane.xlu0 %4839
        %v4841 = vsel %vm1012, %v4785, -inf
        %4842 = vmax.xlane.f32.xlu0 %v4841
        %v4843 = vpop.xlane.xlu0 %4842
        %v4844 = vsel %vm1012, %v4788, -inf
        %4845 = vmax.xlane.f32.xlu0 %v4844
        %v4846 = vpop.xlane.xlu0 %4845
        %v4847 = vsel %vm1012, %v4824, -inf
        %4848 = vmax.xlane.f32.xlu0 %v4847
        %v4849 = vpop.xlane.xlu0 %4848
        %v4850 = vsel %vm1012, %v4827, -inf
        %4851 = vmax.xlane.f32.xlu0 %v4850
        %v4852 = vpop.xlane.xlu0 %4851
        %v4853 = vsub.f32 %v4707, %v4831
        %v4854 = vsub.f32 %v4710, %v4834
        %v4855 = vsub.f32 %v4746, %v4837
        %v4856 = vsub.f32 %v4749, %v4840
        %v4857 = vsub.f32 %v4785, %v4843
        %v4858 = vsub.f32 %v4788, %v4846
        %v4859 = vsub.f32 %v4824, %v4849
        %v4860 = vsub.f32 %v4827, %v4852
        %v4861 = vmul.f32 %v4853, 1.442695
        %v4862 = vpow.pop %v4861
        %v4863 = vmul.f32 %v4854, 1.442695
        %v4864 = vpow.pop %v4863
        %v4865 = vmul.f32 %v4855, 1.442695
        %v4866 = vpow.pop %v4865
        %v4867 = vmul.f32 %v4856, 1.442695
        %v4868 = vpow.pop %v4867
        %v4869 = vmul.f32 %v4857, 1.442695
        %v4870 = vpow.pop %v4869
        %v4871 = vmul.f32 %v4858, 1.442695
        %v4872 = vpow.pop %v4871
        %v4873 = vmul.f32 %v4859, 1.442695
        %v4874 = vpow.pop %v4873
        %v4875 = vmul.f32 %v4860, 1.442695
        %v4876 = vpow.pop %v4875
        %v4877 = vsel %vm1012, %v4862, 0.0
        %4878 = vadd.xlane.f32.xlu0 %v4877
        %v4879 = vpop.xlane.xlu0 %4878
        %v4880 = vsel %vm1012, %v4864, 0.0
        %4881 = vadd.xlane.f32.xlu0 %v4880
        %v4882 = vpop.xlane.xlu0 %4881
        %v4883 = vsel %vm1012, %v4866, 0.0
        %4884 = vadd.xlane.f32.xlu0 %v4883
        %v4885 = vpop.xlane.xlu0 %4884
        %v4886 = vsel %vm1012, %v4868, 0.0
        %4887 = vadd.xlane.f32.xlu0 %v4886
        %v4888 = vpop.xlane.xlu0 %4887
        %v4889 = vsel %vm1012, %v4870, 0.0
        %4890 = vadd.xlane.f32.xlu0 %v4889
        %v4891 = vpop.xlane.xlu0 %4890
        %v4892 = vsel %vm1012, %v4872, 0.0
        %4893 = vadd.xlane.f32.xlu0 %v4892
        %v4894 = vpop.xlane.xlu0 %4893
        %v4895 = vsel %vm1012, %v4874, 0.0
        %4896 = vadd.xlane.f32.xlu0 %v4895
        %v4897 = vpop.xlane.xlu0 %4896
        %v4898 = vsel %vm1012, %v4876, 0.0
        %4899 = vadd.xlane.f32.xlu0 %v4898
        %v4900 = vpop.xlane.xlu0 %4899
        %v4901 = vrcp.pop %v4879
        %v4902 = vrcp.pop %v4882
        %v4903 = vrcp.pop %v4885
        %v4904 = vrcp.pop %v4888
        %v4905 = vrcp.pop %v4891
        %v4906 = vrcp.pop %v4894
        %v4907 = vrcp.pop %v4897
        %v4908 = vrcp.pop %v4900
        %v4909 = vmul.f32 %v4862, %v4901
        %v4910 = vmul.f32 %v4864, %v4902
        %v4911 = vmul.f32 %v4866, %v4903
        %v4912 = vmul.f32 %v4868, %v4904
        %v4913 = vmul.f32 %v4870, %v4905
        %v4914 = vmul.f32 %v4872, %v4906
        %v4915 = vmul.f32 %v4874, %v4907
        %v4916 = vmul.f32 %v4876, %v4908
        %4917 = vrot.lane.b32.xlu0 %v3454, 40
        %v4918 = vpop.permute.xlu0 %4917
        %4919 = vrot.lane.b32.xlu0 %v3457, 40
        %v4920 = vpop.permute.xlu0 %4919
        %v4924 = vsel %vm1012, %v4909, 0
        %v4927 = vsel %vm1012, %v4910, 0
        %4929 = vmatpush.msra.mxu0 0.0
        %4930 = vmatpush.msra.mxu0 0.0
        %4931 = vmatpush.msra.mxu0 0.0
        %4932 = vmatpush.msra.mxu0 0.0
        %4933 = vmatpush.msra.mxu0 0.0
        %4934 = vmatpush.msra.mxu0 0.0
        %4935 = vmatpush.msra.mxu0 0.0
        %4936 = vmatpush.msra.mxu0 0.0
        %4937 = vmatpush.msra.mxu0 0.0
        %4938 = vmatpush.msra.mxu0 0.0
        %4939 = vmatpush.msra.mxu0 0.0
        %4940 = vmatpush.msra.mxu0 0.0
        %4941 = vmatpush.msra.mxu0 0.0
        %4942 = vmatpush.msra.mxu0 0.0
        %4943 = vmatpush.msra.mxu0 %v4920
        %4944 = vmatpush.msra.mxu0 %v4918
        %4945 = vmatmul.f32.gmra.mxu0 %v4924
        %v4946 = vpop.f32.mrf.mxu0
        %v4947 = vadd.f32 0.0, %v4946
        %4948 = vmatmul.f32.gmra.mxu0 %v4927
        %v4949 = vpop.f32.mrf.mxu0
        %v4950 = vadd.f32 0.0, %v4949
        %4951 = vdwg.mxu0
        %4952 = vrot.lane.b32.xlu0 %v3460, 40
        %v4953 = vpop.permute.xlu0 %4952
        %4954 = vrot.lane.b32.xlu0 %v3463, 40
        %v4955 = vpop.permute.xlu0 %4954
        %v4959 = vsel %vm1012, %v4911, 0
        %v4962 = vsel %vm1012, %v4912, 0
        %4964 = vmatpush.msra.mxu0 0.0
        %4965 = vmatpush.msra.mxu0 0.0
        %4966 = vmatpush.msra.mxu0 0.0
        %4967 = vmatpush.msra.mxu0 0.0
        %4968 = vmatpush.msra.mxu0 0.0
        %4969 = vmatpush.msra.mxu0 0.0
        %4970 = vmatpush.msra.mxu0 0.0
        %4971 = vmatpush.msra.mxu0 0.0
        %4972 = vmatpush.msra.mxu0 0.0
        %4973 = vmatpush.msra.mxu0 0.0
        %4974 = vmatpush.msra.mxu0 0.0
        %4975 = vmatpush.msra.mxu0 0.0
        %4976 = vmatpush.msra.mxu0 0.0
        %4977 = vmatpush.msra.mxu0 0.0
        %4978 = vmatpush.msra.mxu0 %v4955
        %4979 = vmatpush.msra.mxu0 %v4953
        %4980 = vmatmul.f32.gmra.mxu0 %v4959
        %v4981 = vpop.f32.mrf.mxu0
        %v4982 = vadd.f32 0.0, %v4981
        %4983 = vmatmul.f32.gmra.mxu0 %v4962
        %v4984 = vpop.f32.mrf.mxu0
        %v4985 = vadd.f32 0.0, %v4984
        %4986 = vdwg.mxu0
        %4987 = vrot.lane.b32.xlu0 %v3466, 40
        %v4988 = vpop.permute.xlu0 %4987
        %4989 = vrot.lane.b32.xlu0 %v3469, 40
        %v4990 = vpop.permute.xlu0 %4989
        %v4994 = vsel %vm1012, %v4913, 0
        %v4997 = vsel %vm1012, %v4914, 0
        %4999 = vmatpush.msra.mxu0 0.0
        %5000 = vmatpush.msra.mxu0 0.0
        %5001 = vmatpush.msra.mxu0 0.0
        %5002 = vmatpush.msra.mxu0 0.0
        %5003 = vmatpush.msra.mxu0 0.0
        %5004 = vmatpush.msra.mxu0 0.0
        %5005 = vmatpush.msra.mxu0 0.0
        %5006 = vmatpush.msra.mxu0 0.0
        %5007 = vmatpush.msra.mxu0 0.0
        %5008 = vmatpush.msra.mxu0 0.0
        %5009 = vmatpush.msra.mxu0 0.0
        %5010 = vmatpush.msra.mxu0 0.0
        %5011 = vmatpush.msra.mxu0 0.0
        %5012 = vmatpush.msra.mxu0 0.0
        %5013 = vmatpush.msra.mxu0 %v4990
        %5014 = vmatpush.msra.mxu0 %v4988
        %5015 = vmatmul.f32.gmra.mxu0 %v4994
        %v5016 = vpop.f32.mrf.mxu0
        %v5017 = vadd.f32 0.0, %v5016
        %5018 = vmatmul.f32.gmra.mxu0 %v4997
        %v5019 = vpop.f32.mrf.mxu0
        %v5020 = vadd.f32 0.0, %v5019
        %5021 = vdwg.mxu0
        %5022 = vrot.lane.b32.xlu0 %v3472, 40
        %v5023 = vpop.permute.xlu0 %5022
        %5024 = vrot.lane.b32.xlu0 %v3475, 40
        %v5025 = vpop.permute.xlu0 %5024
        %v5029 = vsel %vm1012, %v4915, 0
        %v5032 = vsel %vm1012, %v4916, 0
        %5034 = vmatpush.msra.mxu0 0.0
        %5035 = vmatpush.msra.mxu0 0.0
        %5036 = vmatpush.msra.mxu0 0.0
        %5037 = vmatpush.msra.mxu0 0.0
        %5038 = vmatpush.msra.mxu0 0.0
        %5039 = vmatpush.msra.mxu0 0.0
        %5040 = vmatpush.msra.mxu0 0.0
        %5041 = vmatpush.msra.mxu0 0.0
        %5042 = vmatpush.msra.mxu0 0.0
        %5043 = vmatpush.msra.mxu0 0.0
        %5044 = vmatpush.msra.mxu0 0.0
        %5045 = vmatpush.msra.mxu0 0.0
        %5046 = vmatpush.msra.mxu0 0.0
        %5047 = vmatpush.msra.mxu0 0.0
        %5048 = vmatpush.msra.mxu0 %v5025
        %5049 = vmatpush.msra.mxu0 %v5023
        %5050 = vmatmul.f32.gmra.mxu0 %v5029
        %v5051 = vpop.f32.mrf.mxu0
        %v5052 = vadd.f32 0.0, %v5051
        %5053 = vmatmul.f32.gmra.mxu0 %v5032
        %v5054 = vpop.f32.mrf.mxu0
        %v5055 = vadd.f32 0.0, %v5054
        %5056 = vdwg.mxu0
        %5065 = vrot.lane.b32.xlu0 %v4161, 8
        %v5066 = vpop.permute.xlu0 %5065
        %5067 = vrot.lane.b32.xlu0 %v4164, 8
        %v5068 = vpop.permute.xlu0 %5067
        %5069 = vrot.lane.b32.xlu0 %v4196, 8
        %v5070 = vpop.permute.xlu0 %5069
        %5071 = vrot.lane.b32.xlu0 %v4199, 8
        %v5072 = vpop.permute.xlu0 %5071
        %5073 = vrot.lane.b32.xlu0 %v4231, 8
        %v5074 = vpop.permute.xlu0 %5073
        %5075 = vrot.lane.b32.xlu0 %v4234, 8
        %v5076 = vpop.permute.xlu0 %5075
        %5077 = vrot.lane.b32.xlu0 %v4266, 8
        %v5078 = vpop.permute.xlu0 %5077
        %5079 = vrot.lane.b32.xlu0 %v4269, 8
        %v5080 = vpop.permute.xlu0 %5079
        %5097 = vrot.lane.b32.xlu0 %v4554, 16
        %v5098 = vpop.permute.xlu0 %5097
        %5099 = vrot.lane.b32.xlu0 %v4557, 16
        %v5100 = vpop.permute.xlu0 %5099
        %5101 = vrot.lane.b32.xlu0 %v4589, 16
        %v5102 = vpop.permute.xlu0 %5101
        %5103 = vrot.lane.b32.xlu0 %v4592, 16
        %v5104 = vpop.permute.xlu0 %5103
        %5105 = vrot.lane.b32.xlu0 %v4624, 16
        %v5106 = vpop.permute.xlu0 %5105
        %5107 = vrot.lane.b32.xlu0 %v4627, 16
        %v5108 = vpop.permute.xlu0 %5107
        %5109 = vrot.lane.b32.xlu0 %v4659, 16
        %v5110 = vpop.permute.xlu0 %5109
        %5111 = vrot.lane.b32.xlu0 %v4662, 16
        %v5112 = vpop.permute.xlu0 %5111
        %5129 = vrot.lane.b32.xlu0 %v4947, 24
        %v5130 = vpop.permute.xlu0 %5129
        %5131 = vrot.lane.b32.xlu0 %v4950, 24
        %v5132 = vpop.permute.xlu0 %5131
        %5133 = vrot.lane.b32.xlu0 %v4982, 24
        %v5134 = vpop.permute.xlu0 %5133
        %5135 = vrot.lane.b32.xlu0 %v4985, 24
        %v5136 = vpop.permute.xlu0 %5135
        %5137 = vrot.lane.b32.xlu0 %v5017, 24
        %v5138 = vpop.permute.xlu0 %5137
        %5139 = vrot.lane.b32.xlu0 %v5020, 24
        %v5140 = vpop.permute.xlu0 %5139
        %5141 = vrot.lane.b32.xlu0 %v5052, 24
        %v5142 = vpop.permute.xlu0 %5141
        %5143 = vrot.lane.b32.xlu0 %v5055, 24
        %v5144 = vpop.permute.xlu0 %5143
        %v5153 = vsel %vm861, %v3768, %v5066
        %v5154 = vsel %vm861, %v3771, %v5068
        %v5155 = vsel %vm861, %v3803, %v5070
        %v5156 = vsel %vm861, %v3806, %v5072
        %v5157 = vsel %vm861, %v3838, %v5074
        %v5158 = vsel %vm861, %v3841, %v5076
        %v5159 = vsel %vm861, %v3873, %v5078
        %v5160 = vsel %vm861, %v3876, %v5080
        %v5161 = vsel %vm1012, %v5153, %v5098
        %v5162 = vsel %vm1012, %v5154, %v5100
        %v5163 = vsel %vm1012, %v5155, %v5102
        %v5164 = vsel %vm1012, %v5156, %v5104
        %v5165 = vsel %vm1012, %v5157, %v5106
        %v5166 = vsel %vm1012, %v5158, %v5108
        %v5167 = vsel %vm1012, %v5159, %v5110
        %v5168 = vsel %vm1012, %v5160, %v5112
        %v5169 = vsel %vm2532, %v5161, %v5130
        %v5170 = vsel %vm2532, %v5162, %v5132
        %v5171 = vsel %vm2532, %v5163, %v5134
        %v5172 = vsel %vm2532, %v5164, %v5136
        %v5173 = vsel %vm2532, %v5165, %v5138
        %v5174 = vsel %vm2532, %v5166, %v5140
        %v5175 = vsel %vm2532, %v5167, %v5142
        %v5176 = vsel %vm2532, %v5168, %v5144
        %v5178 = vperm.slane %v3416, 0
        %v5181 = vsel %vm495, %v5169, 0
        %v5184 = vsel %vm495, %v5170, 0
        %v5187 = vsel %vm495, %v5171, 0
        %v5190 = vsel %vm495, %v5172, 0
        %v5193 = vsel %vm495, %v5173, 0
        %v5196 = vsel %vm495, %v5174, 0
        %v5199 = vsel %vm495, %v5175, 0
        %v5202 = vsel %vm495, %v5176, 0
        %5204 = vmatpush.msra.mxu0 0.0
        %5205 = vmatpush.msra.mxu0 0.0
        %5206 = vmatpush.msra.mxu0 0.0
        %5207 = vmatpush.msra.mxu0 0.0
        %5208 = vmatpush.msra.mxu0 0.0
        %5209 = vmatpush.msra.mxu0 0.0
        %5210 = vmatpush.msra.mxu0 0.0
        %5211 = vmatpush.msra.mxu0 0.0
        %5212 = vmatpush.msra.mxu0 0.0
        %5213 = vmatpush.msra.mxu0 0.0
        %5214 = vmatpush.msra.mxu0 0.0
        %5215 = vmatpush.msra.mxu0 0.0
        %5216 = vmatpush.msra.mxu0 %v3414
        %5217 = vmatpush.msra.mxu0 %v3413
        %5218 = vmatpush.msra.mxu0 %v3412
        %5219 = vmatpush.msra.mxu0 %v3411
        %5220 = vmatmul.f32.gmra.mxu0 %v5181
        %v5221 = vpop.f32.mrf.mxu0
        %v5222 = vadd.f32 %v5178, %v5221
        %5223 = vmatmul.f32.gmra.mxu0 %v5184
        %v5224 = vpop.f32.mrf.mxu0
        %v5225 = vadd.f32 %v5178, %v5224
        %5226 = vmatmul.f32.gmra.mxu0 %v5187
        %v5227 = vpop.f32.mrf.mxu0
        %v5228 = vadd.f32 %v5178, %v5227
        %5229 = vmatmul.f32.gmra.mxu0 %v5190
        %v5230 = vpop.f32.mrf.mxu0
        %v5231 = vadd.f32 %v5178, %v5230
        %5232 = vmatmul.f32.gmra.mxu0 %v5193
        %v5233 = vpop.f32.mrf.mxu0
        %v5234 = vadd.f32 %v5178, %v5233
        %5235 = vmatmul.f32.gmra.mxu0 %v5196
        %v5236 = vpop.f32.mrf.mxu0
        %v5237 = vadd.f32 %v5178, %v5236
        %5238 = vmatmul.f32.gmra.mxu0 %v5199
        %v5239 = vpop.f32.mrf.mxu0
        %v5240 = vadd.f32 %v5178, %v5239
        %5241 = vmatmul.f32.gmra.mxu0 %v5202
        %v5242 = vpop.f32.mrf.mxu0
        %v5243 = vadd.f32 %v5178, %v5242
        %5244 = vdwg.mxu0
        %v5247 = vrot.slane %v5222, 4
        %v5248 = vrot.slane %v5225, 4
        %v5253 = vrot.slane %v5228, 4
        %v5254 = vrot.slane %v5231, 4
        %s5255 = scalar_lea.vmem [#allocation1], 1
        %5256 = vst [vmem:[%s5255] ss:$2 sm:$0xff] %v5228
        %v5257 = vld.sshfl [vmem:[#allocation1] sm:$0xff pattern:$0x75316420]
        %s5258 = scalar_lea.vmem [#allocation1], 17
        %5259 = vst [vmem:[%s5258] ss:$2 sm:$0xff] %v5253
        %v5260 = vld.sshfl [vmem:[#allocation1 + $0x10] sm:$0xff pattern:$0x75316420]
        %s5261 = scalar_lea.vmem [#allocation1], 33
        %5262 = vst [vmem:[%s5261] ss:$2 sm:$0xff] %v5231
        %v5263 = vld.sshfl [vmem:[#allocation1 + $0x20] sm:$0xff pattern:$0x75316420]
        %s5264 = scalar_lea.vmem [#allocation1], 49
        %5265 = vst [vmem:[%s5264] ss:$2 sm:$0xff] %v5254
        %v5266 = vld.sshfl [vmem:[#allocation1 + $0x30] sm:$0xff pattern:$0x75316420]
        %v5271 = vsel %vm2635, %v5222, %v5257
        %v5272 = vsel %vm2635, %v5247, %v5260
        %v5273 = vsel %vm2635, %v5225, %v5263
        %v5274 = vsel %vm2635, %v5248, %v5266
        %v5277 = vrot.slane %v5234, 4
        %v5278 = vrot.slane %v5237, 4
        %v5283 = vrot.slane %v5240, 4
        %v5284 = vrot.slane %v5243, 4
        %s5285 = scalar_lea.vmem [#allocation1], 1
        %5286 = vst [vmem:[%s5285] ss:$2 sm:$0xff] %v5240
        %v5287 = vld.sshfl [vmem:[#allocation1] sm:$0xff pattern:$0x75316420]
        %s5288 = scalar_lea.vmem [#allocation1], 17
        %5289 = vst [vmem:[%s5288] ss:$2 sm:$0xff] %v5283
        %v5290 = vld.sshfl [vmem:[#allocation1 + $0x10] sm:$0xff pattern:$0x75316420]
        %s5291 = scalar_lea.vmem [#allocation1], 33
        %5292 = vst [vmem:[%s5291] ss:$2 sm:$0xff] %v5243
        %v5293 = vld.sshfl [vmem:[#allocation1 + $0x20] sm:$0xff pattern:$0x75316420]
        %s5294 = scalar_lea.vmem [#allocation1], 49
        %5295 = vst [vmem:[%s5294] ss:$2 sm:$0xff] %v5284
        %v5296 = vld.sshfl [vmem:[#allocation1 + $0x30] sm:$0xff pattern:$0x75316420]
        %v5301 = vsel %vm2635, %v5234, %v5287
        %v5302 = vsel %vm2635, %v5277, %v5290
        %v5303 = vsel %vm2635, %v5237, %v5293
        %v5304 = vsel %vm2635, %v5278, %v5296
        %v5313 = vrot.slane %v5303, 6
        %v5314 = vrot.slane %v5304, 6
        %v5315 = vrot.slane %v5271, 6
        %v5316 = vrot.slane %v5272, 6
        %v5317 = vrot.slane %v5273, 6
        %v5318 = vrot.slane %v5274, 6
        %v5319 = vrot.slane %v5301, 6
        %v5320 = vrot.slane %v5302, 6
        %vm5329 = vcmask 1041408
        %v5330 = vsel %vm5329, %v5313, %v5313
        %v5331 = vsel %vm5329, %v5314, %v5314
        %v5332 = vsel %vm5329, %v5315, %v5315
        %v5333 = vsel %vm5329, %v5316, %v5316
        %v5334 = vsel %vm5329, %v5317, %v5317
        %v5335 = vsel %vm5329, %v5318, %v5318
        %v5336 = vsel %vm5329, %v5319, %v5319
        %v5337 = vsel %vm5329, %v5320, %v5320
        %v5338 = vadd.f32 %v3092, %v5330
        %v5339 = vadd.f32 %v3093, %v5331
        %v5340 = vadd.f32 %v3094, %v5332
        %v5341 = vadd.f32 %v3095, %v5333
        %v5342 = vadd.f32 %v3096, %v5334
        %v5343 = vadd.f32 %v3097, %v5335
        %v5344 = vadd.f32 %v3098, %v5336
        %v5345 = vadd.f32 %v3099, %v5337
        %s5346 = scalar_lea.vmem %s7, 1
        %v5347 = vld [vmem:[%s5346] sm:$0x1]
        %s5348 = scalar_lea.vmem %s8, 1
        %v5349 = vld [vmem:[%s5348] sm:$0x1]
        %v5350 = vsel %vm495, %v5338, 0.0
        %5351 = vadd.xlane.f32.xlu0 %v5350
        %v5352 = vpop.xlane.xlu0 %5351
        %v5353 = vsel %vm495, %v5339, 0.0
        %5354 = vadd.xlane.f32.xlu0 %v5353
        %v5355 = vpop.xlane.xlu0 %5354
        %v5356 = vsel %vm495, %v5340, 0.0
        %5357 = vadd.xlane.f32.xlu0 %v5356
        %v5358 = vpop.xlane.xlu0 %5357
        %v5359 = vsel %vm495, %v5341, 0.0
        %5360 = vadd.xlane.f32.xlu0 %v5359
        %v5361 = vpop.xlane.xlu0 %5360
        %v5362 = vsel %vm495, %v5342, 0.0
        %5363 = vadd.xlane.f32.xlu0 %v5362
        %v5364 = vpop.xlane.xlu0 %5363
        %v5365 = vsel %vm495, %v5343, 0.0
        %5366 = vadd.xlane.f32.xlu0 %v5365
        %v5367 = vpop.xlane.xlu0 %5366
        %v5368 = vsel %vm495, %v5344, 0.0
        %5369 = vadd.xlane.f32.xlu0 %v5368
        %v5370 = vpop.xlane.xlu0 %5369
        %v5371 = vsel %vm495, %v5345, 0.0
        %5372 = vadd.xlane.f32.xlu0 %v5371
        %v5373 = vpop.xlane.xlu0 %5372
        %v5374 = vmul.f32 %v5352, %v526
        %v5375 = vmul.f32 %v5355, %v526
        %v5376 = vmul.f32 %v5358, %v526
        %v5377 = vmul.f32 %v5361, %v526
        %v5378 = vmul.f32 %v5364, %v526
        %v5379 = vmul.f32 %v5367, %v526
        %v5380 = vmul.f32 %v5370, %v526
        %v5381 = vmul.f32 %v5373, %v526
        %v5382 = vsub.f32 %v5338, %v5374
        %v5383 = vsub.f32 %v5339, %v5375
        %v5384 = vsub.f32 %v5340, %v5376
        %v5385 = vsub.f32 %v5341, %v5377
        %v5386 = vsub.f32 %v5342, %v5378
        %v5387 = vsub.f32 %v5343, %v5379
        %v5388 = vsub.f32 %v5344, %v5380
        %v5389 = vsub.f32 %v5345, %v5381
        %v5390 = vmul.f32 %v5382, %v5382
        %v5391 = vmul.f32 %v5383, %v5383
        %v5392 = vmul.f32 %v5384, %v5384
        %v5393 = vmul.f32 %v5385, %v5385
        %v5394 = vmul.f32 %v5386, %v5386
        %v5395 = vmul.f32 %v5387, %v5387
        %v5396 = vmul.f32 %v5388, %v5388
        %v5397 = vmul.f32 %v5389, %v5389
        %v5398 = vsel %vm495, %v5390, 0.0
        %5399 = vadd.xlane.f32.xlu0 %v5398
        %v5400 = vpop.xlane.xlu0 %5399
        %v5401 = vsel %vm495, %v5391, 0.0
        %5402 = vadd.xlane.f32.xlu0 %v5401
        %v5403 = vpop.xlane.xlu0 %5402
        %v5404 = vsel %vm495, %v5392, 0.0
        %5405 = vadd.xlane.f32.xlu0 %v5404
        %v5406 = vpop.xlane.xlu0 %5405
        %v5407 = vsel %vm495, %v5393, 0.0
        %5408 = vadd.xlane.f32.xlu0 %v5407
        %v5409 = vpop.xlane.xlu0 %5408
        %v5410 = vsel %vm495, %v5394, 0.0
        %5411 = vadd.xlane.f32.xlu0 %v5410
        %v5412 = vpop.xlane.xlu0 %5411
        %v5413 = vsel %vm495, %v5395, 0.0
        %5414 = vadd.xlane.f32.xlu0 %v5413
        %v5415 = vpop.xlane.xlu0 %5414
        %v5416 = vsel %vm495, %v5396, 0.0
        %5417 = vadd.xlane.f32.xlu0 %v5416
        %v5418 = vpop.xlane.xlu0 %5417
        %v5419 = vsel %vm495, %v5397, 0.0
        %5420 = vadd.xlane.f32.xlu0 %v5419
        %v5421 = vpop.xlane.xlu0 %5420
        %v5422 = vmul.f32 %v5400, %v526
        %v5423 = vmul.f32 %v5403, %v526
        %v5424 = vmul.f32 %v5406, %v526
        %v5425 = vmul.f32 %v5409, %v526
        %v5426 = vmul.f32 %v5412, %v526
        %v5427 = vmul.f32 %v5415, %v526
        %v5428 = vmul.f32 %v5418, %v526
        %v5429 = vmul.f32 %v5421, %v526
        %v5430 = vadd.f32 %v5422, 1e-05
        %v5431 = vadd.f32 %v5423, 1e-05
        %v5432 = vadd.f32 %v5424, 1e-05
        %v5433 = vadd.f32 %v5425, 1e-05
        %v5434 = vadd.f32 %v5426, 1e-05
        %v5435 = vadd.f32 %v5427, 1e-05
        %v5436 = vadd.f32 %v5428, 1e-05
        %v5437 = vadd.f32 %v5429, 1e-05
        %v5438 = vrsqrt.pop %v5430
        %v5439 = vmul.f32 %v5438, %v5430
        %v5440 = vmul.f32 %v5439, %v5438
        %v5441 = vmul.f32 0.5, %v5440
        %v5442 = vsub.f32 1.5, %v5441
        %v5443 = vmul.f32 %v5438, %v5442
        %vm5444 = vweird.f32 %v5430
        %vm5445 = vweird.f32 %v5438
        %vm5446 = vmor %vm5444, %vm5445
        %v5447 = vsel %vm5446, %v5438, %v5443
        %v5448 = vrsqrt.pop %v5431
        %v5449 = vmul.f32 %v5448, %v5431
        %v5450 = vmul.f32 %v5449, %v5448
        %v5451 = vmul.f32 0.5, %v5450
        %v5452 = vsub.f32 1.5, %v5451
        %v5453 = vmul.f32 %v5448, %v5452
        %vm5454 = vweird.f32 %v5431
        %vm5455 = vweird.f32 %v5448
        %vm5456 = vmor %vm5454, %vm5455
        %v5457 = vsel %vm5456, %v5448, %v5453
        %v5458 = vrsqrt.pop %v5432
        %v5459 = vmul.f32 %v5458, %v5432
        %v5460 = vmul.f32 %v5459, %v5458
        %v5461 = vmul.f32 0.5, %v5460
        %v5462 = vsub.f32 1.5, %v5461
        %v5463 = vmul.f32 %v5458, %v5462
        %vm5464 = vweird.f32 %v5432
        %vm5465 = vweird.f32 %v5458
        %vm5466 = vmor %vm5464, %vm5465
        %v5467 = vsel %vm5466, %v5458, %v5463
        %v5468 = vrsqrt.pop %v5433
        %v5469 = vmul.f32 %v5468, %v5433
        %v5470 = vmul.f32 %v5469, %v5468
        %v5471 = vmul.f32 0.5, %v5470
        %v5472 = vsub.f32 1.5, %v5471
        %v5473 = vmul.f32 %v5468, %v5472
        %vm5474 = vweird.f32 %v5433
        %vm5475 = vweird.f32 %v5468
        %vm5476 = vmor %vm5474, %vm5475
        %v5477 = vsel %vm5476, %v5468, %v5473
        %v5478 = vrsqrt.pop %v5434
        %v5479 = vmul.f32 %v5478, %v5434
        %v5480 = vmul.f32 %v5479, %v5478
        %v5481 = vmul.f32 0.5, %v5480
        %v5482 = vsub.f32 1.5, %v5481
        %v5483 = vmul.f32 %v5478, %v5482
        %vm5484 = vweird.f32 %v5434
        %vm5485 = vweird.f32 %v5478
        %vm5486 = vmor %vm5484, %vm5485
        %v5487 = vsel %vm5486, %v5478, %v5483
        %v5488 = vrsqrt.pop %v5435
        %v5489 = vmul.f32 %v5488, %v5435
        %v5490 = vmul.f32 %v5489, %v5488
        %v5491 = vmul.f32 0.5, %v5490
        %v5492 = vsub.f32 1.5, %v5491
        %v5493 = vmul.f32 %v5488, %v5492
        %vm5494 = vweird.f32 %v5435
        %vm5495 = vweird.f32 %v5488
        %vm5496 = vmor %vm5494, %vm5495
        %v5497 = vsel %vm5496, %v5488, %v5493
        %v5498 = vrsqrt.pop %v5436
        %v5499 = vmul.f32 %v5498, %v5436
        %v5500 = vmul.f32 %v5499, %v5498
        %v5501 = vmul.f32 0.5, %v5500
        %v5502 = vsub.f32 1.5, %v5501
        %v5503 = vmul.f32 %v5498, %v5502
        %vm5504 = vweird.f32 %v5436
        %vm5505 = vweird.f32 %v5498
        %vm5506 = vmor %vm5504, %vm5505
        %v5507 = vsel %vm5506, %v5498, %v5503
        %v5508 = vrsqrt.pop %v5437
        %v5509 = vmul.f32 %v5508, %v5437
        %v5510 = vmul.f32 %v5509, %v5508
        %v5511 = vmul.f32 0.5, %v5510
        %v5512 = vsub.f32 1.5, %v5511
        %v5513 = vmul.f32 %v5508, %v5512
        %vm5514 = vweird.f32 %v5437
        %vm5515 = vweird.f32 %v5508
        %vm5516 = vmor %vm5514, %vm5515
        %v5517 = vsel %vm5516, %v5508, %v5513
        %v5518 = vmul.f32 %v5382, %v5447
        %v5519 = vmul.f32 %v5383, %v5457
        %v5520 = vmul.f32 %v5384, %v5467
        %v5521 = vmul.f32 %v5385, %v5477
        %v5522 = vmul.f32 %v5386, %v5487
        %v5523 = vmul.f32 %v5387, %v5497
        %v5524 = vmul.f32 %v5388, %v5507
        %v5525 = vmul.f32 %v5389, %v5517
        %v5527 = vperm.slane %v5347, 0
        %v5529 = vmul.f32 %v5518, %v5527
        %v5530 = vmul.f32 %v5519, %v5527
        %v5531 = vmul.f32 %v5520, %v5527
        %v5532 = vmul.f32 %v5521, %v5527
        %v5533 = vmul.f32 %v5522, %v5527
        %v5534 = vmul.f32 %v5523, %v5527
        %v5535 = vmul.f32 %v5524, %v5527
        %v5536 = vmul.f32 %v5525, %v5527
        %v5538 = vperm.slane %v5349, 0
        %v5540 = vadd.f32 %v5529, %v5538
        %v5541 = vadd.f32 %v5530, %v5538
        %v5542 = vadd.f32 %v5531, %v5538
        %v5543 = vadd.f32 %v5532, %v5538
        %v5544 = vadd.f32 %v5533, %v5538
        %v5545 = vadd.f32 %v5534, %v5538
        %v5546 = vadd.f32 %v5535, %v5538
        %v5547 = vadd.f32 %v5536, %v5538
        %s5548 = scalar_lea.vmem %s9, 32
        %v5549 = vld [vmem:[%s5548] sm:$0xff]
        %v5550 = vld [vmem:[%s5548 + $0x8] sm:$0xff]
        %v5551 = vld [vmem:[%s5548 + $0x10] sm:$0xff]
        %v5552 = vld [vmem:[%s5548 + $0x18] sm:$0xff]
        %s5553 = scalar_lea.vmem %s10, 1
        %v5554 = vld [vmem:[%s5553] sm:$0x1]
        %v5556 = vperm.slane %v5554, 0
        %v5559 = vsel %vm495, %v5540, 0
        %v5562 = vsel %vm495, %v5541, 0
        %v5565 = vsel %vm495, %v5542, 0
        %v5568 = vsel %vm495, %v5543, 0
        %v5571 = vsel %vm495, %v5544, 0
        %v5574 = vsel %vm495, %v5545, 0
        %v5577 = vsel %vm495, %v5546, 0
        %v5580 = vsel %vm495, %v5547, 0
        %5582 = vmatpush.msra.mxu0 0.0
        %5583 = vmatpush.msra.mxu0 0.0
        %5584 = vmatpush.msra.mxu0 0.0
        %5585 = vmatpush.msra.mxu0 0.0
        %5586 = vmatpush.msra.mxu0 0.0
        %5587 = vmatpush.msra.mxu0 0.0
        %5588 = vmatpush.msra.mxu0 0.0
        %5589 = vmatpush.msra.mxu0 0.0
        %5590 = vmatpush.msra.mxu0 0.0
        %5591 = vmatpush.msra.mxu0 0.0
        %5592 = vmatpush.msra.mxu0 0.0
        %5593 = vmatpush.msra.mxu0 0.0
        %5594 = vmatpush.msra.mxu0 %v5552
        %5595 = vmatpush.msra.mxu0 %v5551
        %5596 = vmatpush.msra.mxu0 %v5550
        %5597 = vmatpush.msra.mxu0 %v5549
        %5598 = vmatmul.f32.gmra.mxu0 %v5559
        %v5599 = vpop.f32.mrf.mxu0
        %v5600 = vadd.f32 %v5556, %v5599
        %5601 = vmatmul.f32.gmra.mxu0 %v5562
        %v5602 = vpop.f32.mrf.mxu0
        %v5603 = vadd.f32 %v5556, %v5602
        %5604 = vmatmul.f32.gmra.mxu0 %v5565
        %v5605 = vpop.f32.mrf.mxu0
        %v5606 = vadd.f32 %v5556, %v5605
        %5607 = vmatmul.f32.gmra.mxu0 %v5568
        %v5608 = vpop.f32.mrf.mxu0
        %v5609 = vadd.f32 %v5556, %v5608
        %5610 = vmatmul.f32.gmra.mxu0 %v5571
        %v5611 = vpop.f32.mrf.mxu0
        %v5612 = vadd.f32 %v5556, %v5611
        %5613 = vmatmul.f32.gmra.mxu0 %v5574
        %v5614 = vpop.f32.mrf.mxu0
        %v5615 = vadd.f32 %v5556, %v5614
        %5616 = vmatmul.f32.gmra.mxu0 %v5577
        %v5617 = vpop.f32.mrf.mxu0
        %v5618 = vadd.f32 %v5556, %v5617
        %5619 = vmatmul.f32.gmra.mxu0 %v5580
        %v5620 = vpop.f32.mrf.mxu0
        %v5621 = vadd.f32 %v5556, %v5620
        %5622 = vdwg.mxu0
        %v5623 = vmul.f32 %v5600, 0.5
        %v5624 = vmul.f32 %v5603, 0.5
        %v5625 = vmul.f32 %v5606, 0.5
        %v5626 = vmul.f32 %v5609, 0.5
        %v5627 = vmul.f32 %v5612, 0.5
        %v5628 = vmul.f32 %v5615, 0.5
        %v5629 = vmul.f32 %v5618, 0.5
        %v5630 = vmul.f32 %v5621, 0.5
        %v5631 = vmul.f32 %v5600, 0.044715
        %v5632 = vmul.f32 %v5603, 0.044715
        %v5633 = vmul.f32 %v5606, 0.044715
        %v5634 = vmul.f32 %v5609, 0.044715
        %v5635 = vmul.f32 %v5612, 0.044715
        %v5636 = vmul.f32 %v5615, 0.044715
        %v5637 = vmul.f32 %v5618, 0.044715
        %v5638 = vmul.f32 %v5621, 0.044715
        %v5639 = vmul.f32 %v5631, %v5600
        %v5640 = vmul.f32 %v5632, %v5603
        %v5641 = vmul.f32 %v5633, %v5606
        %v5642 = vmul.f32 %v5634, %v5609
        %v5643 = vmul.f32 %v5635, %v5612
        %v5644 = vmul.f32 %v5636, %v5615
        %v5645 = vmul.f32 %v5637, %v5618
        %v5646 = vmul.f32 %v5638, %v5621
        %v5647 = vmul.f32 %v5639, %v5600
        %v5648 = vmul.f32 %v5640, %v5603
        %v5649 = vmul.f32 %v5641, %v5606
        %v5650 = vmul.f32 %v5642, %v5609
        %v5651 = vmul.f32 %v5643, %v5612
        %v5652 = vmul.f32 %v5644, %v5615
        %v5653 = vmul.f32 %v5645, %v5618
        %v5654 = vmul.f32 %v5646, %v5621
        %v5655 = vadd.f32 %v5600, %v5647
        %v5656 = vadd.f32 %v5603, %v5648
        %v5657 = vadd.f32 %v5606, %v5649
        %v5658 = vadd.f32 %v5609, %v5650
        %v5659 = vadd.f32 %v5612, %v5651
        %v5660 = vadd.f32 %v5615, %v5652
        %v5661 = vadd.f32 %v5618, %v5653
        %v5662 = vadd.f32 %v5621, %v5654
        %v5663 = vmul.f32 %v5655, 0.7978846
        %v5664 = vmul.f32 %v5656, 0.7978846
        %v5665 = vmul.f32 %v5657, 0.7978846
        %v5666 = vmul.f32 %v5658, 0.7978846
        %v5667 = vmul.f32 %v5659, 0.7978846
        %v5668 = vmul.f32 %v5660, 0.7978846
        %v5669 = vmul.f32 %v5661, 0.7978846
        %v5670 = vmul.f32 %v5662, 0.7978846
        %v5671 = vtanh.pop %v5663
        %v5672 = vtanh.pop %v5664
        %v5673 = vtanh.pop %v5665
        %v5674 = vtanh.pop %v5666
        %v5675 = vtanh.pop %v5667
        %v5676 = vtanh.pop %v5668
        %v5677 = vtanh.pop %v5669
        %v5678 = vtanh.pop %v5670
        %v5679 = vadd.f32 %v5671, 1.0
        %v5680 = vadd.f32 %v5672, 1.0
        %v5681 = vadd.f32 %v5673, 1.0
        %v5682 = vadd.f32 %v5674, 1.0
        %v5683 = vadd.f32 %v5675, 1.0
        %v5684 = vadd.f32 %v5676, 1.0
        %v5685 = vadd.f32 %v5677, 1.0
        %v5686 = vadd.f32 %v5678, 1.0
        %v5687 = vmul.f32 %v5623, %v5679
        %v5688 = vmul.f32 %v5624, %v5680
        %v5689 = vmul.f32 %v5625, %v5681
        %v5690 = vmul.f32 %v5626, %v5682
        %v5691 = vmul.f32 %v5627, %v5683
        %v5692 = vmul.f32 %v5628, %v5684
        %v5693 = vmul.f32 %v5629, %v5685
        %v5694 = vmul.f32 %v5630, %v5686
        %s5695 = scalar_lea.vmem %s11, 128
        %v5696 = vld [vmem:[%s5695] sm:$0xff]
        %v5697 = vld [vmem:[%s5695 + $0x8] sm:$0xff]
        %v5698 = vld [vmem:[%s5695 + $0x10] sm:$0xff]
        %v5699 = vld [vmem:[%s5695 + $0x18] sm:$0xff]
        %v5700 = vld [vmem:[%s5695 + $0x20] sm:$0xff]
        %v5701 = vld [vmem:[%s5695 + $0x28] sm:$0xff]
        %v5702 = vld [vmem:[%s5695 + $0x30] sm:$0xff]
        %v5703 = vld [vmem:[%s5695 + $0x38] sm:$0xff]
        %v5704 = vld [vmem:[%s5695 + $0x40] sm:$0xff]
        %v5705 = vld [vmem:[%s5695 + $0x48] sm:$0xff]
        %v5706 = vld [vmem:[%s5695 + $0x50] sm:$0xff]
        %v5707 = vld [vmem:[%s5695 + $0x58] sm:$0xff]
        %v5708 = vld [vmem:[%s5695 + $0x60] sm:$0xff]
        %v5709 = vld [vmem:[%s5695 + $0x68] sm:$0xff]
        %v5710 = vld [vmem:[%s5695 + $0x70] sm:$0xff]
        %v5711 = vld [vmem:[%s5695 + $0x78] sm:$0xff]
        %5712 = vmatpush.msra.mxu0 %v5711
        %5713 = vmatpush.msra.mxu0 %v5710
        %5714 = vmatpush.msra.mxu0 %v5709
        %5715 = vmatpush.msra.mxu0 %v5708
        %5716 = vmatpush.msra.mxu0 %v5707
        %5717 = vmatpush.msra.mxu0 %v5706
        %5718 = vmatpush.msra.mxu0 %v5705
        %5719 = vmatpush.msra.mxu0 %v5704
        %5720 = vmatpush.msra.mxu0 %v5703
        %5721 = vmatpush.msra.mxu0 %v5702
        %5722 = vmatpush.msra.mxu0 %v5701
        %5723 = vmatpush.msra.mxu0 %v5700
        %5724 = vmatpush.msra.mxu0 %v5699
        %5725 = vmatpush.msra.mxu0 %v5698
        %5726 = vmatpush.msra.mxu0 %v5697
        %5727 = vmatpush.msra.mxu0 %v5696
        %5728 = vmatmul.f32.gmra.mxu0 %v5687
        %v5729 = vpop.f32.mrf.mxu0
        %v5730 = vadd.f32 0.0, %v5729
        %5731 = vmatmul.f32.gmra.mxu0 %v5688
        %v5732 = vpop.f32.mrf.mxu0
        %v5733 = vadd.f32 0.0, %v5732
        %5734 = vmatmul.f32.gmra.mxu0 %v5689
        %v5735 = vpop.f32.mrf.mxu0
        %v5736 = vadd.f32 0.0, %v5735
        %5737 = vmatmul.f32.gmra.mxu0 %v5690
        %v5738 = vpop.f32.mrf.mxu0
        %v5739 = vadd.f32 0.0, %v5738
        %5740 = vmatmul.f32.gmra.mxu0 %v5691
        %v5741 = vpop.f32.mrf.mxu0
        %v5742 = vadd.f32 0.0, %v5741
        %5743 = vmatmul.f32.gmra.mxu0 %v5692
        %v5744 = vpop.f32.mrf.mxu0
        %v5745 = vadd.f32 0.0, %v5744
        %5746 = vmatmul.f32.gmra.mxu0 %v5693
        %v5747 = vpop.f32.mrf.mxu0
        %v5748 = vadd.f32 0.0, %v5747
        %5749 = vmatmul.f32.gmra.mxu0 %v5694
        %v5750 = vpop.f32.mrf.mxu0
        %v5751 = vadd.f32 0.0, %v5750
        %5752 = vdwg.mxu0
        %v5753 = vadd.f32 %v5338, %v5730
        %v5754 = vadd.f32 %v5339, %v5733
        %v5755 = vadd.f32 %v5340, %v5736
        %v5756 = vadd.f32 %v5341, %v5739
        %v5757 = vadd.f32 %v5342, %v5742
        %v5758 = vadd.f32 %v5343, %v5745
        %v5759 = vadd.f32 %v5344, %v5748
        %v5760 = vadd.f32 %v5345, %v5751
        %s5761 = scalar_lea.vmem %s12, 1
        %v5762 = vld [vmem:[%s5761] sm:$0x1]
        %v5764 = vperm.slane %v5762, 0
        %v5766 = vadd.f32 %v5753, %v5764
        %v5767 = vadd.f32 %v5754, %v5764
        %v5768 = vadd.f32 %v5755, %v5764
        %v5769 = vadd.f32 %v5756, %v5764
        %v5770 = vadd.f32 %v5757, %v5764
        %v5771 = vadd.f32 %v5758, %v5764
        %v5772 = vadd.f32 %v5759, %v5764
        %v5773 = vadd.f32 %v5760, %v5764
        %5774 = vst.msk [vmem:[%s484] sm:$0xff] %vm495, %v5766
        %5775 = vst.msk [vmem:[%s484 + $0x8] sm:$0xff] %vm495, %v5767
        %5776 = vst.msk [vmem:[%s484 + $0x10] sm:$0xff] %vm495, %v5768
        %5777 = vst.msk [vmem:[%s484 + $0x18] sm:$0xff] %vm495, %v5769
        %5778 = vst.msk [vmem:[%s484 + $0x20] sm:$0xff] %vm495, %v5770
        %5779 = vst.msk [vmem:[%s484 + $0x28] sm:$0xff] %vm495, %v5771
        %5780 = vst.msk [vmem:[%s484 + $0x30] sm:$0xff] %vm495, %v5772
        %5781 = vst.msk [vmem:[%s484 + $0x38] sm:$0xff] %vm495, %v5773
        %p5782 = scmp.lt.s32.totalorder %s26, 1
        %s5783 = scalar_select %p5782, %s26, 1
        %s5784 = smul.addr %s5783, 8
        %s5785 = smul.addr %s5784, 8
        %s5786 = scalar_lea.vmem %s14, %s5785
        // Predicated region
        $region81: #{tpu_custom_call.1} parent=75 // pred_check
          %p5787 = pneg %p343
        $region82: #{tpu_custom_call.1} parent=75 // pred_check_branch
          %5789 = sbr.rel (%p5787) target = $region84
        $region83: #{tpu_custom_call.1} parent=75 // pred_region
          _
        $region84: #{tpu_custom_call.1} parent=75 // pred_fallthru
          _
      $region76: #{tpu_custom_call.1} parent=5 // pred_fallthru
        _
      %p5790 = scmp.le.s32.totalorder 2, %s21
      // Predicated region
      $region85: #{tpu_custom_call.1} parent=5 // pred_check
        %p5791 = pneg %p5790
      $region86: #{tpu_custom_call.1} parent=5 // pred_check_branch
        %5793 = sbr.rel (%p5791) target = $region88
      $region87: #{tpu_custom_call.1} parent=5 // pred_region
        %s5794 = ssub.s32 %s21, 2
        // Predicated region
        $region89: #{tpu_custom_call.1} parent=87 // pred_check
          %p5795 = pneg %p349
        $region90: #{tpu_custom_call.1} parent=87 // pred_check_branch
          %5797 = sbr.rel (%p5795) target = $region92
        $region91: #{tpu_custom_call.1} parent=87 // pred_region
          %p5798 = scmp.lt.s32.totalorder %s27, 1
          %s5799 = scalar_select %p5798, %s27, 1
          %s5800 = smul.addr %s5799, 8
          %s5801 = smul.addr %s5800, 8
          %s5802 = scalar_lea.vmem %s14, %s5801
        $region92: #{tpu_custom_call.1} parent=87 // pred_fallthru
          _
      $region88: #{tpu_custom_call.1} parent=5 // pred_fallthru
        _
    $region6: #{tpu_custom_call.1} parent=1 // loop_footer
      %s25 = sadd.s32 1, %s21
    $region7: #{tpu_custom_call.1} parent=1 // loop_footer_branch
      %20 = sbr.rel target = $region3
    $region8: #{tpu_custom_call.1} parent=1 // loop_exit
      _
    %5803 = vsyncpa [#allocation3], 1
    %s5804 = scalar_lea.sflag [#allocation3], 1
    %5805 = vsyncpa %s5804, 1

</llo_original>
